<compile_context>
chip_gen: v6e
topology: v6e:2x2x1
jax: 0.10.0
libtpu: 0.0.40
codegen_flags: <defaults>
</compile_context>

<pallas_src>
import functools
import math

import numpy as np
import jax
import jax.numpy as jnp
from jax import lax
from jax.experimental import pallas as pl
from jax.experimental.pallas import tpu as pltpu

_EPS = 1e-5

# (Cin, Cout, K, pool) per layer, per branch.
_CONV_CFG = {
    "w": [(6, 8, 9, "avg"), (8, 12, 3, "avg"), (12, 16, 3, "avg"), (16, 20, 3, "max")],
    "s": [(1, 4, 3, "avg"), (4, 8, 3, "avg"), (8, 12, 2, "avg")],
    "m": [(1, 4, 3, "avg"), (4, 8, 3, "avg")],
}
_SEQ_LEN = {"w": 365, "s": 90, "m": 26}
_BRANCHES = ("w", "s", "m")
_FC_CFG = [(580, 240), (240, 60), (60, 1)]
_N_EXTRA = 20  # x4 extra features


def _layer_dims(branch):
    """(Cin, Cout, K, pool, L_in, Lc, Lp) for each layer of a branch."""
    L = _SEQ_LEN[branch]
    out = []
    for (cin, cout, K, pool) in _CONV_CFG[branch]:
        Lc = L - K + 1
        Lp = Lc // 2
        out.append((cin, cout, K, pool, L, Lc, Lp))
        L = Lp
    return out


def _branch_out_dims(branch):
    d = _layer_dims(branch)[-1]
    return d[1], d[6]  # (Cout_last, Lp_last)


_N_FEAT = sum(c * l for c, l in (_branch_out_dims(b) for b in _BRANCHES)) + _N_EXTRA
assert _N_FEAT == _FC_CFG[0][0]  # 580


# ----------------------------------------------------------------------------
# The single fused kernel.
# ----------------------------------------------------------------------------
def _soybean_kernel(*refs, B):
    # ----------------------------- unpack refs -----------------------------
    idx = 0
    x_ref = {}
    for br in _BRANCHES:
        x_ref[br] = refs[idx]
        idx += 1
    x4_ref = refs[idx]
    idx += 1

    conv_refs = {}
    for br in _BRANCHES:
        lst = []
        for _ in _CONV_CFG[br]:
            lst.append((refs[idx], refs[idx + 1]))
            idx += 2
        conv_refs[br] = lst

    pool_refs = {}
    for br in _BRANCHES:
        lst = []
        for (_, _, _, pool) in _CONV_CFG[br]:
            n = 1 if pool == "avg" else 2
            lst.append(tuple(refs[idx:idx + n]))
            idx += n
        pool_refs[br] = lst

    w1_ref, b1_ref, w2_ref, b2_ref, w3_ref, b3_ref = refs[idx:idx + 6]
    idx += 6
    o_ref = refs[idx]          # (B, 1) output
    stack_ref = refs[idx + 1]  # (B, max K*Cin, max Lc) conv-operand staging scratch
    feat_ref = refs[idx + 2]   # (B, 580) flattened feature slab scratch
    assert idx + 3 == len(refs)

    # ------------------ conv -> +bias -> ReLU -> BN -> pool -----------------
    feats = {}
    for br in _BRANCHES:
        acts = [x_ref[br][b] for b in range(B)]  # per-sample (Cin, L) activations
        for li, (cin, cout, K, pool, L, Lc, Lp) in enumerate(_layer_dims(br)):
            w2d = conv_refs[br][li][0][...]      # (Cout, K*Cin), cols ordered k*Cin+c
            bias = conv_refs[br][li][1][...]     # (Cout, 1)
            kc = K * cin

            ys, s1, s2 = [], None, None
            for b in range(B):
                x = acts[b]                                       # (Cin, L)
                # Stage K lane-shifted taps as one (K*Cin, Lc) operand.
                for k in range(K):
                    stack_ref[b, k * cin:(k + 1) * cin, 0:Lc] = x[:, k:k + Lc]
                xs = stack_ref[b, 0:kc, 0:Lc]                     # (K*Cin, Lc)
                # conv1d (valid) as a single MXU dot, + bias, ReLU.
                y = jnp.maximum(
                    jnp.dot(w2d, xs, preferred_element_type=jnp.float32) + bias,
                    0.0)
                ys.append(y)
                p1 = jnp.sum(y, axis=1, keepdims=True)
                p2 = jnp.sum(y * y, axis=1, keepdims=True)
                s1 = p1 if s1 is None else s1 + p1
                s2 = p2 if s2 is None else s2 + p2

            # BatchNorm1d: training-mode stats over (batch, length), one pass.
            inv_n = 1.0 / float(B * Lc)
            mean = s1 * inv_n
            var = s2 * inv_n - mean * mean
            scale = lax.rsqrt(var + _EPS)

            # Pool (k=2, s=2) via B-independent (Lc, Lp) selector dots.
            sel = pool_refs[br][li]
            nxt = []
            for b in range(B):
                yn = (ys[b] - mean) * scale
                if pool == "avg":
                    p = jnp.dot(yn, sel[0][...],
                                preferred_element_type=jnp.float32)
                else:  # max pool
                    p = jnp.maximum(
                        jnp.dot(yn, sel[0][...],
                                preferred_element_type=jnp.float32),
                        jnp.dot(yn, sel[1][...],
                                preferred_element_type=jnp.float32))
                nxt.append(p)
            acts = nxt
        feats[br] = acts  # per-sample (Cout_last, Lp_last)

    # --------- flatten + concat (torch order: feature = c*Lp + l) ----------
    feat_ref[...] = jnp.zeros((B, _N_FEAT), jnp.float32)
    for b in range(B):
        off = 0
        for br in _BRANCHES:
            y = feats[br][b]
            C, Lp = _branch_out_dims(br)
            for c in range(C):
                feat_ref[b:b + 1, off:off + Lp] = y[c:c + 1, :]
                off += Lp
        feat_ref[b:b + 1, off:off + _N_EXTRA] = x4_ref[b:b + 1, :]

    # ---- classifier head: relu -> BN -> fc1 -> relu -> BN -> fc2 -> ... ----
    feat = feat_ref[...]  # (B, 580)
    inv_b = 1.0 / float(B)

    def bn(h):  # BatchNorm1d over the batch dim, one-pass stats
        m = jnp.sum(h, axis=0, keepdims=True) * inv_b
        ex2 = jnp.sum(h * h, axis=0, keepdims=True) * inv_b
        return (h - m) * lax.rsqrt(ex2 - m * m + _EPS)

    h = bn(jnp.maximum(feat, 0.0))
    h = bn(jnp.maximum(
        jnp.dot(h, w1_ref[...], preferred_element_type=jnp.float32) + b1_ref[...],
        0.0))
    h = bn(jnp.maximum(
        jnp.dot(h, w2_ref[...], preferred_element_type=jnp.float32) + b2_ref[...],
        0.0))
    o_ref[...] = (jnp.dot(h, w3_ref[...], preferred_element_type=jnp.float32)
                  + b3_ref[...]).astype(o_ref.dtype)


# ----------------------------------------------------------------------------
# B-independent pooling selectors, exact per-layer sizes (values 0, 0.5, 1).
# ----------------------------------------------------------------------------
def _pool_selectors():
    sels = {}
    for br in _BRANCHES:
        per = []
        for (_ci, _co, _K, pool, _L, Lc, Lp) in _layer_dims(br):
            l = np.arange(Lc)[:, None]
            j = np.arange(Lp)[None, :]
            even = (l == 2 * j).astype(np.float32)
            odd = (l == 2 * j + 1).astype(np.float32)
            if pool == "avg":
                per.append((jnp.asarray(0.5 * (even + odd)),))
            else:
                per.append((jnp.asarray(even), jnp.asarray(odd)))
        sels[br] = per
    return sels


# ----------------------------------------------------------------------------
# Parameter init (matches the module's kaiming_uniform / zero-bias init in
# distribution; exact torch RNG parity is not reproducible).  Conv weights are
# stored kernel-ready as (Cout, K*Cin) with column order k*Cin + c; fc weights
# as (in, out).
# ----------------------------------------------------------------------------
def _kaiming_uniform(key, shape, fan_in):
    bound = math.sqrt(2.0) * math.sqrt(3.0 / fan_in)
    return jax.random.uniform(key, shape, jnp.float32, -bound, bound)


def init_params(key):
    params = {}
    for br in _BRANCHES:
        for i, (cin, cout, K, _pool) in enumerate(_CONV_CFG[br]):
            key, sub = jax.random.split(key)
            w = _kaiming_uniform(sub, (cout, K * cin), cin * K)
            b = jnp.zeros((cout, 1), jnp.float32)
            params[f"{br}_conv{i + 1}"] = (w, b)
    for i, (fin, fout) in enumerate(_FC_CFG):
        key, sub = jax.random.split(key)
        w = _kaiming_uniform(sub, (fin, fout), fin)
        b = jnp.zeros((1, fout), jnp.float32)
        params[f"c_fc{i + 1}"] = (w, b)
    return params


# ----------------------------------------------------------------------------
# Full forward: a single fused pallas_call (no XLA glue between stages).
# ----------------------------------------------------------------------------
def soybean_forward(params, x1, x2, x3, x4):
    B = x1.shape[0]
    sels = _pool_selectors()

    inputs = [x1, x2, x3, x4]
    for br in _BRANCHES:
        for i in range(len(_CONV_CFG[br])):
            inputs.extend(params[f"{br}_conv{i + 1}"])
    for br in _BRANCHES:
        for s in sels[br]:
            inputs.extend(s)
    for i in range(len(_FC_CFG)):
        inputs.extend(params[f"c_fc{i + 1}"])

    max_kc = max(K * cin for br in _BRANCHES for (cin, _co, K, _p) in _CONV_CFG[br])
    max_lc = max(d[5] for br in _BRANCHES for d in _layer_dims(br))

    return pl.pallas_call(
        functools.partial(_soybean_kernel, B=B),
        out_shape=jax.ShapeDtypeStruct((B, 1), jnp.float32),
        in_specs=[pl.BlockSpec(memory_space=pltpu.MemorySpace.VMEM)] * len(inputs),
        out_specs=pl.BlockSpec(memory_space=pltpu.MemorySpace.VMEM),
        scratch_shapes=[
            pltpu.VMEM((B, max_kc, max_lc), jnp.float32),   # conv operand staging
            pltpu.VMEM((B, _N_FEAT), jnp.float32),          # flattened feature slab
        ],
        compiler_params=pltpu.CompilerParams(vmem_limit_bytes=32 * 1024 * 1024),
    )(*inputs)


if __name__ == "__main__":
    key = jax.random.PRNGKey(0)
    pkey, k1, k2, k3, k4 = jax.random.split(key, 5)
    params = init_params(pkey)

    B = 2
    x1 = jax.random.normal(k1, (B, 6, 365), jnp.float32)   # weather: 6 vars x 365
    x2 = jax.random.normal(k2, (B, 1, 90), jnp.float32)    # soil profile
    x3 = jax.random.normal(k3, (B, 1, 26), jnp.float32)    # management series
    x4 = jax.random.normal(k4, (B, 20), jnp.float32)       # extra features

    out = jax.jit(soybean_forward)(params, x1, x2, x3, x4)
    out = jax.block_until_ready(out)
    assert out.shape == (B, 1) and out.dtype == jnp.float32
    print("KERNEL_OK")
</pallas_src>

<mosaic_0001>
module attributes {stable_mosaic.version = 11 : i64} {
  func.func @_soybean_kernel(%arg0: memref<2x6x365xf32, #tpu.memory_space<vmem>>, %arg1: memref<2x1x90xf32, #tpu.memory_space<vmem>>, %arg2: memref<2x1x26xf32, #tpu.memory_space<vmem>>, %arg3: memref<2x20xf32, #tpu.memory_space<vmem>>, %arg4: memref<8x54xf32, #tpu.memory_space<vmem>>, %arg5: memref<8x1xf32, #tpu.memory_space<vmem>>, %arg6: memref<12x24xf32, #tpu.memory_space<vmem>>, %arg7: memref<12x1xf32, #tpu.memory_space<vmem>>, %arg8: memref<16x36xf32, #tpu.memory_space<vmem>>, %arg9: memref<16x1xf32, #tpu.memory_space<vmem>>, %arg10: memref<20x48xf32, #tpu.memory_space<vmem>>, %arg11: memref<20x1xf32, #tpu.memory_space<vmem>>, %arg12: memref<4x3xf32, #tpu.memory_space<vmem>>, %arg13: memref<4x1xf32, #tpu.memory_space<vmem>>, %arg14: memref<8x12xf32, #tpu.memory_space<vmem>>, %arg15: memref<8x1xf32, #tpu.memory_space<vmem>>, %arg16: memref<12x16xf32, #tpu.memory_space<vmem>>, %arg17: memref<12x1xf32, #tpu.memory_space<vmem>>, %arg18: memref<4x3xf32, #tpu.memory_space<vmem>>, %arg19: memref<4x1xf32, #tpu.memory_space<vmem>>, %arg20: memref<8x12xf32, #tpu.memory_space<vmem>>, %arg21: memref<8x1xf32, #tpu.memory_space<vmem>>, %arg22: memref<357x178xf32, #tpu.memory_space<vmem>>, %arg23: memref<176x88xf32, #tpu.memory_space<vmem>>, %arg24: memref<86x43xf32, #tpu.memory_space<vmem>>, %arg25: memref<41x20xf32, #tpu.memory_space<vmem>>, %arg26: memref<41x20xf32, #tpu.memory_space<vmem>>, %arg27: memref<88x44xf32, #tpu.memory_space<vmem>>, %arg28: memref<42x21xf32, #tpu.memory_space<vmem>>, %arg29: memref<20x10xf32, #tpu.memory_space<vmem>>, %arg30: memref<24x12xf32, #tpu.memory_space<vmem>>, %arg31: memref<10x5xf32, #tpu.memory_space<vmem>>, %arg32: memref<580x240xf32, #tpu.memory_space<vmem>>, %arg33: memref<1x240xf32, #tpu.memory_space<vmem>>, %arg34: memref<240x60xf32, #tpu.memory_space<vmem>>, %arg35: memref<1x60xf32, #tpu.memory_space<vmem>>, %arg36: memref<60x1xf32, #tpu.memory_space<vmem>>, %arg37: memref<1x1xf32, #tpu.memory_space<vmem>>, %arg38: memref<2x1xf32, #tpu.memory_space<vmem>>, %arg39: memref<2x54x357xf32, #tpu.memory_space<vmem>>, %arg40: memref<2x580xf32, #tpu.memory_space<vmem>>) attributes {dimension_semantics = [], scalar_prefetch = 0 : i64, scratch_operands = 2 : i64, tpu.core_type = #tpu.core_type<tc>} {
    %c0 = arith.constant 0 : index
    %c0_0 = arith.constant 0 : index
    %c0_1 = arith.constant 0 : index
    %0 = vector.load %arg0[%c0, %c0_0, %c0_1] : memref<2x6x365xf32, #tpu.memory_space<vmem>>, vector<1x6x365xf32>
    %1 = vector.shape_cast %0 : vector<1x6x365xf32> to vector<6x365xf32>
    %c1 = arith.constant 1 : index
    %c0_2 = arith.constant 0 : index
    %c0_3 = arith.constant 0 : index
    %2 = vector.load %arg0[%c1, %c0_2, %c0_3] : memref<2x6x365xf32, #tpu.memory_space<vmem>>, vector<1x6x365xf32>
    %3 = vector.shape_cast %2 : vector<1x6x365xf32> to vector<6x365xf32>
    %c0_4 = arith.constant 0 : index
    %c0_5 = arith.constant 0 : index
    %4 = vector.load %arg4[%c0_4, %c0_5] : memref<8x54xf32, #tpu.memory_space<vmem>>, vector<8x54xf32>
    %c0_6 = arith.constant 0 : index
    %c0_7 = arith.constant 0 : index
    %5 = vector.load %arg5[%c0_6, %c0_7] : memref<8x1xf32, #tpu.memory_space<vmem>>, vector<8x1xf32>
    %6 = vector.extract_strided_slice %1 {offsets = [0, 0], sizes = [6, 357], strides = [1, 1]} : vector<6x365xf32> to vector<6x357xf32>
    %c0_8 = arith.constant 0 : index
    %c0_9 = arith.constant 0 : index
    %c0_10 = arith.constant 0 : index
    %7 = vector.load %arg39[%c0_8, %c0_9, %c0_10] : memref<2x54x357xf32, #tpu.memory_space<vmem>>, vector<1x6x357xf32>
    %8 = vector.shape_cast %7 : vector<1x6x357xf32> to vector<6x357xf32>
    %9 = vector.shape_cast %6 : vector<6x357xf32> to vector<1x6x357xf32>
    tpu.vector_store %arg39[%c0_8, %c0_9, %c0_10], %9 {strides = array<i32>} : memref<2x54x357xf32, #tpu.memory_space<vmem>>, vector<1x6x357xf32>,
    %10 = vector.extract_strided_slice %1 {offsets = [0, 1], sizes = [6, 357], strides = [1, 1]} : vector<6x365xf32> to vector<6x357xf32>
    %c0_11 = arith.constant 0 : index
    %c6 = arith.constant 6 : index
    %c0_12 = arith.constant 0 : index
    %11 = vector.load %arg39[%c0_11, %c6, %c0_12] : memref<2x54x357xf32, #tpu.memory_space<vmem>>, vector<1x6x357xf32>
    %12 = vector.shape_cast %11 : vector<1x6x357xf32> to vector<6x357xf32>
    %13 = vector.shape_cast %10 : vector<6x357xf32> to vector<1x6x357xf32>
    tpu.vector_store %arg39[%c0_11, %c6, %c0_12], %13 {strides = array<i32>} : memref<2x54x357xf32, #tpu.memory_space<vmem>>, vector<1x6x357xf32>,
    %14 = vector.extract_strided_slice %1 {offsets = [0, 2], sizes = [6, 357], strides = [1, 1]} : vector<6x365xf32> to vector<6x357xf32>
    %c0_13 = arith.constant 0 : index
    %c12 = arith.constant 12 : index
    %c0_14 = arith.constant 0 : index
    %15 = vector.load %arg39[%c0_13, %c12, %c0_14] : memref<2x54x357xf32, #tpu.memory_space<vmem>>, vector<1x6x357xf32>
    %16 = vector.shape_cast %15 : vector<1x6x357xf32> to vector<6x357xf32>
    %17 = vector.shape_cast %14 : vector<6x357xf32> to vector<1x6x357xf32>
    tpu.vector_store %arg39[%c0_13, %c12, %c0_14], %17 {strides = array<i32>} : memref<2x54x357xf32, #tpu.memory_space<vmem>>, vector<1x6x357xf32>,
    %18 = vector.extract_strided_slice %1 {offsets = [0, 3], sizes = [6, 357], strides = [1, 1]} : vector<6x365xf32> to vector<6x357xf32>
    %c0_15 = arith.constant 0 : index
    %c18 = arith.constant 18 : index
    %c0_16 = arith.constant 0 : index
    %19 = vector.load %arg39[%c0_15, %c18, %c0_16] : memref<2x54x357xf32, #tpu.memory_space<vmem>>, vector<1x6x357xf32>
    %20 = vector.shape_cast %19 : vector<1x6x357xf32> to vector<6x357xf32>
    %21 = vector.shape_cast %18 : vector<6x357xf32> to vector<1x6x357xf32>
    tpu.vector_store %arg39[%c0_15, %c18, %c0_16], %21 {strides = array<i32>} : memref<2x54x357xf32, #tpu.memory_space<vmem>>, vector<1x6x357xf32>,
    %22 = vector.extract_strided_slice %1 {offsets = [0, 4], sizes = [6, 357], strides = [1, 1]} : vector<6x365xf32> to vector<6x357xf32>
    %c0_17 = arith.constant 0 : index
    %c24 = arith.constant 24 : index
    %c0_18 = arith.constant 0 : index
    %23 = vector.load %arg39[%c0_17, %c24, %c0_18] : memref<2x54x357xf32, #tpu.memory_space<vmem>>, vector<1x6x357xf32>
    %24 = vector.shape_cast %23 : vector<1x6x357xf32> to vector<6x357xf32>
    %25 = vector.shape_cast %22 : vector<6x357xf32> to vector<1x6x357xf32>
    tpu.vector_store %arg39[%c0_17, %c24, %c0_18], %25 {strides = array<i32>} : memref<2x54x357xf32, #tpu.memory_space<vmem>>, vector<1x6x357xf32>,
    %26 = vector.extract_strided_slice %1 {offsets = [0, 5], sizes = [6, 357], strides = [1, 1]} : vector<6x365xf32> to vector<6x357xf32>
    %c0_19 = arith.constant 0 : index
    %c30 = arith.constant 30 : index
    %c0_20 = arith.constant 0 : index
    %27 = vector.load %arg39[%c0_19, %c30, %c0_20] : memref<2x54x357xf32, #tpu.memory_space<vmem>>, vector<1x6x357xf32>
    %28 = vector.shape_cast %27 : vector<1x6x357xf32> to vector<6x357xf32>
    %29 = vector.shape_cast %26 : vector<6x357xf32> to vector<1x6x357xf32>
    tpu.vector_store %arg39[%c0_19, %c30, %c0_20], %29 {strides = array<i32>} : memref<2x54x357xf32, #tpu.memory_space<vmem>>, vector<1x6x357xf32>,
    %30 = vector.extract_strided_slice %1 {offsets = [0, 6], sizes = [6, 357], strides = [1, 1]} : vector<6x365xf32> to vector<6x357xf32>
    %c0_21 = arith.constant 0 : index
    %c36 = arith.constant 36 : index
    %c0_22 = arith.constant 0 : index
    %31 = vector.load %arg39[%c0_21, %c36, %c0_22] : memref<2x54x357xf32, #tpu.memory_space<vmem>>, vector<1x6x357xf32>
    %32 = vector.shape_cast %31 : vector<1x6x357xf32> to vector<6x357xf32>
    %33 = vector.shape_cast %30 : vector<6x357xf32> to vector<1x6x357xf32>
    tpu.vector_store %arg39[%c0_21, %c36, %c0_22], %33 {strides = array<i32>} : memref<2x54x357xf32, #tpu.memory_space<vmem>>, vector<1x6x357xf32>,
    %34 = vector.extract_strided_slice %1 {offsets = [0, 7], sizes = [6, 357], strides = [1, 1]} : vector<6x365xf32> to vector<6x357xf32>
    %c0_23 = arith.constant 0 : index
    %c42 = arith.constant 42 : index
    %c0_24 = arith.constant 0 : index
    %35 = vector.load %arg39[%c0_23, %c42, %c0_24] : memref<2x54x357xf32, #tpu.memory_space<vmem>>, vector<1x6x357xf32>
    %36 = vector.shape_cast %35 : vector<1x6x357xf32> to vector<6x357xf32>
    %37 = vector.shape_cast %34 : vector<6x357xf32> to vector<1x6x357xf32>
    tpu.vector_store %arg39[%c0_23, %c42, %c0_24], %37 {strides = array<i32>} : memref<2x54x357xf32, #tpu.memory_space<vmem>>, vector<1x6x357xf32>,
    %38 = vector.extract_strided_slice %1 {offsets = [0, 8], sizes = [6, 357], strides = [1, 1]} : vector<6x365xf32> to vector<6x357xf32>
    %c0_25 = arith.constant 0 : index
    %c48 = arith.constant 48 : index
    %c0_26 = arith.constant 0 : index
    %39 = vector.load %arg39[%c0_25, %c48, %c0_26] : memref<2x54x357xf32, #tpu.memory_space<vmem>>, vector<1x6x357xf32>
    %40 = vector.shape_cast %39 : vector<1x6x357xf32> to vector<6x357xf32>
    %41 = vector.shape_cast %38 : vector<6x357xf32> to vector<1x6x357xf32>
    tpu.vector_store %arg39[%c0_25, %c48, %c0_26], %41 {strides = array<i32>} : memref<2x54x357xf32, #tpu.memory_space<vmem>>, vector<1x6x357xf32>,
    %c0_27 = arith.constant 0 : index
    %c0_28 = arith.constant 0 : index
    %c0_29 = arith.constant 0 : index
    %42 = vector.load %arg39[%c0_27, %c0_28, %c0_29] : memref<2x54x357xf32, #tpu.memory_space<vmem>>, vector<1x54x357xf32>
    %43 = vector.shape_cast %42 : vector<1x54x357xf32> to vector<54x357xf32>
    %cst = arith.constant dense<0.000000e+00> : vector<8x357xf32>
    %44 = tpu.matmul %4, %43, %cst {dimension_numbers = #tpu.dot_dimension_numbers<[1], [0], [0], [1], [0, 0, 1, 1], [], []>} : vector<8x54xf32>, vector<54x357xf32>, vector<8x357xf32> -> vector<8x357xf32>
    %45 = vector.broadcast %5 : vector<8x1xf32> to vector<8x357xf32>
    %46 = arith.addf %44, %45 : vector<8x357xf32>
    %cst_30 = arith.constant 0.000000e+00 : f32
    %47 = vector.broadcast %cst_30 : f32 to vector<8x357xf32>
    %48 = arith.maximumf %46, %47 : vector<8x357xf32>
    %cst_31 = arith.constant dense<0.000000e+00> : vector<8xf32>
    %49 = vector.multi_reduction <add>, %48, %cst_31 [1] : vector<8x357xf32> to vector<8xf32>
    %50 = vector.shape_cast %49 : vector<8xf32> to vector<8x1xf32>
    %51 = arith.mulf %48, %48 : vector<8x357xf32>
    %cst_32 = arith.constant dense<0.000000e+00> : vector<8xf32>
    %52 = vector.multi_reduction <add>, %51, %cst_32 [1] : vector<8x357xf32> to vector<8xf32>
    %53 = vector.shape_cast %52 : vector<8xf32> to vector<8x1xf32>
    %54 = vector.extract_strided_slice %3 {offsets = [0, 0], sizes = [6, 357], strides = [1, 1]} : vector<6x365xf32> to vector<6x357xf32>
    %c1_33 = arith.constant 1 : index
    %c0_34 = arith.constant 0 : index
    %c0_35 = arith.constant 0 : index
    %55 = vector.load %arg39[%c1_33, %c0_34, %c0_35] : memref<2x54x357xf32, #tpu.memory_space<vmem>>, vector<1x6x357xf32>
    %56 = vector.shape_cast %55 : vector<1x6x357xf32> to vector<6x357xf32>
    %57 = vector.shape_cast %54 : vector<6x357xf32> to vector<1x6x357xf32>
    tpu.vector_store %arg39[%c1_33, %c0_34, %c0_35], %57 {strides = array<i32>} : memref<2x54x357xf32, #tpu.memory_space<vmem>>, vector<1x6x357xf32>,
    %58 = vector.extract_strided_slice %3 {offsets = [0, 1], sizes = [6, 357], strides = [1, 1]} : vector<6x365xf32> to vector<6x357xf32>
    %c1_36 = arith.constant 1 : index
    %c6_37 = arith.constant 6 : index
    %c0_38 = arith.constant 0 : index
    %59 = vector.load %arg39[%c1_36, %c6_37, %c0_38] : memref<2x54x357xf32, #tpu.memory_space<vmem>>, vector<1x6x357xf32>
    %60 = vector.shape_cast %59 : vector<1x6x357xf32> to vector<6x357xf32>
    %61 = vector.shape_cast %58 : vector<6x357xf32> to vector<1x6x357xf32>
    tpu.vector_store %arg39[%c1_36, %c6_37, %c0_38], %61 {strides = array<i32>} : memref<2x54x357xf32, #tpu.memory_space<vmem>>, vector<1x6x357xf32>,
    %62 = vector.extract_strided_slice %3 {offsets = [0, 2], sizes = [6, 357], strides = [1, 1]} : vector<6x365xf32> to vector<6x357xf32>
    %c1_39 = arith.constant 1 : index
    %c12_40 = arith.constant 12 : index
    %c0_41 = arith.constant 0 : index
    %63 = vector.load %arg39[%c1_39, %c12_40, %c0_41] : memref<2x54x357xf32, #tpu.memory_space<vmem>>, vector<1x6x357xf32>
    %64 = vector.shape_cast %63 : vector<1x6x357xf32> to vector<6x357xf32>
    %65 = vector.shape_cast %62 : vector<6x357xf32> to vector<1x6x357xf32>
    tpu.vector_store %arg39[%c1_39, %c12_40, %c0_41], %65 {strides = array<i32>} : memref<2x54x357xf32, #tpu.memory_space<vmem>>, vector<1x6x357xf32>,
    %66 = vector.extract_strided_slice %3 {offsets = [0, 3], sizes = [6, 357], strides = [1, 1]} : vector<6x365xf32> to vector<6x357xf32>
    %c1_42 = arith.constant 1 : index
    %c18_43 = arith.constant 18 : index
    %c0_44 = arith.constant 0 : index
    %67 = vector.load %arg39[%c1_42, %c18_43, %c0_44] : memref<2x54x357xf32, #tpu.memory_space<vmem>>, vector<1x6x357xf32>
    %68 = vector.shape_cast %67 : vector<1x6x357xf32> to vector<6x357xf32>
    %69 = vector.shape_cast %66 : vector<6x357xf32> to vector<1x6x357xf32>
    tpu.vector_store %arg39[%c1_42, %c18_43, %c0_44], %69 {strides = array<i32>} : memref<2x54x357xf32, #tpu.memory_space<vmem>>, vector<1x6x357xf32>,
    %70 = vector.extract_strided_slice %3 {offsets = [0, 4], sizes = [6, 357], strides = [1, 1]} : vector<6x365xf32> to vector<6x357xf32>
    %c1_45 = arith.constant 1 : index
    %c24_46 = arith.constant 24 : index
    %c0_47 = arith.constant 0 : index
    %71 = vector.load %arg39[%c1_45, %c24_46, %c0_47] : memref<2x54x357xf32, #tpu.memory_space<vmem>>, vector<1x6x357xf32>
    %72 = vector.shape_cast %71 : vector<1x6x357xf32> to vector<6x357xf32>
    %73 = vector.shape_cast %70 : vector<6x357xf32> to vector<1x6x357xf32>
    tpu.vector_store %arg39[%c1_45, %c24_46, %c0_47], %73 {strides = array<i32>} : memref<2x54x357xf32, #tpu.memory_space<vmem>>, vector<1x6x357xf32>,
    %74 = vector.extract_strided_slice %3 {offsets = [0, 5], sizes = [6, 357], strides = [1, 1]} : vector<6x365xf32> to vector<6x357xf32>
    %c1_48 = arith.constant 1 : index
    %c30_49 = arith.constant 30 : index
    %c0_50 = arith.constant 0 : index
    %75 = vector.load %arg39[%c1_48, %c30_49, %c0_50] : memref<2x54x357xf32, #tpu.memory_space<vmem>>, vector<1x6x357xf32>
    %76 = vector.shape_cast %75 : vector<1x6x357xf32> to vector<6x357xf32>
    %77 = vector.shape_cast %74 : vector<6x357xf32> to vector<1x6x357xf32>
    tpu.vector_store %arg39[%c1_48, %c30_49, %c0_50], %77 {strides = array<i32>} : memref<2x54x357xf32, #tpu.memory_space<vmem>>, vector<1x6x357xf32>,
    %78 = vector.extract_strided_slice %3 {offsets = [0, 6], sizes = [6, 357], strides = [1, 1]} : vector<6x365xf32> to vector<6x357xf32>
    %c1_51 = arith.constant 1 : index
    %c36_52 = arith.constant 36 : index
    %c0_53 = arith.constant 0 : index
    %79 = vector.load %arg39[%c1_51, %c36_52, %c0_53] : memref<2x54x357xf32, #tpu.memory_space<vmem>>, vector<1x6x357xf32>
    %80 = vector.shape_cast %79 : vector<1x6x357xf32> to vector<6x357xf32>
    %81 = vector.shape_cast %78 : vector<6x357xf32> to vector<1x6x357xf32>
    tpu.vector_store %arg39[%c1_51, %c36_52, %c0_53], %81 {strides = array<i32>} : memref<2x54x357xf32, #tpu.memory_space<vmem>>, vector<1x6x357xf32>,
    %82 = vector.extract_strided_slice %3 {offsets = [0, 7], sizes = [6, 357], strides = [1, 1]} : vector<6x365xf32> to vector<6x357xf32>
    %c1_54 = arith.constant 1 : index
    %c42_55 = arith.constant 42 : index
    %c0_56 = arith.constant 0 : index
    %83 = vector.load %arg39[%c1_54, %c42_55, %c0_56] : memref<2x54x357xf32, #tpu.memory_space<vmem>>, vector<1x6x357xf32>
    %84 = vector.shape_cast %83 : vector<1x6x357xf32> to vector<6x357xf32>
    %85 = vector.shape_cast %82 : vector<6x357xf32> to vector<1x6x357xf32>
    tpu.vector_store %arg39[%c1_54, %c42_55, %c0_56], %85 {strides = array<i32>} : memref<2x54x357xf32, #tpu.memory_space<vmem>>, vector<1x6x357xf32>,
    %86 = vector.extract_strided_slice %3 {offsets = [0, 8], sizes = [6, 357], strides = [1, 1]} : vector<6x365xf32> to vector<6x357xf32>
    %c1_57 = arith.constant 1 : index
    %c48_58 = arith.constant 48 : index
    %c0_59 = arith.constant 0 : index
    %87 = vector.load %arg39[%c1_57, %c48_58, %c0_59] : memref<2x54x357xf32, #tpu.memory_space<vmem>>, vector<1x6x357xf32>
    %88 = vector.shape_cast %87 : vector<1x6x357xf32> to vector<6x357xf32>
    %89 = vector.shape_cast %86 : vector<6x357xf32> to vector<1x6x357xf32>
    tpu.vector_store %arg39[%c1_57, %c48_58, %c0_59], %89 {strides = array<i32>} : memref<2x54x357xf32, #tpu.memory_space<vmem>>, vector<1x6x357xf32>,
    %c1_60 = arith.constant 1 : index
    %c0_61 = arith.constant 0 : index
    %c0_62 = arith.constant 0 : index
    %90 = vector.load %arg39[%c1_60, %c0_61, %c0_62] : memref<2x54x357xf32, #tpu.memory_space<vmem>>, vector<1x54x357xf32>
    %91 = vector.shape_cast %90 : vector<1x54x357xf32> to vector<54x357xf32>
    %cst_63 = arith.constant dense<0.000000e+00> : vector<8x357xf32>
    %92 = tpu.matmul %4, %91, %cst_63 {dimension_numbers = #tpu.dot_dimension_numbers<[1], [0], [0], [1], [0, 0, 1, 1], [], []>} : vector<8x54xf32>, vector<54x357xf32>, vector<8x357xf32> -> vector<8x357xf32>
    %93 = vector.broadcast %5 : vector<8x1xf32> to vector<8x357xf32>
    %94 = arith.addf %92, %93 : vector<8x357xf32>
    %cst_64 = arith.constant 0.000000e+00 : f32
    %95 = vector.broadcast %cst_64 : f32 to vector<8x357xf32>
    %96 = arith.maximumf %94, %95 : vector<8x357xf32>
    %cst_65 = arith.constant dense<0.000000e+00> : vector<8xf32>
    %97 = vector.multi_reduction <add>, %96, %cst_65 [1] : vector<8x357xf32> to vector<8xf32>
    %98 = vector.shape_cast %97 : vector<8xf32> to vector<8x1xf32>
    %99 = arith.mulf %96, %96 : vector<8x357xf32>
    %cst_66 = arith.constant dense<0.000000e+00> : vector<8xf32>
    %100 = vector.multi_reduction <add>, %99, %cst_66 [1] : vector<8x357xf32> to vector<8xf32>
    %101 = vector.shape_cast %100 : vector<8xf32> to vector<8x1xf32>
    %102 = arith.addf %50, %98 : vector<8x1xf32>
    %103 = arith.addf %53, %101 : vector<8x1xf32>
    %cst_67 = arith.constant 0.00140056026 : f32
    %104 = vector.broadcast %cst_67 : f32 to vector<8x1xf32>
    %105 = arith.mulf %102, %104 : vector<8x1xf32>
    %cst_68 = arith.constant 0.00140056026 : f32
    %106 = vector.broadcast %cst_68 : f32 to vector<8x1xf32>
    %107 = arith.mulf %103, %106 : vector<8x1xf32>
    %108 = arith.mulf %105, %105 : vector<8x1xf32>
    %109 = arith.subf %107, %108 : vector<8x1xf32>
    %cst_69 = arith.constant 9.99999974E-6 : f32
    %110 = vector.broadcast %cst_69 : f32 to vector<8x1xf32>
    %111 = arith.addf %109, %110 : vector<8x1xf32>
    %112 = math.rsqrt %111 : vector<8x1xf32>
    %113 = vector.broadcast %105 : vector<8x1xf32> to vector<8x357xf32>
    %114 = arith.subf %48, %113 : vector<8x357xf32>
    %115 = vector.broadcast %112 : vector<8x1xf32> to vector<8x357xf32>
    %116 = arith.mulf %114, %115 : vector<8x357xf32>
    %c0_70 = arith.constant 0 : index
    %c0_71 = arith.constant 0 : index
    %117 = vector.load %arg22[%c0_70, %c0_71] : memref<357x178xf32, #tpu.memory_space<vmem>>, vector<357x178xf32>
    %cst_72 = arith.constant dense<0.000000e+00> : vector<8x178xf32>
    %118 = tpu.matmul %116, %117, %cst_72 {dimension_numbers = #tpu.dot_dimension_numbers<[1], [0], [0], [1], [0, 0, 1, 1], [], []>} : vector<8x357xf32>, vector<357x178xf32>, vector<8x178xf32> -> vector<8x178xf32>
    %119 = vector.broadcast %105 : vector<8x1xf32> to vector<8x357xf32>
    %120 = arith.subf %96, %119 : vector<8x357xf32>
    %121 = vector.broadcast %112 : vector<8x1xf32> to vector<8x357xf32>
    %122 = arith.mulf %120, %121 : vector<8x357xf32>
    %c0_73 = arith.constant 0 : index
    %c0_74 = arith.constant 0 : index
    %123 = vector.load %arg22[%c0_73, %c0_74] : memref<357x178xf32, #tpu.memory_space<vmem>>, vector<357x178xf32>
    %cst_75 = arith.constant dense<0.000000e+00> : vector<8x178xf32>
    %124 = tpu.matmul %122, %123, %cst_75 {dimension_numbers = #tpu.dot_dimension_numbers<[1], [0], [0], [1], [0, 0, 1, 1], [], []>} : vector<8x357xf32>, vector<357x178xf32>, vector<8x178xf32> -> vector<8x178xf32>
    %c0_76 = arith.constant 0 : index
    %c0_77 = arith.constant 0 : index
    %125 = vector.load %arg6[%c0_76, %c0_77] : memref<12x24xf32, #tpu.memory_space<vmem>>, vector<12x24xf32>
    %c0_78 = arith.constant 0 : index
    %c0_79 = arith.constant 0 : index
    %126 = vector.load %arg7[%c0_78, %c0_79] : memref<12x1xf32, #tpu.memory_space<vmem>>, vector<12x1xf32>
    %127 = vector.extract_strided_slice %118 {offsets = [0, 0], sizes = [8, 176], strides = [1, 1]} : vector<8x178xf32> to vector<8x176xf32>
    %c0_80 = arith.constant 0 : index
    %c0_81 = arith.constant 0 : index
    %c0_82 = arith.constant 0 : index
    %128 = vector.load %arg39[%c0_80, %c0_81, %c0_82] : memref<2x54x357xf32, #tpu.memory_space<vmem>>, vector<1x8x176xf32>
    %129 = vector.shape_cast %128 : vector<1x8x176xf32> to vector<8x176xf32>
    %130 = vector.shape_cast %127 : vector<8x176xf32> to vector<1x8x176xf32>
    tpu.vector_store %arg39[%c0_80, %c0_81, %c0_82], %130 {strides = array<i32>} : memref<2x54x357xf32, #tpu.memory_space<vmem>>, vector<1x8x176xf32>,
    %131 = vector.extract_strided_slice %118 {offsets = [0, 1], sizes = [8, 176], strides = [1, 1]} : vector<8x178xf32> to vector<8x176xf32>
    %c0_83 = arith.constant 0 : index
    %c8 = arith.constant 8 : index
    %c0_84 = arith.constant 0 : index
    %132 = vector.load %arg39[%c0_83, %c8, %c0_84] : memref<2x54x357xf32, #tpu.memory_space<vmem>>, vector<1x8x176xf32>
    %133 = vector.shape_cast %132 : vector<1x8x176xf32> to vector<8x176xf32>
    %134 = vector.shape_cast %131 : vector<8x176xf32> to vector<1x8x176xf32>
    tpu.vector_store %arg39[%c0_83, %c8, %c0_84], %134 {strides = array<i32>} : memref<2x54x357xf32, #tpu.memory_space<vmem>>, vector<1x8x176xf32>,
    %135 = vector.extract_strided_slice %118 {offsets = [0, 2], sizes = [8, 176], strides = [1, 1]} : vector<8x178xf32> to vector<8x176xf32>
    %c0_85 = arith.constant 0 : index
    %c16 = arith.constant 16 : index
    %c0_86 = arith.constant 0 : index
    %136 = vector.load %arg39[%c0_85, %c16, %c0_86] : memref<2x54x357xf32, #tpu.memory_space<vmem>>, vector<1x8x176xf32>
    %137 = vector.shape_cast %136 : vector<1x8x176xf32> to vector<8x176xf32>
    %138 = vector.shape_cast %135 : vector<8x176xf32> to vector<1x8x176xf32>
    tpu.vector_store %arg39[%c0_85, %c16, %c0_86], %138 {strides = array<i32>} : memref<2x54x357xf32, #tpu.memory_space<vmem>>, vector<1x8x176xf32>,
    %c0_87 = arith.constant 0 : index
    %c0_88 = arith.constant 0 : index
    %c0_89 = arith.constant 0 : index
    %139 = vector.load %arg39[%c0_87, %c0_88, %c0_89] : memref<2x54x357xf32, #tpu.memory_space<vmem>>, vector<1x24x176xf32>
    %140 = vector.shape_cast %139 : vector<1x24x176xf32> to vector<24x176xf32>
    %cst_90 = arith.constant dense<0.000000e+00> : vector<12x176xf32>
    %141 = tpu.matmul %125, %140, %cst_90 {dimension_numbers = #tpu.dot_dimension_numbers<[1], [0], [0], [1], [0, 0, 1, 1], [], []>} : vector<12x24xf32>, vector<24x176xf32>, vector<12x176xf32> -> vector<12x176xf32>
    %142 = vector.broadcast %126 : vector<12x1xf32> to vector<12x176xf32>
    %143 = arith.addf %141, %142 : vector<12x176xf32>
    %cst_91 = arith.constant 0.000000e+00 : f32
    %144 = vector.broadcast %cst_91 : f32 to vector<12x176xf32>
    %145 = arith.maximumf %143, %144 : vector<12x176xf32>
    %cst_92 = arith.constant dense<0.000000e+00> : vector<12xf32>
    %146 = vector.multi_reduction <add>, %145, %cst_92 [1] : vector<12x176xf32> to vector<12xf32>
    %147 = vector.shape_cast %146 : vector<12xf32> to vector<12x1xf32>
    %148 = arith.mulf %145, %145 : vector<12x176xf32>
    %cst_93 = arith.constant dense<0.000000e+00> : vector<12xf32>
    %149 = vector.multi_reduction <add>, %148, %cst_93 [1] : vector<12x176xf32> to vector<12xf32>
    %150 = vector.shape_cast %149 : vector<12xf32> to vector<12x1xf32>
    %151 = vector.extract_strided_slice %124 {offsets = [0, 0], sizes = [8, 176], strides = [1, 1]} : vector<8x178xf32> to vector<8x176xf32>
    %c1_94 = arith.constant 1 : index
    %c0_95 = arith.constant 0 : index
    %c0_96 = arith.constant 0 : index
    %152 = vector.load %arg39[%c1_94, %c0_95, %c0_96] : memref<2x54x357xf32, #tpu.memory_space<vmem>>, vector<1x8x176xf32>
    %153 = vector.shape_cast %152 : vector<1x8x176xf32> to vector<8x176xf32>
    %154 = vector.shape_cast %151 : vector<8x176xf32> to vector<1x8x176xf32>
    tpu.vector_store %arg39[%c1_94, %c0_95, %c0_96], %154 {strides = array<i32>} : memref<2x54x357xf32, #tpu.memory_space<vmem>>, vector<1x8x176xf32>,
    %155 = vector.extract_strided_slice %124 {offsets = [0, 1], sizes = [8, 176], strides = [1, 1]} : vector<8x178xf32> to vector<8x176xf32>
    %c1_97 = arith.constant 1 : index
    %c8_98 = arith.constant 8 : index
    %c0_99 = arith.constant 0 : index
    %156 = vector.load %arg39[%c1_97, %c8_98, %c0_99] : memref<2x54x357xf32, #tpu.memory_space<vmem>>, vector<1x8x176xf32>
    %157 = vector.shape_cast %156 : vector<1x8x176xf32> to vector<8x176xf32>
    %158 = vector.shape_cast %155 : vector<8x176xf32> to vector<1x8x176xf32>
    tpu.vector_store %arg39[%c1_97, %c8_98, %c0_99], %158 {strides = array<i32>} : memref<2x54x357xf32, #tpu.memory_space<vmem>>, vector<1x8x176xf32>,
    %159 = vector.extract_strided_slice %124 {offsets = [0, 2], sizes = [8, 176], strides = [1, 1]} : vector<8x178xf32> to vector<8x176xf32>
    %c1_100 = arith.constant 1 : index
    %c16_101 = arith.constant 16 : index
    %c0_102 = arith.constant 0 : index
    %160 = vector.load %arg39[%c1_100, %c16_101, %c0_102] : memref<2x54x357xf32, #tpu.memory_space<vmem>>, vector<1x8x176xf32>
    %161 = vector.shape_cast %160 : vector<1x8x176xf32> to vector<8x176xf32>
    %162 = vector.shape_cast %159 : vector<8x176xf32> to vector<1x8x176xf32>
    tpu.vector_store %arg39[%c1_100, %c16_101, %c0_102], %162 {strides = array<i32>} : memref<2x54x357xf32, #tpu.memory_space<vmem>>, vector<1x8x176xf32>,
    %c1_103 = arith.constant 1 : index
    %c0_104 = arith.constant 0 : index
    %c0_105 = arith.constant 0 : index
    %163 = vector.load %arg39[%c1_103, %c0_104, %c0_105] : memref<2x54x357xf32, #tpu.memory_space<vmem>>, vector<1x24x176xf32>
    %164 = vector.shape_cast %163 : vector<1x24x176xf32> to vector<24x176xf32>
    %cst_106 = arith.constant dense<0.000000e+00> : vector<12x176xf32>
    %165 = tpu.matmul %125, %164, %cst_106 {dimension_numbers = #tpu.dot_dimension_numbers<[1], [0], [0], [1], [0, 0, 1, 1], [], []>} : vector<12x24xf32>, vector<24x176xf32>, vector<12x176xf32> -> vector<12x176xf32>
    %166 = vector.broadcast %126 : vector<12x1xf32> to vector<12x176xf32>
    %167 = arith.addf %165, %166 : vector<12x176xf32>
    %cst_107 = arith.constant 0.000000e+00 : f32
    %168 = vector.broadcast %cst_107 : f32 to vector<12x176xf32>
    %169 = arith.maximumf %167, %168 : vector<12x176xf32>
    %cst_108 = arith.constant dense<0.000000e+00> : vector<12xf32>
    %170 = vector.multi_reduction <add>, %169, %cst_108 [1] : vector<12x176xf32> to vector<12xf32>
    %171 = vector.shape_cast %170 : vector<12xf32> to vector<12x1xf32>
    %172 = arith.mulf %169, %169 : vector<12x176xf32>
    %cst_109 = arith.constant dense<0.000000e+00> : vector<12xf32>
    %173 = vector.multi_reduction <add>, %172, %cst_109 [1] : vector<12x176xf32> to vector<12xf32>
    %174 = vector.shape_cast %173 : vector<12xf32> to vector<12x1xf32>
    %175 = arith.addf %147, %171 : vector<12x1xf32>
    %176 = arith.addf %150, %174 : vector<12x1xf32>
    %cst_110 = arith.constant 0.00284090918 : f32
    %177 = vector.broadcast %cst_110 : f32 to vector<12x1xf32>
    %178 = arith.mulf %175, %177 : vector<12x1xf32>
    %cst_111 = arith.constant 0.00284090918 : f32
    %179 = vector.broadcast %cst_111 : f32 to vector<12x1xf32>
    %180 = arith.mulf %176, %179 : vector<12x1xf32>
    %181 = arith.mulf %178, %178 : vector<12x1xf32>
    %182 = arith.subf %180, %181 : vector<12x1xf32>
    %cst_112 = arith.constant 9.99999974E-6 : f32
    %183 = vector.broadcast %cst_112 : f32 to vector<12x1xf32>
    %184 = arith.addf %182, %183 : vector<12x1xf32>
    %185 = math.rsqrt %184 : vector<12x1xf32>
    %186 = vector.broadcast %178 : vector<12x1xf32> to vector<12x176xf32>
    %187 = arith.subf %145, %186 : vector<12x176xf32>
    %188 = vector.broadcast %185 : vector<12x1xf32> to vector<12x176xf32>
    %189 = arith.mulf %187, %188 : vector<12x176xf32>
    %c0_113 = arith.constant 0 : index
    %c0_114 = arith.constant 0 : index
    %190 = vector.load %arg23[%c0_113, %c0_114] : memref<176x88xf32, #tpu.memory_space<vmem>>, vector<176x88xf32>
    %cst_115 = arith.constant dense<0.000000e+00> : vector<12x88xf32>
    %191 = tpu.matmul %189, %190, %cst_115 {dimension_numbers = #tpu.dot_dimension_numbers<[1], [0], [0], [1], [0, 0, 1, 1], [], []>} : vector<12x176xf32>, vector<176x88xf32>, vector<12x88xf32> -> vector<12x88xf32>
    %192 = vector.broadcast %178 : vector<12x1xf32> to vector<12x176xf32>
    %193 = arith.subf %169, %192 : vector<12x176xf32>
    %194 = vector.broadcast %185 : vector<12x1xf32> to vector<12x176xf32>
    %195 = arith.mulf %193, %194 : vector<12x176xf32>
    %c0_116 = arith.constant 0 : index
    %c0_117 = arith.constant 0 : index
    %196 = vector.load %arg23[%c0_116, %c0_117] : memref<176x88xf32, #tpu.memory_space<vmem>>, vector<176x88xf32>
    %cst_118 = arith.constant dense<0.000000e+00> : vector<12x88xf32>
    %197 = tpu.matmul %195, %196, %cst_118 {dimension_numbers = #tpu.dot_dimension_numbers<[1], [0], [0], [1], [0, 0, 1, 1], [], []>} : vector<12x176xf32>, vector<176x88xf32>, vector<12x88xf32> -> vector<12x88xf32>
    %c0_119 = arith.constant 0 : index
    %c0_120 = arith.constant 0 : index
    %198 = vector.load %arg8[%c0_119, %c0_120] : memref<16x36xf32, #tpu.memory_space<vmem>>, vector<16x36xf32>
    %c0_121 = arith.constant 0 : index
    %c0_122 = arith.constant 0 : index
    %199 = vector.load %arg9[%c0_121, %c0_122] : memref<16x1xf32, #tpu.memory_space<vmem>>, vector<16x1xf32>
    %200 = vector.extract_strided_slice %191 {offsets = [0, 0], sizes = [12, 86], strides = [1, 1]} : vector<12x88xf32> to vector<12x86xf32>
    %c0_123 = arith.constant 0 : index
    %c0_124 = arith.constant 0 : index
    %c0_125 = arith.constant 0 : index
    %201 = vector.load %arg39[%c0_123, %c0_124, %c0_125] : memref<2x54x357xf32, #tpu.memory_space<vmem>>, vector<1x12x86xf32>
    %202 = vector.shape_cast %201 : vector<1x12x86xf32> to vector<12x86xf32>
    %203 = vector.shape_cast %200 : vector<12x86xf32> to vector<1x12x86xf32>
    tpu.vector_store %arg39[%c0_123, %c0_124, %c0_125], %203 {strides = array<i32>} : memref<2x54x357xf32, #tpu.memory_space<vmem>>, vector<1x12x86xf32>,
    %204 = vector.extract_strided_slice %191 {offsets = [0, 1], sizes = [12, 86], strides = [1, 1]} : vector<12x88xf32> to vector<12x86xf32>
    %c0_126 = arith.constant 0 : index
    %c12_127 = arith.constant 12 : index
    %c0_128 = arith.constant 0 : index
    %205 = vector.load %arg39[%c0_126, %c12_127, %c0_128] : memref<2x54x357xf32, #tpu.memory_space<vmem>>, vector<1x12x86xf32>
    %206 = vector.shape_cast %205 : vector<1x12x86xf32> to vector<12x86xf32>
    %207 = vector.shape_cast %204 : vector<12x86xf32> to vector<1x12x86xf32>
    tpu.vector_store %arg39[%c0_126, %c12_127, %c0_128], %207 {strides = array<i32>} : memref<2x54x357xf32, #tpu.memory_space<vmem>>, vector<1x12x86xf32>,
    %208 = vector.extract_strided_slice %191 {offsets = [0, 2], sizes = [12, 86], strides = [1, 1]} : vector<12x88xf32> to vector<12x86xf32>
    %c0_129 = arith.constant 0 : index
    %c24_130 = arith.constant 24 : index
    %c0_131 = arith.constant 0 : index
    %209 = vector.load %arg39[%c0_129, %c24_130, %c0_131] : memref<2x54x357xf32, #tpu.memory_space<vmem>>, vector<1x12x86xf32>
    %210 = vector.shape_cast %209 : vector<1x12x86xf32> to vector<12x86xf32>
    %211 = vector.shape_cast %208 : vector<12x86xf32> to vector<1x12x86xf32>
    tpu.vector_store %arg39[%c0_129, %c24_130, %c0_131], %211 {strides = array<i32>} : memref<2x54x357xf32, #tpu.memory_space<vmem>>, vector<1x12x86xf32>,
    %c0_132 = arith.constant 0 : index
    %c0_133 = arith.constant 0 : index
    %c0_134 = arith.constant 0 : index
    %212 = vector.load %arg39[%c0_132, %c0_133, %c0_134] : memref<2x54x357xf32, #tpu.memory_space<vmem>>, vector<1x36x86xf32>
    %213 = vector.shape_cast %212 : vector<1x36x86xf32> to vector<36x86xf32>
    %cst_135 = arith.constant dense<0.000000e+00> : vector<16x86xf32>
    %214 = tpu.matmul %198, %213, %cst_135 {dimension_numbers = #tpu.dot_dimension_numbers<[1], [0], [0], [1], [0, 0, 1, 1], [], []>} : vector<16x36xf32>, vector<36x86xf32>, vector<16x86xf32> -> vector<16x86xf32>
    %215 = vector.broadcast %199 : vector<16x1xf32> to vector<16x86xf32>
    %216 = arith.addf %214, %215 : vector<16x86xf32>
    %cst_136 = arith.constant 0.000000e+00 : f32
    %217 = vector.broadcast %cst_136 : f32 to vector<16x86xf32>
    %218 = arith.maximumf %216, %217 : vector<16x86xf32>
    %cst_137 = arith.constant dense<0.000000e+00> : vector<16xf32>
    %219 = vector.multi_reduction <add>, %218, %cst_137 [1] : vector<16x86xf32> to vector<16xf32>
    %220 = vector.shape_cast %219 : vector<16xf32> to vector<16x1xf32>
    %221 = arith.mulf %218, %218 : vector<16x86xf32>
    %cst_138 = arith.constant dense<0.000000e+00> : vector<16xf32>
    %222 = vector.multi_reduction <add>, %221, %cst_138 [1] : vector<16x86xf32> to vector<16xf32>
    %223 = vector.shape_cast %222 : vector<16xf32> to vector<16x1xf32>
    %224 = vector.extract_strided_slice %197 {offsets = [0, 0], sizes = [12, 86], strides = [1, 1]} : vector<12x88xf32> to vector<12x86xf32>
    %c1_139 = arith.constant 1 : index
    %c0_140 = arith.constant 0 : index
    %c0_141 = arith.constant 0 : index
    %225 = vector.load %arg39[%c1_139, %c0_140, %c0_141] : memref<2x54x357xf32, #tpu.memory_space<vmem>>, vector<1x12x86xf32>
    %226 = vector.shape_cast %225 : vector<1x12x86xf32> to vector<12x86xf32>
    %227 = vector.shape_cast %224 : vector<12x86xf32> to vector<1x12x86xf32>
    tpu.vector_store %arg39[%c1_139, %c0_140, %c0_141], %227 {strides = array<i32>} : memref<2x54x357xf32, #tpu.memory_space<vmem>>, vector<1x12x86xf32>,
    %228 = vector.extract_strided_slice %197 {offsets = [0, 1], sizes = [12, 86], strides = [1, 1]} : vector<12x88xf32> to vector<12x86xf32>
    %c1_142 = arith.constant 1 : index
    %c12_143 = arith.constant 12 : index
    %c0_144 = arith.constant 0 : index
    %229 = vector.load %arg39[%c1_142, %c12_143, %c0_144] : memref<2x54x357xf32, #tpu.memory_space<vmem>>, vector<1x12x86xf32>
    %230 = vector.shape_cast %229 : vector<1x12x86xf32> to vector<12x86xf32>
    %231 = vector.shape_cast %228 : vector<12x86xf32> to vector<1x12x86xf32>
    tpu.vector_store %arg39[%c1_142, %c12_143, %c0_144], %231 {strides = array<i32>} : memref<2x54x357xf32, #tpu.memory_space<vmem>>, vector<1x12x86xf32>,
    %232 = vector.extract_strided_slice %197 {offsets = [0, 2], sizes = [12, 86], strides = [1, 1]} : vector<12x88xf32> to vector<12x86xf32>
    %c1_145 = arith.constant 1 : index
    %c24_146 = arith.constant 24 : index
    %c0_147 = arith.constant 0 : index
    %233 = vector.load %arg39[%c1_145, %c24_146, %c0_147] : memref<2x54x357xf32, #tpu.memory_space<vmem>>, vector<1x12x86xf32>
    %234 = vector.shape_cast %233 : vector<1x12x86xf32> to vector<12x86xf32>
    %235 = vector.shape_cast %232 : vector<12x86xf32> to vector<1x12x86xf32>
    tpu.vector_store %arg39[%c1_145, %c24_146, %c0_147], %235 {strides = array<i32>} : memref<2x54x357xf32, #tpu.memory_space<vmem>>, vector<1x12x86xf32>,
    %c1_148 = arith.constant 1 : index
    %c0_149 = arith.constant 0 : index
    %c0_150 = arith.constant 0 : index
    %236 = vector.load %arg39[%c1_148, %c0_149, %c0_150] : memref<2x54x357xf32, #tpu.memory_space<vmem>>, vector<1x36x86xf32>
    %237 = vector.shape_cast %236 : vector<1x36x86xf32> to vector<36x86xf32>
    %cst_151 = arith.constant dense<0.000000e+00> : vector<16x86xf32>
    %238 = tpu.matmul %198, %237, %cst_151 {dimension_numbers = #tpu.dot_dimension_numbers<[1], [0], [0], [1], [0, 0, 1, 1], [], []>} : vector<16x36xf32>, vector<36x86xf32>, vector<16x86xf32> -> vector<16x86xf32>
    %239 = vector.broadcast %199 : vector<16x1xf32> to vector<16x86xf32>
    %240 = arith.addf %238, %239 : vector<16x86xf32>
    %cst_152 = arith.constant 0.000000e+00 : f32
    %241 = vector.broadcast %cst_152 : f32 to vector<16x86xf32>
    %242 = arith.maximumf %240, %241 : vector<16x86xf32>
    %cst_153 = arith.constant dense<0.000000e+00> : vector<16xf32>
    %243 = vector.multi_reduction <add>, %242, %cst_153 [1] : vector<16x86xf32> to vector<16xf32>
    %244 = vector.shape_cast %243 : vector<16xf32> to vector<16x1xf32>
    %245 = arith.mulf %242, %242 : vector<16x86xf32>
    %cst_154 = arith.constant dense<0.000000e+00> : vector<16xf32>
    %246 = vector.multi_reduction <add>, %245, %cst_154 [1] : vector<16x86xf32> to vector<16xf32>
    %247 = vector.shape_cast %246 : vector<16xf32> to vector<16x1xf32>
    %248 = arith.addf %220, %244 : vector<16x1xf32>
    %249 = arith.addf %223, %247 : vector<16x1xf32>
    %cst_155 = arith.constant 0.00581395347 : f32
    %250 = vector.broadcast %cst_155 : f32 to vector<16x1xf32>
    %251 = arith.mulf %248, %250 : vector<16x1xf32>
    %cst_156 = arith.constant 0.00581395347 : f32
    %252 = vector.broadcast %cst_156 : f32 to vector<16x1xf32>
    %253 = arith.mulf %249, %252 : vector<16x1xf32>
    %254 = arith.mulf %251, %251 : vector<16x1xf32>
    %255 = arith.subf %253, %254 : vector<16x1xf32>
    %cst_157 = arith.constant 9.99999974E-6 : f32
    %256 = vector.broadcast %cst_157 : f32 to vector<16x1xf32>
    %257 = arith.addf %255, %256 : vector<16x1xf32>
    %258 = math.rsqrt %257 : vector<16x1xf32>
    %259 = vector.broadcast %251 : vector<16x1xf32> to vector<16x86xf32>
    %260 = arith.subf %218, %259 : vector<16x86xf32>
    %261 = vector.broadcast %258 : vector<16x1xf32> to vector<16x86xf32>
    %262 = arith.mulf %260, %261 : vector<16x86xf32>
    %c0_158 = arith.constant 0 : index
    %c0_159 = arith.constant 0 : index
    %263 = vector.load %arg24[%c0_158, %c0_159] : memref<86x43xf32, #tpu.memory_space<vmem>>, vector<86x43xf32>
    %cst_160 = arith.constant dense<0.000000e+00> : vector<16x43xf32>
    %264 = tpu.matmul %262, %263, %cst_160 {dimension_numbers = #tpu.dot_dimension_numbers<[1], [0], [0], [1], [0, 0, 1, 1], [], []>} : vector<16x86xf32>, vector<86x43xf32>, vector<16x43xf32> -> vector<16x43xf32>
    %265 = vector.broadcast %251 : vector<16x1xf32> to vector<16x86xf32>
    %266 = arith.subf %242, %265 : vector<16x86xf32>
    %267 = vector.broadcast %258 : vector<16x1xf32> to vector<16x86xf32>
    %268 = arith.mulf %266, %267 : vector<16x86xf32>
    %c0_161 = arith.constant 0 : index
    %c0_162 = arith.constant 0 : index
    %269 = vector.load %arg24[%c0_161, %c0_162] : memref<86x43xf32, #tpu.memory_space<vmem>>, vector<86x43xf32>
    %cst_163 = arith.constant dense<0.000000e+00> : vector<16x43xf32>
    %270 = tpu.matmul %268, %269, %cst_163 {dimension_numbers = #tpu.dot_dimension_numbers<[1], [0], [0], [1], [0, 0, 1, 1], [], []>} : vector<16x86xf32>, vector<86x43xf32>, vector<16x43xf32> -> vector<16x43xf32>
    %c0_164 = arith.constant 0 : index
    %c0_165 = arith.constant 0 : index
    %271 = vector.load %arg10[%c0_164, %c0_165] : memref<20x48xf32, #tpu.memory_space<vmem>>, vector<20x48xf32>
    %c0_166 = arith.constant 0 : index
    %c0_167 = arith.constant 0 : index
    %272 = vector.load %arg11[%c0_166, %c0_167] : memref<20x1xf32, #tpu.memory_space<vmem>>, vector<20x1xf32>
    %273 = vector.extract_strided_slice %264 {offsets = [0, 0], sizes = [16, 41], strides = [1, 1]} : vector<16x43xf32> to vector<16x41xf32>
    %c0_168 = arith.constant 0 : index
    %c0_169 = arith.constant 0 : index
    %c0_170 = arith.constant 0 : index
    %274 = vector.load %arg39[%c0_168, %c0_169, %c0_170] : memref<2x54x357xf32, #tpu.memory_space<vmem>>, vector<1x16x41xf32>
    %275 = vector.shape_cast %274 : vector<1x16x41xf32> to vector<16x41xf32>
    %276 = vector.shape_cast %273 : vector<16x41xf32> to vector<1x16x41xf32>
    tpu.vector_store %arg39[%c0_168, %c0_169, %c0_170], %276 {strides = array<i32>} : memref<2x54x357xf32, #tpu.memory_space<vmem>>, vector<1x16x41xf32>,
    %277 = vector.extract_strided_slice %264 {offsets = [0, 1], sizes = [16, 41], strides = [1, 1]} : vector<16x43xf32> to vector<16x41xf32>
    %c0_171 = arith.constant 0 : index
    %c16_172 = arith.constant 16 : index
    %c0_173 = arith.constant 0 : index
    %278 = vector.load %arg39[%c0_171, %c16_172, %c0_173] : memref<2x54x357xf32, #tpu.memory_space<vmem>>, vector<1x16x41xf32>
    %279 = vector.shape_cast %278 : vector<1x16x41xf32> to vector<16x41xf32>
    %280 = vector.shape_cast %277 : vector<16x41xf32> to vector<1x16x41xf32>
    tpu.vector_store %arg39[%c0_171, %c16_172, %c0_173], %280 {strides = array<i32>} : memref<2x54x357xf32, #tpu.memory_space<vmem>>, vector<1x16x41xf32>,
    %281 = vector.extract_strided_slice %264 {offsets = [0, 2], sizes = [16, 41], strides = [1, 1]} : vector<16x43xf32> to vector<16x41xf32>
    %c0_174 = arith.constant 0 : index
    %c32 = arith.constant 32 : index
    %c0_175 = arith.constant 0 : index
    %282 = vector.load %arg39[%c0_174, %c32, %c0_175] : memref<2x54x357xf32, #tpu.memory_space<vmem>>, vector<1x16x41xf32>
    %283 = vector.shape_cast %282 : vector<1x16x41xf32> to vector<16x41xf32>
    %284 = vector.shape_cast %281 : vector<16x41xf32> to vector<1x16x41xf32>
    tpu.vector_store %arg39[%c0_174, %c32, %c0_175], %284 {strides = array<i32>} : memref<2x54x357xf32, #tpu.memory_space<vmem>>, vector<1x16x41xf32>,
    %c0_176 = arith.constant 0 : index
    %c0_177 = arith.constant 0 : index
    %c0_178 = arith.constant 0 : index
    %285 = vector.load %arg39[%c0_176, %c0_177, %c0_178] : memref<2x54x357xf32, #tpu.memory_space<vmem>>, vector<1x48x41xf32>
    %286 = vector.shape_cast %285 : vector<1x48x41xf32> to vector<48x41xf32>
    %cst_179 = arith.constant dense<0.000000e+00> : vector<20x41xf32>
    %287 = tpu.matmul %271, %286, %cst_179 {dimension_numbers = #tpu.dot_dimension_numbers<[1], [0], [0], [1], [0, 0, 1, 1], [], []>} : vector<20x48xf32>, vector<48x41xf32>, vector<20x41xf32> -> vector<20x41xf32>
    %288 = vector.broadcast %272 : vector<20x1xf32> to vector<20x41xf32>
    %289 = arith.addf %287, %288 : vector<20x41xf32>
    %cst_180 = arith.constant 0.000000e+00 : f32
    %290 = vector.broadcast %cst_180 : f32 to vector<20x41xf32>
    %291 = arith.maximumf %289, %290 : vector<20x41xf32>
    %cst_181 = arith.constant dense<0.000000e+00> : vector<20xf32>
    %292 = vector.multi_reduction <add>, %291, %cst_181 [1] : vector<20x41xf32> to vector<20xf32>
    %293 = vector.shape_cast %292 : vector<20xf32> to vector<20x1xf32>
    %294 = arith.mulf %291, %291 : vector<20x41xf32>
    %cst_182 = arith.constant dense<0.000000e+00> : vector<20xf32>
    %295 = vector.multi_reduction <add>, %294, %cst_182 [1] : vector<20x41xf32> to vector<20xf32>
    %296 = vector.shape_cast %295 : vector<20xf32> to vector<20x1xf32>
    %297 = vector.extract_strided_slice %270 {offsets = [0, 0], sizes = [16, 41], strides = [1, 1]} : vector<16x43xf32> to vector<16x41xf32>
    %c1_183 = arith.constant 1 : index
    %c0_184 = arith.constant 0 : index
    %c0_185 = arith.constant 0 : index
    %298 = vector.load %arg39[%c1_183, %c0_184, %c0_185] : memref<2x54x357xf32, #tpu.memory_space<vmem>>, vector<1x16x41xf32>
    %299 = vector.shape_cast %298 : vector<1x16x41xf32> to vector<16x41xf32>
    %300 = vector.shape_cast %297 : vector<16x41xf32> to vector<1x16x41xf32>
    tpu.vector_store %arg39[%c1_183, %c0_184, %c0_185], %300 {strides = array<i32>} : memref<2x54x357xf32, #tpu.memory_space<vmem>>, vector<1x16x41xf32>,
    %301 = vector.extract_strided_slice %270 {offsets = [0, 1], sizes = [16, 41], strides = [1, 1]} : vector<16x43xf32> to vector<16x41xf32>
    %c1_186 = arith.constant 1 : index
    %c16_187 = arith.constant 16 : index
    %c0_188 = arith.constant 0 : index
    %302 = vector.load %arg39[%c1_186, %c16_187, %c0_188] : memref<2x54x357xf32, #tpu.memory_space<vmem>>, vector<1x16x41xf32>
    %303 = vector.shape_cast %302 : vector<1x16x41xf32> to vector<16x41xf32>
    %304 = vector.shape_cast %301 : vector<16x41xf32> to vector<1x16x41xf32>
    tpu.vector_store %arg39[%c1_186, %c16_187, %c0_188], %304 {strides = array<i32>} : memref<2x54x357xf32, #tpu.memory_space<vmem>>, vector<1x16x41xf32>,
    %305 = vector.extract_strided_slice %270 {offsets = [0, 2], sizes = [16, 41], strides = [1, 1]} : vector<16x43xf32> to vector<16x41xf32>
    %c1_189 = arith.constant 1 : index
    %c32_190 = arith.constant 32 : index
    %c0_191 = arith.constant 0 : index
    %306 = vector.load %arg39[%c1_189, %c32_190, %c0_191] : memref<2x54x357xf32, #tpu.memory_space<vmem>>, vector<1x16x41xf32>
    %307 = vector.shape_cast %306 : vector<1x16x41xf32> to vector<16x41xf32>
    %308 = vector.shape_cast %305 : vector<16x41xf32> to vector<1x16x41xf32>
    tpu.vector_store %arg39[%c1_189, %c32_190, %c0_191], %308 {strides = array<i32>} : memref<2x54x357xf32, #tpu.memory_space<vmem>>, vector<1x16x41xf32>,
    %c1_192 = arith.constant 1 : index
    %c0_193 = arith.constant 0 : index
    %c0_194 = arith.constant 0 : index
    %309 = vector.load %arg39[%c1_192, %c0_193, %c0_194] : memref<2x54x357xf32, #tpu.memory_space<vmem>>, vector<1x48x41xf32>
    %310 = vector.shape_cast %309 : vector<1x48x41xf32> to vector<48x41xf32>
    %cst_195 = arith.constant dense<0.000000e+00> : vector<20x41xf32>
    %311 = tpu.matmul %271, %310, %cst_195 {dimension_numbers = #tpu.dot_dimension_numbers<[1], [0], [0], [1], [0, 0, 1, 1], [], []>} : vector<20x48xf32>, vector<48x41xf32>, vector<20x41xf32> -> vector<20x41xf32>
    %312 = vector.broadcast %272 : vector<20x1xf32> to vector<20x41xf32>
    %313 = arith.addf %311, %312 : vector<20x41xf32>
    %cst_196 = arith.constant 0.000000e+00 : f32
    %314 = vector.broadcast %cst_196 : f32 to vector<20x41xf32>
    %315 = arith.maximumf %313, %314 : vector<20x41xf32>
    %cst_197 = arith.constant dense<0.000000e+00> : vector<20xf32>
    %316 = vector.multi_reduction <add>, %315, %cst_197 [1] : vector<20x41xf32> to vector<20xf32>
    %317 = vector.shape_cast %316 : vector<20xf32> to vector<20x1xf32>
    %318 = arith.mulf %315, %315 : vector<20x41xf32>
    %cst_198 = arith.constant dense<0.000000e+00> : vector<20xf32>
    %319 = vector.multi_reduction <add>, %318, %cst_198 [1] : vector<20x41xf32> to vector<20xf32>
    %320 = vector.shape_cast %319 : vector<20xf32> to vector<20x1xf32>
    %321 = arith.addf %293, %317 : vector<20x1xf32>
    %322 = arith.addf %296, %320 : vector<20x1xf32>
    %cst_199 = arith.constant 0.0121951215 : f32
    %323 = vector.broadcast %cst_199 : f32 to vector<20x1xf32>
    %324 = arith.mulf %321, %323 : vector<20x1xf32>
    %cst_200 = arith.constant 0.0121951215 : f32
    %325 = vector.broadcast %cst_200 : f32 to vector<20x1xf32>
    %326 = arith.mulf %322, %325 : vector<20x1xf32>
    %327 = arith.mulf %324, %324 : vector<20x1xf32>
    %328 = arith.subf %326, %327 : vector<20x1xf32>
    %cst_201 = arith.constant 9.99999974E-6 : f32
    %329 = vector.broadcast %cst_201 : f32 to vector<20x1xf32>
    %330 = arith.addf %328, %329 : vector<20x1xf32>
    %331 = math.rsqrt %330 : vector<20x1xf32>
    %332 = vector.broadcast %324 : vector<20x1xf32> to vector<20x41xf32>
    %333 = arith.subf %291, %332 : vector<20x41xf32>
    %334 = vector.broadcast %331 : vector<20x1xf32> to vector<20x41xf32>
    %335 = arith.mulf %333, %334 : vector<20x41xf32>
    %c0_202 = arith.constant 0 : index
    %c0_203 = arith.constant 0 : index
    %336 = vector.load %arg25[%c0_202, %c0_203] : memref<41x20xf32, #tpu.memory_space<vmem>>, vector<41x20xf32>
    %cst_204 = arith.constant dense<0.000000e+00> : vector<20x20xf32>
    %337 = tpu.matmul %335, %336, %cst_204 {dimension_numbers = #tpu.dot_dimension_numbers<[1], [0], [0], [1], [0, 0, 1, 1], [], []>} : vector<20x41xf32>, vector<41x20xf32>, vector<20x20xf32> -> vector<20x20xf32>
    %c0_205 = arith.constant 0 : index
    %c0_206 = arith.constant 0 : index
    %338 = vector.load %arg26[%c0_205, %c0_206] : memref<41x20xf32, #tpu.memory_space<vmem>>, vector<41x20xf32>
    %cst_207 = arith.constant dense<0.000000e+00> : vector<20x20xf32>
    %339 = tpu.matmul %335, %338, %cst_207 {dimension_numbers = #tpu.dot_dimension_numbers<[1], [0], [0], [1], [0, 0, 1, 1], [], []>} : vector<20x41xf32>, vector<41x20xf32>, vector<20x20xf32> -> vector<20x20xf32>
    %340 = arith.maximumf %337, %339 : vector<20x20xf32>
    %341 = vector.broadcast %324 : vector<20x1xf32> to vector<20x41xf32>
    %342 = arith.subf %315, %341 : vector<20x41xf32>
    %343 = vector.broadcast %331 : vector<20x1xf32> to vector<20x41xf32>
    %344 = arith.mulf %342, %343 : vector<20x41xf32>
    %c0_208 = arith.constant 0 : index
    %c0_209 = arith.constant 0 : index
    %345 = vector.load %arg25[%c0_208, %c0_209] : memref<41x20xf32, #tpu.memory_space<vmem>>, vector<41x20xf32>
    %cst_210 = arith.constant dense<0.000000e+00> : vector<20x20xf32>
    %346 = tpu.matmul %344, %345, %cst_210 {dimension_numbers = #tpu.dot_dimension_numbers<[1], [0], [0], [1], [0, 0, 1, 1], [], []>} : vector<20x41xf32>, vector<41x20xf32>, vector<20x20xf32> -> vector<20x20xf32>
    %c0_211 = arith.constant 0 : index
    %c0_212 = arith.constant 0 : index
    %347 = vector.load %arg26[%c0_211, %c0_212] : memref<41x20xf32, #tpu.memory_space<vmem>>, vector<41x20xf32>
    %cst_213 = arith.constant dense<0.000000e+00> : vector<20x20xf32>
    %348 = tpu.matmul %344, %347, %cst_213 {dimension_numbers = #tpu.dot_dimension_numbers<[1], [0], [0], [1], [0, 0, 1, 1], [], []>} : vector<20x41xf32>, vector<41x20xf32>, vector<20x20xf32> -> vector<20x20xf32>
    %349 = arith.maximumf %346, %348 : vector<20x20xf32>
    %c0_214 = arith.constant 0 : index
    %c0_215 = arith.constant 0 : index
    %c0_216 = arith.constant 0 : index
    %350 = vector.load %arg1[%c0_214, %c0_215, %c0_216] : memref<2x1x90xf32, #tpu.memory_space<vmem>>, vector<1x1x90xf32>
    %351 = vector.shape_cast %350 : vector<1x1x90xf32> to vector<1x90xf32>
    %c1_217 = arith.constant 1 : index
    %c0_218 = arith.constant 0 : index
    %c0_219 = arith.constant 0 : index
    %352 = vector.load %arg1[%c1_217, %c0_218, %c0_219] : memref<2x1x90xf32, #tpu.memory_space<vmem>>, vector<1x1x90xf32>
    %353 = vector.shape_cast %352 : vector<1x1x90xf32> to vector<1x90xf32>
    %c0_220 = arith.constant 0 : index
    %c0_221 = arith.constant 0 : index
    %354 = vector.load %arg12[%c0_220, %c0_221] : memref<4x3xf32, #tpu.memory_space<vmem>>, vector<4x3xf32>
    %c0_222 = arith.constant 0 : index
    %c0_223 = arith.constant 0 : index
    %355 = vector.load %arg13[%c0_222, %c0_223] : memref<4x1xf32, #tpu.memory_space<vmem>>, vector<4x1xf32>
    %356 = vector.extract_strided_slice %351 {offsets = [0, 0], sizes = [1, 88], strides = [1, 1]} : vector<1x90xf32> to vector<1x88xf32>
    %c0_224 = arith.constant 0 : index
    %c0_225 = arith.constant 0 : index
    %c0_226 = arith.constant 0 : index
    %357 = vector.load %arg39[%c0_224, %c0_225, %c0_226] : memref<2x54x357xf32, #tpu.memory_space<vmem>>, vector<1x1x88xf32>
    %358 = vector.shape_cast %357 : vector<1x1x88xf32> to vector<1x88xf32>
    %359 = vector.shape_cast %356 : vector<1x88xf32> to vector<1x1x88xf32>
    tpu.vector_store %arg39[%c0_224, %c0_225, %c0_226], %359 {strides = array<i32>} : memref<2x54x357xf32, #tpu.memory_space<vmem>>, vector<1x1x88xf32>,
    %360 = vector.extract_strided_slice %351 {offsets = [0, 1], sizes = [1, 88], strides = [1, 1]} : vector<1x90xf32> to vector<1x88xf32>
    %c0_227 = arith.constant 0 : index
    %c1_228 = arith.constant 1 : index
    %c0_229 = arith.constant 0 : index
    %361 = vector.load %arg39[%c0_227, %c1_228, %c0_229] : memref<2x54x357xf32, #tpu.memory_space<vmem>>, vector<1x1x88xf32>
    %362 = vector.shape_cast %361 : vector<1x1x88xf32> to vector<1x88xf32>
    %363 = vector.shape_cast %360 : vector<1x88xf32> to vector<1x1x88xf32>
    tpu.vector_store %arg39[%c0_227, %c1_228, %c0_229], %363 {strides = array<i32>} : memref<2x54x357xf32, #tpu.memory_space<vmem>>, vector<1x1x88xf32>,
    %364 = vector.extract_strided_slice %351 {offsets = [0, 2], sizes = [1, 88], strides = [1, 1]} : vector<1x90xf32> to vector<1x88xf32>
    %c0_230 = arith.constant 0 : index
    %c2 = arith.constant 2 : index
    %c0_231 = arith.constant 0 : index
    %365 = vector.load %arg39[%c0_230, %c2, %c0_231] : memref<2x54x357xf32, #tpu.memory_space<vmem>>, vector<1x1x88xf32>
    %366 = vector.shape_cast %365 : vector<1x1x88xf32> to vector<1x88xf32>
    %367 = vector.shape_cast %364 : vector<1x88xf32> to vector<1x1x88xf32>
    tpu.vector_store %arg39[%c0_230, %c2, %c0_231], %367 {strides = array<i32>} : memref<2x54x357xf32, #tpu.memory_space<vmem>>, vector<1x1x88xf32>,
    %c0_232 = arith.constant 0 : index
    %c0_233 = arith.constant 0 : index
    %c0_234 = arith.constant 0 : index
    %368 = vector.load %arg39[%c0_232, %c0_233, %c0_234] : memref<2x54x357xf32, #tpu.memory_space<vmem>>, vector<1x3x88xf32>
    %369 = vector.shape_cast %368 : vector<1x3x88xf32> to vector<3x88xf32>
    %cst_235 = arith.constant dense<0.000000e+00> : vector<4x88xf32>
    %370 = tpu.matmul %354, %369, %cst_235 {dimension_numbers = #tpu.dot_dimension_numbers<[1], [0], [0], [1], [0, 0, 1, 1], [], []>} : vector<4x3xf32>, vector<3x88xf32>, vector<4x88xf32> -> vector<4x88xf32>
    %371 = vector.broadcast %355 : vector<4x1xf32> to vector<4x88xf32>
    %372 = arith.addf %370, %371 : vector<4x88xf32>
    %cst_236 = arith.constant 0.000000e+00 : f32
    %373 = vector.broadcast %cst_236 : f32 to vector<4x88xf32>
    %374 = arith.maximumf %372, %373 : vector<4x88xf32>
    %cst_237 = arith.constant dense<0.000000e+00> : vector<4xf32>
    %375 = vector.multi_reduction <add>, %374, %cst_237 [1] : vector<4x88xf32> to vector<4xf32>
    %376 = vector.shape_cast %375 : vector<4xf32> to vector<4x1xf32>
    %377 = arith.mulf %374, %374 : vector<4x88xf32>
    %cst_238 = arith.constant dense<0.000000e+00> : vector<4xf32>
    %378 = vector.multi_reduction <add>, %377, %cst_238 [1] : vector<4x88xf32> to vector<4xf32>
    %379 = vector.shape_cast %378 : vector<4xf32> to vector<4x1xf32>
    %380 = vector.extract_strided_slice %353 {offsets = [0, 0], sizes = [1, 88], strides = [1, 1]} : vector<1x90xf32> to vector<1x88xf32>
    %c1_239 = arith.constant 1 : index
    %c0_240 = arith.constant 0 : index
    %c0_241 = arith.constant 0 : index
    %381 = vector.load %arg39[%c1_239, %c0_240, %c0_241] : memref<2x54x357xf32, #tpu.memory_space<vmem>>, vector<1x1x88xf32>
    %382 = vector.shape_cast %381 : vector<1x1x88xf32> to vector<1x88xf32>
    %383 = vector.shape_cast %380 : vector<1x88xf32> to vector<1x1x88xf32>
    tpu.vector_store %arg39[%c1_239, %c0_240, %c0_241], %383 {strides = array<i32>} : memref<2x54x357xf32, #tpu.memory_space<vmem>>, vector<1x1x88xf32>,
    %384 = vector.extract_strided_slice %353 {offsets = [0, 1], sizes = [1, 88], strides = [1, 1]} : vector<1x90xf32> to vector<1x88xf32>
    %c1_242 = arith.constant 1 : index
    %c1_243 = arith.constant 1 : index
    %c0_244 = arith.constant 0 : index
    %385 = vector.load %arg39[%c1_242, %c1_243, %c0_244] : memref<2x54x357xf32, #tpu.memory_space<vmem>>, vector<1x1x88xf32>
    %386 = vector.shape_cast %385 : vector<1x1x88xf32> to vector<1x88xf32>
    %387 = vector.shape_cast %384 : vector<1x88xf32> to vector<1x1x88xf32>
    tpu.vector_store %arg39[%c1_242, %c1_243, %c0_244], %387 {strides = array<i32>} : memref<2x54x357xf32, #tpu.memory_space<vmem>>, vector<1x1x88xf32>,
    %388 = vector.extract_strided_slice %353 {offsets = [0, 2], sizes = [1, 88], strides = [1, 1]} : vector<1x90xf32> to vector<1x88xf32>
    %c1_245 = arith.constant 1 : index
    %c2_246 = arith.constant 2 : index
    %c0_247 = arith.constant 0 : index
    %389 = vector.load %arg39[%c1_245, %c2_246, %c0_247] : memref<2x54x357xf32, #tpu.memory_space<vmem>>, vector<1x1x88xf32>
    %390 = vector.shape_cast %389 : vector<1x1x88xf32> to vector<1x88xf32>
    %391 = vector.shape_cast %388 : vector<1x88xf32> to vector<1x1x88xf32>
    tpu.vector_store %arg39[%c1_245, %c2_246, %c0_247], %391 {strides = array<i32>} : memref<2x54x357xf32, #tpu.memory_space<vmem>>, vector<1x1x88xf32>,
    %c1_248 = arith.constant 1 : index
    %c0_249 = arith.constant 0 : index
    %c0_250 = arith.constant 0 : index
    %392 = vector.load %arg39[%c1_248, %c0_249, %c0_250] : memref<2x54x357xf32, #tpu.memory_space<vmem>>, vector<1x3x88xf32>
    %393 = vector.shape_cast %392 : vector<1x3x88xf32> to vector<3x88xf32>
    %cst_251 = arith.constant dense<0.000000e+00> : vector<4x88xf32>
    %394 = tpu.matmul %354, %393, %cst_251 {dimension_numbers = #tpu.dot_dimension_numbers<[1], [0], [0], [1], [0, 0, 1, 1], [], []>} : vector<4x3xf32>, vector<3x88xf32>, vector<4x88xf32> -> vector<4x88xf32>
    %395 = vector.broadcast %355 : vector<4x1xf32> to vector<4x88xf32>
    %396 = arith.addf %394, %395 : vector<4x88xf32>
    %cst_252 = arith.constant 0.000000e+00 : f32
    %397 = vector.broadcast %cst_252 : f32 to vector<4x88xf32>
    %398 = arith.maximumf %396, %397 : vector<4x88xf32>
    %cst_253 = arith.constant dense<0.000000e+00> : vector<4xf32>
    %399 = vector.multi_reduction <add>, %398, %cst_253 [1] : vector<4x88xf32> to vector<4xf32>
    %400 = vector.shape_cast %399 : vector<4xf32> to vector<4x1xf32>
    %401 = arith.mulf %398, %398 : vector<4x88xf32>
    %cst_254 = arith.constant dense<0.000000e+00> : vector<4xf32>
    %402 = vector.multi_reduction <add>, %401, %cst_254 [1] : vector<4x88xf32> to vector<4xf32>
    %403 = vector.shape_cast %402 : vector<4xf32> to vector<4x1xf32>
    %404 = arith.addf %376, %400 : vector<4x1xf32>
    %405 = arith.addf %379, %403 : vector<4x1xf32>
    %cst_255 = arith.constant 0.00568181835 : f32
    %406 = vector.broadcast %cst_255 : f32 to vector<4x1xf32>
    %407 = arith.mulf %404, %406 : vector<4x1xf32>
    %cst_256 = arith.constant 0.00568181835 : f32
    %408 = vector.broadcast %cst_256 : f32 to vector<4x1xf32>
    %409 = arith.mulf %405, %408 : vector<4x1xf32>
    %410 = arith.mulf %407, %407 : vector<4x1xf32>
    %411 = arith.subf %409, %410 : vector<4x1xf32>
    %cst_257 = arith.constant 9.99999974E-6 : f32
    %412 = vector.broadcast %cst_257 : f32 to vector<4x1xf32>
    %413 = arith.addf %411, %412 : vector<4x1xf32>
    %414 = math.rsqrt %413 : vector<4x1xf32>
    %415 = vector.broadcast %407 : vector<4x1xf32> to vector<4x88xf32>
    %416 = arith.subf %374, %415 : vector<4x88xf32>
    %417 = vector.broadcast %414 : vector<4x1xf32> to vector<4x88xf32>
    %418 = arith.mulf %416, %417 : vector<4x88xf32>
    %c0_258 = arith.constant 0 : index
    %c0_259 = arith.constant 0 : index
    %419 = vector.load %arg27[%c0_258, %c0_259] : memref<88x44xf32, #tpu.memory_space<vmem>>, vector<88x44xf32>
    %cst_260 = arith.constant dense<0.000000e+00> : vector<4x44xf32>
    %420 = tpu.matmul %418, %419, %cst_260 {dimension_numbers = #tpu.dot_dimension_numbers<[1], [0], [0], [1], [0, 0, 1, 1], [], []>} : vector<4x88xf32>, vector<88x44xf32>, vector<4x44xf32> -> vector<4x44xf32>
    %421 = vector.broadcast %407 : vector<4x1xf32> to vector<4x88xf32>
    %422 = arith.subf %398, %421 : vector<4x88xf32>
    %423 = vector.broadcast %414 : vector<4x1xf32> to vector<4x88xf32>
    %424 = arith.mulf %422, %423 : vector<4x88xf32>
    %c0_261 = arith.constant 0 : index
    %c0_262 = arith.constant 0 : index
    %425 = vector.load %arg27[%c0_261, %c0_262] : memref<88x44xf32, #tpu.memory_space<vmem>>, vector<88x44xf32>
    %cst_263 = arith.constant dense<0.000000e+00> : vector<4x44xf32>
    %426 = tpu.matmul %424, %425, %cst_263 {dimension_numbers = #tpu.dot_dimension_numbers<[1], [0], [0], [1], [0, 0, 1, 1], [], []>} : vector<4x88xf32>, vector<88x44xf32>, vector<4x44xf32> -> vector<4x44xf32>
    %c0_264 = arith.constant 0 : index
    %c0_265 = arith.constant 0 : index
    %427 = vector.load %arg14[%c0_264, %c0_265] : memref<8x12xf32, #tpu.memory_space<vmem>>, vector<8x12xf32>
    %c0_266 = arith.constant 0 : index
    %c0_267 = arith.constant 0 : index
    %428 = vector.load %arg15[%c0_266, %c0_267] : memref<8x1xf32, #tpu.memory_space<vmem>>, vector<8x1xf32>
    %429 = vector.extract_strided_slice %420 {offsets = [0, 0], sizes = [4, 42], strides = [1, 1]} : vector<4x44xf32> to vector<4x42xf32>
    %c0_268 = arith.constant 0 : index
    %c0_269 = arith.constant 0 : index
    %c0_270 = arith.constant 0 : index
    %430 = vector.load %arg39[%c0_268, %c0_269, %c0_270] : memref<2x54x357xf32, #tpu.memory_space<vmem>>, vector<1x4x42xf32>
    %431 = vector.shape_cast %430 : vector<1x4x42xf32> to vector<4x42xf32>
    %432 = vector.shape_cast %429 : vector<4x42xf32> to vector<1x4x42xf32>
    tpu.vector_store %arg39[%c0_268, %c0_269, %c0_270], %432 {strides = array<i32>} : memref<2x54x357xf32, #tpu.memory_space<vmem>>, vector<1x4x42xf32>,
    %433 = vector.extract_strided_slice %420 {offsets = [0, 1], sizes = [4, 42], strides = [1, 1]} : vector<4x44xf32> to vector<4x42xf32>
    %c0_271 = arith.constant 0 : index
    %c4 = arith.constant 4 : index
    %c0_272 = arith.constant 0 : index
    %434 = vector.load %arg39[%c0_271, %c4, %c0_272] : memref<2x54x357xf32, #tpu.memory_space<vmem>>, vector<1x4x42xf32>
    %435 = vector.shape_cast %434 : vector<1x4x42xf32> to vector<4x42xf32>
    %436 = vector.shape_cast %433 : vector<4x42xf32> to vector<1x4x42xf32>
    tpu.vector_store %arg39[%c0_271, %c4, %c0_272], %436 {strides = array<i32>} : memref<2x54x357xf32, #tpu.memory_space<vmem>>, vector<1x4x42xf32>,
    %437 = vector.extract_strided_slice %420 {offsets = [0, 2], sizes = [4, 42], strides = [1, 1]} : vector<4x44xf32> to vector<4x42xf32>
    %c0_273 = arith.constant 0 : index
    %c8_274 = arith.constant 8 : index
    %c0_275 = arith.constant 0 : index
    %438 = vector.load %arg39[%c0_273, %c8_274, %c0_275] : memref<2x54x357xf32, #tpu.memory_space<vmem>>, vector<1x4x42xf32>
    %439 = vector.shape_cast %438 : vector<1x4x42xf32> to vector<4x42xf32>
    %440 = vector.shape_cast %437 : vector<4x42xf32> to vector<1x4x42xf32>
    tpu.vector_store %arg39[%c0_273, %c8_274, %c0_275], %440 {strides = array<i32>} : memref<2x54x357xf32, #tpu.memory_space<vmem>>, vector<1x4x42xf32>,
    %c0_276 = arith.constant 0 : index
    %c0_277 = arith.constant 0 : index
    %c0_278 = arith.constant 0 : index
    %441 = vector.load %arg39[%c0_276, %c0_277, %c0_278] : memref<2x54x357xf32, #tpu.memory_space<vmem>>, vector<1x12x42xf32>
    %442 = vector.shape_cast %441 : vector<1x12x42xf32> to vector<12x42xf32>
    %cst_279 = arith.constant dense<0.000000e+00> : vector<8x42xf32>
    %443 = tpu.matmul %427, %442, %cst_279 {dimension_numbers = #tpu.dot_dimension_numbers<[1], [0], [0], [1], [0, 0, 1, 1], [], []>} : vector<8x12xf32>, vector<12x42xf32>, vector<8x42xf32> -> vector<8x42xf32>
    %444 = vector.broadcast %428 : vector<8x1xf32> to vector<8x42xf32>
    %445 = arith.addf %443, %444 : vector<8x42xf32>
    %cst_280 = arith.constant 0.000000e+00 : f32
    %446 = vector.broadcast %cst_280 : f32 to vector<8x42xf32>
    %447 = arith.maximumf %445, %446 : vector<8x42xf32>
    %cst_281 = arith.constant dense<0.000000e+00> : vector<8xf32>
    %448 = vector.multi_reduction <add>, %447, %cst_281 [1] : vector<8x42xf32> to vector<8xf32>
    %449 = vector.shape_cast %448 : vector<8xf32> to vector<8x1xf32>
    %450 = arith.mulf %447, %447 : vector<8x42xf32>
    %cst_282 = arith.constant dense<0.000000e+00> : vector<8xf32>
    %451 = vector.multi_reduction <add>, %450, %cst_282 [1] : vector<8x42xf32> to vector<8xf32>
    %452 = vector.shape_cast %451 : vector<8xf32> to vector<8x1xf32>
    %453 = vector.extract_strided_slice %426 {offsets = [0, 0], sizes = [4, 42], strides = [1, 1]} : vector<4x44xf32> to vector<4x42xf32>
    %c1_283 = arith.constant 1 : index
    %c0_284 = arith.constant 0 : index
    %c0_285 = arith.constant 0 : index
    %454 = vector.load %arg39[%c1_283, %c0_284, %c0_285] : memref<2x54x357xf32, #tpu.memory_space<vmem>>, vector<1x4x42xf32>
    %455 = vector.shape_cast %454 : vector<1x4x42xf32> to vector<4x42xf32>
    %456 = vector.shape_cast %453 : vector<4x42xf32> to vector<1x4x42xf32>
    tpu.vector_store %arg39[%c1_283, %c0_284, %c0_285], %456 {strides = array<i32>} : memref<2x54x357xf32, #tpu.memory_space<vmem>>, vector<1x4x42xf32>,
    %457 = vector.extract_strided_slice %426 {offsets = [0, 1], sizes = [4, 42], strides = [1, 1]} : vector<4x44xf32> to vector<4x42xf32>
    %c1_286 = arith.constant 1 : index
    %c4_287 = arith.constant 4 : index
    %c0_288 = arith.constant 0 : index
    %458 = vector.load %arg39[%c1_286, %c4_287, %c0_288] : memref<2x54x357xf32, #tpu.memory_space<vmem>>, vector<1x4x42xf32>
    %459 = vector.shape_cast %458 : vector<1x4x42xf32> to vector<4x42xf32>
    %460 = vector.shape_cast %457 : vector<4x42xf32> to vector<1x4x42xf32>
    tpu.vector_store %arg39[%c1_286, %c4_287, %c0_288], %460 {strides = array<i32>} : memref<2x54x357xf32, #tpu.memory_space<vmem>>, vector<1x4x42xf32>,
    %461 = vector.extract_strided_slice %426 {offsets = [0, 2], sizes = [4, 42], strides = [1, 1]} : vector<4x44xf32> to vector<4x42xf32>
    %c1_289 = arith.constant 1 : index
    %c8_290 = arith.constant 8 : index
    %c0_291 = arith.constant 0 : index
    %462 = vector.load %arg39[%c1_289, %c8_290, %c0_291] : memref<2x54x357xf32, #tpu.memory_space<vmem>>, vector<1x4x42xf32>
    %463 = vector.shape_cast %462 : vector<1x4x42xf32> to vector<4x42xf32>
    %464 = vector.shape_cast %461 : vector<4x42xf32> to vector<1x4x42xf32>
    tpu.vector_store %arg39[%c1_289, %c8_290, %c0_291], %464 {strides = array<i32>} : memref<2x54x357xf32, #tpu.memory_space<vmem>>, vector<1x4x42xf32>,
    %c1_292 = arith.constant 1 : index
    %c0_293 = arith.constant 0 : index
    %c0_294 = arith.constant 0 : index
    %465 = vector.load %arg39[%c1_292, %c0_293, %c0_294] : memref<2x54x357xf32, #tpu.memory_space<vmem>>, vector<1x12x42xf32>
    %466 = vector.shape_cast %465 : vector<1x12x42xf32> to vector<12x42xf32>
    %cst_295 = arith.constant dense<0.000000e+00> : vector<8x42xf32>
    %467 = tpu.matmul %427, %466, %cst_295 {dimension_numbers = #tpu.dot_dimension_numbers<[1], [0], [0], [1], [0, 0, 1, 1], [], []>} : vector<8x12xf32>, vector<12x42xf32>, vector<8x42xf32> -> vector<8x42xf32>
    %468 = vector.broadcast %428 : vector<8x1xf32> to vector<8x42xf32>
    %469 = arith.addf %467, %468 : vector<8x42xf32>
    %cst_296 = arith.constant 0.000000e+00 : f32
    %470 = vector.broadcast %cst_296 : f32 to vector<8x42xf32>
    %471 = arith.maximumf %469, %470 : vector<8x42xf32>
    %cst_297 = arith.constant dense<0.000000e+00> : vector<8xf32>
    %472 = vector.multi_reduction <add>, %471, %cst_297 [1] : vector<8x42xf32> to vector<8xf32>
    %473 = vector.shape_cast %472 : vector<8xf32> to vector<8x1xf32>
    %474 = arith.mulf %471, %471 : vector<8x42xf32>
    %cst_298 = arith.constant dense<0.000000e+00> : vector<8xf32>
    %475 = vector.multi_reduction <add>, %474, %cst_298 [1] : vector<8x42xf32> to vector<8xf32>
    %476 = vector.shape_cast %475 : vector<8xf32> to vector<8x1xf32>
    %477 = arith.addf %449, %473 : vector<8x1xf32>
    %478 = arith.addf %452, %476 : vector<8x1xf32>
    %cst_299 = arith.constant 0.0119047621 : f32
    %479 = vector.broadcast %cst_299 : f32 to vector<8x1xf32>
    %480 = arith.mulf %477, %479 : vector<8x1xf32>
    %cst_300 = arith.constant 0.0119047621 : f32
    %481 = vector.broadcast %cst_300 : f32 to vector<8x1xf32>
    %482 = arith.mulf %478, %481 : vector<8x1xf32>
    %483 = arith.mulf %480, %480 : vector<8x1xf32>
    %484 = arith.subf %482, %483 : vector<8x1xf32>
    %cst_301 = arith.constant 9.99999974E-6 : f32
    %485 = vector.broadcast %cst_301 : f32 to vector<8x1xf32>
    %486 = arith.addf %484, %485 : vector<8x1xf32>
    %487 = math.rsqrt %486 : vector<8x1xf32>
    %488 = vector.broadcast %480 : vector<8x1xf32> to vector<8x42xf32>
    %489 = arith.subf %447, %488 : vector<8x42xf32>
    %490 = vector.broadcast %487 : vector<8x1xf32> to vector<8x42xf32>
    %491 = arith.mulf %489, %490 : vector<8x42xf32>
    %c0_302 = arith.constant 0 : index
    %c0_303 = arith.constant 0 : index
    %492 = vector.load %arg28[%c0_302, %c0_303] : memref<42x21xf32, #tpu.memory_space<vmem>>, vector<42x21xf32>
    %cst_304 = arith.constant dense<0.000000e+00> : vector<8x21xf32>
    %493 = tpu.matmul %491, %492, %cst_304 {dimension_numbers = #tpu.dot_dimension_numbers<[1], [0], [0], [1], [0, 0, 1, 1], [], []>} : vector<8x42xf32>, vector<42x21xf32>, vector<8x21xf32> -> vector<8x21xf32>
    %494 = vector.broadcast %480 : vector<8x1xf32> to vector<8x42xf32>
    %495 = arith.subf %471, %494 : vector<8x42xf32>
    %496 = vector.broadcast %487 : vector<8x1xf32> to vector<8x42xf32>
    %497 = arith.mulf %495, %496 : vector<8x42xf32>
    %c0_305 = arith.constant 0 : index
    %c0_306 = arith.constant 0 : index
    %498 = vector.load %arg28[%c0_305, %c0_306] : memref<42x21xf32, #tpu.memory_space<vmem>>, vector<42x21xf32>
    %cst_307 = arith.constant dense<0.000000e+00> : vector<8x21xf32>
    %499 = tpu.matmul %497, %498, %cst_307 {dimension_numbers = #tpu.dot_dimension_numbers<[1], [0], [0], [1], [0, 0, 1, 1], [], []>} : vector<8x42xf32>, vector<42x21xf32>, vector<8x21xf32> -> vector<8x21xf32>
    %c0_308 = arith.constant 0 : index
    %c0_309 = arith.constant 0 : index
    %500 = vector.load %arg16[%c0_308, %c0_309] : memref<12x16xf32, #tpu.memory_space<vmem>>, vector<12x16xf32>
    %c0_310 = arith.constant 0 : index
    %c0_311 = arith.constant 0 : index
    %501 = vector.load %arg17[%c0_310, %c0_311] : memref<12x1xf32, #tpu.memory_space<vmem>>, vector<12x1xf32>
    %502 = vector.extract_strided_slice %493 {offsets = [0, 0], sizes = [8, 20], strides = [1, 1]} : vector<8x21xf32> to vector<8x20xf32>
    %c0_312 = arith.constant 0 : index
    %c0_313 = arith.constant 0 : index
    %c0_314 = arith.constant 0 : index
    %503 = vector.load %arg39[%c0_312, %c0_313, %c0_314] : memref<2x54x357xf32, #tpu.memory_space<vmem>>, vector<1x8x20xf32>
    %504 = vector.shape_cast %503 : vector<1x8x20xf32> to vector<8x20xf32>
    %505 = vector.shape_cast %502 : vector<8x20xf32> to vector<1x8x20xf32>
    tpu.vector_store %arg39[%c0_312, %c0_313, %c0_314], %505 {strides = array<i32>} : memref<2x54x357xf32, #tpu.memory_space<vmem>>, vector<1x8x20xf32>,
    %506 = vector.extract_strided_slice %493 {offsets = [0, 1], sizes = [8, 20], strides = [1, 1]} : vector<8x21xf32> to vector<8x20xf32>
    %c0_315 = arith.constant 0 : index
    %c8_316 = arith.constant 8 : index
    %c0_317 = arith.constant 0 : index
    %507 = vector.load %arg39[%c0_315, %c8_316, %c0_317] : memref<2x54x357xf32, #tpu.memory_space<vmem>>, vector<1x8x20xf32>
    %508 = vector.shape_cast %507 : vector<1x8x20xf32> to vector<8x20xf32>
    %509 = vector.shape_cast %506 : vector<8x20xf32> to vector<1x8x20xf32>
    tpu.vector_store %arg39[%c0_315, %c8_316, %c0_317], %509 {strides = array<i32>} : memref<2x54x357xf32, #tpu.memory_space<vmem>>, vector<1x8x20xf32>,
    %c0_318 = arith.constant 0 : index
    %c0_319 = arith.constant 0 : index
    %c0_320 = arith.constant 0 : index
    %510 = vector.load %arg39[%c0_318, %c0_319, %c0_320] : memref<2x54x357xf32, #tpu.memory_space<vmem>>, vector<1x16x20xf32>
    %511 = vector.shape_cast %510 : vector<1x16x20xf32> to vector<16x20xf32>
    %cst_321 = arith.constant dense<0.000000e+00> : vector<12x20xf32>
    %512 = tpu.matmul %500, %511, %cst_321 {dimension_numbers = #tpu.dot_dimension_numbers<[1], [0], [0], [1], [0, 0, 1, 1], [], []>} : vector<12x16xf32>, vector<16x20xf32>, vector<12x20xf32> -> vector<12x20xf32>
    %513 = vector.broadcast %501 : vector<12x1xf32> to vector<12x20xf32>
    %514 = arith.addf %512, %513 : vector<12x20xf32>
    %cst_322 = arith.constant 0.000000e+00 : f32
    %515 = vector.broadcast %cst_322 : f32 to vector<12x20xf32>
    %516 = arith.maximumf %514, %515 : vector<12x20xf32>
    %cst_323 = arith.constant dense<0.000000e+00> : vector<12xf32>
    %517 = vector.multi_reduction <add>, %516, %cst_323 [1] : vector<12x20xf32> to vector<12xf32>
    %518 = vector.shape_cast %517 : vector<12xf32> to vector<12x1xf32>
    %519 = arith.mulf %516, %516 : vector<12x20xf32>
    %cst_324 = arith.constant dense<0.000000e+00> : vector<12xf32>
    %520 = vector.multi_reduction <add>, %519, %cst_324 [1] : vector<12x20xf32> to vector<12xf32>
    %521 = vector.shape_cast %520 : vector<12xf32> to vector<12x1xf32>
    %522 = vector.extract_strided_slice %499 {offsets = [0, 0], sizes = [8, 20], strides = [1, 1]} : vector<8x21xf32> to vector<8x20xf32>
    %c1_325 = arith.constant 1 : index
    %c0_326 = arith.constant 0 : index
    %c0_327 = arith.constant 0 : index
    %523 = vector.load %arg39[%c1_325, %c0_326, %c0_327] : memref<2x54x357xf32, #tpu.memory_space<vmem>>, vector<1x8x20xf32>
    %524 = vector.shape_cast %523 : vector<1x8x20xf32> to vector<8x20xf32>
    %525 = vector.shape_cast %522 : vector<8x20xf32> to vector<1x8x20xf32>
    tpu.vector_store %arg39[%c1_325, %c0_326, %c0_327], %525 {strides = array<i32>} : memref<2x54x357xf32, #tpu.memory_space<vmem>>, vector<1x8x20xf32>,
    %526 = vector.extract_strided_slice %499 {offsets = [0, 1], sizes = [8, 20], strides = [1, 1]} : vector<8x21xf32> to vector<8x20xf32>
    %c1_328 = arith.constant 1 : index
    %c8_329 = arith.constant 8 : index
    %c0_330 = arith.constant 0 : index
    %527 = vector.load %arg39[%c1_328, %c8_329, %c0_330] : memref<2x54x357xf32, #tpu.memory_space<vmem>>, vector<1x8x20xf32>
    %528 = vector.shape_cast %527 : vector<1x8x20xf32> to vector<8x20xf32>
    %529 = vector.shape_cast %526 : vector<8x20xf32> to vector<1x8x20xf32>
    tpu.vector_store %arg39[%c1_328, %c8_329, %c0_330], %529 {strides = array<i32>} : memref<2x54x357xf32, #tpu.memory_space<vmem>>, vector<1x8x20xf32>,
    %c1_331 = arith.constant 1 : index
    %c0_332 = arith.constant 0 : index
    %c0_333 = arith.constant 0 : index
    %530 = vector.load %arg39[%c1_331, %c0_332, %c0_333] : memref<2x54x357xf32, #tpu.memory_space<vmem>>, vector<1x16x20xf32>
    %531 = vector.shape_cast %530 : vector<1x16x20xf32> to vector<16x20xf32>
    %cst_334 = arith.constant dense<0.000000e+00> : vector<12x20xf32>
    %532 = tpu.matmul %500, %531, %cst_334 {dimension_numbers = #tpu.dot_dimension_numbers<[1], [0], [0], [1], [0, 0, 1, 1], [], []>} : vector<12x16xf32>, vector<16x20xf32>, vector<12x20xf32> -> vector<12x20xf32>
    %533 = vector.broadcast %501 : vector<12x1xf32> to vector<12x20xf32>
    %534 = arith.addf %532, %533 : vector<12x20xf32>
    %cst_335 = arith.constant 0.000000e+00 : f32
    %535 = vector.broadcast %cst_335 : f32 to vector<12x20xf32>
    %536 = arith.maximumf %534, %535 : vector<12x20xf32>
    %cst_336 = arith.constant dense<0.000000e+00> : vector<12xf32>
    %537 = vector.multi_reduction <add>, %536, %cst_336 [1] : vector<12x20xf32> to vector<12xf32>
    %538 = vector.shape_cast %537 : vector<12xf32> to vector<12x1xf32>
    %539 = arith.mulf %536, %536 : vector<12x20xf32>
    %cst_337 = arith.constant dense<0.000000e+00> : vector<12xf32>
    %540 = vector.multi_reduction <add>, %539, %cst_337 [1] : vector<12x20xf32> to vector<12xf32>
    %541 = vector.shape_cast %540 : vector<12xf32> to vector<12x1xf32>
    %542 = arith.addf %518, %538 : vector<12x1xf32>
    %543 = arith.addf %521, %541 : vector<12x1xf32>
    %cst_338 = arith.constant 2.500000e-02 : f32
    %544 = vector.broadcast %cst_338 : f32 to vector<12x1xf32>
    %545 = arith.mulf %542, %544 : vector<12x1xf32>
    %cst_339 = arith.constant 2.500000e-02 : f32
    %546 = vector.broadcast %cst_339 : f32 to vector<12x1xf32>
    %547 = arith.mulf %543, %546 : vector<12x1xf32>
    %548 = arith.mulf %545, %545 : vector<12x1xf32>
    %549 = arith.subf %547, %548 : vector<12x1xf32>
    %cst_340 = arith.constant 9.99999974E-6 : f32
    %550 = vector.broadcast %cst_340 : f32 to vector<12x1xf32>
    %551 = arith.addf %549, %550 : vector<12x1xf32>
    %552 = math.rsqrt %551 : vector<12x1xf32>
    %553 = vector.broadcast %545 : vector<12x1xf32> to vector<12x20xf32>
    %554 = arith.subf %516, %553 : vector<12x20xf32>
    %555 = vector.broadcast %552 : vector<12x1xf32> to vector<12x20xf32>
    %556 = arith.mulf %554, %555 : vector<12x20xf32>
    %c0_341 = arith.constant 0 : index
    %c0_342 = arith.constant 0 : index
    %557 = vector.load %arg29[%c0_341, %c0_342] : memref<20x10xf32, #tpu.memory_space<vmem>>, vector<20x10xf32>
    %cst_343 = arith.constant dense<0.000000e+00> : vector<12x10xf32>
    %558 = tpu.matmul %556, %557, %cst_343 {dimension_numbers = #tpu.dot_dimension_numbers<[1], [0], [0], [1], [0, 0, 1, 1], [], []>} : vector<12x20xf32>, vector<20x10xf32>, vector<12x10xf32> -> vector<12x10xf32>
    %559 = vector.broadcast %545 : vector<12x1xf32> to vector<12x20xf32>
    %560 = arith.subf %536, %559 : vector<12x20xf32>
    %561 = vector.broadcast %552 : vector<12x1xf32> to vector<12x20xf32>
    %562 = arith.mulf %560, %561 : vector<12x20xf32>
    %c0_344 = arith.constant 0 : index
    %c0_345 = arith.constant 0 : index
    %563 = vector.load %arg29[%c0_344, %c0_345] : memref<20x10xf32, #tpu.memory_space<vmem>>, vector<20x10xf32>
    %cst_346 = arith.constant dense<0.000000e+00> : vector<12x10xf32>
    %564 = tpu.matmul %562, %563, %cst_346 {dimension_numbers = #tpu.dot_dimension_numbers<[1], [0], [0], [1], [0, 0, 1, 1], [], []>} : vector<12x20xf32>, vector<20x10xf32>, vector<12x10xf32> -> vector<12x10xf32>
    %c0_347 = arith.constant 0 : index
    %c0_348 = arith.constant 0 : index
    %c0_349 = arith.constant 0 : index
    %565 = vector.load %arg2[%c0_347, %c0_348, %c0_349] : memref<2x1x26xf32, #tpu.memory_space<vmem>>, vector<1x1x26xf32>
    %566 = vector.shape_cast %565 : vector<1x1x26xf32> to vector<1x26xf32>
    %c1_350 = arith.constant 1 : index
    %c0_351 = arith.constant 0 : index
    %c0_352 = arith.constant 0 : index
    %567 = vector.load %arg2[%c1_350, %c0_351, %c0_352] : memref<2x1x26xf32, #tpu.memory_space<vmem>>, vector<1x1x26xf32>
    %568 = vector.shape_cast %567 : vector<1x1x26xf32> to vector<1x26xf32>
    %c0_353 = arith.constant 0 : index
    %c0_354 = arith.constant 0 : index
    %569 = vector.load %arg18[%c0_353, %c0_354] : memref<4x3xf32, #tpu.memory_space<vmem>>, vector<4x3xf32>
    %c0_355 = arith.constant 0 : index
    %c0_356 = arith.constant 0 : index
    %570 = vector.load %arg19[%c0_355, %c0_356] : memref<4x1xf32, #tpu.memory_space<vmem>>, vector<4x1xf32>
    %571 = vector.extract_strided_slice %566 {offsets = [0, 0], sizes = [1, 24], strides = [1, 1]} : vector<1x26xf32> to vector<1x24xf32>
    %c0_357 = arith.constant 0 : index
    %c0_358 = arith.constant 0 : index
    %c0_359 = arith.constant 0 : index
    %572 = vector.load %arg39[%c0_357, %c0_358, %c0_359] : memref<2x54x357xf32, #tpu.memory_space<vmem>>, vector<1x1x24xf32>
    %573 = vector.shape_cast %572 : vector<1x1x24xf32> to vector<1x24xf32>
    %574 = vector.shape_cast %571 : vector<1x24xf32> to vector<1x1x24xf32>
    tpu.vector_store %arg39[%c0_357, %c0_358, %c0_359], %574 {strides = array<i32>} : memref<2x54x357xf32, #tpu.memory_space<vmem>>, vector<1x1x24xf32>,
    %575 = vector.extract_strided_slice %566 {offsets = [0, 1], sizes = [1, 24], strides = [1, 1]} : vector<1x26xf32> to vector<1x24xf32>
    %c0_360 = arith.constant 0 : index
    %c1_361 = arith.constant 1 : index
    %c0_362 = arith.constant 0 : index
    %576 = vector.load %arg39[%c0_360, %c1_361, %c0_362] : memref<2x54x357xf32, #tpu.memory_space<vmem>>, vector<1x1x24xf32>
    %577 = vector.shape_cast %576 : vector<1x1x24xf32> to vector<1x24xf32>
    %578 = vector.shape_cast %575 : vector<1x24xf32> to vector<1x1x24xf32>
    tpu.vector_store %arg39[%c0_360, %c1_361, %c0_362], %578 {strides = array<i32>} : memref<2x54x357xf32, #tpu.memory_space<vmem>>, vector<1x1x24xf32>,
    %579 = vector.extract_strided_slice %566 {offsets = [0, 2], sizes = [1, 24], strides = [1, 1]} : vector<1x26xf32> to vector<1x24xf32>
    %c0_363 = arith.constant 0 : index
    %c2_364 = arith.constant 2 : index
    %c0_365 = arith.constant 0 : index
    %580 = vector.load %arg39[%c0_363, %c2_364, %c0_365] : memref<2x54x357xf32, #tpu.memory_space<vmem>>, vector<1x1x24xf32>
    %581 = vector.shape_cast %580 : vector<1x1x24xf32> to vector<1x24xf32>
    %582 = vector.shape_cast %579 : vector<1x24xf32> to vector<1x1x24xf32>
    tpu.vector_store %arg39[%c0_363, %c2_364, %c0_365], %582 {strides = array<i32>} : memref<2x54x357xf32, #tpu.memory_space<vmem>>, vector<1x1x24xf32>,
    %c0_366 = arith.constant 0 : index
    %c0_367 = arith.constant 0 : index
    %c0_368 = arith.constant 0 : index
    %583 = vector.load %arg39[%c0_366, %c0_367, %c0_368] : memref<2x54x357xf32, #tpu.memory_space<vmem>>, vector<1x3x24xf32>
    %584 = vector.shape_cast %583 : vector<1x3x24xf32> to vector<3x24xf32>
    %cst_369 = arith.constant dense<0.000000e+00> : vector<4x24xf32>
    %585 = tpu.matmul %569, %584, %cst_369 {dimension_numbers = #tpu.dot_dimension_numbers<[1], [0], [0], [1], [0, 0, 1, 1], [], []>} : vector<4x3xf32>, vector<3x24xf32>, vector<4x24xf32> -> vector<4x24xf32>
    %586 = vector.broadcast %570 : vector<4x1xf32> to vector<4x24xf32>
    %587 = arith.addf %585, %586 : vector<4x24xf32>
    %cst_370 = arith.constant 0.000000e+00 : f32
    %588 = vector.broadcast %cst_370 : f32 to vector<4x24xf32>
    %589 = arith.maximumf %587, %588 : vector<4x24xf32>
    %cst_371 = arith.constant dense<0.000000e+00> : vector<4xf32>
    %590 = vector.multi_reduction <add>, %589, %cst_371 [1] : vector<4x24xf32> to vector<4xf32>
    %591 = vector.shape_cast %590 : vector<4xf32> to vector<4x1xf32>
    %592 = arith.mulf %589, %589 : vector<4x24xf32>
    %cst_372 = arith.constant dense<0.000000e+00> : vector<4xf32>
    %593 = vector.multi_reduction <add>, %592, %cst_372 [1] : vector<4x24xf32> to vector<4xf32>
    %594 = vector.shape_cast %593 : vector<4xf32> to vector<4x1xf32>
    %595 = vector.extract_strided_slice %568 {offsets = [0, 0], sizes = [1, 24], strides = [1, 1]} : vector<1x26xf32> to vector<1x24xf32>
    %c1_373 = arith.constant 1 : index
    %c0_374 = arith.constant 0 : index
    %c0_375 = arith.constant 0 : index
    %596 = vector.load %arg39[%c1_373, %c0_374, %c0_375] : memref<2x54x357xf32, #tpu.memory_space<vmem>>, vector<1x1x24xf32>
    %597 = vector.shape_cast %596 : vector<1x1x24xf32> to vector<1x24xf32>
    %598 = vector.shape_cast %595 : vector<1x24xf32> to vector<1x1x24xf32>
    tpu.vector_store %arg39[%c1_373, %c0_374, %c0_375], %598 {strides = array<i32>} : memref<2x54x357xf32, #tpu.memory_space<vmem>>, vector<1x1x24xf32>,
    %599 = vector.extract_strided_slice %568 {offsets = [0, 1], sizes = [1, 24], strides = [1, 1]} : vector<1x26xf32> to vector<1x24xf32>
    %c1_376 = arith.constant 1 : index
    %c1_377 = arith.constant 1 : index
    %c0_378 = arith.constant 0 : index
    %600 = vector.load %arg39[%c1_376, %c1_377, %c0_378] : memref<2x54x357xf32, #tpu.memory_space<vmem>>, vector<1x1x24xf32>
    %601 = vector.shape_cast %600 : vector<1x1x24xf32> to vector<1x24xf32>
    %602 = vector.shape_cast %599 : vector<1x24xf32> to vector<1x1x24xf32>
    tpu.vector_store %arg39[%c1_376, %c1_377, %c0_378], %602 {strides = array<i32>} : memref<2x54x357xf32, #tpu.memory_space<vmem>>, vector<1x1x24xf32>,
    %603 = vector.extract_strided_slice %568 {offsets = [0, 2], sizes = [1, 24], strides = [1, 1]} : vector<1x26xf32> to vector<1x24xf32>
    %c1_379 = arith.constant 1 : index
    %c2_380 = arith.constant 2 : index
    %c0_381 = arith.constant 0 : index
    %604 = vector.load %arg39[%c1_379, %c2_380, %c0_381] : memref<2x54x357xf32, #tpu.memory_space<vmem>>, vector<1x1x24xf32>
    %605 = vector.shape_cast %604 : vector<1x1x24xf32> to vector<1x24xf32>
    %606 = vector.shape_cast %603 : vector<1x24xf32> to vector<1x1x24xf32>
    tpu.vector_store %arg39[%c1_379, %c2_380, %c0_381], %606 {strides = array<i32>} : memref<2x54x357xf32, #tpu.memory_space<vmem>>, vector<1x1x24xf32>,
    %c1_382 = arith.constant 1 : index
    %c0_383 = arith.constant 0 : index
    %c0_384 = arith.constant 0 : index
    %607 = vector.load %arg39[%c1_382, %c0_383, %c0_384] : memref<2x54x357xf32, #tpu.memory_space<vmem>>, vector<1x3x24xf32>
    %608 = vector.shape_cast %607 : vector<1x3x24xf32> to vector<3x24xf32>
    %cst_385 = arith.constant dense<0.000000e+00> : vector<4x24xf32>
    %609 = tpu.matmul %569, %608, %cst_385 {dimension_numbers = #tpu.dot_dimension_numbers<[1], [0], [0], [1], [0, 0, 1, 1], [], []>} : vector<4x3xf32>, vector<3x24xf32>, vector<4x24xf32> -> vector<4x24xf32>
    %610 = vector.broadcast %570 : vector<4x1xf32> to vector<4x24xf32>
    %611 = arith.addf %609, %610 : vector<4x24xf32>
    %cst_386 = arith.constant 0.000000e+00 : f32
    %612 = vector.broadcast %cst_386 : f32 to vector<4x24xf32>
    %613 = arith.maximumf %611, %612 : vector<4x24xf32>
    %cst_387 = arith.constant dense<0.000000e+00> : vector<4xf32>
    %614 = vector.multi_reduction <add>, %613, %cst_387 [1] : vector<4x24xf32> to vector<4xf32>
    %615 = vector.shape_cast %614 : vector<4xf32> to vector<4x1xf32>
    %616 = arith.mulf %613, %613 : vector<4x24xf32>
    %cst_388 = arith.constant dense<0.000000e+00> : vector<4xf32>
    %617 = vector.multi_reduction <add>, %616, %cst_388 [1] : vector<4x24xf32> to vector<4xf32>
    %618 = vector.shape_cast %617 : vector<4xf32> to vector<4x1xf32>
    %619 = arith.addf %591, %615 : vector<4x1xf32>
    %620 = arith.addf %594, %618 : vector<4x1xf32>
    %cst_389 = arith.constant 0.020833334 : f32
    %621 = vector.broadcast %cst_389 : f32 to vector<4x1xf32>
    %622 = arith.mulf %619, %621 : vector<4x1xf32>
    %cst_390 = arith.constant 0.020833334 : f32
    %623 = vector.broadcast %cst_390 : f32 to vector<4x1xf32>
    %624 = arith.mulf %620, %623 : vector<4x1xf32>
    %625 = arith.mulf %622, %622 : vector<4x1xf32>
    %626 = arith.subf %624, %625 : vector<4x1xf32>
    %cst_391 = arith.constant 9.99999974E-6 : f32
    %627 = vector.broadcast %cst_391 : f32 to vector<4x1xf32>
    %628 = arith.addf %626, %627 : vector<4x1xf32>
    %629 = math.rsqrt %628 : vector<4x1xf32>
    %630 = vector.broadcast %622 : vector<4x1xf32> to vector<4x24xf32>
    %631 = arith.subf %589, %630 : vector<4x24xf32>
    %632 = vector.broadcast %629 : vector<4x1xf32> to vector<4x24xf32>
    %633 = arith.mulf %631, %632 : vector<4x24xf32>
    %c0_392 = arith.constant 0 : index
    %c0_393 = arith.constant 0 : index
    %634 = vector.load %arg30[%c0_392, %c0_393] : memref<24x12xf32, #tpu.memory_space<vmem>>, vector<24x12xf32>
    %cst_394 = arith.constant dense<0.000000e+00> : vector<4x12xf32>
    %635 = tpu.matmul %633, %634, %cst_394 {dimension_numbers = #tpu.dot_dimension_numbers<[1], [0], [0], [1], [0, 0, 1, 1], [], []>} : vector<4x24xf32>, vector<24x12xf32>, vector<4x12xf32> -> vector<4x12xf32>
    %636 = vector.broadcast %622 : vector<4x1xf32> to vector<4x24xf32>
    %637 = arith.subf %613, %636 : vector<4x24xf32>
    %638 = vector.broadcast %629 : vector<4x1xf32> to vector<4x24xf32>
    %639 = arith.mulf %637, %638 : vector<4x24xf32>
    %c0_395 = arith.constant 0 : index
    %c0_396 = arith.constant 0 : index
    %640 = vector.load %arg30[%c0_395, %c0_396] : memref<24x12xf32, #tpu.memory_space<vmem>>, vector<24x12xf32>
    %cst_397 = arith.constant dense<0.000000e+00> : vector<4x12xf32>
    %641 = tpu.matmul %639, %640, %cst_397 {dimension_numbers = #tpu.dot_dimension_numbers<[1], [0], [0], [1], [0, 0, 1, 1], [], []>} : vector<4x24xf32>, vector<24x12xf32>, vector<4x12xf32> -> vector<4x12xf32>
    %c0_398 = arith.constant 0 : index
    %c0_399 = arith.constant 0 : index
    %642 = vector.load %arg20[%c0_398, %c0_399] : memref<8x12xf32, #tpu.memory_space<vmem>>, vector<8x12xf32>
    %c0_400 = arith.constant 0 : index
    %c0_401 = arith.constant 0 : index
    %643 = vector.load %arg21[%c0_400, %c0_401] : memref<8x1xf32, #tpu.memory_space<vmem>>, vector<8x1xf32>
    %644 = vector.extract_strided_slice %635 {offsets = [0, 0], sizes = [4, 10], strides = [1, 1]} : vector<4x12xf32> to vector<4x10xf32>
    %c0_402 = arith.constant 0 : index
    %c0_403 = arith.constant 0 : index
    %c0_404 = arith.constant 0 : index
    %645 = vector.load %arg39[%c0_402, %c0_403, %c0_404] : memref<2x54x357xf32, #tpu.memory_space<vmem>>, vector<1x4x10xf32>
    %646 = vector.shape_cast %645 : vector<1x4x10xf32> to vector<4x10xf32>
    %647 = vector.shape_cast %644 : vector<4x10xf32> to vector<1x4x10xf32>
    tpu.vector_store %arg39[%c0_402, %c0_403, %c0_404], %647 {strides = array<i32>} : memref<2x54x357xf32, #tpu.memory_space<vmem>>, vector<1x4x10xf32>,
    %648 = vector.extract_strided_slice %635 {offsets = [0, 1], sizes = [4, 10], strides = [1, 1]} : vector<4x12xf32> to vector<4x10xf32>
    %c0_405 = arith.constant 0 : index
    %c4_406 = arith.constant 4 : index
    %c0_407 = arith.constant 0 : index
    %649 = vector.load %arg39[%c0_405, %c4_406, %c0_407] : memref<2x54x357xf32, #tpu.memory_space<vmem>>, vector<1x4x10xf32>
    %650 = vector.shape_cast %649 : vector<1x4x10xf32> to vector<4x10xf32>
    %651 = vector.shape_cast %648 : vector<4x10xf32> to vector<1x4x10xf32>
    tpu.vector_store %arg39[%c0_405, %c4_406, %c0_407], %651 {strides = array<i32>} : memref<2x54x357xf32, #tpu.memory_space<vmem>>, vector<1x4x10xf32>,
    %652 = vector.extract_strided_slice %635 {offsets = [0, 2], sizes = [4, 10], strides = [1, 1]} : vector<4x12xf32> to vector<4x10xf32>
    %c0_408 = arith.constant 0 : index
    %c8_409 = arith.constant 8 : index
    %c0_410 = arith.constant 0 : index
    %653 = vector.load %arg39[%c0_408, %c8_409, %c0_410] : memref<2x54x357xf32, #tpu.memory_space<vmem>>, vector<1x4x10xf32>
    %654 = vector.shape_cast %653 : vector<1x4x10xf32> to vector<4x10xf32>
    %655 = vector.shape_cast %652 : vector<4x10xf32> to vector<1x4x10xf32>
    tpu.vector_store %arg39[%c0_408, %c8_409, %c0_410], %655 {strides = array<i32>} : memref<2x54x357xf32, #tpu.memory_space<vmem>>, vector<1x4x10xf32>,
    %c0_411 = arith.constant 0 : index
    %c0_412 = arith.constant 0 : index
    %c0_413 = arith.constant 0 : index
    %656 = vector.load %arg39[%c0_411, %c0_412, %c0_413] : memref<2x54x357xf32, #tpu.memory_space<vmem>>, vector<1x12x10xf32>
    %657 = vector.shape_cast %656 : vector<1x12x10xf32> to vector<12x10xf32>
    %cst_414 = arith.constant dense<0.000000e+00> : vector<8x10xf32>
    %658 = tpu.matmul %642, %657, %cst_414 {dimension_numbers = #tpu.dot_dimension_numbers<[1], [0], [0], [1], [0, 0, 1, 1], [], []>} : vector<8x12xf32>, vector<12x10xf32>, vector<8x10xf32> -> vector<8x10xf32>
    %659 = vector.broadcast %643 : vector<8x1xf32> to vector<8x10xf32>
    %660 = arith.addf %658, %659 : vector<8x10xf32>
    %cst_415 = arith.constant 0.000000e+00 : f32
    %661 = vector.broadcast %cst_415 : f32 to vector<8x10xf32>
    %662 = arith.maximumf %660, %661 : vector<8x10xf32>
    %cst_416 = arith.constant dense<0.000000e+00> : vector<8xf32>
    %663 = vector.multi_reduction <add>, %662, %cst_416 [1] : vector<8x10xf32> to vector<8xf32>
    %664 = vector.shape_cast %663 : vector<8xf32> to vector<8x1xf32>
    %665 = arith.mulf %662, %662 : vector<8x10xf32>
    %cst_417 = arith.constant dense<0.000000e+00> : vector<8xf32>
    %666 = vector.multi_reduction <add>, %665, %cst_417 [1] : vector<8x10xf32> to vector<8xf32>
    %667 = vector.shape_cast %666 : vector<8xf32> to vector<8x1xf32>
    %668 = vector.extract_strided_slice %641 {offsets = [0, 0], sizes = [4, 10], strides = [1, 1]} : vector<4x12xf32> to vector<4x10xf32>
    %c1_418 = arith.constant 1 : index
    %c0_419 = arith.constant 0 : index
    %c0_420 = arith.constant 0 : index
    %669 = vector.load %arg39[%c1_418, %c0_419, %c0_420] : memref<2x54x357xf32, #tpu.memory_space<vmem>>, vector<1x4x10xf32>
    %670 = vector.shape_cast %669 : vector<1x4x10xf32> to vector<4x10xf32>
    %671 = vector.shape_cast %668 : vector<4x10xf32> to vector<1x4x10xf32>
    tpu.vector_store %arg39[%c1_418, %c0_419, %c0_420], %671 {strides = array<i32>} : memref<2x54x357xf32, #tpu.memory_space<vmem>>, vector<1x4x10xf32>,
    %672 = vector.extract_strided_slice %641 {offsets = [0, 1], sizes = [4, 10], strides = [1, 1]} : vector<4x12xf32> to vector<4x10xf32>
    %c1_421 = arith.constant 1 : index
    %c4_422 = arith.constant 4 : index
    %c0_423 = arith.constant 0 : index
    %673 = vector.load %arg39[%c1_421, %c4_422, %c0_423] : memref<2x54x357xf32, #tpu.memory_space<vmem>>, vector<1x4x10xf32>
    %674 = vector.shape_cast %673 : vector<1x4x10xf32> to vector<4x10xf32>
    %675 = vector.shape_cast %672 : vector<4x10xf32> to vector<1x4x10xf32>
    tpu.vector_store %arg39[%c1_421, %c4_422, %c0_423], %675 {strides = array<i32>} : memref<2x54x357xf32, #tpu.memory_space<vmem>>, vector<1x4x10xf32>,
    %676 = vector.extract_strided_slice %641 {offsets = [0, 2], sizes = [4, 10], strides = [1, 1]} : vector<4x12xf32> to vector<4x10xf32>
    %c1_424 = arith.constant 1 : index
    %c8_425 = arith.constant 8 : index
    %c0_426 = arith.constant 0 : index
    %677 = vector.load %arg39[%c1_424, %c8_425, %c0_426] : memref<2x54x357xf32, #tpu.memory_space<vmem>>, vector<1x4x10xf32>
    %678 = vector.shape_cast %677 : vector<1x4x10xf32> to vector<4x10xf32>
    %679 = vector.shape_cast %676 : vector<4x10xf32> to vector<1x4x10xf32>
    tpu.vector_store %arg39[%c1_424, %c8_425, %c0_426], %679 {strides = array<i32>} : memref<2x54x357xf32, #tpu.memory_space<vmem>>, vector<1x4x10xf32>,
    %c1_427 = arith.constant 1 : index
    %c0_428 = arith.constant 0 : index
    %c0_429 = arith.constant 0 : index
    %680 = vector.load %arg39[%c1_427, %c0_428, %c0_429] : memref<2x54x357xf32, #tpu.memory_space<vmem>>, vector<1x12x10xf32>
    %681 = vector.shape_cast %680 : vector<1x12x10xf32> to vector<12x10xf32>
    %cst_430 = arith.constant dense<0.000000e+00> : vector<8x10xf32>
    %682 = tpu.matmul %642, %681, %cst_430 {dimension_numbers = #tpu.dot_dimension_numbers<[1], [0], [0], [1], [0, 0, 1, 1], [], []>} : vector<8x12xf32>, vector<12x10xf32>, vector<8x10xf32> -> vector<8x10xf32>
    %683 = vector.broadcast %643 : vector<8x1xf32> to vector<8x10xf32>
    %684 = arith.addf %682, %683 : vector<8x10xf32>
    %cst_431 = arith.constant 0.000000e+00 : f32
    %685 = vector.broadcast %cst_431 : f32 to vector<8x10xf32>
    %686 = arith.maximumf %684, %685 : vector<8x10xf32>
    %cst_432 = arith.constant dense<0.000000e+00> : vector<8xf32>
    %687 = vector.multi_reduction <add>, %686, %cst_432 [1] : vector<8x10xf32> to vector<8xf32>
    %688 = vector.shape_cast %687 : vector<8xf32> to vector<8x1xf32>
    %689 = arith.mulf %686, %686 : vector<8x10xf32>
    %cst_433 = arith.constant dense<0.000000e+00> : vector<8xf32>
    %690 = vector.multi_reduction <add>, %689, %cst_433 [1] : vector<8x10xf32> to vector<8xf32>
    %691 = vector.shape_cast %690 : vector<8xf32> to vector<8x1xf32>
    %692 = arith.addf %664, %688 : vector<8x1xf32>
    %693 = arith.addf %667, %691 : vector<8x1xf32>
    %cst_434 = arith.constant 5.000000e-02 : f32
    %694 = vector.broadcast %cst_434 : f32 to vector<8x1xf32>
    %695 = arith.mulf %692, %694 : vector<8x1xf32>
    %cst_435 = arith.constant 5.000000e-02 : f32
    %696 = vector.broadcast %cst_435 : f32 to vector<8x1xf32>
    %697 = arith.mulf %693, %696 : vector<8x1xf32>
    %698 = arith.mulf %695, %695 : vector<8x1xf32>
    %699 = arith.subf %697, %698 : vector<8x1xf32>
    %cst_436 = arith.constant 9.99999974E-6 : f32
    %700 = vector.broadcast %cst_436 : f32 to vector<8x1xf32>
    %701 = arith.addf %699, %700 : vector<8x1xf32>
    %702 = math.rsqrt %701 : vector<8x1xf32>
    %703 = vector.broadcast %695 : vector<8x1xf32> to vector<8x10xf32>
    %704 = arith.subf %662, %703 : vector<8x10xf32>
    %705 = vector.broadcast %702 : vector<8x1xf32> to vector<8x10xf32>
    %706 = arith.mulf %704, %705 : vector<8x10xf32>
    %c0_437 = arith.constant 0 : index
    %c0_438 = arith.constant 0 : index
    %707 = vector.load %arg31[%c0_437, %c0_438] : memref<10x5xf32, #tpu.memory_space<vmem>>, vector<10x5xf32>
    %cst_439 = arith.constant dense<0.000000e+00> : vector<8x5xf32>
    %708 = tpu.matmul %706, %707, %cst_439 {dimension_numbers = #tpu.dot_dimension_numbers<[1], [0], [0], [1], [0, 0, 1, 1], [], []>} : vector<8x10xf32>, vector<10x5xf32>, vector<8x5xf32> -> vector<8x5xf32>
    %709 = vector.broadcast %695 : vector<8x1xf32> to vector<8x10xf32>
    %710 = arith.subf %686, %709 : vector<8x10xf32>
    %711 = vector.broadcast %702 : vector<8x1xf32> to vector<8x10xf32>
    %712 = arith.mulf %710, %711 : vector<8x10xf32>
    %c0_440 = arith.constant 0 : index
    %c0_441 = arith.constant 0 : index
    %713 = vector.load %arg31[%c0_440, %c0_441] : memref<10x5xf32, #tpu.memory_space<vmem>>, vector<10x5xf32>
    %cst_442 = arith.constant dense<0.000000e+00> : vector<8x5xf32>
    %714 = tpu.matmul %712, %713, %cst_442 {dimension_numbers = #tpu.dot_dimension_numbers<[1], [0], [0], [1], [0, 0, 1, 1], [], []>} : vector<8x10xf32>, vector<10x5xf32>, vector<8x5xf32> -> vector<8x5xf32>
    %cst_443 = arith.constant 0.000000e+00 : f32
    %715 = vector.broadcast %cst_443 : f32 to vector<2x580xf32>
    %c0_444 = arith.constant 0 : index
    %c0_445 = arith.constant 0 : index
    %716 = vector.load %arg40[%c0_444, %c0_445] : memref<2x580xf32, #tpu.memory_space<vmem>>, vector<2x580xf32>
    tpu.vector_store %arg40[%c0_444, %c0_445], %715 {strides = array<i32>} : memref<2x580xf32, #tpu.memory_space<vmem>>, vector<2x580xf32>,
    %717 = vector.extract_strided_slice %340 {offsets = [0, 0], sizes = [1, 20], strides = [1, 1]} : vector<20x20xf32> to vector<1x20xf32>
    %c0_446 = arith.constant 0 : index
    %c0_447 = arith.constant 0 : index
    %718 = vector.load %arg40[%c0_446, %c0_447] : memref<2x580xf32, #tpu.memory_space<vmem>>, vector<1x20xf32>
    tpu.vector_store %arg40[%c0_446, %c0_447], %717 {strides = array<i32>} : memref<2x580xf32, #tpu.memory_space<vmem>>, vector<1x20xf32>,
    %719 = vector.extract_strided_slice %340 {offsets = [1, 0], sizes = [1, 20], strides = [1, 1]} : vector<20x20xf32> to vector<1x20xf32>
    %c0_448 = arith.constant 0 : index
    %c20 = arith.constant 20 : index
    %720 = vector.load %arg40[%c0_448, %c20] : memref<2x580xf32, #tpu.memory_space<vmem>>, vector<1x20xf32>
    tpu.vector_store %arg40[%c0_448, %c20], %719 {strides = array<i32>} : memref<2x580xf32, #tpu.memory_space<vmem>>, vector<1x20xf32>,
    %721 = vector.extract_strided_slice %340 {offsets = [2, 0], sizes = [1, 20], strides = [1, 1]} : vector<20x20xf32> to vector<1x20xf32>
    %c0_449 = arith.constant 0 : index
    %c40 = arith.constant 40 : index
    %722 = vector.load %arg40[%c0_449, %c40] : memref<2x580xf32, #tpu.memory_space<vmem>>, vector<1x20xf32>
    tpu.vector_store %arg40[%c0_449, %c40], %721 {strides = array<i32>} : memref<2x580xf32, #tpu.memory_space<vmem>>, vector<1x20xf32>,
    %723 = vector.extract_strided_slice %340 {offsets = [3, 0], sizes = [1, 20], strides = [1, 1]} : vector<20x20xf32> to vector<1x20xf32>
    %c0_450 = arith.constant 0 : index
    %c60 = arith.constant 60 : index
    %724 = vector.load %arg40[%c0_450, %c60] : memref<2x580xf32, #tpu.memory_space<vmem>>, vector<1x20xf32>
    tpu.vector_store %arg40[%c0_450, %c60], %723 {strides = array<i32>} : memref<2x580xf32, #tpu.memory_space<vmem>>, vector<1x20xf32>,
    %725 = vector.extract_strided_slice %340 {offsets = [4, 0], sizes = [1, 20], strides = [1, 1]} : vector<20x20xf32> to vector<1x20xf32>
    %c0_451 = arith.constant 0 : index
    %c80 = arith.constant 80 : index
    %726 = vector.load %arg40[%c0_451, %c80] : memref<2x580xf32, #tpu.memory_space<vmem>>, vector<1x20xf32>
    tpu.vector_store %arg40[%c0_451, %c80], %725 {strides = array<i32>} : memref<2x580xf32, #tpu.memory_space<vmem>>, vector<1x20xf32>,
    %727 = vector.extract_strided_slice %340 {offsets = [5, 0], sizes = [1, 20], strides = [1, 1]} : vector<20x20xf32> to vector<1x20xf32>
    %c0_452 = arith.constant 0 : index
    %c100 = arith.constant 100 : index
    %728 = vector.load %arg40[%c0_452, %c100] : memref<2x580xf32, #tpu.memory_space<vmem>>, vector<1x20xf32>
    tpu.vector_store %arg40[%c0_452, %c100], %727 {strides = array<i32>} : memref<2x580xf32, #tpu.memory_space<vmem>>, vector<1x20xf32>,
    %729 = vector.extract_strided_slice %340 {offsets = [6, 0], sizes = [1, 20], strides = [1, 1]} : vector<20x20xf32> to vector<1x20xf32>
    %c0_453 = arith.constant 0 : index
    %c120 = arith.constant 120 : index
    %730 = vector.load %arg40[%c0_453, %c120] : memref<2x580xf32, #tpu.memory_space<vmem>>, vector<1x20xf32>
    tpu.vector_store %arg40[%c0_453, %c120], %729 {strides = array<i32>} : memref<2x580xf32, #tpu.memory_space<vmem>>, vector<1x20xf32>,
    %731 = vector.extract_strided_slice %340 {offsets = [7, 0], sizes = [1, 20], strides = [1, 1]} : vector<20x20xf32> to vector<1x20xf32>
    %c0_454 = arith.constant 0 : index
    %c140 = arith.constant 140 : index
    %732 = vector.load %arg40[%c0_454, %c140] : memref<2x580xf32, #tpu.memory_space<vmem>>, vector<1x20xf32>
    tpu.vector_store %arg40[%c0_454, %c140], %731 {strides = array<i32>} : memref<2x580xf32, #tpu.memory_space<vmem>>, vector<1x20xf32>,
    %733 = vector.extract_strided_slice %340 {offsets = [8, 0], sizes = [1, 20], strides = [1, 1]} : vector<20x20xf32> to vector<1x20xf32>
    %c0_455 = arith.constant 0 : index
    %c160 = arith.constant 160 : index
    %734 = vector.load %arg40[%c0_455, %c160] : memref<2x580xf32, #tpu.memory_space<vmem>>, vector<1x20xf32>
    tpu.vector_store %arg40[%c0_455, %c160], %733 {strides = array<i32>} : memref<2x580xf32, #tpu.memory_space<vmem>>, vector<1x20xf32>,
    %735 = vector.extract_strided_slice %340 {offsets = [9, 0], sizes = [1, 20], strides = [1, 1]} : vector<20x20xf32> to vector<1x20xf32>
    %c0_456 = arith.constant 0 : index
    %c180 = arith.constant 180 : index
    %736 = vector.load %arg40[%c0_456, %c180] : memref<2x580xf32, #tpu.memory_space<vmem>>, vector<1x20xf32>
    tpu.vector_store %arg40[%c0_456, %c180], %735 {strides = array<i32>} : memref<2x580xf32, #tpu.memory_space<vmem>>, vector<1x20xf32>,
    %737 = vector.extract_strided_slice %340 {offsets = [10, 0], sizes = [1, 20], strides = [1, 1]} : vector<20x20xf32> to vector<1x20xf32>
    %c0_457 = arith.constant 0 : index
    %c200 = arith.constant 200 : index
    %738 = vector.load %arg40[%c0_457, %c200] : memref<2x580xf32, #tpu.memory_space<vmem>>, vector<1x20xf32>
    tpu.vector_store %arg40[%c0_457, %c200], %737 {strides = array<i32>} : memref<2x580xf32, #tpu.memory_space<vmem>>, vector<1x20xf32>,
    %739 = vector.extract_strided_slice %340 {offsets = [11, 0], sizes = [1, 20], strides = [1, 1]} : vector<20x20xf32> to vector<1x20xf32>
    %c0_458 = arith.constant 0 : index
    %c220 = arith.constant 220 : index
    %740 = vector.load %arg40[%c0_458, %c220] : memref<2x580xf32, #tpu.memory_space<vmem>>, vector<1x20xf32>
    tpu.vector_store %arg40[%c0_458, %c220], %739 {strides = array<i32>} : memref<2x580xf32, #tpu.memory_space<vmem>>, vector<1x20xf32>,
    %741 = vector.extract_strided_slice %340 {offsets = [12, 0], sizes = [1, 20], strides = [1, 1]} : vector<20x20xf32> to vector<1x20xf32>
    %c0_459 = arith.constant 0 : index
    %c240 = arith.constant 240 : index
    %742 = vector.load %arg40[%c0_459, %c240] : memref<2x580xf32, #tpu.memory_space<vmem>>, vector<1x20xf32>
    tpu.vector_store %arg40[%c0_459, %c240], %741 {strides = array<i32>} : memref<2x580xf32, #tpu.memory_space<vmem>>, vector<1x20xf32>,
    %743 = vector.extract_strided_slice %340 {offsets = [13, 0], sizes = [1, 20], strides = [1, 1]} : vector<20x20xf32> to vector<1x20xf32>
    %c0_460 = arith.constant 0 : index
    %c260 = arith.constant 260 : index
    %744 = vector.load %arg40[%c0_460, %c260] : memref<2x580xf32, #tpu.memory_space<vmem>>, vector<1x20xf32>
    tpu.vector_store %arg40[%c0_460, %c260], %743 {strides = array<i32>} : memref<2x580xf32, #tpu.memory_space<vmem>>, vector<1x20xf32>,
    %745 = vector.extract_strided_slice %340 {offsets = [14, 0], sizes = [1, 20], strides = [1, 1]} : vector<20x20xf32> to vector<1x20xf32>
    %c0_461 = arith.constant 0 : index
    %c280 = arith.constant 280 : index
    %746 = vector.load %arg40[%c0_461, %c280] : memref<2x580xf32, #tpu.memory_space<vmem>>, vector<1x20xf32>
    tpu.vector_store %arg40[%c0_461, %c280], %745 {strides = array<i32>} : memref<2x580xf32, #tpu.memory_space<vmem>>, vector<1x20xf32>,
    %747 = vector.extract_strided_slice %340 {offsets = [15, 0], sizes = [1, 20], strides = [1, 1]} : vector<20x20xf32> to vector<1x20xf32>
    %c0_462 = arith.constant 0 : index
    %c300 = arith.constant 300 : index
    %748 = vector.load %arg40[%c0_462, %c300] : memref<2x580xf32, #tpu.memory_space<vmem>>, vector<1x20xf32>
    tpu.vector_store %arg40[%c0_462, %c300], %747 {strides = array<i32>} : memref<2x580xf32, #tpu.memory_space<vmem>>, vector<1x20xf32>,
    %749 = vector.extract_strided_slice %340 {offsets = [16, 0], sizes = [1, 20], strides = [1, 1]} : vector<20x20xf32> to vector<1x20xf32>
    %c0_463 = arith.constant 0 : index
    %c320 = arith.constant 320 : index
    %750 = vector.load %arg40[%c0_463, %c320] : memref<2x580xf32, #tpu.memory_space<vmem>>, vector<1x20xf32>
    tpu.vector_store %arg40[%c0_463, %c320], %749 {strides = array<i32>} : memref<2x580xf32, #tpu.memory_space<vmem>>, vector<1x20xf32>,
    %751 = vector.extract_strided_slice %340 {offsets = [17, 0], sizes = [1, 20], strides = [1, 1]} : vector<20x20xf32> to vector<1x20xf32>
    %c0_464 = arith.constant 0 : index
    %c340 = arith.constant 340 : index
    %752 = vector.load %arg40[%c0_464, %c340] : memref<2x580xf32, #tpu.memory_space<vmem>>, vector<1x20xf32>
    tpu.vector_store %arg40[%c0_464, %c340], %751 {strides = array<i32>} : memref<2x580xf32, #tpu.memory_space<vmem>>, vector<1x20xf32>,
    %753 = vector.extract_strided_slice %340 {offsets = [18, 0], sizes = [1, 20], strides = [1, 1]} : vector<20x20xf32> to vector<1x20xf32>
    %c0_465 = arith.constant 0 : index
    %c360 = arith.constant 360 : index
    %754 = vector.load %arg40[%c0_465, %c360] : memref<2x580xf32, #tpu.memory_space<vmem>>, vector<1x20xf32>
    tpu.vector_store %arg40[%c0_465, %c360], %753 {strides = array<i32>} : memref<2x580xf32, #tpu.memory_space<vmem>>, vector<1x20xf32>,
    %755 = vector.extract_strided_slice %340 {offsets = [19, 0], sizes = [1, 20], strides = [1, 1]} : vector<20x20xf32> to vector<1x20xf32>
    %c0_466 = arith.constant 0 : index
    %c380 = arith.constant 380 : index
    %756 = vector.load %arg40[%c0_466, %c380] : memref<2x580xf32, #tpu.memory_space<vmem>>, vector<1x20xf32>
    tpu.vector_store %arg40[%c0_466, %c380], %755 {strides = array<i32>} : memref<2x580xf32, #tpu.memory_space<vmem>>, vector<1x20xf32>,
    %757 = vector.extract_strided_slice %558 {offsets = [0, 0], sizes = [1, 10], strides = [1, 1]} : vector<12x10xf32> to vector<1x10xf32>
    %c0_467 = arith.constant 0 : index
    %c400 = arith.constant 400 : index
    %758 = vector.load %arg40[%c0_467, %c400] : memref<2x580xf32, #tpu.memory_space<vmem>>, vector<1x10xf32>
    tpu.vector_store %arg40[%c0_467, %c400], %757 {strides = array<i32>} : memref<2x580xf32, #tpu.memory_space<vmem>>, vector<1x10xf32>,
    %759 = vector.extract_strided_slice %558 {offsets = [1, 0], sizes = [1, 10], strides = [1, 1]} : vector<12x10xf32> to vector<1x10xf32>
    %c0_468 = arith.constant 0 : index
    %c410 = arith.constant 410 : index
    %760 = vector.load %arg40[%c0_468, %c410] : memref<2x580xf32, #tpu.memory_space<vmem>>, vector<1x10xf32>
    tpu.vector_store %arg40[%c0_468, %c410], %759 {strides = array<i32>} : memref<2x580xf32, #tpu.memory_space<vmem>>, vector<1x10xf32>,
    %761 = vector.extract_strided_slice %558 {offsets = [2, 0], sizes = [1, 10], strides = [1, 1]} : vector<12x10xf32> to vector<1x10xf32>
    %c0_469 = arith.constant 0 : index
    %c420 = arith.constant 420 : index
    %762 = vector.load %arg40[%c0_469, %c420] : memref<2x580xf32, #tpu.memory_space<vmem>>, vector<1x10xf32>
    tpu.vector_store %arg40[%c0_469, %c420], %761 {strides = array<i32>} : memref<2x580xf32, #tpu.memory_space<vmem>>, vector<1x10xf32>,
    %763 = vector.extract_strided_slice %558 {offsets = [3, 0], sizes = [1, 10], strides = [1, 1]} : vector<12x10xf32> to vector<1x10xf32>
    %c0_470 = arith.constant 0 : index
    %c430 = arith.constant 430 : index
    %764 = vector.load %arg40[%c0_470, %c430] : memref<2x580xf32, #tpu.memory_space<vmem>>, vector<1x10xf32>
    tpu.vector_store %arg40[%c0_470, %c430], %763 {strides = array<i32>} : memref<2x580xf32, #tpu.memory_space<vmem>>, vector<1x10xf32>,
    %765 = vector.extract_strided_slice %558 {offsets = [4, 0], sizes = [1, 10], strides = [1, 1]} : vector<12x10xf32> to vector<1x10xf32>
    %c0_471 = arith.constant 0 : index
    %c440 = arith.constant 440 : index
    %766 = vector.load %arg40[%c0_471, %c440] : memref<2x580xf32, #tpu.memory_space<vmem>>, vector<1x10xf32>
    tpu.vector_store %arg40[%c0_471, %c440], %765 {strides = array<i32>} : memref<2x580xf32, #tpu.memory_space<vmem>>, vector<1x10xf32>,
    %767 = vector.extract_strided_slice %558 {offsets = [5, 0], sizes = [1, 10], strides = [1, 1]} : vector<12x10xf32> to vector<1x10xf32>
    %c0_472 = arith.constant 0 : index
    %c450 = arith.constant 450 : index
    %768 = vector.load %arg40[%c0_472, %c450] : memref<2x580xf32, #tpu.memory_space<vmem>>, vector<1x10xf32>
    tpu.vector_store %arg40[%c0_472, %c450], %767 {strides = array<i32>} : memref<2x580xf32, #tpu.memory_space<vmem>>, vector<1x10xf32>,
    %769 = vector.extract_strided_slice %558 {offsets = [6, 0], sizes = [1, 10], strides = [1, 1]} : vector<12x10xf32> to vector<1x10xf32>
    %c0_473 = arith.constant 0 : index
    %c460 = arith.constant 460 : index
    %770 = vector.load %arg40[%c0_473, %c460] : memref<2x580xf32, #tpu.memory_space<vmem>>, vector<1x10xf32>
    tpu.vector_store %arg40[%c0_473, %c460], %769 {strides = array<i32>} : memref<2x580xf32, #tpu.memory_space<vmem>>, vector<1x10xf32>,
    %771 = vector.extract_strided_slice %558 {offsets = [7, 0], sizes = [1, 10], strides = [1, 1]} : vector<12x10xf32> to vector<1x10xf32>
    %c0_474 = arith.constant 0 : index
    %c470 = arith.constant 470 : index
    %772 = vector.load %arg40[%c0_474, %c470] : memref<2x580xf32, #tpu.memory_space<vmem>>, vector<1x10xf32>
    tpu.vector_store %arg40[%c0_474, %c470], %771 {strides = array<i32>} : memref<2x580xf32, #tpu.memory_space<vmem>>, vector<1x10xf32>,
    %773 = vector.extract_strided_slice %558 {offsets = [8, 0], sizes = [1, 10], strides = [1, 1]} : vector<12x10xf32> to vector<1x10xf32>
    %c0_475 = arith.constant 0 : index
    %c480 = arith.constant 480 : index
    %774 = vector.load %arg40[%c0_475, %c480] : memref<2x580xf32, #tpu.memory_space<vmem>>, vector<1x10xf32>
    tpu.vector_store %arg40[%c0_475, %c480], %773 {strides = array<i32>} : memref<2x580xf32, #tpu.memory_space<vmem>>, vector<1x10xf32>,
    %775 = vector.extract_strided_slice %558 {offsets = [9, 0], sizes = [1, 10], strides = [1, 1]} : vector<12x10xf32> to vector<1x10xf32>
    %c0_476 = arith.constant 0 : index
    %c490 = arith.constant 490 : index
    %776 = vector.load %arg40[%c0_476, %c490] : memref<2x580xf32, #tpu.memory_space<vmem>>, vector<1x10xf32>
    tpu.vector_store %arg40[%c0_476, %c490], %775 {strides = array<i32>} : memref<2x580xf32, #tpu.memory_space<vmem>>, vector<1x10xf32>,
    %777 = vector.extract_strided_slice %558 {offsets = [10, 0], sizes = [1, 10], strides = [1, 1]} : vector<12x10xf32> to vector<1x10xf32>
    %c0_477 = arith.constant 0 : index
    %c500 = arith.constant 500 : index
    %778 = vector.load %arg40[%c0_477, %c500] : memref<2x580xf32, #tpu.memory_space<vmem>>, vector<1x10xf32>
    tpu.vector_store %arg40[%c0_477, %c500], %777 {strides = array<i32>} : memref<2x580xf32, #tpu.memory_space<vmem>>, vector<1x10xf32>,
    %779 = vector.extract_strided_slice %558 {offsets = [11, 0], sizes = [1, 10], strides = [1, 1]} : vector<12x10xf32> to vector<1x10xf32>
    %c0_478 = arith.constant 0 : index
    %c510 = arith.constant 510 : index
    %780 = vector.load %arg40[%c0_478, %c510] : memref<2x580xf32, #tpu.memory_space<vmem>>, vector<1x10xf32>
    tpu.vector_store %arg40[%c0_478, %c510], %779 {strides = array<i32>} : memref<2x580xf32, #tpu.memory_space<vmem>>, vector<1x10xf32>,
    %781 = vector.extract_strided_slice %708 {offsets = [0, 0], sizes = [1, 5], strides = [1, 1]} : vector<8x5xf32> to vector<1x5xf32>
    %c0_479 = arith.constant 0 : index
    %c520 = arith.constant 520 : index
    %782 = vector.load %arg40[%c0_479, %c520] : memref<2x580xf32, #tpu.memory_space<vmem>>, vector<1x5xf32>
    tpu.vector_store %arg40[%c0_479, %c520], %781 {strides = array<i32>} : memref<2x580xf32, #tpu.memory_space<vmem>>, vector<1x5xf32>,
    %783 = vector.extract_strided_slice %708 {offsets = [1, 0], sizes = [1, 5], strides = [1, 1]} : vector<8x5xf32> to vector<1x5xf32>
    %c0_480 = arith.constant 0 : index
    %c525 = arith.constant 525 : index
    %784 = vector.load %arg40[%c0_480, %c525] : memref<2x580xf32, #tpu.memory_space<vmem>>, vector<1x5xf32>
    tpu.vector_store %arg40[%c0_480, %c525], %783 {strides = array<i32>} : memref<2x580xf32, #tpu.memory_space<vmem>>, vector<1x5xf32>,
    %785 = vector.extract_strided_slice %708 {offsets = [2, 0], sizes = [1, 5], strides = [1, 1]} : vector<8x5xf32> to vector<1x5xf32>
    %c0_481 = arith.constant 0 : index
    %c530 = arith.constant 530 : index
    %786 = vector.load %arg40[%c0_481, %c530] : memref<2x580xf32, #tpu.memory_space<vmem>>, vector<1x5xf32>
    tpu.vector_store %arg40[%c0_481, %c530], %785 {strides = array<i32>} : memref<2x580xf32, #tpu.memory_space<vmem>>, vector<1x5xf32>,
    %787 = vector.extract_strided_slice %708 {offsets = [3, 0], sizes = [1, 5], strides = [1, 1]} : vector<8x5xf32> to vector<1x5xf32>
    %c0_482 = arith.constant 0 : index
    %c535 = arith.constant 535 : index
    %788 = vector.load %arg40[%c0_482, %c535] : memref<2x580xf32, #tpu.memory_space<vmem>>, vector<1x5xf32>
    tpu.vector_store %arg40[%c0_482, %c535], %787 {strides = array<i32>} : memref<2x580xf32, #tpu.memory_space<vmem>>, vector<1x5xf32>,
    %789 = vector.extract_strided_slice %708 {offsets = [4, 0], sizes = [1, 5], strides = [1, 1]} : vector<8x5xf32> to vector<1x5xf32>
    %c0_483 = arith.constant 0 : index
    %c540 = arith.constant 540 : index
    %790 = vector.load %arg40[%c0_483, %c540] : memref<2x580xf32, #tpu.memory_space<vmem>>, vector<1x5xf32>
    tpu.vector_store %arg40[%c0_483, %c540], %789 {strides = array<i32>} : memref<2x580xf32, #tpu.memory_space<vmem>>, vector<1x5xf32>,
    %791 = vector.extract_strided_slice %708 {offsets = [5, 0], sizes = [1, 5], strides = [1, 1]} : vector<8x5xf32> to vector<1x5xf32>
    %c0_484 = arith.constant 0 : index
    %c545 = arith.constant 545 : index
    %792 = vector.load %arg40[%c0_484, %c545] : memref<2x580xf32, #tpu.memory_space<vmem>>, vector<1x5xf32>
    tpu.vector_store %arg40[%c0_484, %c545], %791 {strides = array<i32>} : memref<2x580xf32, #tpu.memory_space<vmem>>, vector<1x5xf32>,
    %793 = vector.extract_strided_slice %708 {offsets = [6, 0], sizes = [1, 5], strides = [1, 1]} : vector<8x5xf32> to vector<1x5xf32>
    %c0_485 = arith.constant 0 : index
    %c550 = arith.constant 550 : index
    %794 = vector.load %arg40[%c0_485, %c550] : memref<2x580xf32, #tpu.memory_space<vmem>>, vector<1x5xf32>
    tpu.vector_store %arg40[%c0_485, %c550], %793 {strides = array<i32>} : memref<2x580xf32, #tpu.memory_space<vmem>>, vector<1x5xf32>,
    %795 = vector.extract_strided_slice %708 {offsets = [7, 0], sizes = [1, 5], strides = [1, 1]} : vector<8x5xf32> to vector<1x5xf32>
    %c0_486 = arith.constant 0 : index
    %c555 = arith.constant 555 : index
    %796 = vector.load %arg40[%c0_486, %c555] : memref<2x580xf32, #tpu.memory_space<vmem>>, vector<1x5xf32>
    tpu.vector_store %arg40[%c0_486, %c555], %795 {strides = array<i32>} : memref<2x580xf32, #tpu.memory_space<vmem>>, vector<1x5xf32>,
    %c0_487 = arith.constant 0 : index
    %c0_488 = arith.constant 0 : index
    %797 = vector.load %arg3[%c0_487, %c0_488] : memref<2x20xf32, #tpu.memory_space<vmem>>, vector<1x20xf32>
    %c0_489 = arith.constant 0 : index
    %c560 = arith.constant 560 : index
    %798 = vector.load %arg40[%c0_489, %c560] : memref<2x580xf32, #tpu.memory_space<vmem>>, vector<1x20xf32>
    tpu.vector_store %arg40[%c0_489, %c560], %797 {strides = array<i32>} : memref<2x580xf32, #tpu.memory_space<vmem>>, vector<1x20xf32>,
    %799 = vector.extract_strided_slice %349 {offsets = [0, 0], sizes = [1, 20], strides = [1, 1]} : vector<20x20xf32> to vector<1x20xf32>
    %c1_490 = arith.constant 1 : index
    %c0_491 = arith.constant 0 : index
    %800 = vector.load %arg40[%c1_490, %c0_491] : memref<2x580xf32, #tpu.memory_space<vmem>>, vector<1x20xf32>
    tpu.vector_store %arg40[%c1_490, %c0_491], %799 {strides = array<i32>} : memref<2x580xf32, #tpu.memory_space<vmem>>, vector<1x20xf32>,
    %801 = vector.extract_strided_slice %349 {offsets = [1, 0], sizes = [1, 20], strides = [1, 1]} : vector<20x20xf32> to vector<1x20xf32>
    %c1_492 = arith.constant 1 : index
    %c20_493 = arith.constant 20 : index
    %802 = vector.load %arg40[%c1_492, %c20_493] : memref<2x580xf32, #tpu.memory_space<vmem>>, vector<1x20xf32>
    tpu.vector_store %arg40[%c1_492, %c20_493], %801 {strides = array<i32>} : memref<2x580xf32, #tpu.memory_space<vmem>>, vector<1x20xf32>,
    %803 = vector.extract_strided_slice %349 {offsets = [2, 0], sizes = [1, 20], strides = [1, 1]} : vector<20x20xf32> to vector<1x20xf32>
    %c1_494 = arith.constant 1 : index
    %c40_495 = arith.constant 40 : index
    %804 = vector.load %arg40[%c1_494, %c40_495] : memref<2x580xf32, #tpu.memory_space<vmem>>, vector<1x20xf32>
    tpu.vector_store %arg40[%c1_494, %c40_495], %803 {strides = array<i32>} : memref<2x580xf32, #tpu.memory_space<vmem>>, vector<1x20xf32>,
    %805 = vector.extract_strided_slice %349 {offsets = [3, 0], sizes = [1, 20], strides = [1, 1]} : vector<20x20xf32> to vector<1x20xf32>
    %c1_496 = arith.constant 1 : index
    %c60_497 = arith.constant 60 : index
    %806 = vector.load %arg40[%c1_496, %c60_497] : memref<2x580xf32, #tpu.memory_space<vmem>>, vector<1x20xf32>
    tpu.vector_store %arg40[%c1_496, %c60_497], %805 {strides = array<i32>} : memref<2x580xf32, #tpu.memory_space<vmem>>, vector<1x20xf32>,
    %807 = vector.extract_strided_slice %349 {offsets = [4, 0], sizes = [1, 20], strides = [1, 1]} : vector<20x20xf32> to vector<1x20xf32>
    %c1_498 = arith.constant 1 : index
    %c80_499 = arith.constant 80 : index
    %808 = vector.load %arg40[%c1_498, %c80_499] : memref<2x580xf32, #tpu.memory_space<vmem>>, vector<1x20xf32>
    tpu.vector_store %arg40[%c1_498, %c80_499], %807 {strides = array<i32>} : memref<2x580xf32, #tpu.memory_space<vmem>>, vector<1x20xf32>,
    %809 = vector.extract_strided_slice %349 {offsets = [5, 0], sizes = [1, 20], strides = [1, 1]} : vector<20x20xf32> to vector<1x20xf32>
    %c1_500 = arith.constant 1 : index
    %c100_501 = arith.constant 100 : index
    %810 = vector.load %arg40[%c1_500, %c100_501] : memref<2x580xf32, #tpu.memory_space<vmem>>, vector<1x20xf32>
    tpu.vector_store %arg40[%c1_500, %c100_501], %809 {strides = array<i32>} : memref<2x580xf32, #tpu.memory_space<vmem>>, vector<1x20xf32>,
    %811 = vector.extract_strided_slice %349 {offsets = [6, 0], sizes = [1, 20], strides = [1, 1]} : vector<20x20xf32> to vector<1x20xf32>
    %c1_502 = arith.constant 1 : index
    %c120_503 = arith.constant 120 : index
    %812 = vector.load %arg40[%c1_502, %c120_503] : memref<2x580xf32, #tpu.memory_space<vmem>>, vector<1x20xf32>
    tpu.vector_store %arg40[%c1_502, %c120_503], %811 {strides = array<i32>} : memref<2x580xf32, #tpu.memory_space<vmem>>, vector<1x20xf32>,
    %813 = vector.extract_strided_slice %349 {offsets = [7, 0], sizes = [1, 20], strides = [1, 1]} : vector<20x20xf32> to vector<1x20xf32>
    %c1_504 = arith.constant 1 : index
    %c140_505 = arith.constant 140 : index
    %814 = vector.load %arg40[%c1_504, %c140_505] : memref<2x580xf32, #tpu.memory_space<vmem>>, vector<1x20xf32>
    tpu.vector_store %arg40[%c1_504, %c140_505], %813 {strides = array<i32>} : memref<2x580xf32, #tpu.memory_space<vmem>>, vector<1x20xf32>,
    %815 = vector.extract_strided_slice %349 {offsets = [8, 0], sizes = [1, 20], strides = [1, 1]} : vector<20x20xf32> to vector<1x20xf32>
    %c1_506 = arith.constant 1 : index
    %c160_507 = arith.constant 160 : index
    %816 = vector.load %arg40[%c1_506, %c160_507] : memref<2x580xf32, #tpu.memory_space<vmem>>, vector<1x20xf32>
    tpu.vector_store %arg40[%c1_506, %c160_507], %815 {strides = array<i32>} : memref<2x580xf32, #tpu.memory_space<vmem>>, vector<1x20xf32>,
    %817 = vector.extract_strided_slice %349 {offsets = [9, 0], sizes = [1, 20], strides = [1, 1]} : vector<20x20xf32> to vector<1x20xf32>
    %c1_508 = arith.constant 1 : index
    %c180_509 = arith.constant 180 : index
    %818 = vector.load %arg40[%c1_508, %c180_509] : memref<2x580xf32, #tpu.memory_space<vmem>>, vector<1x20xf32>
    tpu.vector_store %arg40[%c1_508, %c180_509], %817 {strides = array<i32>} : memref<2x580xf32, #tpu.memory_space<vmem>>, vector<1x20xf32>,
    %819 = vector.extract_strided_slice %349 {offsets = [10, 0], sizes = [1, 20], strides = [1, 1]} : vector<20x20xf32> to vector<1x20xf32>
    %c1_510 = arith.constant 1 : index
    %c200_511 = arith.constant 200 : index
    %820 = vector.load %arg40[%c1_510, %c200_511] : memref<2x580xf32, #tpu.memory_space<vmem>>, vector<1x20xf32>
    tpu.vector_store %arg40[%c1_510, %c200_511], %819 {strides = array<i32>} : memref<2x580xf32, #tpu.memory_space<vmem>>, vector<1x20xf32>,
    %821 = vector.extract_strided_slice %349 {offsets = [11, 0], sizes = [1, 20], strides = [1, 1]} : vector<20x20xf32> to vector<1x20xf32>
    %c1_512 = arith.constant 1 : index
    %c220_513 = arith.constant 220 : index
    %822 = vector.load %arg40[%c1_512, %c220_513] : memref<2x580xf32, #tpu.memory_space<vmem>>, vector<1x20xf32>
    tpu.vector_store %arg40[%c1_512, %c220_513], %821 {strides = array<i32>} : memref<2x580xf32, #tpu.memory_space<vmem>>, vector<1x20xf32>,
    %823 = vector.extract_strided_slice %349 {offsets = [12, 0], sizes = [1, 20], strides = [1, 1]} : vector<20x20xf32> to vector<1x20xf32>
    %c1_514 = arith.constant 1 : index
    %c240_515 = arith.constant 240 : index
    %824 = vector.load %arg40[%c1_514, %c240_515] : memref<2x580xf32, #tpu.memory_space<vmem>>, vector<1x20xf32>
    tpu.vector_store %arg40[%c1_514, %c240_515], %823 {strides = array<i32>} : memref<2x580xf32, #tpu.memory_space<vmem>>, vector<1x20xf32>,
    %825 = vector.extract_strided_slice %349 {offsets = [13, 0], sizes = [1, 20], strides = [1, 1]} : vector<20x20xf32> to vector<1x20xf32>
    %c1_516 = arith.constant 1 : index
    %c260_517 = arith.constant 260 : index
    %826 = vector.load %arg40[%c1_516, %c260_517] : memref<2x580xf32, #tpu.memory_space<vmem>>, vector<1x20xf32>
    tpu.vector_store %arg40[%c1_516, %c260_517], %825 {strides = array<i32>} : memref<2x580xf32, #tpu.memory_space<vmem>>, vector<1x20xf32>,
    %827 = vector.extract_strided_slice %349 {offsets = [14, 0], sizes = [1, 20], strides = [1, 1]} : vector<20x20xf32> to vector<1x20xf32>
    %c1_518 = arith.constant 1 : index
    %c280_519 = arith.constant 280 : index
    %828 = vector.load %arg40[%c1_518, %c280_519] : memref<2x580xf32, #tpu.memory_space<vmem>>, vector<1x20xf32>
    tpu.vector_store %arg40[%c1_518, %c280_519], %827 {strides = array<i32>} : memref<2x580xf32, #tpu.memory_space<vmem>>, vector<1x20xf32>,
    %829 = vector.extract_strided_slice %349 {offsets = [15, 0], sizes = [1, 20], strides = [1, 1]} : vector<20x20xf32> to vector<1x20xf32>
    %c1_520 = arith.constant 1 : index
    %c300_521 = arith.constant 300 : index
    %830 = vector.load %arg40[%c1_520, %c300_521] : memref<2x580xf32, #tpu.memory_space<vmem>>, vector<1x20xf32>
    tpu.vector_store %arg40[%c1_520, %c300_521], %829 {strides = array<i32>} : memref<2x580xf32, #tpu.memory_space<vmem>>, vector<1x20xf32>,
    %831 = vector.extract_strided_slice %349 {offsets = [16, 0], sizes = [1, 20], strides = [1, 1]} : vector<20x20xf32> to vector<1x20xf32>
    %c1_522 = arith.constant 1 : index
    %c320_523 = arith.constant 320 : index
    %832 = vector.load %arg40[%c1_522, %c320_523] : memref<2x580xf32, #tpu.memory_space<vmem>>, vector<1x20xf32>
    tpu.vector_store %arg40[%c1_522, %c320_523], %831 {strides = array<i32>} : memref<2x580xf32, #tpu.memory_space<vmem>>, vector<1x20xf32>,
    %833 = vector.extract_strided_slice %349 {offsets = [17, 0], sizes = [1, 20], strides = [1, 1]} : vector<20x20xf32> to vector<1x20xf32>
    %c1_524 = arith.constant 1 : index
    %c340_525 = arith.constant 340 : index
    %834 = vector.load %arg40[%c1_524, %c340_525] : memref<2x580xf32, #tpu.memory_space<vmem>>, vector<1x20xf32>
    tpu.vector_store %arg40[%c1_524, %c340_525], %833 {strides = array<i32>} : memref<2x580xf32, #tpu.memory_space<vmem>>, vector<1x20xf32>,
    %835 = vector.extract_strided_slice %349 {offsets = [18, 0], sizes = [1, 20], strides = [1, 1]} : vector<20x20xf32> to vector<1x20xf32>
    %c1_526 = arith.constant 1 : index
    %c360_527 = arith.constant 360 : index
    %836 = vector.load %arg40[%c1_526, %c360_527] : memref<2x580xf32, #tpu.memory_space<vmem>>, vector<1x20xf32>
    tpu.vector_store %arg40[%c1_526, %c360_527], %835 {strides = array<i32>} : memref<2x580xf32, #tpu.memory_space<vmem>>, vector<1x20xf32>,
    %837 = vector.extract_strided_slice %349 {offsets = [19, 0], sizes = [1, 20], strides = [1, 1]} : vector<20x20xf32> to vector<1x20xf32>
    %c1_528 = arith.constant 1 : index
    %c380_529 = arith.constant 380 : index
    %838 = vector.load %arg40[%c1_528, %c380_529] : memref<2x580xf32, #tpu.memory_space<vmem>>, vector<1x20xf32>
    tpu.vector_store %arg40[%c1_528, %c380_529], %837 {strides = array<i32>} : memref<2x580xf32, #tpu.memory_space<vmem>>, vector<1x20xf32>,
    %839 = vector.extract_strided_slice %564 {offsets = [0, 0], sizes = [1, 10], strides = [1, 1]} : vector<12x10xf32> to vector<1x10xf32>
    %c1_530 = arith.constant 1 : index
    %c400_531 = arith.constant 400 : index
    %840 = vector.load %arg40[%c1_530, %c400_531] : memref<2x580xf32, #tpu.memory_space<vmem>>, vector<1x10xf32>
    tpu.vector_store %arg40[%c1_530, %c400_531], %839 {strides = array<i32>} : memref<2x580xf32, #tpu.memory_space<vmem>>, vector<1x10xf32>,
    %841 = vector.extract_strided_slice %564 {offsets = [1, 0], sizes = [1, 10], strides = [1, 1]} : vector<12x10xf32> to vector<1x10xf32>
    %c1_532 = arith.constant 1 : index
    %c410_533 = arith.constant 410 : index
    %842 = vector.load %arg40[%c1_532, %c410_533] : memref<2x580xf32, #tpu.memory_space<vmem>>, vector<1x10xf32>
    tpu.vector_store %arg40[%c1_532, %c410_533], %841 {strides = array<i32>} : memref<2x580xf32, #tpu.memory_space<vmem>>, vector<1x10xf32>,
    %843 = vector.extract_strided_slice %564 {offsets = [2, 0], sizes = [1, 10], strides = [1, 1]} : vector<12x10xf32> to vector<1x10xf32>
    %c1_534 = arith.constant 1 : index
    %c420_535 = arith.constant 420 : index
    %844 = vector.load %arg40[%c1_534, %c420_535] : memref<2x580xf32, #tpu.memory_space<vmem>>, vector<1x10xf32>
    tpu.vector_store %arg40[%c1_534, %c420_535], %843 {strides = array<i32>} : memref<2x580xf32, #tpu.memory_space<vmem>>, vector<1x10xf32>,
    %845 = vector.extract_strided_slice %564 {offsets = [3, 0], sizes = [1, 10], strides = [1, 1]} : vector<12x10xf32> to vector<1x10xf32>
    %c1_536 = arith.constant 1 : index
    %c430_537 = arith.constant 430 : index
    %846 = vector.load %arg40[%c1_536, %c430_537] : memref<2x580xf32, #tpu.memory_space<vmem>>, vector<1x10xf32>
    tpu.vector_store %arg40[%c1_536, %c430_537], %845 {strides = array<i32>} : memref<2x580xf32, #tpu.memory_space<vmem>>, vector<1x10xf32>,
    %847 = vector.extract_strided_slice %564 {offsets = [4, 0], sizes = [1, 10], strides = [1, 1]} : vector<12x10xf32> to vector<1x10xf32>
    %c1_538 = arith.constant 1 : index
    %c440_539 = arith.constant 440 : index
    %848 = vector.load %arg40[%c1_538, %c440_539] : memref<2x580xf32, #tpu.memory_space<vmem>>, vector<1x10xf32>
    tpu.vector_store %arg40[%c1_538, %c440_539], %847 {strides = array<i32>} : memref<2x580xf32, #tpu.memory_space<vmem>>, vector<1x10xf32>,
    %849 = vector.extract_strided_slice %564 {offsets = [5, 0], sizes = [1, 10], strides = [1, 1]} : vector<12x10xf32> to vector<1x10xf32>
    %c1_540 = arith.constant 1 : index
    %c450_541 = arith.constant 450 : index
    %850 = vector.load %arg40[%c1_540, %c450_541] : memref<2x580xf32, #tpu.memory_space<vmem>>, vector<1x10xf32>
    tpu.vector_store %arg40[%c1_540, %c450_541], %849 {strides = array<i32>} : memref<2x580xf32, #tpu.memory_space<vmem>>, vector<1x10xf32>,
    %851 = vector.extract_strided_slice %564 {offsets = [6, 0], sizes = [1, 10], strides = [1, 1]} : vector<12x10xf32> to vector<1x10xf32>
    %c1_542 = arith.constant 1 : index
    %c460_543 = arith.constant 460 : index
    %852 = vector.load %arg40[%c1_542, %c460_543] : memref<2x580xf32, #tpu.memory_space<vmem>>, vector<1x10xf32>
    tpu.vector_store %arg40[%c1_542, %c460_543], %851 {strides = array<i32>} : memref<2x580xf32, #tpu.memory_space<vmem>>, vector<1x10xf32>,
    %853 = vector.extract_strided_slice %564 {offsets = [7, 0], sizes = [1, 10], strides = [1, 1]} : vector<12x10xf32> to vector<1x10xf32>
    %c1_544 = arith.constant 1 : index
    %c470_545 = arith.constant 470 : index
    %854 = vector.load %arg40[%c1_544, %c470_545] : memref<2x580xf32, #tpu.memory_space<vmem>>, vector<1x10xf32>
    tpu.vector_store %arg40[%c1_544, %c470_545], %853 {strides = array<i32>} : memref<2x580xf32, #tpu.memory_space<vmem>>, vector<1x10xf32>,
    %855 = vector.extract_strided_slice %564 {offsets = [8, 0], sizes = [1, 10], strides = [1, 1]} : vector<12x10xf32> to vector<1x10xf32>
    %c1_546 = arith.constant 1 : index
    %c480_547 = arith.constant 480 : index
    %856 = vector.load %arg40[%c1_546, %c480_547] : memref<2x580xf32, #tpu.memory_space<vmem>>, vector<1x10xf32>
    tpu.vector_store %arg40[%c1_546, %c480_547], %855 {strides = array<i32>} : memref<2x580xf32, #tpu.memory_space<vmem>>, vector<1x10xf32>,
    %857 = vector.extract_strided_slice %564 {offsets = [9, 0], sizes = [1, 10], strides = [1, 1]} : vector<12x10xf32> to vector<1x10xf32>
    %c1_548 = arith.constant 1 : index
    %c490_549 = arith.constant 490 : index
    %858 = vector.load %arg40[%c1_548, %c490_549] : memref<2x580xf32, #tpu.memory_space<vmem>>, vector<1x10xf32>
    tpu.vector_store %arg40[%c1_548, %c490_549], %857 {strides = array<i32>} : memref<2x580xf32, #tpu.memory_space<vmem>>, vector<1x10xf32>,
    %859 = vector.extract_strided_slice %564 {offsets = [10, 0], sizes = [1, 10], strides = [1, 1]} : vector<12x10xf32> to vector<1x10xf32>
    %c1_550 = arith.constant 1 : index
    %c500_551 = arith.constant 500 : index
    %860 = vector.load %arg40[%c1_550, %c500_551] : memref<2x580xf32, #tpu.memory_space<vmem>>, vector<1x10xf32>
    tpu.vector_store %arg40[%c1_550, %c500_551], %859 {strides = array<i32>} : memref<2x580xf32, #tpu.memory_space<vmem>>, vector<1x10xf32>,
    %861 = vector.extract_strided_slice %564 {offsets = [11, 0], sizes = [1, 10], strides = [1, 1]} : vector<12x10xf32> to vector<1x10xf32>
    %c1_552 = arith.constant 1 : index
    %c510_553 = arith.constant 510 : index
    %862 = vector.load %arg40[%c1_552, %c510_553] : memref<2x580xf32, #tpu.memory_space<vmem>>, vector<1x10xf32>
    tpu.vector_store %arg40[%c1_552, %c510_553], %861 {strides = array<i32>} : memref<2x580xf32, #tpu.memory_space<vmem>>, vector<1x10xf32>,
    %863 = vector.extract_strided_slice %714 {offsets = [0, 0], sizes = [1, 5], strides = [1, 1]} : vector<8x5xf32> to vector<1x5xf32>
    %c1_554 = arith.constant 1 : index
    %c520_555 = arith.constant 520 : index
    %864 = vector.load %arg40[%c1_554, %c520_555] : memref<2x580xf32, #tpu.memory_space<vmem>>, vector<1x5xf32>
    tpu.vector_store %arg40[%c1_554, %c520_555], %863 {strides = array<i32>} : memref<2x580xf32, #tpu.memory_space<vmem>>, vector<1x5xf32>,
    %865 = vector.extract_strided_slice %714 {offsets = [1, 0], sizes = [1, 5], strides = [1, 1]} : vector<8x5xf32> to vector<1x5xf32>
    %c1_556 = arith.constant 1 : index
    %c525_557 = arith.constant 525 : index
    %866 = vector.load %arg40[%c1_556, %c525_557] : memref<2x580xf32, #tpu.memory_space<vmem>>, vector<1x5xf32>
    tpu.vector_store %arg40[%c1_556, %c525_557], %865 {strides = array<i32>} : memref<2x580xf32, #tpu.memory_space<vmem>>, vector<1x5xf32>,
    %867 = vector.extract_strided_slice %714 {offsets = [2, 0], sizes = [1, 5], strides = [1, 1]} : vector<8x5xf32> to vector<1x5xf32>
    %c1_558 = arith.constant 1 : index
    %c530_559 = arith.constant 530 : index
    %868 = vector.load %arg40[%c1_558, %c530_559] : memref<2x580xf32, #tpu.memory_space<vmem>>, vector<1x5xf32>
    tpu.vector_store %arg40[%c1_558, %c530_559], %867 {strides = array<i32>} : memref<2x580xf32, #tpu.memory_space<vmem>>, vector<1x5xf32>,
    %869 = vector.extract_strided_slice %714 {offsets = [3, 0], sizes = [1, 5], strides = [1, 1]} : vector<8x5xf32> to vector<1x5xf32>
    %c1_560 = arith.constant 1 : index
    %c535_561 = arith.constant 535 : index
    %870 = vector.load %arg40[%c1_560, %c535_561] : memref<2x580xf32, #tpu.memory_space<vmem>>, vector<1x5xf32>
    tpu.vector_store %arg40[%c1_560, %c535_561], %869 {strides = array<i32>} : memref<2x580xf32, #tpu.memory_space<vmem>>, vector<1x5xf32>,
    %871 = vector.extract_strided_slice %714 {offsets = [4, 0], sizes = [1, 5], strides = [1, 1]} : vector<8x5xf32> to vector<1x5xf32>
    %c1_562 = arith.constant 1 : index
    %c540_563 = arith.constant 540 : index
    %872 = vector.load %arg40[%c1_562, %c540_563] : memref<2x580xf32, #tpu.memory_space<vmem>>, vector<1x5xf32>
    tpu.vector_store %arg40[%c1_562, %c540_563], %871 {strides = array<i32>} : memref<2x580xf32, #tpu.memory_space<vmem>>, vector<1x5xf32>,
    %873 = vector.extract_strided_slice %714 {offsets = [5, 0], sizes = [1, 5], strides = [1, 1]} : vector<8x5xf32> to vector<1x5xf32>
    %c1_564 = arith.constant 1 : index
    %c545_565 = arith.constant 545 : index
    %874 = vector.load %arg40[%c1_564, %c545_565] : memref<2x580xf32, #tpu.memory_space<vmem>>, vector<1x5xf32>
    tpu.vector_store %arg40[%c1_564, %c545_565], %873 {strides = array<i32>} : memref<2x580xf32, #tpu.memory_space<vmem>>, vector<1x5xf32>,
    %875 = vector.extract_strided_slice %714 {offsets = [6, 0], sizes = [1, 5], strides = [1, 1]} : vector<8x5xf32> to vector<1x5xf32>
    %c1_566 = arith.constant 1 : index
    %c550_567 = arith.constant 550 : index
    %876 = vector.load %arg40[%c1_566, %c550_567] : memref<2x580xf32, #tpu.memory_space<vmem>>, vector<1x5xf32>
    tpu.vector_store %arg40[%c1_566, %c550_567], %875 {strides = array<i32>} : memref<2x580xf32, #tpu.memory_space<vmem>>, vector<1x5xf32>,
    %877 = vector.extract_strided_slice %714 {offsets = [7, 0], sizes = [1, 5], strides = [1, 1]} : vector<8x5xf32> to vector<1x5xf32>
    %c1_568 = arith.constant 1 : index
    %c555_569 = arith.constant 555 : index
    %878 = vector.load %arg40[%c1_568, %c555_569] : memref<2x580xf32, #tpu.memory_space<vmem>>, vector<1x5xf32>
    tpu.vector_store %arg40[%c1_568, %c555_569], %877 {strides = array<i32>} : memref<2x580xf32, #tpu.memory_space<vmem>>, vector<1x5xf32>,
    %c1_570 = arith.constant 1 : index
    %c0_571 = arith.constant 0 : index
    %879 = vector.load %arg3[%c1_570, %c0_571] : memref<2x20xf32, #tpu.memory_space<vmem>>, vector<1x20xf32>
    %c1_572 = arith.constant 1 : index
    %c560_573 = arith.constant 560 : index
    %880 = vector.load %arg40[%c1_572, %c560_573] : memref<2x580xf32, #tpu.memory_space<vmem>>, vector<1x20xf32>
    tpu.vector_store %arg40[%c1_572, %c560_573], %879 {strides = array<i32>} : memref<2x580xf32, #tpu.memory_space<vmem>>, vector<1x20xf32>,
    %c0_574 = arith.constant 0 : index
    %c0_575 = arith.constant 0 : index
    %881 = vector.load %arg40[%c0_574, %c0_575] : memref<2x580xf32, #tpu.memory_space<vmem>>, vector<2x580xf32>
    %cst_576 = arith.constant 0.000000e+00 : f32
    %882 = vector.broadcast %cst_576 : f32 to vector<2x580xf32>
    %883 = arith.maximumf %881, %882 : vector<2x580xf32>
    %cst_577 = arith.constant dense<0.000000e+00> : vector<580xf32>
    %884 = vector.multi_reduction <add>, %883, %cst_577 [0] : vector<2x580xf32> to vector<580xf32>
    %885 = vector.shape_cast %884 : vector<580xf32> to vector<1x580xf32>
    %cst_578 = arith.constant 5.000000e-01 : f32
    %886 = vector.broadcast %cst_578 : f32 to vector<1x580xf32>
    %887 = arith.mulf %885, %886 : vector<1x580xf32>
    %888 = arith.mulf %883, %883 : vector<2x580xf32>
    %cst_579 = arith.constant dense<0.000000e+00> : vector<580xf32>
    %889 = vector.multi_reduction <add>, %888, %cst_579 [0] : vector<2x580xf32> to vector<580xf32>
    %890 = vector.shape_cast %889 : vector<580xf32> to vector<1x580xf32>
    %cst_580 = arith.constant 5.000000e-01 : f32
    %891 = vector.broadcast %cst_580 : f32 to vector<1x580xf32>
    %892 = arith.mulf %890, %891 : vector<1x580xf32>
    %893 = vector.broadcast %887 : vector<1x580xf32> to vector<2x580xf32>
    %894 = arith.subf %883, %893 : vector<2x580xf32>
    %895 = arith.mulf %887, %887 : vector<1x580xf32>
    %896 = arith.subf %892, %895 : vector<1x580xf32>
    %cst_581 = arith.constant 9.99999974E-6 : f32
    %897 = vector.broadcast %cst_581 : f32 to vector<1x580xf32>
    %898 = arith.addf %896, %897 : vector<1x580xf32>
    %899 = math.rsqrt %898 : vector<1x580xf32>
    %900 = vector.broadcast %899 : vector<1x580xf32> to vector<2x580xf32>
    %901 = arith.mulf %894, %900 : vector<2x580xf32>
    %c0_582 = arith.constant 0 : index
    %c0_583 = arith.constant 0 : index
    %902 = vector.load %arg32[%c0_582, %c0_583] : memref<580x240xf32, #tpu.memory_space<vmem>>, vector<580x240xf32>
    %cst_584 = arith.constant dense<0.000000e+00> : vector<2x240xf32>
    %903 = tpu.matmul %901, %902, %cst_584 {dimension_numbers = #tpu.dot_dimension_numbers<[1], [0], [0], [1], [0, 0, 1, 1], [], []>} : vector<2x580xf32>, vector<580x240xf32>, vector<2x240xf32> -> vector<2x240xf32>
    %c0_585 = arith.constant 0 : index
    %c0_586 = arith.constant 0 : index
    %904 = vector.load %arg33[%c0_585, %c0_586] : memref<1x240xf32, #tpu.memory_space<vmem>>, vector<1x240xf32>
    %905 = vector.broadcast %904 : vector<1x240xf32> to vector<2x240xf32>
    %906 = arith.addf %903, %905 : vector<2x240xf32>
    %cst_587 = arith.constant 0.000000e+00 : f32
    %907 = vector.broadcast %cst_587 : f32 to vector<2x240xf32>
    %908 = arith.maximumf %906, %907 : vector<2x240xf32>
    %cst_588 = arith.constant dense<0.000000e+00> : vector<240xf32>
    %909 = vector.multi_reduction <add>, %908, %cst_588 [0] : vector<2x240xf32> to vector<240xf32>
    %910 = vector.shape_cast %909 : vector<240xf32> to vector<1x240xf32>
    %cst_589 = arith.constant 5.000000e-01 : f32
    %911 = vector.broadcast %cst_589 : f32 to vector<1x240xf32>
    %912 = arith.mulf %910, %911 : vector<1x240xf32>
    %913 = arith.mulf %908, %908 : vector<2x240xf32>
    %cst_590 = arith.constant dense<0.000000e+00> : vector<240xf32>
    %914 = vector.multi_reduction <add>, %913, %cst_590 [0] : vector<2x240xf32> to vector<240xf32>
    %915 = vector.shape_cast %914 : vector<240xf32> to vector<1x240xf32>
    %cst_591 = arith.constant 5.000000e-01 : f32
    %916 = vector.broadcast %cst_591 : f32 to vector<1x240xf32>
    %917 = arith.mulf %915, %916 : vector<1x240xf32>
    %918 = vector.broadcast %912 : vector<1x240xf32> to vector<2x240xf32>
    %919 = arith.subf %908, %918 : vector<2x240xf32>
    %920 = arith.mulf %912, %912 : vector<1x240xf32>
    %921 = arith.subf %917, %920 : vector<1x240xf32>
    %cst_592 = arith.constant 9.99999974E-6 : f32
    %922 = vector.broadcast %cst_592 : f32 to vector<1x240xf32>
    %923 = arith.addf %921, %922 : vector<1x240xf32>
    %924 = math.rsqrt %923 : vector<1x240xf32>
    %925 = vector.broadcast %924 : vector<1x240xf32> to vector<2x240xf32>
    %926 = arith.mulf %919, %925 : vector<2x240xf32>
    %c0_593 = arith.constant 0 : index
    %c0_594 = arith.constant 0 : index
    %927 = vector.load %arg34[%c0_593, %c0_594] : memref<240x60xf32, #tpu.memory_space<vmem>>, vector<240x60xf32>
    %cst_595 = arith.constant dense<0.000000e+00> : vector<2x60xf32>
    %928 = tpu.matmul %926, %927, %cst_595 {dimension_numbers = #tpu.dot_dimension_numbers<[1], [0], [0], [1], [0, 0, 1, 1], [], []>} : vector<2x240xf32>, vector<240x60xf32>, vector<2x60xf32> -> vector<2x60xf32>
    %c0_596 = arith.constant 0 : index
    %c0_597 = arith.constant 0 : index
    %929 = vector.load %arg35[%c0_596, %c0_597] : memref<1x60xf32, #tpu.memory_space<vmem>>, vector<1x60xf32>
    %930 = vector.broadcast %929 : vector<1x60xf32> to vector<2x60xf32>
    %931 = arith.addf %928, %930 : vector<2x60xf32>
    %cst_598 = arith.constant 0.000000e+00 : f32
    %932 = vector.broadcast %cst_598 : f32 to vector<2x60xf32>
    %933 = arith.maximumf %931, %932 : vector<2x60xf32>
    %cst_599 = arith.constant dense<0.000000e+00> : vector<60xf32>
    %934 = vector.multi_reduction <add>, %933, %cst_599 [0] : vector<2x60xf32> to vector<60xf32>
    %935 = vector.shape_cast %934 : vector<60xf32> to vector<1x60xf32>
    %cst_600 = arith.constant 5.000000e-01 : f32
    %936 = vector.broadcast %cst_600 : f32 to vector<1x60xf32>
    %937 = arith.mulf %935, %936 : vector<1x60xf32>
    %938 = arith.mulf %933, %933 : vector<2x60xf32>
    %cst_601 = arith.constant dense<0.000000e+00> : vector<60xf32>
    %939 = vector.multi_reduction <add>, %938, %cst_601 [0] : vector<2x60xf32> to vector<60xf32>
    %940 = vector.shape_cast %939 : vector<60xf32> to vector<1x60xf32>
    %cst_602 = arith.constant 5.000000e-01 : f32
    %941 = vector.broadcast %cst_602 : f32 to vector<1x60xf32>
    %942 = arith.mulf %940, %941 : vector<1x60xf32>
    %943 = vector.broadcast %937 : vector<1x60xf32> to vector<2x60xf32>
    %944 = arith.subf %933, %943 : vector<2x60xf32>
    %945 = arith.mulf %937, %937 : vector<1x60xf32>
    %946 = arith.subf %942, %945 : vector<1x60xf32>
    %cst_603 = arith.constant 9.99999974E-6 : f32
    %947 = vector.broadcast %cst_603 : f32 to vector<1x60xf32>
    %948 = arith.addf %946, %947 : vector<1x60xf32>
    %949 = math.rsqrt %948 : vector<1x60xf32>
    %950 = vector.broadcast %949 : vector<1x60xf32> to vector<2x60xf32>
    %951 = arith.mulf %944, %950 : vector<2x60xf32>
    %c0_604 = arith.constant 0 : index
    %c0_605 = arith.constant 0 : index
    %952 = vector.load %arg36[%c0_604, %c0_605] : memref<60x1xf32, #tpu.memory_space<vmem>>, vector<60x1xf32>
    %cst_606 = arith.constant dense<0.000000e+00> : vector<2x1xf32>
    %953 = tpu.matmul %951, %952, %cst_606 {dimension_numbers = #tpu.dot_dimension_numbers<[1], [0], [0], [1], [0, 0, 1, 1], [], []>} : vector<2x60xf32>, vector<60x1xf32>, vector<2x1xf32> -> vector<2x1xf32>
    %c0_607 = arith.constant 0 : index
    %c0_608 = arith.constant 0 : index
    %954 = vector.load %arg37[%c0_607, %c0_608] : memref<1x1xf32, #tpu.memory_space<vmem>>, vector<1x1xf32>
    %955 = vector.broadcast %954 : vector<1x1xf32> to vector<2x1xf32>
    %956 = arith.addf %953, %955 : vector<2x1xf32>
    %c0_609 = arith.constant 0 : index
    %c0_610 = arith.constant 0 : index
    %957 = vector.load %arg38[%c0_609, %c0_610] : memref<2x1xf32, #tpu.memory_space<vmem>>, vector<2x1xf32>
    tpu.vector_store %arg38[%c0_609, %c0_610], %956 {strides = array<i32>} : memref<2x1xf32, #tpu.memory_space<vmem>>, vector<2x1xf32>,
    return
  }
}

</mosaic_0001>

<llo_original>
// kernel: soybean_forward.1
$region0: #{soybean_forward.1}
  #allocation0 [shape = 'u32[]', space=smem, size = 0x4, offset = 0x4, fixed_abs, tag = 'smem constant byte address 0x4 - core index']
  #allocation1 [shape = 'u32[144,128]{1,0:T(1,128)}', space=vmem, size = 0x12000, scoped, tag = 'internal scratch']
  #allocation2 [shape = 'f32[2,54,357]{2,1,0:T(8,128)}', space=vmem, size = 0x2a000, scoped, tag = 'scratch operand']
  #allocation3 [shape = 'f32[2,580]{1,0:T(2,128)}', space=vmem, size = 0x1400, scoped, tag = 'scratch operand']
  #allocation4 [shape = 'f32[1,1]{1,0:T(1,128)S(1)}', space=vmem, size = 0x200, scoped, tag = 'scoped memory for soybean_forward.1']
  %s0 = inlined_call_operand.smem [shape: u32[39], index: -1, kind: input, shape index: {}]
  %s1 = sld [smem:[%s0]]
  %s2 = scalar_lea.smem %s0, 1
  %s3 = sld [smem:[%s2]]
  %s4 = scalar_lea.smem %s0, 2
  %s5 = sld [smem:[%s4]]
  %s6 = scalar_lea.smem %s0, 3
  %s7 = sld [smem:[%s6]]
  %s8 = scalar_lea.smem %s0, 4
  %s9 = sld [smem:[%s8]]
  %s10 = scalar_lea.smem %s0, 5
  %s11 = sld [smem:[%s10]]
  %s12 = scalar_lea.smem %s0, 6
  %s13 = sld [smem:[%s12]]
  %s14 = scalar_lea.smem %s0, 7
  %s15 = sld [smem:[%s14]]
  %s16 = scalar_lea.smem %s0, 8
  %s17 = sld [smem:[%s16]]
  %s18 = scalar_lea.smem %s0, 9
  %s19 = sld [smem:[%s18]]
  %s20 = scalar_lea.smem %s0, 10
  %s21 = sld [smem:[%s20]]
  %s22 = scalar_lea.smem %s0, 11
  %s23 = sld [smem:[%s22]]
  %s24 = scalar_lea.smem %s0, 12
  %s25 = sld [smem:[%s24]]
  %s26 = scalar_lea.smem %s0, 13
  %s27 = sld [smem:[%s26]]
  %s28 = scalar_lea.smem %s0, 14
  %s29 = sld [smem:[%s28]]
  %s30 = scalar_lea.smem %s0, 15
  %s31 = sld [smem:[%s30]]
  %s32 = scalar_lea.smem %s0, 16
  %s33 = sld [smem:[%s32]]
  %s34 = scalar_lea.smem %s0, 17
  %s35 = sld [smem:[%s34]]
  %s36 = scalar_lea.smem %s0, 18
  %s37 = sld [smem:[%s36]]
  %s38 = scalar_lea.smem %s0, 19
  %s39 = sld [smem:[%s38]]
  %s40 = scalar_lea.smem %s0, 20
  %s41 = sld [smem:[%s40]]
  %s42 = scalar_lea.smem %s0, 21
  %s43 = sld [smem:[%s42]]
  %s44 = scalar_lea.smem %s0, 22
  %s45 = sld [smem:[%s44]]
  %s46 = scalar_lea.smem %s0, 23
  %s47 = sld [smem:[%s46]]
  %s48 = scalar_lea.smem %s0, 24
  %s49 = sld [smem:[%s48]]
  %s50 = scalar_lea.smem %s0, 25
  %s51 = sld [smem:[%s50]]
  %s52 = scalar_lea.smem %s0, 26
  %s53 = sld [smem:[%s52]]
  %s54 = scalar_lea.smem %s0, 27
  %s55 = sld [smem:[%s54]]
  %s56 = scalar_lea.smem %s0, 28
  %s57 = sld [smem:[%s56]]
  %s58 = scalar_lea.smem %s0, 29
  %s59 = sld [smem:[%s58]]
  %s60 = scalar_lea.smem %s0, 30
  %s61 = sld [smem:[%s60]]
  %s62 = scalar_lea.smem %s0, 31
  %s63 = sld [smem:[%s62]]
  %s64 = scalar_lea.smem %s0, 32
  %s65 = sld [smem:[%s64]]
  %s66 = scalar_lea.smem %s0, 33
  %s67 = sld [smem:[%s66]]
  %s68 = scalar_lea.smem %s0, 34
  %s69 = sld [smem:[%s68]]
  %s70 = scalar_lea.smem %s0, 35
  %s71 = sld [smem:[%s70]]
  %s72 = scalar_lea.smem %s0, 36
  %s73 = sld [smem:[%s72]]
  %s74 = scalar_lea.smem %s0, 37
  %s75 = sld [smem:[%s74]]
  %s76 = scalar_lea.smem %s0, 38
  %s77 = sld [smem:[%s76]]
  %s78 = sld [smem:[#allocation0]]
  $region226: #{soybean_forward.1} parent=0
    _
  %s80 = ssub.s32 1, %s78
  %s81 = scalar_select 0, %s80, %s78
  %v82 = vstv %s75
  %83 = vst [vmem:[#allocation4] sm:$0x1] %v82
  $region1: #{soybean_forward.1} parent=0
    #allocation5 [shape = 'u8[1024]{0}', space=vmem, size = 0x400, scoped, tag = 'input window, operand 3, single buffered']
    #allocation6 [shape = 's32[1]{0}', space=sflag, size = 0x4, scoped, tag = 'scoped memory for soybean_forward.1']
    #allocation7 [shape = 'u8[4096]{0}', space=vmem, size = 0x1000, scoped, tag = 'input window, operand 4, single buffered']
    #allocation8 [shape = 's32[1]{0}', space=sflag, size = 0x4, scoped, tag = 'scoped memory for soybean_forward.1']
    #allocation9 [shape = 'u8[8192]{0}', space=vmem, size = 0x2000, scoped, tag = 'input window, operand 6, single buffered']
    #allocation10 [shape = 'u8[8192]{0}', space=vmem, size = 0x2000, scoped, tag = 'input window, operand 8, single buffered']
    #allocation11 [shape = 's32[1]{0}', space=sflag, size = 0x4, scoped, tag = 'scoped memory for soybean_forward.1']
    #allocation12 [shape = 'u8[12288]{0}', space=vmem, size = 0x3000, scoped, tag = 'input window, operand 10, single buffered']
    #allocation13 [shape = 'u8[2048]{0}', space=vmem, size = 0x800, scoped, tag = 'input window, operand 12, single buffered']
    #allocation14 [shape = 's32[1]{0}', space=sflag, size = 0x4, scoped, tag = 'scoped memory for soybean_forward.1']
    #allocation15 [shape = 'u8[4096]{0}', space=vmem, size = 0x1000, scoped, tag = 'input window, operand 14, single buffered']
    #allocation16 [shape = 'u8[8192]{0}', space=vmem, size = 0x2000, scoped, tag = 'input window, operand 16, single buffered']
    #allocation17 [shape = 's32[1]{0}', space=sflag, size = 0x4, scoped, tag = 'scoped memory for soybean_forward.1']
    #allocation18 [shape = 'u8[2048]{0}', space=vmem, size = 0x800, scoped, tag = 'input window, operand 18, single buffered']
    #allocation19 [shape = 'u8[4096]{0}', space=vmem, size = 0x1000, scoped, tag = 'input window, operand 20, single buffered']
    #allocation20 [shape = 's32[1]{0}', space=sflag, size = 0x4, scoped, tag = 'scoped memory for soybean_forward.1']
    #allocation21 [shape = 'u8[368640]{0}', space=vmem, size = 0x5a000, scoped, tag = 'input window, operand 22, single buffered']
    #allocation22 [shape = 'u8[12288]{0}', space=vmem, size = 0x3000, scoped, tag = 'input window, operand 29, single buffered']
    #allocation23 [shape = 's32[1]{0}', space=sflag, size = 0x4, scoped, tag = 'scoped memory for soybean_forward.1']
    #allocation24 [shape = 'u8[8192]{0}', space=vmem, size = 0x2000, scoped, tag = 'input window, operand 31, single buffered']
    #allocation25 [shape = 'u8[598016]{0}', space=vmem, size = 0x92000, scoped, tag = 'input window, operand 32, single buffered']
    #allocation26 [shape = 's32[1]{0}', space=sflag, size = 0x4, scoped, tag = 'scoped memory for soybean_forward.1']
    #allocation27 [shape = 'u8[1024]{0}', space=vmem, size = 0x400, scoped, tag = 'input window, operand 33, single buffered']
    #allocation28 [shape = 'u8[512]{0}', space=vmem, size = 0x400, scoped, tag = 'input window, operand 35, single buffered']
    #allocation29 [shape = 's32[1]{0}', space=sflag, size = 0x4, scoped, tag = 'scoped memory for soybean_forward.1']
    %84 = vsyncpa [#allocation6], 0
    %85 = vsyncpa [#allocation8], 0
    %86 = vsyncpa [#allocation11], 0
    %87 = vsyncpa [#allocation14], 0
    %88 = vsyncpa [#allocation17], 0
    %89 = vsyncpa [#allocation20], 0
    %90 = vsyncpa [#allocation23], 0
    %91 = vsyncpa [#allocation26], 0
    %92 = vsyncpa [#allocation29], 0
    // Predicated region
    $region2: #{soybean_forward.1} parent=1 // pred_check
      _
    $region3: #{soybean_forward.1} parent=1 // pred_check_branch
      %94 = sbr.rel (0) target = $region5
    $region4: #{soybean_forward.1} parent=1 // pred_region
      _
    $region5: #{soybean_forward.1} parent=1 // pred_fallthru
      _
    // Predicated region
    $region6: #{soybean_forward.1} parent=1 // pred_check
      _
    $region7: #{soybean_forward.1} parent=1 // pred_check_branch
      %96 = sbr.rel (0) target = $region9
    $region8: #{soybean_forward.1} parent=1 // pred_region
      _
    $region9: #{soybean_forward.1} parent=1 // pred_fallthru
      _
    // Predicated region
    $region10: #{soybean_forward.1} parent=1 // pred_check
      _
    $region11: #{soybean_forward.1} parent=1 // pred_check_branch
      %98 = sbr.rel (0) target = $region13
    $region12: #{soybean_forward.1} parent=1 // pred_region
      _
    $region13: #{soybean_forward.1} parent=1 // pred_fallthru
      _
    // Predicated region
    $region14: #{soybean_forward.1} parent=1 // pred_check
      _
    $region15: #{soybean_forward.1} parent=1 // pred_check_branch
      %100 = sbr.rel (0) target = $region17
    $region16: #{soybean_forward.1} parent=1 // pred_region
      %s102 = ssub.s32 32, 32
      %103 = vsyncadd [#allocation6], %s102
      %s105 = sshll.u32 [#allocation5], 4
      %s106 = int_to_ptr.vmem [resolvable:$true] %s105
      %108 = dma.hbm_to_vmem [thread:$0]  %s7, 32, %s106, [#allocation6]
    $region17: #{soybean_forward.1} parent=1 // pred_fallthru
      _
    // Predicated region
    $region18: #{soybean_forward.1} parent=1 // pred_check
      _
    $region19: #{soybean_forward.1} parent=1 // pred_check_branch
      %110 = sbr.rel (0) target = $region21
    $region20: #{soybean_forward.1} parent=1 // pred_region
      %s112 = ssub.s32 128, 128
      %113 = vsyncadd [#allocation8], %s112
      %s115 = sshll.u32 [#allocation7], 4
      %s116 = int_to_ptr.vmem [resolvable:$true] %s115
      %118 = dma.hbm_to_vmem [thread:$0]  %s9, 128, %s116, [#allocation8]
    $region21: #{soybean_forward.1} parent=1 // pred_fallthru
      _
    // Predicated region
    $region22: #{soybean_forward.1} parent=1 // pred_check
      _
    $region23: #{soybean_forward.1} parent=1 // pred_check_branch
      %120 = sbr.rel (0) target = $region25
    $region24: #{soybean_forward.1} parent=1 // pred_region
      _
    $region25: #{soybean_forward.1} parent=1 // pred_fallthru
      _
    // Predicated region
    $region26: #{soybean_forward.1} parent=1 // pred_check
      _
    $region27: #{soybean_forward.1} parent=1 // pred_check_branch
      %122 = sbr.rel (0) target = $region29
    $region28: #{soybean_forward.1} parent=1 // pred_region
      %s124 = ssub.s32 256, 256
      %125 = vsyncadd [#allocation8], %s124
      %s126 = sshll.u32 [#allocation9], 4
      %s127 = int_to_ptr.vmem [resolvable:$true] %s126
      %132 = dma.hbm_to_vmem [thread:$0]  %s13, 256, %s127, [#allocation8], 128, 128, 8
    $region29: #{soybean_forward.1} parent=1 // pred_fallthru
      _
    // Predicated region
    $region30: #{soybean_forward.1} parent=1 // pred_check
      _
    $region31: #{soybean_forward.1} parent=1 // pred_check_branch
      %134 = sbr.rel (0) target = $region33
    $region32: #{soybean_forward.1} parent=1 // pred_region
      _
    $region33: #{soybean_forward.1} parent=1 // pred_fallthru
      _
    // Predicated region
    $region34: #{soybean_forward.1} parent=1 // pred_check
      _
    $region35: #{soybean_forward.1} parent=1 // pred_check_branch
      %136 = sbr.rel (0) target = $region37
    $region36: #{soybean_forward.1} parent=1 // pred_region
      %s138 = ssub.s32 256, 256
      %139 = vsyncadd [#allocation11], %s138
      %s140 = sshll.u32 [#allocation10], 4
      %s141 = int_to_ptr.vmem [resolvable:$true] %s140
      %146 = dma.hbm_to_vmem [thread:$0]  %s17, 256, %s141, [#allocation11], 128, 128, 8
    $region37: #{soybean_forward.1} parent=1 // pred_fallthru
      _
    // Predicated region
    $region38: #{soybean_forward.1} parent=1 // pred_check
      _
    $region39: #{soybean_forward.1} parent=1 // pred_check_branch
      %148 = sbr.rel (0) target = $region41
    $region40: #{soybean_forward.1} parent=1 // pred_region
      _
    $region41: #{soybean_forward.1} parent=1 // pred_fallthru
      _
    // Predicated region
    $region42: #{soybean_forward.1} parent=1 // pred_check
      _
    $region43: #{soybean_forward.1} parent=1 // pred_check_branch
      %150 = sbr.rel (0) target = $region45
    $region44: #{soybean_forward.1} parent=1 // pred_region
      %s152 = ssub.s32 384, 384
      %153 = vsyncadd [#allocation11], %s152
      %s154 = sshll.u32 [#allocation12], 4
      %s155 = int_to_ptr.vmem [resolvable:$true] %s154
      %160 = dma.hbm_to_vmem [thread:$0]  %s21, 384, %s155, [#allocation11], 128, 128, 8
    $region45: #{soybean_forward.1} parent=1 // pred_fallthru
      _
    // Predicated region
    $region46: #{soybean_forward.1} parent=1 // pred_check
      _
    $region47: #{soybean_forward.1} parent=1 // pred_check_branch
      %162 = sbr.rel (0) target = $region49
    $region48: #{soybean_forward.1} parent=1 // pred_region
      _
    $region49: #{soybean_forward.1} parent=1 // pred_fallthru
      _
    // Predicated region
    $region50: #{soybean_forward.1} parent=1 // pred_check
      _
    $region51: #{soybean_forward.1} parent=1 // pred_check_branch
      %164 = sbr.rel (0) target = $region53
    $region52: #{soybean_forward.1} parent=1 // pred_region
      %s166 = ssub.s32 64, 64
      %167 = vsyncadd [#allocation14], %s166
      %s169 = sshll.u32 [#allocation13], 4
      %s170 = int_to_ptr.vmem [resolvable:$true] %s169
      %172 = dma.hbm_to_vmem [thread:$0]  %s25, 64, %s170, [#allocation14]
    $region53: #{soybean_forward.1} parent=1 // pred_fallthru
      _
    // Predicated region
    $region54: #{soybean_forward.1} parent=1 // pred_check
      _
    $region55: #{soybean_forward.1} parent=1 // pred_check_branch
      %174 = sbr.rel (0) target = $region57
    $region56: #{soybean_forward.1} parent=1 // pred_region
      _
    $region57: #{soybean_forward.1} parent=1 // pred_fallthru
      _
    // Predicated region
    $region58: #{soybean_forward.1} parent=1 // pred_check
      _
    $region59: #{soybean_forward.1} parent=1 // pred_check_branch
      %176 = sbr.rel (0) target = $region61
    $region60: #{soybean_forward.1} parent=1 // pred_region
      %s178 = ssub.s32 128, 128
      %179 = vsyncadd [#allocation14], %s178
      %s181 = sshll.u32 [#allocation15], 4
      %s182 = int_to_ptr.vmem [resolvable:$true] %s181
      %184 = dma.hbm_to_vmem [thread:$0]  %s29, 128, %s182, [#allocation14]
    $region61: #{soybean_forward.1} parent=1 // pred_fallthru
      _
    // Predicated region
    $region62: #{soybean_forward.1} parent=1 // pred_check
      _
    $region63: #{soybean_forward.1} parent=1 // pred_check_branch
      %186 = sbr.rel (0) target = $region65
    $region64: #{soybean_forward.1} parent=1 // pred_region
      _
    $region65: #{soybean_forward.1} parent=1 // pred_fallthru
      _
    // Predicated region
    $region66: #{soybean_forward.1} parent=1 // pred_check
      _
    $region67: #{soybean_forward.1} parent=1 // pred_check_branch
      %188 = sbr.rel (0) target = $region69
    $region68: #{soybean_forward.1} parent=1 // pred_region
      %s190 = ssub.s32 256, 256
      %191 = vsyncadd [#allocation17], %s190
      %s192 = sshll.u32 [#allocation16], 4
      %s193 = int_to_ptr.vmem [resolvable:$true] %s192
      %198 = dma.hbm_to_vmem [thread:$0]  %s33, 256, %s193, [#allocation17], 128, 128, 8
    $region69: #{soybean_forward.1} parent=1 // pred_fallthru
      _
    // Predicated region
    $region70: #{soybean_forward.1} parent=1 // pred_check
      _
    $region71: #{soybean_forward.1} parent=1 // pred_check_branch
      %200 = sbr.rel (0) target = $region73
    $region72: #{soybean_forward.1} parent=1 // pred_region
      _
    $region73: #{soybean_forward.1} parent=1 // pred_fallthru
      _
    // Predicated region
    $region74: #{soybean_forward.1} parent=1 // pred_check
      _
    $region75: #{soybean_forward.1} parent=1 // pred_check_branch
      %202 = sbr.rel (0) target = $region77
    $region76: #{soybean_forward.1} parent=1 // pred_region
      %s204 = ssub.s32 64, 64
      %205 = vsyncadd [#allocation17], %s204
      %s207 = sshll.u32 [#allocation18], 4
      %s208 = int_to_ptr.vmem [resolvable:$true] %s207
      %210 = dma.hbm_to_vmem [thread:$0]  %s37, 64, %s208, [#allocation17]
    $region77: #{soybean_forward.1} parent=1 // pred_fallthru
      _
    // Predicated region
    $region78: #{soybean_forward.1} parent=1 // pred_check
      _
    $region79: #{soybean_forward.1} parent=1 // pred_check_branch
      %212 = sbr.rel (0) target = $region81
    $region80: #{soybean_forward.1} parent=1 // pred_region
      _
    $region81: #{soybean_forward.1} parent=1 // pred_fallthru
      _
    // Predicated region
    $region82: #{soybean_forward.1} parent=1 // pred_check
      _
    $region83: #{soybean_forward.1} parent=1 // pred_check_branch
      %214 = sbr.rel (0) target = $region85
    $region84: #{soybean_forward.1} parent=1 // pred_region
      %s216 = ssub.s32 128, 128
      %217 = vsyncadd [#allocation20], %s216
      %s219 = sshll.u32 [#allocation19], 4
      %s220 = int_to_ptr.vmem [resolvable:$true] %s219
      %222 = dma.hbm_to_vmem [thread:$0]  %s41, 128, %s220, [#allocation20]
    $region85: #{soybean_forward.1} parent=1 // pred_fallthru
      _
    // Predicated region
    $region86: #{soybean_forward.1} parent=1 // pred_check
      _
    $region87: #{soybean_forward.1} parent=1 // pred_check_branch
      %224 = sbr.rel (0) target = $region89
    $region88: #{soybean_forward.1} parent=1 // pred_region
      _
    $region89: #{soybean_forward.1} parent=1 // pred_fallthru
      _
    // Predicated region
    $region90: #{soybean_forward.1} parent=1 // pred_check
      _
    $region91: #{soybean_forward.1} parent=1 // pred_check_branch
      %226 = sbr.rel (0) target = $region93
    $region92: #{soybean_forward.1} parent=1 // pred_region
      %s228 = ssub.s32 11520, 11520
      %229 = vsyncadd [#allocation20], %s228
      %s230 = sshll.u32 [#allocation21], 4
      %s231 = int_to_ptr.vmem [resolvable:$true] %s230
      %236 = dma.hbm_to_vmem [thread:$0]  %s45, 11520, %s231, [#allocation20], 256, 256, 16
    $region93: #{soybean_forward.1} parent=1 // pred_fallthru
      _
    // Predicated region
    $region94: #{soybean_forward.1} parent=1 // pred_check
      _
    $region95: #{soybean_forward.1} parent=1 // pred_check_branch
      %238 = sbr.rel (0) target = $region97
    $region96: #{soybean_forward.1} parent=1 // pred_region
      _
    $region97: #{soybean_forward.1} parent=1 // pred_fallthru
      _
    // Predicated region
    $region98: #{soybean_forward.1} parent=1 // pred_check
      _
    $region99: #{soybean_forward.1} parent=1 // pred_check_branch
      %240 = sbr.rel (0) target = $region101
    $region100: #{soybean_forward.1} parent=1 // pred_region
      _
    $region101: #{soybean_forward.1} parent=1 // pred_fallthru
      _
    // Predicated region
    $region102: #{soybean_forward.1} parent=1 // pred_check
      _
    $region103: #{soybean_forward.1} parent=1 // pred_check_branch
      %242 = sbr.rel (0) target = $region105
    $region104: #{soybean_forward.1} parent=1 // pred_region
      _
    $region105: #{soybean_forward.1} parent=1 // pred_fallthru
      _
    // Predicated region
    $region106: #{soybean_forward.1} parent=1 // pred_check
      _
    $region107: #{soybean_forward.1} parent=1 // pred_check_branch
      %244 = sbr.rel (0) target = $region109
    $region108: #{soybean_forward.1} parent=1 // pred_region
      _
    $region109: #{soybean_forward.1} parent=1 // pred_fallthru
      _
    // Predicated region
    $region110: #{soybean_forward.1} parent=1 // pred_check
      _
    $region111: #{soybean_forward.1} parent=1 // pred_check_branch
      %246 = sbr.rel (0) target = $region113
    $region112: #{soybean_forward.1} parent=1 // pred_region
      _
    $region113: #{soybean_forward.1} parent=1 // pred_fallthru
      _
    // Predicated region
    $region114: #{soybean_forward.1} parent=1 // pred_check
      _
    $region115: #{soybean_forward.1} parent=1 // pred_check_branch
      %248 = sbr.rel (0) target = $region117
    $region116: #{soybean_forward.1} parent=1 // pred_region
      _
    $region117: #{soybean_forward.1} parent=1 // pred_fallthru
      _
    // Predicated region
    $region118: #{soybean_forward.1} parent=1 // pred_check
      _
    $region119: #{soybean_forward.1} parent=1 // pred_check_branch
      %250 = sbr.rel (0) target = $region121
    $region120: #{soybean_forward.1} parent=1 // pred_region
      %s252 = ssub.s32 384, 384
      %253 = vsyncadd [#allocation23], %s252
      %s254 = sshll.u32 [#allocation22], 4
      %s255 = int_to_ptr.vmem [resolvable:$true] %s254
      %260 = dma.hbm_to_vmem [thread:$0]  %s59, 384, %s255, [#allocation23], 128, 128, 8
    $region121: #{soybean_forward.1} parent=1 // pred_fallthru
      _
    // Predicated region
    $region122: #{soybean_forward.1} parent=1 // pred_check
      _
    $region123: #{soybean_forward.1} parent=1 // pred_check_branch
      %262 = sbr.rel (0) target = $region125
    $region124: #{soybean_forward.1} parent=1 // pred_region
      _
    $region125: #{soybean_forward.1} parent=1 // pred_fallthru
      _
    // Predicated region
    $region126: #{soybean_forward.1} parent=1 // pred_check
      _
    $region127: #{soybean_forward.1} parent=1 // pred_check_branch
      %264 = sbr.rel (0) target = $region129
    $region128: #{soybean_forward.1} parent=1 // pred_region
      %s266 = ssub.s32 256, 256
      %267 = vsyncadd [#allocation23], %s266
      %s268 = sshll.u32 [#allocation24], 4
      %s269 = int_to_ptr.vmem [resolvable:$true] %s268
      %274 = dma.hbm_to_vmem [thread:$0]  %s63, 256, %s269, [#allocation23], 128, 128, 8
    $region129: #{soybean_forward.1} parent=1 // pred_fallthru
      _
    // Predicated region
    $region130: #{soybean_forward.1} parent=1 // pred_check
      _
    $region131: #{soybean_forward.1} parent=1 // pred_check_branch
      %276 = sbr.rel (0) target = $region133
    $region132: #{soybean_forward.1} parent=1 // pred_region
      %s278 = ssub.s32 18688, 18688
      %279 = vsyncadd [#allocation26], %s278
      %s280 = sshll.u32 [#allocation25], 4
      %s281 = int_to_ptr.vmem [resolvable:$true] %s280
      %286 = dma.hbm_to_vmem [thread:$0]  %s65, 18688, %s281, [#allocation26], 256, 256, 16
    $region133: #{soybean_forward.1} parent=1 // pred_fallthru
      _
    // Predicated region
    $region134: #{soybean_forward.1} parent=1 // pred_check
      _
    $region135: #{soybean_forward.1} parent=1 // pred_check_branch
      %288 = sbr.rel (0) target = $region137
    $region136: #{soybean_forward.1} parent=1 // pred_region
      %s290 = ssub.s32 32, 32
      %291 = vsyncadd [#allocation26], %s290
      %s293 = sshll.u32 [#allocation27], 4
      %s294 = int_to_ptr.vmem [resolvable:$true] %s293
      %296 = dma.hbm_to_vmem [thread:$0]  %s67, 32, %s294, [#allocation26]
    $region137: #{soybean_forward.1} parent=1 // pred_fallthru
      _
    // Predicated region
    $region138: #{soybean_forward.1} parent=1 // pred_check
      _
    $region139: #{soybean_forward.1} parent=1 // pred_check_branch
      %298 = sbr.rel (0) target = $region141
    $region140: #{soybean_forward.1} parent=1 // pred_region
      _
    $region141: #{soybean_forward.1} parent=1 // pred_fallthru
      _
    // Predicated region
    $region142: #{soybean_forward.1} parent=1 // pred_check
      _
    $region143: #{soybean_forward.1} parent=1 // pred_check_branch
      %300 = sbr.rel (0) target = $region145
    $region144: #{soybean_forward.1} parent=1 // pred_region
      %s302 = ssub.s32 16, 16
      %303 = vsyncadd [#allocation29], %s302
      %s305 = sshll.u32 [#allocation28], 4
      %s306 = int_to_ptr.vmem [resolvable:$true] %s305
      %308 = dma.hbm_to_vmem [thread:$0]  %s71, 16, %s306, [#allocation29]
    $region145: #{soybean_forward.1} parent=1 // pred_fallthru
      _
    // Predicated region
    $region146: #{soybean_forward.1} parent=1 // pred_check
      _
    $region147: #{soybean_forward.1} parent=1 // pred_check_branch
      %310 = sbr.rel (0) target = $region149
    $region148: #{soybean_forward.1} parent=1 // pred_region
      _
    $region149: #{soybean_forward.1} parent=1 // pred_fallthru
      _
    // Predicated region
    $region150: #{soybean_forward.1} parent=1 // pred_check
      _
    $region151: #{soybean_forward.1} parent=1 // pred_check_branch
      %312 = sbr.rel (0) target = $region153
    $region152: #{soybean_forward.1} parent=1 // pred_region
      _
    $region153: #{soybean_forward.1} parent=1 // pred_fallthru
      _
    // Predicated region
    $region154: #{soybean_forward.1} parent=1 // pred_check
      _
    $region155: #{soybean_forward.1} parent=1 // pred_check_branch
      %314 = sbr.rel (0) target = $region157
    $region156: #{soybean_forward.1} parent=1 // pred_region
      %315 = dma.done [#allocation6], 32
    $region157: #{soybean_forward.1} parent=1 // pred_fallthru
      _
    // Predicated region
    $region158: #{soybean_forward.1} parent=1 // pred_check
      _
    $region159: #{soybean_forward.1} parent=1 // pred_check_branch
      %317 = sbr.rel (0) target = $region161
    $region160: #{soybean_forward.1} parent=1 // pred_region
      %318 = dma.done [#allocation8], 128
    $region161: #{soybean_forward.1} parent=1 // pred_fallthru
      _
    // Predicated region
    $region162: #{soybean_forward.1} parent=1 // pred_check
      _
    $region163: #{soybean_forward.1} parent=1 // pred_check_branch
      %320 = sbr.rel (0) target = $region165
    $region164: #{soybean_forward.1} parent=1 // pred_region
      %321 = dma.done [#allocation8], 256
    $region165: #{soybean_forward.1} parent=1 // pred_fallthru
      _
    // Predicated region
    $region166: #{soybean_forward.1} parent=1 // pred_check
      _
    $region167: #{soybean_forward.1} parent=1 // pred_check_branch
      %323 = sbr.rel (0) target = $region169
    $region168: #{soybean_forward.1} parent=1 // pred_region
      %324 = dma.done [#allocation11], 256
    $region169: #{soybean_forward.1} parent=1 // pred_fallthru
      _
    // Predicated region
    $region170: #{soybean_forward.1} parent=1 // pred_check
      _
    $region171: #{soybean_forward.1} parent=1 // pred_check_branch
      %326 = sbr.rel (0) target = $region173
    $region172: #{soybean_forward.1} parent=1 // pred_region
      %327 = dma.done [#allocation11], 384
    $region173: #{soybean_forward.1} parent=1 // pred_fallthru
      _
    // Predicated region
    $region174: #{soybean_forward.1} parent=1 // pred_check
      _
    $region175: #{soybean_forward.1} parent=1 // pred_check_branch
      %329 = sbr.rel (0) target = $region177
    $region176: #{soybean_forward.1} parent=1 // pred_region
      %330 = dma.done [#allocation14], 64
    $region177: #{soybean_forward.1} parent=1 // pred_fallthru
      _
    // Predicated region
    $region178: #{soybean_forward.1} parent=1 // pred_check
      _
    $region179: #{soybean_forward.1} parent=1 // pred_check_branch
      %332 = sbr.rel (0) target = $region181
    $region180: #{soybean_forward.1} parent=1 // pred_region
      %333 = dma.done [#allocation14], 128
    $region181: #{soybean_forward.1} parent=1 // pred_fallthru
      _
    // Predicated region
    $region182: #{soybean_forward.1} parent=1 // pred_check
      _
    $region183: #{soybean_forward.1} parent=1 // pred_check_branch
      %335 = sbr.rel (0) target = $region185
    $region184: #{soybean_forward.1} parent=1 // pred_region
      %336 = dma.done [#allocation17], 256
    $region185: #{soybean_forward.1} parent=1 // pred_fallthru
      _
    // Predicated region
    $region186: #{soybean_forward.1} parent=1 // pred_check
      _
    $region187: #{soybean_forward.1} parent=1 // pred_check_branch
      %338 = sbr.rel (0) target = $region189
    $region188: #{soybean_forward.1} parent=1 // pred_region
      %339 = dma.done [#allocation17], 64
    $region189: #{soybean_forward.1} parent=1 // pred_fallthru
      _
    // Predicated region
    $region190: #{soybean_forward.1} parent=1 // pred_check
      _
    $region191: #{soybean_forward.1} parent=1 // pred_check_branch
      %341 = sbr.rel (0) target = $region193
    $region192: #{soybean_forward.1} parent=1 // pred_region
      %342 = dma.done [#allocation20], 128
    $region193: #{soybean_forward.1} parent=1 // pred_fallthru
      _
    // Predicated region
    $region194: #{soybean_forward.1} parent=1 // pred_check
      _
    $region195: #{soybean_forward.1} parent=1 // pred_check_branch
      %344 = sbr.rel (0) target = $region197
    $region196: #{soybean_forward.1} parent=1 // pred_region
      %345 = dma.done [#allocation20], 11520
    $region197: #{soybean_forward.1} parent=1 // pred_fallthru
      _
    // Predicated region
    $region198: #{soybean_forward.1} parent=1 // pred_check
      _
    $region199: #{soybean_forward.1} parent=1 // pred_check_branch
      %347 = sbr.rel (0) target = $region201
    $region200: #{soybean_forward.1} parent=1 // pred_region
      %348 = dma.done [#allocation23], 384
    $region201: #{soybean_forward.1} parent=1 // pred_fallthru
      _
    // Predicated region
    $region202: #{soybean_forward.1} parent=1 // pred_check
      _
    $region203: #{soybean_forward.1} parent=1 // pred_check_branch
      %350 = sbr.rel (0) target = $region205
    $region204: #{soybean_forward.1} parent=1 // pred_region
      %351 = dma.done [#allocation23], 256
    $region205: #{soybean_forward.1} parent=1 // pred_fallthru
      _
    // Predicated region
    $region206: #{soybean_forward.1} parent=1 // pred_check
      _
    $region207: #{soybean_forward.1} parent=1 // pred_check_branch
      %353 = sbr.rel (0) target = $region209
    $region208: #{soybean_forward.1} parent=1 // pred_region
      %354 = dma.done [#allocation26], 18688
    $region209: #{soybean_forward.1} parent=1 // pred_fallthru
      _
    // Predicated region
    $region210: #{soybean_forward.1} parent=1 // pred_check
      _
    $region211: #{soybean_forward.1} parent=1 // pred_check_branch
      %356 = sbr.rel (0) target = $region213
    $region212: #{soybean_forward.1} parent=1 // pred_region
      %357 = dma.done [#allocation26], 32
    $region213: #{soybean_forward.1} parent=1 // pred_fallthru
      _
    // Predicated region
    $region214: #{soybean_forward.1} parent=1 // pred_check
      _
    $region215: #{soybean_forward.1} parent=1 // pred_check_branch
      %359 = sbr.rel (0) target = $region217
    $region216: #{soybean_forward.1} parent=1 // pred_region
      %360 = dma.done [#allocation29], 16
    $region217: #{soybean_forward.1} parent=1 // pred_fallthru
      _
    %v361 = vld [vmem:[%s1] sm:$0x3f]
    %v362 = vld [vmem:[%s1 + $0x8] sm:$0x3f]
    %v363 = vld [vmem:[%s1 + $0x10] sm:$0x3f]
    %s364 = scalar_lea.vmem %s1, 24
    %v365 = vld [vmem:[%s364] sm:$0x3f]
    %v366 = vld [vmem:[%s364 + $0x8] sm:$0x3f]
    %v367 = vld [vmem:[%s364 + $0x10] sm:$0x3f]
    %v368 = vld [vmem:[#allocation7] sm:$0xff]
    %v369 = vld [vmem:[%s11] sm:$0xff]
    %370 = vst [vmem:[#allocation2] sm:$0x3f] %v361
    %371 = vst [vmem:[#allocation2 + $0x8] sm:$0x3f] %v362
    %vm372 = vcmask 824320
    %373 = vst.msk [vmem:[#allocation2 + $0x10] sm:$0x3f] %vm372, %v363
    %v377 = vrot.slane %v361, 2
    %v378 = vrot.slane %v362, 2
    %v379 = vrot.slane %v363, 2
    %380 = vrot.lane.b32.xlu0 %v377, 127
    %v381 = vpop.permute.xlu0 %380
    %382 = vrot.lane.b32.xlu0 %v378, 127
    %v383 = vpop.permute.xlu0 %382
    %384 = vrot.lane.b32.xlu0 %v379, 127
    %v385 = vpop.permute.xlu0 %384
    %vm386 = vcmask 1039360
    %v387 = vsel %vm386, %v381, %v383
    %v388 = vsel %vm386, %v383, %v385
    %392 = vst [vmem:[#allocation2] sm:$0xc0] %v387
    %393 = vst [vmem:[#allocation2 + $0x8] sm:$0xc0] %v388
    %vm394 = vcmask 826374
    %395 = vst.msk [vmem:[#allocation2 + $0x10] sm:$0xc0] %vm394, %v385
    %396 = vst [vmem:[#allocation2 + $0x18] sm:$0xf] %v387
    %397 = vst [vmem:[#allocation2 + $0x20] sm:$0xf] %v388
    %vm398 = vcmask 822272
    %399 = vst.msk [vmem:[#allocation2 + $0x28] sm:$0xf] %vm398, %v385
    %v400 = vrot.slane %v361, 4
    %v401 = vrot.slane %v362, 4
    %v402 = vrot.slane %v363, 4
    %403 = vrot.lane.b32.xlu0 %v400, 126
    %v404 = vpop.permute.xlu0 %403
    %405 = vrot.lane.b32.xlu0 %v401, 126
    %v406 = vpop.permute.xlu0 %405
    %407 = vrot.lane.b32.xlu0 %v402, 126
    %v408 = vpop.permute.xlu0 %407
    %vm409 = vcmask 1031168
    %v410 = vsel %vm409, %v404, %v406
    %v411 = vsel %vm409, %v406, %v408
    %415 = vst [vmem:[#allocation2 + $0x18] sm:$0xf0] %v410
    %416 = vst [vmem:[#allocation2 + $0x20] sm:$0xf0] %v411
    %vm417 = vcmask 826372
    %418 = vst.msk [vmem:[#allocation2 + $0x28] sm:$0xf0] %vm417, %v408
    %419 = vst [vmem:[#allocation2 + $0x30] sm:$0x3] %v410
    %420 = vst [vmem:[#allocation2 + $0x38] sm:$0x3] %v411
    %vm421 = vcmask 820224
    %422 = vst.msk [vmem:[#allocation2 + $0x40] sm:$0x3] %vm421, %v408
    %v423 = vrot.slane %v361, 6
    %v424 = vrot.slane %v362, 6
    %v425 = vrot.slane %v363, 6
    %426 = vrot.lane.b32.xlu0 %v423, 125
    %v427 = vpop.permute.xlu0 %426
    %428 = vrot.lane.b32.xlu0 %v424, 125
    %v429 = vpop.permute.xlu0 %428
    %430 = vrot.lane.b32.xlu0 %v425, 125
    %v431 = vpop.permute.xlu0 %430
    %vm432 = vcmask 1022976
    %v433 = vsel %vm432, %v427, %v429
    %v434 = vsel %vm432, %v429, %v431
    %438 = vst [vmem:[#allocation2 + $0x30] sm:$0xfc] %v433
    %439 = vst [vmem:[#allocation2 + $0x38] sm:$0xfc] %v434
    %vm440 = vcmask 826370
    %441 = vst.msk [vmem:[#allocation2 + $0x40] sm:$0xfc] %vm440, %v431
    %442 = vrot.lane.b32.xlu0 %v361, 124
    %v443 = vpop.permute.xlu0 %442
    %444 = vrot.lane.b32.xlu0 %v362, 124
    %v445 = vpop.permute.xlu0 %444
    %446 = vrot.lane.b32.xlu0 %v363, 124
    %v447 = vpop.permute.xlu0 %446
    %vm448 = vcmask 1014784
    %v449 = vsel %vm448, %v443, %v445
    %v450 = vsel %vm448, %v445, %v447
    %454 = vst [vmem:[#allocation2 + $0x48] sm:$0x3f] %v449
    %455 = vst [vmem:[#allocation2 + $0x50] sm:$0x3f] %v450
    %456 = vst.msk [vmem:[#allocation2 + $0x58] sm:$0x3f] %vm372, %v447
    %457 = vrot.lane.b32.xlu0 %v377, 123
    %v458 = vpop.permute.xlu0 %457
    %459 = vrot.lane.b32.xlu0 %v378, 123
    %v460 = vpop.permute.xlu0 %459
    %461 = vrot.lane.b32.xlu0 %v379, 123
    %v462 = vpop.permute.xlu0 %461
    %vm463 = vcmask 1006592
    %v464 = vsel %vm463, %v458, %v460
    %v465 = vsel %vm463, %v460, %v462
    %469 = vst [vmem:[#allocation2 + $0x48] sm:$0xc0] %v464
    %470 = vst [vmem:[#allocation2 + $0x50] sm:$0xc0] %v465
    %471 = vst.msk [vmem:[#allocation2 + $0x58] sm:$0xc0] %vm394, %v462
    %472 = vst [vmem:[#allocation2 + $0x60] sm:$0xf] %v464
    %473 = vst [vmem:[#allocation2 + $0x68] sm:$0xf] %v465
    %474 = vst.msk [vmem:[#allocation2 + $0x70] sm:$0xf] %vm398, %v462
    %475 = vrot.lane.b32.xlu0 %v400, 122
    %v476 = vpop.permute.xlu0 %475
    %477 = vrot.lane.b32.xlu0 %v401, 122
    %v478 = vpop.permute.xlu0 %477
    %479 = vrot.lane.b32.xlu0 %v402, 122
    %v480 = vpop.permute.xlu0 %479
    %vm481 = vcmask 998400
    %v482 = vsel %vm481, %v476, %v478
    %v483 = vsel %vm481, %v478, %v480
    %487 = vst [vmem:[#allocation2 + $0x60] sm:$0xf0] %v482
    %488 = vst [vmem:[#allocation2 + $0x68] sm:$0xf0] %v483
    %489 = vst.msk [vmem:[#allocation2 + $0x70] sm:$0xf0] %vm417, %v480
    %490 = vst [vmem:[#allocation2 + $0x78] sm:$0x3] %v482
    %491 = vst [vmem:[#allocation2 + $0x80] sm:$0x3] %v483
    %492 = vst.msk [vmem:[#allocation2 + $0x88] sm:$0x3] %vm421, %v480
    %493 = vrot.lane.b32.xlu0 %v423, 121
    %v494 = vpop.permute.xlu0 %493
    %495 = vrot.lane.b32.xlu0 %v424, 121
    %v496 = vpop.permute.xlu0 %495
    %497 = vrot.lane.b32.xlu0 %v425, 121
    %v498 = vpop.permute.xlu0 %497
    %vm499 = vcmask 990208
    %v500 = vsel %vm499, %v494, %v496
    %v501 = vsel %vm499, %v496, %v498
    %505 = vst [vmem:[#allocation2 + $0x78] sm:$0xfc] %v500
    %506 = vst [vmem:[#allocation2 + $0x80] sm:$0xfc] %v501
    %507 = vst.msk [vmem:[#allocation2 + $0x88] sm:$0xfc] %vm440, %v498
    %508 = vrot.lane.b32.xlu0 %v361, 120
    %v509 = vpop.permute.xlu0 %508
    %510 = vrot.lane.b32.xlu0 %v362, 120
    %v511 = vpop.permute.xlu0 %510
    %512 = vrot.lane.b32.xlu0 %v363, 120
    %v513 = vpop.permute.xlu0 %512
    %vm514 = vcmask 982016
    %v515 = vsel %vm514, %v509, %v511
    %v516 = vsel %vm514, %v511, %v513
    %520 = vst [vmem:[#allocation2 + $0x90] sm:$0x3f] %v515
    %521 = vst [vmem:[#allocation2 + $0x98] sm:$0x3f] %v516
    %522 = vst.msk [vmem:[#allocation2 + $0xa0] sm:$0x3f] %vm372, %v513
    %v523 = vld [vmem:[#allocation2] sm:$0xff]
    %v524 = vld [vmem:[#allocation2 + $0x8] sm:$0xff]
    %v525 = vld [vmem:[#allocation2 + $0x10] sm:$0xff]
    %v526 = vld [vmem:[#allocation2 + $0x18] sm:$0xff]
    %v527 = vld [vmem:[#allocation2 + $0x20] sm:$0xff]
    %v528 = vld [vmem:[#allocation2 + $0x28] sm:$0xff]
    %v529 = vld [vmem:[#allocation2 + $0x30] sm:$0xff]
    %v530 = vld [vmem:[#allocation2 + $0x38] sm:$0xff]
    %v531 = vld [vmem:[#allocation2 + $0x40] sm:$0xff]
    %v532 = vld [vmem:[#allocation2 + $0x48] sm:$0xff]
    %v533 = vld [vmem:[#allocation2 + $0x50] sm:$0xff]
    %v534 = vld [vmem:[#allocation2 + $0x58] sm:$0xff]
    %v535 = vld [vmem:[#allocation2 + $0x60] sm:$0xff]
    %v536 = vld [vmem:[#allocation2 + $0x68] sm:$0xff]
    %v537 = vld [vmem:[#allocation2 + $0x70] sm:$0xff]
    %v538 = vld [vmem:[#allocation2 + $0x78] sm:$0xff]
    %v539 = vld [vmem:[#allocation2 + $0x80] sm:$0xff]
    %v540 = vld [vmem:[#allocation2 + $0x88] sm:$0xff]
    %v541 = vld [vmem:[#allocation2 + $0x90] sm:$0x3f]
    %v542 = vld [vmem:[#allocation2 + $0x98] sm:$0x3f]
    %v543 = vld [vmem:[#allocation2 + $0xa0] sm:$0x3f]
    %545 = vset.pattern.permute.xlu0 0
    %546 = vperm.xlu0 %545, %v369
    %v547 = vpop.permute.xlu0 %546
    %vm549 = vcmask 441344
    %v551 = vsel %vm549, %v368, 0
    %vm553 = vcmask 1045504
    %v555 = vsel %vm553, %v541, 0
    %v558 = vsel %vm553, %v542, 0
    %v561 = vsel %vm553, %v543, 0
    %563 = vmatprep.subr.mxu0 0.0
    %564 = vmatpush1.msra.mxu0 0.0
    %565 = vmatprep.subr.mxu0 0.0
    %566 = vmatpush1.msra.mxu0 0.0
    %567 = vmatprep.subr.mxu0 0.0
    %568 = vmatpush1.msra.mxu0 0.0
    %569 = vmatprep.subr.mxu0 0.0
    %570 = vmatpush1.msra.mxu0 0.0
    %571 = vmatprep.subr.mxu0 0.0
    %572 = vmatpush1.msra.mxu0 0.0
    %573 = vmatprep.subr.mxu0 0.0
    %574 = vmatpush1.msra.mxu0 0.0
    %575 = vmatprep.subr.mxu0 0.0
    %576 = vmatpush1.msra.mxu0 0.0
    %577 = vmatprep.subr.mxu0 0.0
    %578 = vmatpush1.msra.mxu0 0.0
    %579 = vmatprep.subr.mxu0 0.0
    %580 = vmatpush1.msra.mxu0 0.0
    %581 = vmatprep.subr.mxu0 %v558
    %582 = vmatpush1.msra.mxu0 %v555
    %583 = vmatprep.subr.mxu0 %v539
    %584 = vmatpush1.msra.mxu0 %v538
    %585 = vmatprep.subr.mxu0 %v536
    %586 = vmatpush1.msra.mxu0 %v535
    %587 = vmatprep.subr.mxu0 %v533
    %588 = vmatpush1.msra.mxu0 %v532
    %589 = vmatprep.subr.mxu0 %v530
    %590 = vmatpush1.msra.mxu0 %v529
    %591 = vmatprep.subr.mxu0 %v527
    %592 = vmatpush1.msra.mxu0 %v526
    %593 = vmatprep.subr.mxu0 %v524
    %594 = vmatpush1.msra.mxu0 %v523
    %595 = vmatprep.subr.mxu0 0.0
    %596 = vmatpush2.msra.mxu0 0.0
    %597 = vmatprep.subr.mxu0 0.0
    %598 = vmatpush2.msra.mxu0 0.0
    %599 = vmatprep.subr.mxu0 0.0
    %600 = vmatpush2.msra.mxu0 0.0
    %601 = vmatprep.subr.mxu0 0.0
    %602 = vmatpush2.msra.mxu0 0.0
    %603 = vmatprep.subr.mxu0 0.0
    %604 = vmatpush2.msra.mxu0 0.0
    %605 = vmatprep.subr.mxu0 0.0
    %606 = vmatpush2.msra.mxu0 0.0
    %607 = vmatprep.subr.mxu0 0.0
    %608 = vmatpush2.msra.mxu0 0.0
    %609 = vmatprep.subr.mxu0 0.0
    %610 = vmatpush2.msra.mxu0 0.0
    %611 = vmatprep.subr.mxu0 0.0
    %612 = vmatpush2.msra.mxu0 0.0
    %613 = vmatprep.subr.mxu0 0.0
    %614 = vmatpush2.msra.mxu0 0.0
    %615 = vmatprep.subr.mxu0 0.0
    %616 = vmatpush2.msra.mxu0 0.0
    %617 = vmatprep.subr.mxu0 0.0
    %618 = vmatpush2.msra.mxu0 0.0
    %619 = vmatprep.subr.mxu0 0.0
    %620 = vmatpush2.msra.mxu0 0.0
    %621 = vmatprep.subr.mxu0 0.0
    %622 = vmatpush2.msra.mxu0 0.0
    %623 = vmatprep.subr.mxu0 0.0
    %624 = vmatpush2.msra.mxu0 0.0
    %625 = vmatprep.subr.mxu0 0.0
    %626 = vmatpush2.msra.mxu0 0.0
    %627 = vmatprep.mubr.f32.mxu0 0.0
    %628 = vmatmul.mubr.f32.gmra.mxu0 %v551
    %v629 = vpop.f32.mrf.mxu0
    %v630 = vadd.f32 %v547, %v629
    %v631 = vpop.f32.mrf.mxu0
    %v632 = vadd.f32 %v547, %v631
    %633 = vdwg.mxu0
    %634 = vmatprep.subr.mxu0 0.0
    %635 = vmatpush1.msra.mxu0 0.0
    %636 = vmatprep.subr.mxu0 0.0
    %637 = vmatpush1.msra.mxu0 0.0
    %638 = vmatprep.subr.mxu0 0.0
    %639 = vmatpush1.msra.mxu0 0.0
    %640 = vmatprep.subr.mxu0 0.0
    %641 = vmatpush1.msra.mxu0 0.0
    %642 = vmatprep.subr.mxu0 0.0
    %643 = vmatpush1.msra.mxu0 0.0
    %644 = vmatprep.subr.mxu0 0.0
    %645 = vmatpush1.msra.mxu0 0.0
    %646 = vmatprep.subr.mxu0 0.0
    %647 = vmatpush1.msra.mxu0 0.0
    %648 = vmatprep.subr.mxu0 0.0
    %649 = vmatpush1.msra.mxu0 0.0
    %650 = vmatprep.subr.mxu0 0.0
    %651 = vmatpush1.msra.mxu0 0.0
    %652 = vmatprep.subr.mxu0 0.0
    %653 = vmatpush1.msra.mxu0 %v561
    %654 = vmatprep.subr.mxu0 0.0
    %655 = vmatpush1.msra.mxu0 %v540
    %656 = vmatprep.subr.mxu0 0.0
    %657 = vmatpush1.msra.mxu0 %v537
    %658 = vmatprep.subr.mxu0 0.0
    %659 = vmatpush1.msra.mxu0 %v534
    %660 = vmatprep.subr.mxu0 0.0
    %661 = vmatpush1.msra.mxu0 %v531
    %662 = vmatprep.subr.mxu0 0.0
    %663 = vmatpush1.msra.mxu0 %v528
    %664 = vmatprep.subr.mxu0 0.0
    %665 = vmatpush1.msra.mxu0 %v525
    %666 = vmatprep.subr.mxu0 0.0
    %667 = vmatpush2.msra.mxu0 0.0
    %668 = vmatprep.subr.mxu0 0.0
    %669 = vmatpush2.msra.mxu0 0.0
    %670 = vmatprep.subr.mxu0 0.0
    %671 = vmatpush2.msra.mxu0 0.0
    %672 = vmatprep.subr.mxu0 0.0
    %673 = vmatpush2.msra.mxu0 0.0
    %674 = vmatprep.subr.mxu0 0.0
    %675 = vmatpush2.msra.mxu0 0.0
    %676 = vmatprep.subr.mxu0 0.0
    %677 = vmatpush2.msra.mxu0 0.0
    %678 = vmatprep.subr.mxu0 0.0
    %679 = vmatpush2.msra.mxu0 0.0
    %680 = vmatprep.subr.mxu0 0.0
    %681 = vmatpush2.msra.mxu0 0.0
    %682 = vmatprep.subr.mxu0 0.0
    %683 = vmatpush2.msra.mxu0 0.0
    %684 = vmatprep.subr.mxu0 0.0
    %685 = vmatpush2.msra.mxu0 0.0
    %686 = vmatprep.subr.mxu0 0.0
    %687 = vmatpush2.msra.mxu0 0.0
    %688 = vmatprep.subr.mxu0 0.0
    %689 = vmatpush2.msra.mxu0 0.0
    %690 = vmatprep.subr.mxu0 0.0
    %691 = vmatpush2.msra.mxu0 0.0
    %692 = vmatprep.subr.mxu0 0.0
    %693 = vmatpush2.msra.mxu0 0.0
    %694 = vmatprep.subr.mxu0 0.0
    %695 = vmatpush2.msra.mxu0 0.0
    %696 = vmatprep.subr.mxu0 0.0
    %697 = vmatpush2.msra.mxu0 0.0
    %698 = vmatprep.mubr.f32.mxu0 0.0
    %699 = vmatmul.mubr.f32.gmra.mxu0 %v551
    %v700 = vpop.f32.mrf.mxu0
    %v701 = vadd.f32 %v547, %v700
    %v702 = vpop.f32.mrf.mxu0
    %703 = vdwg.mxu0
    %v704 = vmax.f32 %v630, 0.0
    %v705 = vmax.f32 %v632, 0.0
    %v706 = vmax.f32 %v701, 0.0
    %v707 = vadd.f32 %v704, %v705
    %vm708 = vcmask 826368
    %v709 = vsel %vm708, %v706, 0.0
    %v710 = vadd.f32 %v707, %v709
    %711 = vadd.xlane.f32.xlu0 %v710
    %v712 = vpop.xlane.xlu0 %711
    %v713 = vmul.f32 %v704, %v704
    %v714 = vmul.f32 %v705, %v705
    %v715 = vmul.f32 %v706, %v706
    %v716 = vadd.f32 %v713, %v714
    %v717 = vsel %vm708, %v715, 0.0
    %v718 = vadd.f32 %v716, %v717
    %719 = vadd.xlane.f32.xlu0 %v718
    %v720 = vpop.xlane.xlu0 %719
    %s721 = scalar_lea.vmem [#allocation2], 168
    %722 = vst [vmem:[%s721] sm:$0x3f] %v365
    %723 = vst [vmem:[%s721 + $0x8] sm:$0x3f] %v366
    %724 = vst.msk [vmem:[%s721 + $0x10] sm:$0x3f] %vm372, %v367
    %v728 = vrot.slane %v365, 2
    %v729 = vrot.slane %v366, 2
    %v730 = vrot.slane %v367, 2
    %731 = vrot.lane.b32.xlu0 %v728, 127
    %v732 = vpop.permute.xlu0 %731
    %733 = vrot.lane.b32.xlu0 %v729, 127
    %v734 = vpop.permute.xlu0 %733
    %735 = vrot.lane.b32.xlu0 %v730, 127
    %v736 = vpop.permute.xlu0 %735
    %v737 = vsel %vm386, %v732, %v734
    %v738 = vsel %vm386, %v734, %v736
    %742 = vst [vmem:[%s721] sm:$0xc0] %v737
    %743 = vst [vmem:[%s721 + $0x8] sm:$0xc0] %v738
    %744 = vst.msk [vmem:[%s721 + $0x10] sm:$0xc0] %vm394, %v736
    %745 = vst [vmem:[%s721 + $0x18] sm:$0xf] %v737
    %746 = vst [vmem:[%s721 + $0x20] sm:$0xf] %v738
    %747 = vst.msk [vmem:[%s721 + $0x28] sm:$0xf] %vm398, %v736
    %v748 = vrot.slane %v365, 4
    %v749 = vrot.slane %v366, 4
    %v750 = vrot.slane %v367, 4
    %751 = vrot.lane.b32.xlu0 %v748, 126
    %v752 = vpop.permute.xlu0 %751
    %753 = vrot.lane.b32.xlu0 %v749, 126
    %v754 = vpop.permute.xlu0 %753
    %755 = vrot.lane.b32.xlu0 %v750, 126
    %v756 = vpop.permute.xlu0 %755
    %v757 = vsel %vm409, %v752, %v754
    %v758 = vsel %vm409, %v754, %v756
    %762 = vst [vmem:[%s721 + $0x18] sm:$0xf0] %v757
    %763 = vst [vmem:[%s721 + $0x20] sm:$0xf0] %v758
    %764 = vst.msk [vmem:[%s721 + $0x28] sm:$0xf0] %vm417, %v756
    %765 = vst [vmem:[%s721 + $0x30] sm:$0x3] %v757
    %766 = vst [vmem:[%s721 + $0x38] sm:$0x3] %v758
    %767 = vst.msk [vmem:[%s721 + $0x40] sm:$0x3] %vm421, %v756
    %v768 = vrot.slane %v365, 6
    %v769 = vrot.slane %v366, 6
    %v770 = vrot.slane %v367, 6
    %771 = vrot.lane.b32.xlu0 %v768, 125
    %v772 = vpop.permute.xlu0 %771
    %773 = vrot.lane.b32.xlu0 %v769, 125
    %v774 = vpop.permute.xlu0 %773
    %775 = vrot.lane.b32.xlu0 %v770, 125
    %v776 = vpop.permute.xlu0 %775
    %v777 = vsel %vm432, %v772, %v774
    %v778 = vsel %vm432, %v774, %v776
    %782 = vst [vmem:[%s721 + $0x30] sm:$0xfc] %v777
    %783 = vst [vmem:[%s721 + $0x38] sm:$0xfc] %v778
    %784 = vst.msk [vmem:[%s721 + $0x40] sm:$0xfc] %vm440, %v776
    %785 = vrot.lane.b32.xlu0 %v365, 124
    %v786 = vpop.permute.xlu0 %785
    %787 = vrot.lane.b32.xlu0 %v366, 124
    %v788 = vpop.permute.xlu0 %787
    %789 = vrot.lane.b32.xlu0 %v367, 124
    %v790 = vpop.permute.xlu0 %789
    %v791 = vsel %vm448, %v786, %v788
    %v792 = vsel %vm448, %v788, %v790
    %796 = vst [vmem:[%s721 + $0x48] sm:$0x3f] %v791
    %797 = vst [vmem:[%s721 + $0x50] sm:$0x3f] %v792
    %798 = vst.msk [vmem:[%s721 + $0x58] sm:$0x3f] %vm372, %v790
    %799 = vrot.lane.b32.xlu0 %v728, 123
    %v800 = vpop.permute.xlu0 %799
    %801 = vrot.lane.b32.xlu0 %v729, 123
    %v802 = vpop.permute.xlu0 %801
    %803 = vrot.lane.b32.xlu0 %v730, 123
    %v804 = vpop.permute.xlu0 %803
    %v805 = vsel %vm463, %v800, %v802
    %v806 = vsel %vm463, %v802, %v804
    %810 = vst [vmem:[%s721 + $0x48] sm:$0xc0] %v805
    %811 = vst [vmem:[%s721 + $0x50] sm:$0xc0] %v806
    %812 = vst.msk [vmem:[%s721 + $0x58] sm:$0xc0] %vm394, %v804
    %813 = vst [vmem:[%s721 + $0x60] sm:$0xf] %v805
    %814 = vst [vmem:[%s721 + $0x68] sm:$0xf] %v806
    %815 = vst.msk [vmem:[%s721 + $0x70] sm:$0xf] %vm398, %v804
    %816 = vrot.lane.b32.xlu0 %v748, 122
    %v817 = vpop.permute.xlu0 %816
    %818 = vrot.lane.b32.xlu0 %v749, 122
    %v819 = vpop.permute.xlu0 %818
    %820 = vrot.lane.b32.xlu0 %v750, 122
    %v821 = vpop.permute.xlu0 %820
    %v822 = vsel %vm481, %v817, %v819
    %v823 = vsel %vm481, %v819, %v821
    %827 = vst [vmem:[%s721 + $0x60] sm:$0xf0] %v822
    %828 = vst [vmem:[%s721 + $0x68] sm:$0xf0] %v823
    %829 = vst.msk [vmem:[%s721 + $0x70] sm:$0xf0] %vm417, %v821
    %830 = vst [vmem:[%s721 + $0x78] sm:$0x3] %v822
    %831 = vst [vmem:[%s721 + $0x80] sm:$0x3] %v823
    %832 = vst.msk [vmem:[%s721 + $0x88] sm:$0x3] %vm421, %v821
    %833 = vrot.lane.b32.xlu0 %v768, 121
    %v834 = vpop.permute.xlu0 %833
    %835 = vrot.lane.b32.xlu0 %v769, 121
    %v836 = vpop.permute.xlu0 %835
    %837 = vrot.lane.b32.xlu0 %v770, 121
    %v838 = vpop.permute.xlu0 %837
    %v839 = vsel %vm499, %v834, %v836
    %v840 = vsel %vm499, %v836, %v838
    %844 = vst [vmem:[%s721 + $0x78] sm:$0xfc] %v839
    %845 = vst [vmem:[%s721 + $0x80] sm:$0xfc] %v840
    %846 = vst.msk [vmem:[%s721 + $0x88] sm:$0xfc] %vm440, %v838
    %847 = vrot.lane.b32.xlu0 %v365, 120
    %v848 = vpop.permute.xlu0 %847
    %849 = vrot.lane.b32.xlu0 %v366, 120
    %v850 = vpop.permute.xlu0 %849
    %851 = vrot.lane.b32.xlu0 %v367, 120
    %v852 = vpop.permute.xlu0 %851
    %v853 = vsel %vm514, %v848, %v850
    %v854 = vsel %vm514, %v850, %v852
    %858 = vst [vmem:[%s721 + $0x90] sm:$0x3f] %v853
    %859 = vst [vmem:[%s721 + $0x98] sm:$0x3f] %v854
    %860 = vst.msk [vmem:[%s721 + $0xa0] sm:$0x3f] %vm372, %v852
    %v861 = vld [vmem:[%s721] sm:$0xff]
    %v862 = vld [vmem:[%s721 + $0x8] sm:$0xff]
    %v863 = vld [vmem:[%s721 + $0x10] sm:$0xff]
    %v864 = vld [vmem:[%s721 + $0x18] sm:$0xff]
    %v865 = vld [vmem:[%s721 + $0x20] sm:$0xff]
    %v866 = vld [vmem:[%s721 + $0x28] sm:$0xff]
    %v867 = vld [vmem:[%s721 + $0x30] sm:$0xff]
    %v868 = vld [vmem:[%s721 + $0x38] sm:$0xff]
    %v869 = vld [vmem:[%s721 + $0x40] sm:$0xff]
    %v870 = vld [vmem:[%s721 + $0x48] sm:$0xff]
    %v871 = vld [vmem:[%s721 + $0x50] sm:$0xff]
    %v872 = vld [vmem:[%s721 + $0x58] sm:$0xff]
    %v873 = vld [vmem:[%s721 + $0x60] sm:$0xff]
    %v874 = vld [vmem:[%s721 + $0x68] sm:$0xff]
    %v875 = vld [vmem:[%s721 + $0x70] sm:$0xff]
    %v876 = vld [vmem:[%s721 + $0x78] sm:$0xff]
    %v877 = vld [vmem:[%s721 + $0x80] sm:$0xff]
    %v878 = vld [vmem:[%s721 + $0x88] sm:$0xff]
    %v879 = vld [vmem:[%s721 + $0x90] sm:$0x3f]
    %v880 = vld [vmem:[%s721 + $0x98] sm:$0x3f]
    %v881 = vld [vmem:[%s721 + $0xa0] sm:$0x3f]
    %v883 = vsel %vm553, %v879, 0
    %v886 = vsel %vm553, %v880, 0
    %v889 = vsel %vm553, %v881, 0
    %891 = vmatprep.subr.mxu0 0.0
    %892 = vmatpush1.msra.mxu0 0.0
    %893 = vmatprep.subr.mxu0 0.0
    %894 = vmatpush1.msra.mxu0 0.0
    %895 = vmatprep.subr.mxu0 0.0
    %896 = vmatpush1.msra.mxu0 0.0
    %897 = vmatprep.subr.mxu0 0.0
    %898 = vmatpush1.msra.mxu0 0.0
    %899 = vmatprep.subr.mxu0 0.0
    %900 = vmatpush1.msra.mxu0 0.0
    %901 = vmatprep.subr.mxu0 0.0
    %902 = vmatpush1.msra.mxu0 0.0
    %903 = vmatprep.subr.mxu0 0.0
    %904 = vmatpush1.msra.mxu0 0.0
    %905 = vmatprep.subr.mxu0 0.0
    %906 = vmatpush1.msra.mxu0 0.0
    %907 = vmatprep.subr.mxu0 0.0
    %908 = vmatpush1.msra.mxu0 0.0
    %909 = vmatprep.subr.mxu0 %v886
    %910 = vmatpush1.msra.mxu0 %v883
    %911 = vmatprep.subr.mxu0 %v877
    %912 = vmatpush1.msra.mxu0 %v876
    %913 = vmatprep.subr.mxu0 %v874
    %914 = vmatpush1.msra.mxu0 %v873
    %915 = vmatprep.subr.mxu0 %v871
    %916 = vmatpush1.msra.mxu0 %v870
    %917 = vmatprep.subr.mxu0 %v868
    %918 = vmatpush1.msra.mxu0 %v867
    %919 = vmatprep.subr.mxu0 %v865
    %920 = vmatpush1.msra.mxu0 %v864
    %921 = vmatprep.subr.mxu0 %v862
    %922 = vmatpush1.msra.mxu0 %v861
    %923 = vmatprep.subr.mxu0 0.0
    %924 = vmatpush2.msra.mxu0 0.0
    %925 = vmatprep.subr.mxu0 0.0
    %926 = vmatpush2.msra.mxu0 0.0
    %927 = vmatprep.subr.mxu0 0.0
    %928 = vmatpush2.msra.mxu0 0.0
    %929 = vmatprep.subr.mxu0 0.0
    %930 = vmatpush2.msra.mxu0 0.0
    %931 = vmatprep.subr.mxu0 0.0
    %932 = vmatpush2.msra.mxu0 0.0
    %933 = vmatprep.subr.mxu0 0.0
    %934 = vmatpush2.msra.mxu0 0.0
    %935 = vmatprep.subr.mxu0 0.0
    %936 = vmatpush2.msra.mxu0 0.0
    %937 = vmatprep.subr.mxu0 0.0
    %938 = vmatpush2.msra.mxu0 0.0
    %939 = vmatprep.subr.mxu0 0.0
    %940 = vmatpush2.msra.mxu0 0.0
    %941 = vmatprep.subr.mxu0 0.0
    %942 = vmatpush2.msra.mxu0 0.0
    %943 = vmatprep.subr.mxu0 0.0
    %944 = vmatpush2.msra.mxu0 0.0
    %945 = vmatprep.subr.mxu0 0.0
    %946 = vmatpush2.msra.mxu0 0.0
    %947 = vmatprep.subr.mxu0 0.0
    %948 = vmatpush2.msra.mxu0 0.0
    %949 = vmatprep.subr.mxu0 0.0
    %950 = vmatpush2.msra.mxu0 0.0
    %951 = vmatprep.subr.mxu0 0.0
    %952 = vmatpush2.msra.mxu0 0.0
    %953 = vmatprep.subr.mxu0 0.0
    %954 = vmatpush2.msra.mxu0 0.0
    %955 = vmatprep.mubr.f32.mxu0 0.0
    %956 = vmatmul.mubr.f32.gmra.mxu0 %v551
    %v957 = vpop.f32.mrf.mxu0
    %v958 = vadd.f32 %v547, %v957
    %v959 = vpop.f32.mrf.mxu0
    %v960 = vadd.f32 %v547, %v959
    %961 = vdwg.mxu0
    %962 = vmatprep.subr.mxu0 0.0
    %963 = vmatpush1.msra.mxu0 0.0
    %964 = vmatprep.subr.mxu0 0.0
    %965 = vmatpush1.msra.mxu0 0.0
    %966 = vmatprep.subr.mxu0 0.0
    %967 = vmatpush1.msra.mxu0 0.0
    %968 = vmatprep.subr.mxu0 0.0
    %969 = vmatpush1.msra.mxu0 0.0
    %970 = vmatprep.subr.mxu0 0.0
    %971 = vmatpush1.msra.mxu0 0.0
    %972 = vmatprep.subr.mxu0 0.0
    %973 = vmatpush1.msra.mxu0 0.0
    %974 = vmatprep.subr.mxu0 0.0
    %975 = vmatpush1.msra.mxu0 0.0
    %976 = vmatprep.subr.mxu0 0.0
    %977 = vmatpush1.msra.mxu0 0.0
    %978 = vmatprep.subr.mxu0 0.0
    %979 = vmatpush1.msra.mxu0 0.0
    %980 = vmatprep.subr.mxu0 0.0
    %981 = vmatpush1.msra.mxu0 %v889
    %982 = vmatprep.subr.mxu0 0.0
    %983 = vmatpush1.msra.mxu0 %v878
    %984 = vmatprep.subr.mxu0 0.0
    %985 = vmatpush1.msra.mxu0 %v875
    %986 = vmatprep.subr.mxu0 0.0
    %987 = vmatpush1.msra.mxu0 %v872
    %988 = vmatprep.subr.mxu0 0.0
    %989 = vmatpush1.msra.mxu0 %v869
    %990 = vmatprep.subr.mxu0 0.0
    %991 = vmatpush1.msra.mxu0 %v866
    %992 = vmatprep.subr.mxu0 0.0
    %993 = vmatpush1.msra.mxu0 %v863
    %994 = vmatprep.subr.mxu0 0.0
    %995 = vmatpush2.msra.mxu0 0.0
    %996 = vmatprep.subr.mxu0 0.0
    %997 = vmatpush2.msra.mxu0 0.0
    %998 = vmatprep.subr.mxu0 0.0
    %999 = vmatpush2.msra.mxu0 0.0
    %1000 = vmatprep.subr.mxu0 0.0
    %1001 = vmatpush2.msra.mxu0 0.0
    %1002 = vmatprep.subr.mxu0 0.0
    %1003 = vmatpush2.msra.mxu0 0.0
    %1004 = vmatprep.subr.mxu0 0.0
    %1005 = vmatpush2.msra.mxu0 0.0
    %1006 = vmatprep.subr.mxu0 0.0
    %1007 = vmatpush2.msra.mxu0 0.0
    %1008 = vmatprep.subr.mxu0 0.0
    %1009 = vmatpush2.msra.mxu0 0.0
    %1010 = vmatprep.subr.mxu0 0.0
    %1011 = vmatpush2.msra.mxu0 0.0
    %1012 = vmatprep.subr.mxu0 0.0
    %1013 = vmatpush2.msra.mxu0 0.0
    %1014 = vmatprep.subr.mxu0 0.0
    %1015 = vmatpush2.msra.mxu0 0.0
    %1016 = vmatprep.subr.mxu0 0.0
    %1017 = vmatpush2.msra.mxu0 0.0
    %1018 = vmatprep.subr.mxu0 0.0
    %1019 = vmatpush2.msra.mxu0 0.0
    %1020 = vmatprep.subr.mxu0 0.0
    %1021 = vmatpush2.msra.mxu0 0.0
    %1022 = vmatprep.subr.mxu0 0.0
    %1023 = vmatpush2.msra.mxu0 0.0
    %1024 = vmatprep.subr.mxu0 0.0
    %1025 = vmatpush2.msra.mxu0 0.0
    %1026 = vmatprep.mubr.f32.mxu0 0.0
    %1027 = vmatmul.mubr.f32.gmra.mxu0 %v551
    %v1028 = vpop.f32.mrf.mxu0
    %v1029 = vadd.f32 %v547, %v1028
    %v1030 = vpop.f32.mrf.mxu0
    %1031 = vdwg.mxu0
    %v1032 = vmax.f32 %v958, 0.0
    %v1033 = vmax.f32 %v960, 0.0
    %v1034 = vmax.f32 %v1029, 0.0
    %v1035 = vadd.f32 %v1032, %v1033
    %v1036 = vsel %vm708, %v1034, 0.0
    %v1037 = vadd.f32 %v1035, %v1036
    %1038 = vadd.xlane.f32.xlu0 %v1037
    %v1039 = vpop.xlane.xlu0 %1038
    %v1040 = vmul.f32 %v1032, %v1032
    %v1041 = vmul.f32 %v1033, %v1033
    %v1042 = vmul.f32 %v1034, %v1034
    %v1043 = vadd.f32 %v1040, %v1041
    %v1044 = vsel %vm708, %v1042, 0.0
    %v1045 = vadd.f32 %v1043, %v1044
    %1046 = vadd.xlane.f32.xlu0 %v1045
    %v1047 = vpop.xlane.xlu0 %1046
    %v1048 = vadd.f32 %v712, %v1039
    %v1049 = vadd.f32 %v720, %v1047
    %v1050 = vmul.f32 %v1048, 0.0014005603
    %v1051 = vmul.f32 %v1049, 0.0014005603
    %v1052 = vmul.f32 %v1050, %v1050
    %v1053 = vsub.f32 %v1051, %v1052
    %v1054 = vadd.f32 %v1053, 1e-05
    %v1055 = vrsqrt.pop %v1054
    %v1056 = vsub.f32 %v704, %v1050
    %v1057 = vsub.f32 %v705, %v1050
    %v1058 = vsub.f32 %v706, %v1050
    %v1059 = vmul.f32 %v1056, %v1055
    %v1060 = vmul.f32 %v1057, %v1055
    %v1061 = vmul.f32 %v1058, %v1055
    %v1062 = vld [vmem:[#allocation21] sm:$0xff]
    %v1063 = vld [vmem:[#allocation21 + $0x8] sm:$0xff]
    %v1064 = vld [vmem:[#allocation21 + $0x10] sm:$0xff]
    %v1065 = vld [vmem:[#allocation21 + $0x18] sm:$0xff]
    %v1066 = vld [vmem:[#allocation21 + $0x20] sm:$0xff]
    %v1067 = vld [vmem:[#allocation21 + $0x28] sm:$0xff]
    %v1068 = vld [vmem:[#allocation21 + $0x30] sm:$0xff]
    %v1069 = vld [vmem:[#allocation21 + $0x38] sm:$0xff]
    %v1070 = vld [vmem:[#allocation21 + $0x40] sm:$0xff]
    %v1071 = vld [vmem:[#allocation21 + $0x48] sm:$0xff]
    %v1072 = vld [vmem:[#allocation21 + $0x50] sm:$0xff]
    %v1073 = vld [vmem:[#allocation21 + $0x58] sm:$0xff]
    %v1074 = vld [vmem:[#allocation21 + $0x60] sm:$0xff]
    %v1075 = vld [vmem:[#allocation21 + $0x68] sm:$0xff]
    %v1076 = vld [vmem:[#allocation21 + $0x70] sm:$0xff]
    %v1077 = vld [vmem:[#allocation21 + $0x78] sm:$0xff]
    %v1078 = vld [vmem:[#allocation21 + $0x80] sm:$0xff]
    %v1079 = vld [vmem:[#allocation21 + $0x88] sm:$0xff]
    %v1080 = vld [vmem:[#allocation21 + $0x90] sm:$0xff]
    %v1081 = vld [vmem:[#allocation21 + $0x98] sm:$0xff]
    %v1082 = vld [vmem:[#allocation21 + $0xa0] sm:$0xff]
    %v1083 = vld [vmem:[#allocation21 + $0xa8] sm:$0xff]
    %v1084 = vld [vmem:[#allocation21 + $0xb0] sm:$0xff]
    %v1085 = vld [vmem:[#allocation21 + $0xb8] sm:$0xff]
    %v1086 = vld [vmem:[#allocation21 + $0xc0] sm:$0xff]
    %v1087 = vld [vmem:[#allocation21 + $0xc8] sm:$0xff]
    %v1088 = vld [vmem:[#allocation21 + $0xd0] sm:$0xff]
    %v1089 = vld [vmem:[#allocation21 + $0xd8] sm:$0xff]
    %v1090 = vld [vmem:[#allocation21 + $0xe0] sm:$0xff]
    %v1091 = vld [vmem:[#allocation21 + $0xe8] sm:$0xff]
    %v1092 = vld [vmem:[#allocation21 + $0xf0] sm:$0xff]
    %v1093 = vld [vmem:[#allocation21 + $0xf8] sm:$0xff]
    %v1094 = vld [vmem:[#allocation21 + $0x100] sm:$0xff]
    %v1095 = vld [vmem:[#allocation21 + $0x108] sm:$0xff]
    %v1096 = vld [vmem:[#allocation21 + $0x110] sm:$0xff]
    %v1097 = vld [vmem:[#allocation21 + $0x118] sm:$0xff]
    %v1098 = vld [vmem:[#allocation21 + $0x120] sm:$0xff]
    %v1099 = vld [vmem:[#allocation21 + $0x128] sm:$0xff]
    %v1100 = vld [vmem:[#allocation21 + $0x130] sm:$0xff]
    %v1101 = vld [vmem:[#allocation21 + $0x138] sm:$0xff]
    %v1102 = vld [vmem:[#allocation21 + $0x140] sm:$0xff]
    %v1103 = vld [vmem:[#allocation21 + $0x148] sm:$0xff]
    %v1104 = vld [vmem:[#allocation21 + $0x150] sm:$0xff]
    %v1105 = vld [vmem:[#allocation21 + $0x158] sm:$0xff]
    %v1106 = vld [vmem:[#allocation21 + $0x160] sm:$0xff]
    %v1107 = vld [vmem:[#allocation21 + $0x168] sm:$0xff]
    %v1108 = vld [vmem:[#allocation21 + $0x170] sm:$0xff]
    %v1109 = vld [vmem:[#allocation21 + $0x178] sm:$0xff]
    %v1110 = vld [vmem:[#allocation21 + $0x180] sm:$0xff]
    %v1111 = vld [vmem:[#allocation21 + $0x188] sm:$0xff]
    %v1112 = vld [vmem:[#allocation21 + $0x190] sm:$0xff]
    %v1113 = vld [vmem:[#allocation21 + $0x198] sm:$0xff]
    %v1114 = vld [vmem:[#allocation21 + $0x1a0] sm:$0xff]
    %v1115 = vld [vmem:[#allocation21 + $0x1a8] sm:$0xff]
    %v1116 = vld [vmem:[#allocation21 + $0x1b0] sm:$0xff]
    %v1117 = vld [vmem:[#allocation21 + $0x1b8] sm:$0xff]
    %v1118 = vld [vmem:[#allocation21 + $0x1c0] sm:$0xff]
    %v1119 = vld [vmem:[#allocation21 + $0x1c8] sm:$0xff]
    %v1120 = vld [vmem:[#allocation21 + $0x1d0] sm:$0xff]
    %v1121 = vld [vmem:[#allocation21 + $0x1d8] sm:$0xff]
    %v1122 = vld [vmem:[#allocation21 + $0x1e0] sm:$0xff]
    %v1123 = vld [vmem:[#allocation21 + $0x1e8] sm:$0xff]
    %v1124 = vld [vmem:[#allocation21 + $0x1f0] sm:$0xff]
    %v1125 = vld [vmem:[#allocation21 + $0x1f8] sm:$0xff]
    %v1126 = vld [vmem:[#allocation21 + $0x200] sm:$0xff]
    %v1127 = vld [vmem:[#allocation21 + $0x208] sm:$0xff]
    %v1128 = vld [vmem:[#allocation21 + $0x210] sm:$0xff]
    %v1129 = vld [vmem:[#allocation21 + $0x218] sm:$0xff]
    %v1130 = vld [vmem:[#allocation21 + $0x220] sm:$0xff]
    %v1131 = vld [vmem:[#allocation21 + $0x228] sm:$0xff]
    %v1132 = vld [vmem:[#allocation21 + $0x230] sm:$0xff]
    %v1133 = vld [vmem:[#allocation21 + $0x238] sm:$0xff]
    %v1134 = vld [vmem:[#allocation21 + $0x240] sm:$0xff]
    %v1135 = vld [vmem:[#allocation21 + $0x248] sm:$0xff]
    %v1136 = vld [vmem:[#allocation21 + $0x250] sm:$0xff]
    %v1137 = vld [vmem:[#allocation21 + $0x258] sm:$0xff]
    %v1138 = vld [vmem:[#allocation21 + $0x260] sm:$0xff]
    %v1139 = vld [vmem:[#allocation21 + $0x268] sm:$0xff]
    %v1140 = vld [vmem:[#allocation21 + $0x270] sm:$0xff]
    %v1141 = vld [vmem:[#allocation21 + $0x278] sm:$0xff]
    %v1142 = vld [vmem:[#allocation21 + $0x280] sm:$0xff]
    %v1143 = vld [vmem:[#allocation21 + $0x288] sm:$0xff]
    %v1144 = vld [vmem:[#allocation21 + $0x290] sm:$0xff]
    %v1145 = vld [vmem:[#allocation21 + $0x298] sm:$0xff]
    %v1146 = vld [vmem:[#allocation21 + $0x2a0] sm:$0xff]
    %v1147 = vld [vmem:[#allocation21 + $0x2a8] sm:$0xff]
    %v1148 = vld [vmem:[#allocation21 + $0x2b0] sm:$0xff]
    %v1149 = vld [vmem:[#allocation21 + $0x2b8] sm:$0xff]
    %v1150 = vld [vmem:[#allocation21 + $0x2c0] sm:$0x1f]
    %v1151 = vld [vmem:[#allocation21 + $0x2c8] sm:$0x1f]
    %v1153 = vsel %vm708, %v1061, 0
    %vm1155 = vcmask 1044480
    %v1157 = vsel %vm1155, %v1150, 0
    %v1160 = vsel %vm1155, %v1151, 0
    %1162 = vmatprep.subr.mxu0 %v1093
    %1163 = vmatpush1.msra.mxu0 %v1092
    %1164 = vmatprep.subr.mxu0 %v1091
    %1165 = vmatpush1.msra.mxu0 %v1090
    %1166 = vmatprep.subr.mxu0 %v1089
    %1167 = vmatpush1.msra.mxu0 %v1088
    %1168 = vmatprep.subr.mxu0 %v1087
    %1169 = vmatpush1.msra.mxu0 %v1086
    %1170 = vmatprep.subr.mxu0 %v1085
    %1171 = vmatpush1.msra.mxu0 %v1084
    %1172 = vmatprep.subr.mxu0 %v1083
    %1173 = vmatpush1.msra.mxu0 %v1082
    %1174 = vmatprep.subr.mxu0 %v1081
    %1175 = vmatpush1.msra.mxu0 %v1080
    %1176 = vmatprep.subr.mxu0 %v1079
    %1177 = vmatpush1.msra.mxu0 %v1078
    %1178 = vmatprep.subr.mxu0 %v1077
    %1179 = vmatpush1.msra.mxu0 %v1076
    %1180 = vmatprep.subr.mxu0 %v1075
    %1181 = vmatpush1.msra.mxu0 %v1074
    %1182 = vmatprep.subr.mxu0 %v1073
    %1183 = vmatpush1.msra.mxu0 %v1072
    %1184 = vmatprep.subr.mxu0 %v1071
    %1185 = vmatpush1.msra.mxu0 %v1070
    %1186 = vmatprep.subr.mxu0 %v1069
    %1187 = vmatpush1.msra.mxu0 %v1068
    %1188 = vmatprep.subr.mxu0 %v1067
    %1189 = vmatpush1.msra.mxu0 %v1066
    %1190 = vmatprep.subr.mxu0 %v1065
    %1191 = vmatpush1.msra.mxu0 %v1064
    %1192 = vmatprep.subr.mxu0 %v1063
    %1193 = vmatpush1.msra.mxu0 %v1062
    %1194 = vmatprep.subr.mxu0 %v1125
    %1195 = vmatpush2.msra.mxu0 %v1124
    %1196 = vmatprep.subr.mxu0 %v1123
    %1197 = vmatpush2.msra.mxu0 %v1122
    %1198 = vmatprep.subr.mxu0 %v1121
    %1199 = vmatpush2.msra.mxu0 %v1120
    %1200 = vmatprep.subr.mxu0 %v1119
    %1201 = vmatpush2.msra.mxu0 %v1118
    %1202 = vmatprep.subr.mxu0 %v1117
    %1203 = vmatpush2.msra.mxu0 %v1116
    %1204 = vmatprep.subr.mxu0 %v1115
    %1205 = vmatpush2.msra.mxu0 %v1114
    %1206 = vmatprep.subr.mxu0 %v1113
    %1207 = vmatpush2.msra.mxu0 %v1112
    %1208 = vmatprep.subr.mxu0 %v1111
    %1209 = vmatpush2.msra.mxu0 %v1110
    %1210 = vmatprep.subr.mxu0 %v1109
    %1211 = vmatpush2.msra.mxu0 %v1108
    %1212 = vmatprep.subr.mxu0 %v1107
    %1213 = vmatpush2.msra.mxu0 %v1106
    %1214 = vmatprep.subr.mxu0 %v1105
    %1215 = vmatpush2.msra.mxu0 %v1104
    %1216 = vmatprep.subr.mxu0 %v1103
    %1217 = vmatpush2.msra.mxu0 %v1102
    %1218 = vmatprep.subr.mxu0 %v1101
    %1219 = vmatpush2.msra.mxu0 %v1100
    %1220 = vmatprep.subr.mxu0 %v1099
    %1221 = vmatpush2.msra.mxu0 %v1098
    %1222 = vmatprep.subr.mxu0 %v1097
    %1223 = vmatpush2.msra.mxu0 %v1096
    %1224 = vmatprep.subr.mxu0 %v1095
    %1225 = vmatpush2.msra.mxu0 %v1094
    %1226 = vmatprep.mubr.f32.mxu0 %v1060
    %1227 = vmatmul.mubr.f32.gmra.mxu0 %v1059
    %v1228 = vpop.f32.mrf.mxu0
    %v1229 = vadd.f32 0.0, %v1228
    %v1230 = vpop.f32.mrf.mxu0
    %v1231 = vadd.f32 0.0, %v1230
    %1232 = vdwg.mxu0
    %1233 = vmatprep.subr.mxu0 0.0
    %1234 = vmatpush1.msra.mxu0 0.0
    %1235 = vmatprep.subr.mxu0 0.0
    %1236 = vmatpush1.msra.mxu0 0.0
    %1237 = vmatprep.subr.mxu0 0.0
    %1238 = vmatpush1.msra.mxu0 0.0
    %1239 = vmatprep.subr.mxu0 %v1160
    %1240 = vmatpush1.msra.mxu0 %v1157
    %1241 = vmatprep.subr.mxu0 %v1149
    %1242 = vmatpush1.msra.mxu0 %v1148
    %1243 = vmatprep.subr.mxu0 %v1147
    %1244 = vmatpush1.msra.mxu0 %v1146
    %1245 = vmatprep.subr.mxu0 %v1145
    %1246 = vmatpush1.msra.mxu0 %v1144
    %1247 = vmatprep.subr.mxu0 %v1143
    %1248 = vmatpush1.msra.mxu0 %v1142
    %1249 = vmatprep.subr.mxu0 %v1141
    %1250 = vmatpush1.msra.mxu0 %v1140
    %1251 = vmatprep.subr.mxu0 %v1139
    %1252 = vmatpush1.msra.mxu0 %v1138
    %1253 = vmatprep.subr.mxu0 %v1137
    %1254 = vmatpush1.msra.mxu0 %v1136
    %1255 = vmatprep.subr.mxu0 %v1135
    %1256 = vmatpush1.msra.mxu0 %v1134
    %1257 = vmatprep.subr.mxu0 %v1133
    %1258 = vmatpush1.msra.mxu0 %v1132
    %1259 = vmatprep.subr.mxu0 %v1131
    %1260 = vmatpush1.msra.mxu0 %v1130
    %1261 = vmatprep.subr.mxu0 %v1129
    %1262 = vmatpush1.msra.mxu0 %v1128
    %1263 = vmatprep.subr.mxu0 %v1127
    %1264 = vmatpush1.msra.mxu0 %v1126
    %1265 = vmatprep.subr.mxu0 0.0
    %1266 = vmatpush2.msra.mxu0 0.0
    %1267 = vmatprep.subr.mxu0 0.0
    %1268 = vmatpush2.msra.mxu0 0.0
    %1269 = vmatprep.subr.mxu0 0.0
    %1270 = vmatpush2.msra.mxu0 0.0
    %1271 = vmatprep.subr.mxu0 0.0
    %1272 = vmatpush2.msra.mxu0 0.0
    %1273 = vmatprep.subr.mxu0 0.0
    %1274 = vmatpush2.msra.mxu0 0.0
    %1275 = vmatprep.subr.mxu0 0.0
    %1276 = vmatpush2.msra.mxu0 0.0
    %1277 = vmatprep.subr.mxu0 0.0
    %1278 = vmatpush2.msra.mxu0 0.0
    %1279 = vmatprep.subr.mxu0 0.0
    %1280 = vmatpush2.msra.mxu0 0.0
    %1281 = vmatprep.subr.mxu0 0.0
    %1282 = vmatpush2.msra.mxu0 0.0
    %1283 = vmatprep.subr.mxu0 0.0
    %1284 = vmatpush2.msra.mxu0 0.0
    %1285 = vmatprep.subr.mxu0 0.0
    %1286 = vmatpush2.msra.mxu0 0.0
    %1287 = vmatprep.subr.mxu0 0.0
    %1288 = vmatpush2.msra.mxu0 0.0
    %1289 = vmatprep.subr.mxu0 0.0
    %1290 = vmatpush2.msra.mxu0 0.0
    %1291 = vmatprep.subr.mxu0 0.0
    %1292 = vmatpush2.msra.mxu0 0.0
    %1293 = vmatprep.subr.mxu0 0.0
    %1294 = vmatpush2.msra.mxu0 0.0
    %1295 = vmatprep.subr.mxu0 0.0
    %1296 = vmatpush2.msra.mxu0 0.0
    %1297 = vmatprep.mubr.f32.mxu0 0.0
    %1298 = vmatmul.mubr.f32.gmra.mxu0 %v1153
    %v1299 = vpop.f32.mrf.mxu0
    %v1300 = vadd.f32 %v1229, %v1299
    %v1301 = vpop.f32.mrf.mxu0
    %v1302 = vadd.f32 %v1231, %v1301
    %1303 = vdwg.mxu0
    %v1304 = vsub.f32 %v1032, %v1050
    %v1305 = vsub.f32 %v1033, %v1050
    %v1306 = vsub.f32 %v1034, %v1050
    %v1307 = vmul.f32 %v1304, %v1055
    %v1308 = vmul.f32 %v1305, %v1055
    %v1309 = vmul.f32 %v1306, %v1055
    %v1311 = vsel %vm708, %v1309, 0
    %1313 = vmatprep.subr.mxu0 %v1093
    %1314 = vmatpush1.msra.mxu0 %v1092
    %1315 = vmatprep.subr.mxu0 %v1091
    %1316 = vmatpush1.msra.mxu0 %v1090
    %1317 = vmatprep.subr.mxu0 %v1089
    %1318 = vmatpush1.msra.mxu0 %v1088
    %1319 = vmatprep.subr.mxu0 %v1087
    %1320 = vmatpush1.msra.mxu0 %v1086
    %1321 = vmatprep.subr.mxu0 %v1085
    %1322 = vmatpush1.msra.mxu0 %v1084
    %1323 = vmatprep.subr.mxu0 %v1083
    %1324 = vmatpush1.msra.mxu0 %v1082
    %1325 = vmatprep.subr.mxu0 %v1081
    %1326 = vmatpush1.msra.mxu0 %v1080
    %1327 = vmatprep.subr.mxu0 %v1079
    %1328 = vmatpush1.msra.mxu0 %v1078
    %1329 = vmatprep.subr.mxu0 %v1077
    %1330 = vmatpush1.msra.mxu0 %v1076
    %1331 = vmatprep.subr.mxu0 %v1075
    %1332 = vmatpush1.msra.mxu0 %v1074
    %1333 = vmatprep.subr.mxu0 %v1073
    %1334 = vmatpush1.msra.mxu0 %v1072
    %1335 = vmatprep.subr.mxu0 %v1071
    %1336 = vmatpush1.msra.mxu0 %v1070
    %1337 = vmatprep.subr.mxu0 %v1069
    %1338 = vmatpush1.msra.mxu0 %v1068
    %1339 = vmatprep.subr.mxu0 %v1067
    %1340 = vmatpush1.msra.mxu0 %v1066
    %1341 = vmatprep.subr.mxu0 %v1065
    %1342 = vmatpush1.msra.mxu0 %v1064
    %1343 = vmatprep.subr.mxu0 %v1063
    %1344 = vmatpush1.msra.mxu0 %v1062
    %1345 = vmatprep.subr.mxu0 %v1125
    %1346 = vmatpush2.msra.mxu0 %v1124
    %1347 = vmatprep.subr.mxu0 %v1123
    %1348 = vmatpush2.msra.mxu0 %v1122
    %1349 = vmatprep.subr.mxu0 %v1121
    %1350 = vmatpush2.msra.mxu0 %v1120
    %1351 = vmatprep.subr.mxu0 %v1119
    %1352 = vmatpush2.msra.mxu0 %v1118
    %1353 = vmatprep.subr.mxu0 %v1117
    %1354 = vmatpush2.msra.mxu0 %v1116
    %1355 = vmatprep.subr.mxu0 %v1115
    %1356 = vmatpush2.msra.mxu0 %v1114
    %1357 = vmatprep.subr.mxu0 %v1113
    %1358 = vmatpush2.msra.mxu0 %v1112
    %1359 = vmatprep.subr.mxu0 %v1111
    %1360 = vmatpush2.msra.mxu0 %v1110
    %1361 = vmatprep.subr.mxu0 %v1109
    %1362 = vmatpush2.msra.mxu0 %v1108
    %1363 = vmatprep.subr.mxu0 %v1107
    %1364 = vmatpush2.msra.mxu0 %v1106
    %1365 = vmatprep.subr.mxu0 %v1105
    %1366 = vmatpush2.msra.mxu0 %v1104
    %1367 = vmatprep.subr.mxu0 %v1103
    %1368 = vmatpush2.msra.mxu0 %v1102
    %1369 = vmatprep.subr.mxu0 %v1101
    %1370 = vmatpush2.msra.mxu0 %v1100
    %1371 = vmatprep.subr.mxu0 %v1099
    %1372 = vmatpush2.msra.mxu0 %v1098
    %1373 = vmatprep.subr.mxu0 %v1097
    %1374 = vmatpush2.msra.mxu0 %v1096
    %1375 = vmatprep.subr.mxu0 %v1095
    %1376 = vmatpush2.msra.mxu0 %v1094
    %1377 = vmatprep.mubr.f32.mxu0 %v1308
    %1378 = vmatmul.mubr.f32.gmra.mxu0 %v1307
    %v1379 = vpop.f32.mrf.mxu0
    %v1380 = vadd.f32 0.0, %v1379
    %v1381 = vpop.f32.mrf.mxu0
    %v1382 = vadd.f32 0.0, %v1381
    %1383 = vdwg.mxu0
    %1384 = vmatprep.subr.mxu0 0.0
    %1385 = vmatpush1.msra.mxu0 0.0
    %1386 = vmatprep.subr.mxu0 0.0
    %1387 = vmatpush1.msra.mxu0 0.0
    %1388 = vmatprep.subr.mxu0 0.0
    %1389 = vmatpush1.msra.mxu0 0.0
    %1390 = vmatprep.subr.mxu0 %v1160
    %1391 = vmatpush1.msra.mxu0 %v1157
    %1392 = vmatprep.subr.mxu0 %v1149
    %1393 = vmatpush1.msra.mxu0 %v1148
    %1394 = vmatprep.subr.mxu0 %v1147
    %1395 = vmatpush1.msra.mxu0 %v1146
    %1396 = vmatprep.subr.mxu0 %v1145
    %1397 = vmatpush1.msra.mxu0 %v1144
    %1398 = vmatprep.subr.mxu0 %v1143
    %1399 = vmatpush1.msra.mxu0 %v1142
    %1400 = vmatprep.subr.mxu0 %v1141
    %1401 = vmatpush1.msra.mxu0 %v1140
    %1402 = vmatprep.subr.mxu0 %v1139
    %1403 = vmatpush1.msra.mxu0 %v1138
    %1404 = vmatprep.subr.mxu0 %v1137
    %1405 = vmatpush1.msra.mxu0 %v1136
    %1406 = vmatprep.subr.mxu0 %v1135
    %1407 = vmatpush1.msra.mxu0 %v1134
    %1408 = vmatprep.subr.mxu0 %v1133
    %1409 = vmatpush1.msra.mxu0 %v1132
    %1410 = vmatprep.subr.mxu0 %v1131
    %1411 = vmatpush1.msra.mxu0 %v1130
    %1412 = vmatprep.subr.mxu0 %v1129
    %1413 = vmatpush1.msra.mxu0 %v1128
    %1414 = vmatprep.subr.mxu0 %v1127
    %1415 = vmatpush1.msra.mxu0 %v1126
    %1416 = vmatprep.subr.mxu0 0.0
    %1417 = vmatpush2.msra.mxu0 0.0
    %1418 = vmatprep.subr.mxu0 0.0
    %1419 = vmatpush2.msra.mxu0 0.0
    %1420 = vmatprep.subr.mxu0 0.0
    %1421 = vmatpush2.msra.mxu0 0.0
    %1422 = vmatprep.subr.mxu0 0.0
    %1423 = vmatpush2.msra.mxu0 0.0
    %1424 = vmatprep.subr.mxu0 0.0
    %1425 = vmatpush2.msra.mxu0 0.0
    %1426 = vmatprep.subr.mxu0 0.0
    %1427 = vmatpush2.msra.mxu0 0.0
    %1428 = vmatprep.subr.mxu0 0.0
    %1429 = vmatpush2.msra.mxu0 0.0
    %1430 = vmatprep.subr.mxu0 0.0
    %1431 = vmatpush2.msra.mxu0 0.0
    %1432 = vmatprep.subr.mxu0 0.0
    %1433 = vmatpush2.msra.mxu0 0.0
    %1434 = vmatprep.subr.mxu0 0.0
    %1435 = vmatpush2.msra.mxu0 0.0
    %1436 = vmatprep.subr.mxu0 0.0
    %1437 = vmatpush2.msra.mxu0 0.0
    %1438 = vmatprep.subr.mxu0 0.0
    %1439 = vmatpush2.msra.mxu0 0.0
    %1440 = vmatprep.subr.mxu0 0.0
    %1441 = vmatpush2.msra.mxu0 0.0
    %1442 = vmatprep.subr.mxu0 0.0
    %1443 = vmatpush2.msra.mxu0 0.0
    %1444 = vmatprep.subr.mxu0 0.0
    %1445 = vmatpush2.msra.mxu0 0.0
    %1446 = vmatprep.subr.mxu0 0.0
    %1447 = vmatpush2.msra.mxu0 0.0
    %1448 = vmatprep.mubr.f32.mxu0 0.0
    %1449 = vmatmul.mubr.f32.gmra.mxu0 %v1311
    %v1450 = vpop.f32.mrf.mxu0
    %v1451 = vadd.f32 %v1380, %v1450
    %v1452 = vpop.f32.mrf.mxu0
    %v1453 = vadd.f32 %v1382, %v1452
    %1454 = vdwg.mxu0
    %v1455 = vld [vmem:[#allocation9] sm:$0xff]
    %v1456 = vld [vmem:[#allocation9 + $0x8] sm:$0xf]
    %v1457 = vld [vmem:[%s15] sm:$0xff]
    %v1458 = vld [vmem:[%s15 + $0x8] sm:$0xf]
    %1459 = vst [vmem:[#allocation2] sm:$0xff] %v1300
    %vm1460 = vcmask 392192
    %1461 = vst.msk [vmem:[#allocation2 + $0x8] sm:$0xff] %vm1460, %v1302
    %1464 = vrot.lane.b32.xlu0 %v1300, 127
    %v1465 = vpop.permute.xlu0 %1464
    %1466 = vrot.lane.b32.xlu0 %v1302, 127
    %v1467 = vpop.permute.xlu0 %1466
    %v1468 = vsel %vm386, %v1465, %v1467
    %1471 = vst [vmem:[#allocation2 + $0x18] sm:$0xff] %v1468
    %1472 = vst.msk [vmem:[#allocation2 + $0x20] sm:$0xff] %vm1460, %v1467
    %1473 = vrot.lane.b32.xlu0 %v1300, 126
    %v1474 = vpop.permute.xlu0 %1473
    %1475 = vrot.lane.b32.xlu0 %v1302, 126
    %v1476 = vpop.permute.xlu0 %1475
    %v1477 = vsel %vm409, %v1474, %v1476
    %1480 = vst [vmem:[#allocation2 + $0x30] sm:$0xff] %v1477
    %1481 = vst.msk [vmem:[#allocation2 + $0x38] sm:$0xff] %vm1460, %v1476
    %v1482 = vld [vmem:[#allocation2] sm:$0xff]
    %v1483 = vld [vmem:[#allocation2 + $0x8] sm:$0xff]
    %v1484 = vld [vmem:[#allocation2 + $0x18] sm:$0xff]
    %v1485 = vld [vmem:[#allocation2 + $0x20] sm:$0xff]
    %v1486 = vld [vmem:[#allocation2 + $0x30] sm:$0xff]
    %v1487 = vld [vmem:[#allocation2 + $0x38] sm:$0xff]
    %1489 = vset.pattern.permute.xlu0 0
    %1490 = vperm.xlu0 %1489, %v1457
    %v1491 = vpop.permute.xlu0 %1490
    %1494 = vset.pattern.permute.xlu0 0
    %1495 = vperm.xlu0 %1494, %v1458
    %v1496 = vpop.permute.xlu0 %1495
    %vm1498 = vcmask 195584
    %v1500 = vsel %vm1498, %v1455, 0
    %v1503 = vsel %vm1498, %v1456, 0
    %1505 = vmatprep.subr.mxu0 0.0
    %1506 = vmatpush1.msra.mxu0 0.0
    %1507 = vmatprep.subr.mxu0 0.0
    %1508 = vmatpush1.msra.mxu0 0.0
    %1509 = vmatprep.subr.mxu0 0.0
    %1510 = vmatpush1.msra.mxu0 0.0
    %1511 = vmatprep.subr.mxu0 0.0
    %1512 = vmatpush1.msra.mxu0 0.0
    %1513 = vmatprep.subr.mxu0 0.0
    %1514 = vmatpush1.msra.mxu0 0.0
    %1515 = vmatprep.subr.mxu0 0.0
    %1516 = vmatpush1.msra.mxu0 0.0
    %1517 = vmatprep.subr.mxu0 0.0
    %1518 = vmatpush1.msra.mxu0 0.0
    %1519 = vmatprep.subr.mxu0 0.0
    %1520 = vmatpush1.msra.mxu0 0.0
    %1521 = vmatprep.subr.mxu0 0.0
    %1522 = vmatpush1.msra.mxu0 0.0
    %1523 = vmatprep.subr.mxu0 0.0
    %1524 = vmatpush1.msra.mxu0 0.0
    %1525 = vmatprep.subr.mxu0 0.0
    %1526 = vmatpush1.msra.mxu0 0.0
    %1527 = vmatprep.subr.mxu0 0.0
    %1528 = vmatpush1.msra.mxu0 0.0
    %1529 = vmatprep.subr.mxu0 0.0
    %1530 = vmatpush1.msra.mxu0 0.0
    %1531 = vmatprep.subr.mxu0 %v1487
    %1532 = vmatpush1.msra.mxu0 %v1486
    %1533 = vmatprep.subr.mxu0 %v1485
    %1534 = vmatpush1.msra.mxu0 %v1484
    %1535 = vmatprep.subr.mxu0 %v1483
    %1536 = vmatpush1.msra.mxu0 %v1482
    %1537 = vmatprep.subr.mxu0 0.0
    %1538 = vmatpush2.msra.mxu0 0.0
    %1539 = vmatprep.subr.mxu0 0.0
    %1540 = vmatpush2.msra.mxu0 0.0
    %1541 = vmatprep.subr.mxu0 0.0
    %1542 = vmatpush2.msra.mxu0 0.0
    %1543 = vmatprep.subr.mxu0 0.0
    %1544 = vmatpush2.msra.mxu0 0.0
    %1545 = vmatprep.subr.mxu0 0.0
    %1546 = vmatpush2.msra.mxu0 0.0
    %1547 = vmatprep.subr.mxu0 0.0
    %1548 = vmatpush2.msra.mxu0 0.0
    %1549 = vmatprep.subr.mxu0 0.0
    %1550 = vmatpush2.msra.mxu0 0.0
    %1551 = vmatprep.subr.mxu0 0.0
    %1552 = vmatpush2.msra.mxu0 0.0
    %1553 = vmatprep.subr.mxu0 0.0
    %1554 = vmatpush2.msra.mxu0 0.0
    %1555 = vmatprep.subr.mxu0 0.0
    %1556 = vmatpush2.msra.mxu0 0.0
    %1557 = vmatprep.subr.mxu0 0.0
    %1558 = vmatpush2.msra.mxu0 0.0
    %1559 = vmatprep.subr.mxu0 0.0
    %1560 = vmatpush2.msra.mxu0 0.0
    %1561 = vmatprep.subr.mxu0 0.0
    %1562 = vmatpush2.msra.mxu0 0.0
    %1563 = vmatprep.subr.mxu0 0.0
    %1564 = vmatpush2.msra.mxu0 0.0
    %1565 = vmatprep.subr.mxu0 0.0
    %1566 = vmatpush2.msra.mxu0 0.0
    %1567 = vmatprep.subr.mxu0 0.0
    %1568 = vmatpush2.msra.mxu0 0.0
    %1569 = vmatprep.mubr.f32.mxu0 0.0
    %1570 = vmatmul.mubr.f32.gmra.mxu0 %v1500
    %v1571 = vpop.f32.mrf.mxu0
    %v1572 = vadd.f32 %v1491, %v1571
    %v1573 = vpop.f32.mrf.mxu0
    %v1574 = vadd.f32 %v1491, %v1573
    %1575 = vmatprep.mubr.f32.mxu0 0.0
    %1576 = vmatmul.mubr.f32.gmra.mxu0 %v1503
    %v1577 = vpop.f32.mrf.mxu0
    %v1578 = vadd.f32 %v1496, %v1577
    %v1579 = vpop.f32.mrf.mxu0
    %v1580 = vadd.f32 %v1496, %v1579
    %1581 = vdwg.mxu0
    %v1582 = vmax.f32 %v1572, 0.0
    %v1583 = vmax.f32 %v1574, 0.0
    %v1584 = vmax.f32 %v1578, 0.0
    %v1585 = vmax.f32 %v1580, 0.0
    %v1586 = vsel %vm1460, %v1583, 0.0
    %v1587 = vadd.f32 %v1582, %v1586
    %1588 = vadd.xlane.f32.xlu0 %v1587
    %v1589 = vpop.xlane.xlu0 %1588
    %vm1590 = vcmask 1043456
    %v1591 = vsel %vm1590, %v1584, 0.0
    %vm1592 = vcmask 388096
    %v1593 = vsel %vm1592, %v1585, 0.0
    %v1594 = vadd.f32 %v1591, %v1593
    %1595 = vadd.xlane.f32.xlu0 %v1594
    %v1596 = vpop.xlane.xlu0 %1595
    %v1597 = vmul.f32 %v1582, %v1582
    %v1598 = vmul.f32 %v1583, %v1583
    %v1599 = vmul.f32 %v1584, %v1584
    %v1600 = vmul.f32 %v1585, %v1585
    %v1601 = vsel %vm1460, %v1598, 0.0
    %v1602 = vadd.f32 %v1597, %v1601
    %1603 = vadd.xlane.f32.xlu0 %v1602
    %v1604 = vpop.xlane.xlu0 %1603
    %v1605 = vsel %vm1590, %v1599, 0.0
    %v1606 = vsel %vm1592, %v1600, 0.0
    %v1607 = vadd.f32 %v1605, %v1606
    %1608 = vadd.xlane.f32.xlu0 %v1607
    %v1609 = vpop.xlane.xlu0 %1608
    %1610 = vst [vmem:[%s721] sm:$0xff] %v1451
    %1611 = vst.msk [vmem:[%s721 + $0x8] sm:$0xff] %vm1460, %v1453
    %1614 = vrot.lane.b32.xlu0 %v1451, 127
    %v1615 = vpop.permute.xlu0 %1614
    %1616 = vrot.lane.b32.xlu0 %v1453, 127
    %v1617 = vpop.permute.xlu0 %1616
    %v1618 = vsel %vm386, %v1615, %v1617
    %1621 = vst [vmem:[%s721 + $0x18] sm:$0xff] %v1618
    %1622 = vst.msk [vmem:[%s721 + $0x20] sm:$0xff] %vm1460, %v1617
    %1623 = vrot.lane.b32.xlu0 %v1451, 126
    %v1624 = vpop.permute.xlu0 %1623
    %1625 = vrot.lane.b32.xlu0 %v1453, 126
    %v1626 = vpop.permute.xlu0 %1625
    %v1627 = vsel %vm409, %v1624, %v1626
    %1630 = vst [vmem:[%s721 + $0x30] sm:$0xff] %v1627
    %1631 = vst.msk [vmem:[%s721 + $0x38] sm:$0xff] %vm1460, %v1626
    %v1632 = vld [vmem:[%s721] sm:$0xff]
    %v1633 = vld [vmem:[%s721 + $0x8] sm:$0xff]
    %v1634 = vld [vmem:[%s721 + $0x18] sm:$0xff]
    %v1635 = vld [vmem:[%s721 + $0x20] sm:$0xff]
    %v1636 = vld [vmem:[%s721 + $0x30] sm:$0xff]
    %v1637 = vld [vmem:[%s721 + $0x38] sm:$0xff]
    %1638 = vmatprep.subr.mxu0 0.0
    %1639 = vmatpush1.msra.mxu0 0.0
    %1640 = vmatprep.subr.mxu0 0.0
    %1641 = vmatpush1.msra.mxu0 0.0
    %1642 = vmatprep.subr.mxu0 0.0
    %1643 = vmatpush1.msra.mxu0 0.0
    %1644 = vmatprep.subr.mxu0 0.0
    %1645 = vmatpush1.msra.mxu0 0.0
    %1646 = vmatprep.subr.mxu0 0.0
    %1647 = vmatpush1.msra.mxu0 0.0
    %1648 = vmatprep.subr.mxu0 0.0
    %1649 = vmatpush1.msra.mxu0 0.0
    %1650 = vmatprep.subr.mxu0 0.0
    %1651 = vmatpush1.msra.mxu0 0.0
    %1652 = vmatprep.subr.mxu0 0.0
    %1653 = vmatpush1.msra.mxu0 0.0
    %1654 = vmatprep.subr.mxu0 0.0
    %1655 = vmatpush1.msra.mxu0 0.0
    %1656 = vmatprep.subr.mxu0 0.0
    %1657 = vmatpush1.msra.mxu0 0.0
    %1658 = vmatprep.subr.mxu0 0.0
    %1659 = vmatpush1.msra.mxu0 0.0
    %1660 = vmatprep.subr.mxu0 0.0
    %1661 = vmatpush1.msra.mxu0 0.0
    %1662 = vmatprep.subr.mxu0 0.0
    %1663 = vmatpush1.msra.mxu0 0.0
    %1664 = vmatprep.subr.mxu0 %v1637
    %1665 = vmatpush1.msra.mxu0 %v1636
    %1666 = vmatprep.subr.mxu0 %v1635
    %1667 = vmatpush1.msra.mxu0 %v1634
    %1668 = vmatprep.subr.mxu0 %v1633
    %1669 = vmatpush1.msra.mxu0 %v1632
    %1670 = vmatprep.subr.mxu0 0.0
    %1671 = vmatpush2.msra.mxu0 0.0
    %1672 = vmatprep.subr.mxu0 0.0
    %1673 = vmatpush2.msra.mxu0 0.0
    %1674 = vmatprep.subr.mxu0 0.0
    %1675 = vmatpush2.msra.mxu0 0.0
    %1676 = vmatprep.subr.mxu0 0.0
    %1677 = vmatpush2.msra.mxu0 0.0
    %1678 = vmatprep.subr.mxu0 0.0
    %1679 = vmatpush2.msra.mxu0 0.0
    %1680 = vmatprep.subr.mxu0 0.0
    %1681 = vmatpush2.msra.mxu0 0.0
    %1682 = vmatprep.subr.mxu0 0.0
    %1683 = vmatpush2.msra.mxu0 0.0
    %1684 = vmatprep.subr.mxu0 0.0
    %1685 = vmatpush2.msra.mxu0 0.0
    %1686 = vmatprep.subr.mxu0 0.0
    %1687 = vmatpush2.msra.mxu0 0.0
    %1688 = vmatprep.subr.mxu0 0.0
    %1689 = vmatpush2.msra.mxu0 0.0
    %1690 = vmatprep.subr.mxu0 0.0
    %1691 = vmatpush2.msra.mxu0 0.0
    %1692 = vmatprep.subr.mxu0 0.0
    %1693 = vmatpush2.msra.mxu0 0.0
    %1694 = vmatprep.subr.mxu0 0.0
    %1695 = vmatpush2.msra.mxu0 0.0
    %1696 = vmatprep.subr.mxu0 0.0
    %1697 = vmatpush2.msra.mxu0 0.0
    %1698 = vmatprep.subr.mxu0 0.0
    %1699 = vmatpush2.msra.mxu0 0.0
    %1700 = vmatprep.subr.mxu0 0.0
    %1701 = vmatpush2.msra.mxu0 0.0
    %1702 = vmatprep.mubr.f32.mxu0 0.0
    %1703 = vmatmul.mubr.f32.gmra.mxu0 %v1500
    %v1704 = vpop.f32.mrf.mxu0
    %v1705 = vadd.f32 %v1491, %v1704
    %v1706 = vpop.f32.mrf.mxu0
    %v1707 = vadd.f32 %v1491, %v1706
    %1708 = vmatprep.mubr.f32.mxu0 0.0
    %1709 = vmatmul.mubr.f32.gmra.mxu0 %v1503
    %v1710 = vpop.f32.mrf.mxu0
    %v1711 = vadd.f32 %v1496, %v1710
    %v1712 = vpop.f32.mrf.mxu0
    %v1713 = vadd.f32 %v1496, %v1712
    %1714 = vdwg.mxu0
    %v1715 = vmax.f32 %v1705, 0.0
    %v1716 = vmax.f32 %v1707, 0.0
    %v1717 = vmax.f32 %v1711, 0.0
    %v1718 = vmax.f32 %v1713, 0.0
    %v1719 = vsel %vm1460, %v1716, 0.0
    %v1720 = vadd.f32 %v1715, %v1719
    %1721 = vadd.xlane.f32.xlu0 %v1720
    %v1722 = vpop.xlane.xlu0 %1721
    %v1723 = vsel %vm1590, %v1717, 0.0
    %v1724 = vsel %vm1592, %v1718, 0.0
    %v1725 = vadd.f32 %v1723, %v1724
    %1726 = vadd.xlane.f32.xlu0 %v1725
    %v1727 = vpop.xlane.xlu0 %1726
    %v1728 = vmul.f32 %v1715, %v1715
    %v1729 = vmul.f32 %v1716, %v1716
    %v1730 = vmul.f32 %v1717, %v1717
    %v1731 = vmul.f32 %v1718, %v1718
    %v1732 = vsel %vm1460, %v1729, 0.0
    %v1733 = vadd.f32 %v1728, %v1732
    %1734 = vadd.xlane.f32.xlu0 %v1733
    %v1735 = vpop.xlane.xlu0 %1734
    %v1736 = vsel %vm1590, %v1730, 0.0
    %v1737 = vsel %vm1592, %v1731, 0.0
    %v1738 = vadd.f32 %v1736, %v1737
    %1739 = vadd.xlane.f32.xlu0 %v1738
    %v1740 = vpop.xlane.xlu0 %1739
    %v1741 = vadd.f32 %v1589, %v1722
    %v1742 = vadd.f32 %v1596, %v1727
    %v1743 = vadd.f32 %v1604, %v1735
    %v1744 = vadd.f32 %v1609, %v1740
    %v1745 = vmul.f32 %v1741, 0.0028409092
    %v1746 = vmul.f32 %v1742, 0.0028409092
    %v1747 = vmul.f32 %v1743, 0.0028409092
    %v1748 = vmul.f32 %v1744, 0.0028409092
    %v1749 = vmul.f32 %v1745, %v1745
    %v1750 = vmul.f32 %v1746, %v1746
    %v1751 = vsub.f32 %v1747, %v1749
    %v1752 = vsub.f32 %v1748, %v1750
    %v1753 = vadd.f32 %v1751, 1e-05
    %v1754 = vadd.f32 %v1752, 1e-05
    %v1755 = vrsqrt.pop %v1753
    %v1756 = vrsqrt.pop %v1754
    %v1757 = vsub.f32 %v1582, %v1745
    %v1758 = vsub.f32 %v1583, %v1745
    %v1759 = vsub.f32 %v1584, %v1746
    %v1760 = vsub.f32 %v1585, %v1746
    %v1761 = vmul.f32 %v1757, %v1755
    %v1762 = vmul.f32 %v1758, %v1755
    %v1763 = vmul.f32 %v1759, %v1756
    %v1764 = vmul.f32 %v1760, %v1756
    %v1765 = vld [vmem:[%s47] sm:$0xff]
    %v1766 = vld [vmem:[%s47 + $0x8] sm:$0xff]
    %v1767 = vld [vmem:[%s47 + $0x10] sm:$0xff]
    %v1768 = vld [vmem:[%s47 + $0x18] sm:$0xff]
    %v1769 = vld [vmem:[%s47 + $0x20] sm:$0xff]
    %v1770 = vld [vmem:[%s47 + $0x28] sm:$0xff]
    %v1771 = vld [vmem:[%s47 + $0x30] sm:$0xff]
    %v1772 = vld [vmem:[%s47 + $0x38] sm:$0xff]
    %v1773 = vld [vmem:[%s47 + $0x40] sm:$0xff]
    %v1774 = vld [vmem:[%s47 + $0x48] sm:$0xff]
    %v1775 = vld [vmem:[%s47 + $0x50] sm:$0xff]
    %v1776 = vld [vmem:[%s47 + $0x58] sm:$0xff]
    %v1777 = vld [vmem:[%s47 + $0x60] sm:$0xff]
    %v1778 = vld [vmem:[%s47 + $0x68] sm:$0xff]
    %v1779 = vld [vmem:[%s47 + $0x70] sm:$0xff]
    %v1780 = vld [vmem:[%s47 + $0x78] sm:$0xff]
    %v1781 = vld [vmem:[%s47 + $0x80] sm:$0xff]
    %v1782 = vld [vmem:[%s47 + $0x88] sm:$0xff]
    %v1783 = vld [vmem:[%s47 + $0x90] sm:$0xff]
    %v1784 = vld [vmem:[%s47 + $0x98] sm:$0xff]
    %v1785 = vld [vmem:[%s47 + $0xa0] sm:$0xff]
    %v1786 = vld [vmem:[%s47 + $0xa8] sm:$0xff]
    %v1788 = vsel %vm1460, %v1762, 0
    %v1791 = vsel %vm1460, %v1764, 0
    %1793 = vmatprep.subr.mxu0 0.0
    %1794 = vmatpush1.msra.mxu0 %v1780
    %1795 = vmatprep.subr.mxu0 0.0
    %1796 = vmatpush1.msra.mxu0 %v1779
    %1797 = vmatprep.subr.mxu0 0.0
    %1798 = vmatpush1.msra.mxu0 %v1778
    %1799 = vmatprep.subr.mxu0 0.0
    %1800 = vmatpush1.msra.mxu0 %v1777
    %1801 = vmatprep.subr.mxu0 0.0
    %1802 = vmatpush1.msra.mxu0 %v1776
    %1803 = vmatprep.subr.mxu0 0.0
    %1804 = vmatpush1.msra.mxu0 %v1775
    %1805 = vmatprep.subr.mxu0 0.0
    %1806 = vmatpush1.msra.mxu0 %v1774
    %1807 = vmatprep.subr.mxu0 0.0
    %1808 = vmatpush1.msra.mxu0 %v1773
    %1809 = vmatprep.subr.mxu0 0.0
    %1810 = vmatpush1.msra.mxu0 %v1772
    %1811 = vmatprep.subr.mxu0 0.0
    %1812 = vmatpush1.msra.mxu0 %v1771
    %1813 = vmatprep.subr.mxu0 0.0
    %1814 = vmatpush1.msra.mxu0 %v1770
    %1815 = vmatprep.subr.mxu0 0.0
    %1816 = vmatpush1.msra.mxu0 %v1769
    %1817 = vmatprep.subr.mxu0 0.0
    %1818 = vmatpush1.msra.mxu0 %v1768
    %1819 = vmatprep.subr.mxu0 0.0
    %1820 = vmatpush1.msra.mxu0 %v1767
    %1821 = vmatprep.subr.mxu0 0.0
    %1822 = vmatpush1.msra.mxu0 %v1766
    %1823 = vmatprep.subr.mxu0 0.0
    %1824 = vmatpush1.msra.mxu0 %v1765
    %1825 = vmatprep.subr.mxu0 0.0
    %1826 = vmatpush2.msra.mxu0 0.0
    %1827 = vmatprep.subr.mxu0 0.0
    %1828 = vmatpush2.msra.mxu0 0.0
    %1829 = vmatprep.subr.mxu0 0.0
    %1830 = vmatpush2.msra.mxu0 0.0
    %1831 = vmatprep.subr.mxu0 0.0
    %1832 = vmatpush2.msra.mxu0 0.0
    %1833 = vmatprep.subr.mxu0 0.0
    %1834 = vmatpush2.msra.mxu0 0.0
    %1835 = vmatprep.subr.mxu0 0.0
    %1836 = vmatpush2.msra.mxu0 0.0
    %1837 = vmatprep.subr.mxu0 0.0
    %1838 = vmatpush2.msra.mxu0 0.0
    %1839 = vmatprep.subr.mxu0 0.0
    %1840 = vmatpush2.msra.mxu0 0.0
    %1841 = vmatprep.subr.mxu0 0.0
    %1842 = vmatpush2.msra.mxu0 0.0
    %1843 = vmatprep.subr.mxu0 0.0
    %1844 = vmatpush2.msra.mxu0 0.0
    %1845 = vmatprep.subr.mxu0 0.0
    %1846 = vmatpush2.msra.mxu0 %v1786
    %1847 = vmatprep.subr.mxu0 0.0
    %1848 = vmatpush2.msra.mxu0 %v1785
    %1849 = vmatprep.subr.mxu0 0.0
    %1850 = vmatpush2.msra.mxu0 %v1784
    %1851 = vmatprep.subr.mxu0 0.0
    %1852 = vmatpush2.msra.mxu0 %v1783
    %1853 = vmatprep.subr.mxu0 0.0
    %1854 = vmatpush2.msra.mxu0 %v1782
    %1855 = vmatprep.subr.mxu0 0.0
    %1856 = vmatpush2.msra.mxu0 %v1781
    %1857 = vmatprep.mubr.f32.mxu0 %v1788
    %1858 = vmatmul.mubr.f32.gmra.mxu0 %v1761
    %v1859 = vpop.f32.mrf.mxu0
    %v1860 = vadd.f32 0.0, %v1859
    %v1861 = vpop.f32.mrf.mxu0
    %1862 = vmatprep.mubr.f32.mxu0 %v1791
    %1863 = vmatmul.mubr.f32.gmra.mxu0 %v1763
    %v1864 = vpop.f32.mrf.mxu0
    %v1865 = vadd.f32 0.0, %v1864
    %v1866 = vpop.f32.mrf.mxu0
    %1867 = vdwg.mxu0
    %v1868 = vsub.f32 %v1715, %v1745
    %v1869 = vsub.f32 %v1716, %v1745
    %v1870 = vsub.f32 %v1717, %v1746
    %v1871 = vsub.f32 %v1718, %v1746
    %v1872 = vmul.f32 %v1868, %v1755
    %v1873 = vmul.f32 %v1869, %v1755
    %v1874 = vmul.f32 %v1870, %v1756
    %v1875 = vmul.f32 %v1871, %v1756
    %v1877 = vsel %vm1460, %v1873, 0
    %v1880 = vsel %vm1460, %v1875, 0
    %1882 = vmatprep.subr.mxu0 0.0
    %1883 = vmatpush1.msra.mxu0 %v1780
    %1884 = vmatprep.subr.mxu0 0.0
    %1885 = vmatpush1.msra.mxu0 %v1779
    %1886 = vmatprep.subr.mxu0 0.0
    %1887 = vmatpush1.msra.mxu0 %v1778
    %1888 = vmatprep.subr.mxu0 0.0
    %1889 = vmatpush1.msra.mxu0 %v1777
    %1890 = vmatprep.subr.mxu0 0.0
    %1891 = vmatpush1.msra.mxu0 %v1776
    %1892 = vmatprep.subr.mxu0 0.0
    %1893 = vmatpush1.msra.mxu0 %v1775
    %1894 = vmatprep.subr.mxu0 0.0
    %1895 = vmatpush1.msra.mxu0 %v1774
    %1896 = vmatprep.subr.mxu0 0.0
    %1897 = vmatpush1.msra.mxu0 %v1773
    %1898 = vmatprep.subr.mxu0 0.0
    %1899 = vmatpush1.msra.mxu0 %v1772
    %1900 = vmatprep.subr.mxu0 0.0
    %1901 = vmatpush1.msra.mxu0 %v1771
    %1902 = vmatprep.subr.mxu0 0.0
    %1903 = vmatpush1.msra.mxu0 %v1770
    %1904 = vmatprep.subr.mxu0 0.0
    %1905 = vmatpush1.msra.mxu0 %v1769
    %1906 = vmatprep.subr.mxu0 0.0
    %1907 = vmatpush1.msra.mxu0 %v1768
    %1908 = vmatprep.subr.mxu0 0.0
    %1909 = vmatpush1.msra.mxu0 %v1767
    %1910 = vmatprep.subr.mxu0 0.0
    %1911 = vmatpush1.msra.mxu0 %v1766
    %1912 = vmatprep.subr.mxu0 0.0
    %1913 = vmatpush1.msra.mxu0 %v1765
    %1914 = vmatprep.subr.mxu0 0.0
    %1915 = vmatpush2.msra.mxu0 0.0
    %1916 = vmatprep.subr.mxu0 0.0
    %1917 = vmatpush2.msra.mxu0 0.0
    %1918 = vmatprep.subr.mxu0 0.0
    %1919 = vmatpush2.msra.mxu0 0.0
    %1920 = vmatprep.subr.mxu0 0.0
    %1921 = vmatpush2.msra.mxu0 0.0
    %1922 = vmatprep.subr.mxu0 0.0
    %1923 = vmatpush2.msra.mxu0 0.0
    %1924 = vmatprep.subr.mxu0 0.0
    %1925 = vmatpush2.msra.mxu0 0.0
    %1926 = vmatprep.subr.mxu0 0.0
    %1927 = vmatpush2.msra.mxu0 0.0
    %1928 = vmatprep.subr.mxu0 0.0
    %1929 = vmatpush2.msra.mxu0 0.0
    %1930 = vmatprep.subr.mxu0 0.0
    %1931 = vmatpush2.msra.mxu0 0.0
    %1932 = vmatprep.subr.mxu0 0.0
    %1933 = vmatpush2.msra.mxu0 0.0
    %1934 = vmatprep.subr.mxu0 0.0
    %1935 = vmatpush2.msra.mxu0 %v1786
    %1936 = vmatprep.subr.mxu0 0.0
    %1937 = vmatpush2.msra.mxu0 %v1785
    %1938 = vmatprep.subr.mxu0 0.0
    %1939 = vmatpush2.msra.mxu0 %v1784
    %1940 = vmatprep.subr.mxu0 0.0
    %1941 = vmatpush2.msra.mxu0 %v1783
    %1942 = vmatprep.subr.mxu0 0.0
    %1943 = vmatpush2.msra.mxu0 %v1782
    %1944 = vmatprep.subr.mxu0 0.0
    %1945 = vmatpush2.msra.mxu0 %v1781
    %1946 = vmatprep.mubr.f32.mxu0 %v1877
    %1947 = vmatmul.mubr.f32.gmra.mxu0 %v1872
    %v1948 = vpop.f32.mrf.mxu0
    %v1949 = vadd.f32 0.0, %v1948
    %v1950 = vpop.f32.mrf.mxu0
    %1951 = vmatprep.mubr.f32.mxu0 %v1880
    %1952 = vmatmul.mubr.f32.gmra.mxu0 %v1874
    %v1953 = vpop.f32.mrf.mxu0
    %v1954 = vadd.f32 0.0, %v1953
    %v1955 = vpop.f32.mrf.mxu0
    %1956 = vdwg.mxu0
    %v1957 = vld [vmem:[#allocation10] sm:$0xff]
    %v1958 = vld [vmem:[#allocation10 + $0x8] sm:$0xff]
    %v1959 = vld [vmem:[%s19] sm:$0xff]
    %v1960 = vld [vmem:[%s19 + $0x8] sm:$0xff]
    %vm1961 = vcmask 703488
    %1962 = vst.msk [vmem:[#allocation2] sm:$0xff] %vm1961, %v1860
    %vm1963 = vcmask 699392
    %1964 = vst.msk [vmem:[#allocation2 + $0x18] sm:$0xf] %vm1963, %v1865
    %v1967 = vrot.slane %v1860, 4
    %v1968 = vrot.slane %v1865, 4
    %v1969 = vsel %vm1590, %v1967, %v1968
    %1970 = vrot.lane.b32.xlu0 %v1967, 127
    %v1971 = vpop.permute.xlu0 %1970
    %1972 = vrot.lane.b32.xlu0 %v1969, 127
    %v1973 = vpop.permute.xlu0 %1972
    %vm1976 = vcmask 703492
    %1977 = vst.msk [vmem:[#allocation2 + $0x18] sm:$0xf0] %vm1976, %v1971
    %1978 = vst.msk [vmem:[#allocation2 + $0x30] sm:$0xff] %vm1961, %v1973
    %1979 = vrot.lane.b32.xlu0 %v1860, 126
    %v1980 = vpop.permute.xlu0 %1979
    %1981 = vrot.lane.b32.xlu0 %v1865, 126
    %v1982 = vpop.permute.xlu0 %1981
    %1985 = vst.msk [vmem:[#allocation2 + $0x48] sm:$0xff] %vm1961, %v1980
    %1986 = vst.msk [vmem:[#allocation2 + $0x60] sm:$0xf] %vm1963, %v1982
    %v1987 = vld [vmem:[#allocation2] sm:$0xff]
    %v1988 = vld [vmem:[#allocation2 + $0x18] sm:$0xff]
    %v1989 = vld [vmem:[#allocation2 + $0x30] sm:$0xff]
    %v1990 = vld [vmem:[#allocation2 + $0x48] sm:$0xff]
    %v1991 = vld [vmem:[#allocation2 + $0x60] sm:$0xf]
    %1993 = vset.pattern.permute.xlu0 0
    %1994 = vperm.xlu0 %1993, %v1959
    %v1995 = vpop.permute.xlu0 %1994
    %1998 = vset.pattern.permute.xlu0 0
    %1999 = vperm.xlu0 %1998, %v1960
    %v2000 = vpop.permute.xlu0 %1999
    %vm2002 = vcmask 293888
    %v2004 = vsel %vm2002, %v1957, 0
    %v2007 = vsel %vm2002, %v1958, 0
    %v2010 = vsel %vm1590, %v1991, 0
    %2012 = vmatprep.subr.mxu0 0.0
    %2013 = vmatpush1.msra.mxu0 0.0
    %2014 = vmatprep.subr.mxu0 0.0
    %2015 = vmatpush1.msra.mxu0 0.0
    %2016 = vmatprep.subr.mxu0 0.0
    %2017 = vmatpush1.msra.mxu0 0.0
    %2018 = vmatprep.subr.mxu0 0.0
    %2019 = vmatpush1.msra.mxu0 0.0
    %2020 = vmatprep.subr.mxu0 0.0
    %2021 = vmatpush1.msra.mxu0 0.0
    %2022 = vmatprep.subr.mxu0 0.0
    %2023 = vmatpush1.msra.mxu0 0.0
    %2024 = vmatprep.subr.mxu0 0.0
    %2025 = vmatpush1.msra.mxu0 0.0
    %2026 = vmatprep.subr.mxu0 0.0
    %2027 = vmatpush1.msra.mxu0 0.0
    %2028 = vmatprep.subr.mxu0 0.0
    %2029 = vmatpush1.msra.mxu0 0.0
    %2030 = vmatprep.subr.mxu0 0.0
    %2031 = vmatpush1.msra.mxu0 0.0
    %2032 = vmatprep.subr.mxu0 0.0
    %2033 = vmatpush1.msra.mxu0 0.0
    %2034 = vmatprep.subr.mxu0 0.0
    %2035 = vmatpush1.msra.mxu0 %v2010
    %2036 = vmatprep.subr.mxu0 0.0
    %2037 = vmatpush1.msra.mxu0 %v1990
    %2038 = vmatprep.subr.mxu0 0.0
    %2039 = vmatpush1.msra.mxu0 %v1989
    %2040 = vmatprep.subr.mxu0 0.0
    %2041 = vmatpush1.msra.mxu0 %v1988
    %2042 = vmatprep.subr.mxu0 0.0
    %2043 = vmatpush1.msra.mxu0 %v1987
    %2044 = vmatprep.subr.mxu0 0.0
    %2045 = vmatpush2.msra.mxu0 0.0
    %2046 = vmatprep.subr.mxu0 0.0
    %2047 = vmatpush2.msra.mxu0 0.0
    %2048 = vmatprep.subr.mxu0 0.0
    %2049 = vmatpush2.msra.mxu0 0.0
    %2050 = vmatprep.subr.mxu0 0.0
    %2051 = vmatpush2.msra.mxu0 0.0
    %2052 = vmatprep.subr.mxu0 0.0
    %2053 = vmatpush2.msra.mxu0 0.0
    %2054 = vmatprep.subr.mxu0 0.0
    %2055 = vmatpush2.msra.mxu0 0.0
    %2056 = vmatprep.subr.mxu0 0.0
    %2057 = vmatpush2.msra.mxu0 0.0
    %2058 = vmatprep.subr.mxu0 0.0
    %2059 = vmatpush2.msra.mxu0 0.0
    %2060 = vmatprep.subr.mxu0 0.0
    %2061 = vmatpush2.msra.mxu0 0.0
    %2062 = vmatprep.subr.mxu0 0.0
    %2063 = vmatpush2.msra.mxu0 0.0
    %2064 = vmatprep.subr.mxu0 0.0
    %2065 = vmatpush2.msra.mxu0 0.0
    %2066 = vmatprep.subr.mxu0 0.0
    %2067 = vmatpush2.msra.mxu0 0.0
    %2068 = vmatprep.subr.mxu0 0.0
    %2069 = vmatpush2.msra.mxu0 0.0
    %2070 = vmatprep.subr.mxu0 0.0
    %2071 = vmatpush2.msra.mxu0 0.0
    %2072 = vmatprep.subr.mxu0 0.0
    %2073 = vmatpush2.msra.mxu0 0.0
    %2074 = vmatprep.subr.mxu0 0.0
    %2075 = vmatpush2.msra.mxu0 0.0
    %2076 = vmatprep.mubr.f32.mxu0 0.0
    %2077 = vmatmul.mubr.f32.gmra.mxu0 %v2004
    %v2078 = vpop.f32.mrf.mxu0
    %v2079 = vadd.f32 %v1995, %v2078
    %v2080 = vpop.f32.mrf.mxu0
    %2081 = vmatprep.mubr.f32.mxu0 0.0
    %2082 = vmatmul.mubr.f32.gmra.mxu0 %v2007
    %v2083 = vpop.f32.mrf.mxu0
    %v2084 = vadd.f32 %v2000, %v2083
    %v2085 = vpop.f32.mrf.mxu0
    %2086 = vdwg.mxu0
    %v2087 = vmax.f32 %v2079, 0.0
    %v2088 = vmax.f32 %v2084, 0.0
    %v2089 = vsel %vm1961, %v2087, 0.0
    %2090 = vadd.xlane.f32.xlu0 %v2089
    %v2091 = vpop.xlane.xlu0 %2090
    %v2092 = vsel %vm1961, %v2088, 0.0
    %2093 = vadd.xlane.f32.xlu0 %v2092
    %v2094 = vpop.xlane.xlu0 %2093
    %v2095 = vmul.f32 %v2087, %v2087
    %v2096 = vmul.f32 %v2088, %v2088
    %v2097 = vsel %vm1961, %v2095, 0.0
    %2098 = vadd.xlane.f32.xlu0 %v2097
    %v2099 = vpop.xlane.xlu0 %2098
    %v2100 = vsel %vm1961, %v2096, 0.0
    %2101 = vadd.xlane.f32.xlu0 %v2100
    %v2102 = vpop.xlane.xlu0 %2101
    %2103 = vst.msk [vmem:[%s721] sm:$0xff] %vm1961, %v1949
    %2104 = vst.msk [vmem:[%s721 + $0x18] sm:$0xf] %vm1963, %v1954
    %v2107 = vrot.slane %v1949, 4
    %v2108 = vrot.slane %v1954, 4
    %v2109 = vsel %vm1590, %v2107, %v2108
    %2110 = vrot.lane.b32.xlu0 %v2107, 127
    %v2111 = vpop.permute.xlu0 %2110
    %2112 = vrot.lane.b32.xlu0 %v2109, 127
    %v2113 = vpop.permute.xlu0 %2112
    %2116 = vst.msk [vmem:[%s721 + $0x18] sm:$0xf0] %vm1976, %v2111
    %2117 = vst.msk [vmem:[%s721 + $0x30] sm:$0xff] %vm1961, %v2113
    %2118 = vrot.lane.b32.xlu0 %v1949, 126
    %v2119 = vpop.permute.xlu0 %2118
    %2120 = vrot.lane.b32.xlu0 %v1954, 126
    %v2121 = vpop.permute.xlu0 %2120
    %2124 = vst.msk [vmem:[%s721 + $0x48] sm:$0xff] %vm1961, %v2119
    %2125 = vst.msk [vmem:[%s721 + $0x60] sm:$0xf] %vm1963, %v2121
    %v2126 = vld [vmem:[%s721] sm:$0xff]
    %v2127 = vld [vmem:[%s721 + $0x18] sm:$0xff]
    %v2128 = vld [vmem:[%s721 + $0x30] sm:$0xff]
    %v2129 = vld [vmem:[%s721 + $0x48] sm:$0xff]
    %v2130 = vld [vmem:[%s721 + $0x60] sm:$0xf]
    %v2132 = vsel %vm1590, %v2130, 0
    %2134 = vmatprep.subr.mxu0 0.0
    %2135 = vmatpush1.msra.mxu0 0.0
    %2136 = vmatprep.subr.mxu0 0.0
    %2137 = vmatpush1.msra.mxu0 0.0
    %2138 = vmatprep.subr.mxu0 0.0
    %2139 = vmatpush1.msra.mxu0 0.0
    %2140 = vmatprep.subr.mxu0 0.0
    %2141 = vmatpush1.msra.mxu0 0.0
    %2142 = vmatprep.subr.mxu0 0.0
    %2143 = vmatpush1.msra.mxu0 0.0
    %2144 = vmatprep.subr.mxu0 0.0
    %2145 = vmatpush1.msra.mxu0 0.0
    %2146 = vmatprep.subr.mxu0 0.0
    %2147 = vmatpush1.msra.mxu0 0.0
    %2148 = vmatprep.subr.mxu0 0.0
    %2149 = vmatpush1.msra.mxu0 0.0
    %2150 = vmatprep.subr.mxu0 0.0
    %2151 = vmatpush1.msra.mxu0 0.0
    %2152 = vmatprep.subr.mxu0 0.0
    %2153 = vmatpush1.msra.mxu0 0.0
    %2154 = vmatprep.subr.mxu0 0.0
    %2155 = vmatpush1.msra.mxu0 0.0
    %2156 = vmatprep.subr.mxu0 0.0
    %2157 = vmatpush1.msra.mxu0 %v2132
    %2158 = vmatprep.subr.mxu0 0.0
    %2159 = vmatpush1.msra.mxu0 %v2129
    %2160 = vmatprep.subr.mxu0 0.0
    %2161 = vmatpush1.msra.mxu0 %v2128
    %2162 = vmatprep.subr.mxu0 0.0
    %2163 = vmatpush1.msra.mxu0 %v2127
    %2164 = vmatprep.subr.mxu0 0.0
    %2165 = vmatpush1.msra.mxu0 %v2126
    %2166 = vmatprep.subr.mxu0 0.0
    %2167 = vmatpush2.msra.mxu0 0.0
    %2168 = vmatprep.subr.mxu0 0.0
    %2169 = vmatpush2.msra.mxu0 0.0
    %2170 = vmatprep.subr.mxu0 0.0
    %2171 = vmatpush2.msra.mxu0 0.0
    %2172 = vmatprep.subr.mxu0 0.0
    %2173 = vmatpush2.msra.mxu0 0.0
    %2174 = vmatprep.subr.mxu0 0.0
    %2175 = vmatpush2.msra.mxu0 0.0
    %2176 = vmatprep.subr.mxu0 0.0
    %2177 = vmatpush2.msra.mxu0 0.0
    %2178 = vmatprep.subr.mxu0 0.0
    %2179 = vmatpush2.msra.mxu0 0.0
    %2180 = vmatprep.subr.mxu0 0.0
    %2181 = vmatpush2.msra.mxu0 0.0
    %2182 = vmatprep.subr.mxu0 0.0
    %2183 = vmatpush2.msra.mxu0 0.0
    %2184 = vmatprep.subr.mxu0 0.0
    %2185 = vmatpush2.msra.mxu0 0.0
    %2186 = vmatprep.subr.mxu0 0.0
    %2187 = vmatpush2.msra.mxu0 0.0
    %2188 = vmatprep.subr.mxu0 0.0
    %2189 = vmatpush2.msra.mxu0 0.0
    %2190 = vmatprep.subr.mxu0 0.0
    %2191 = vmatpush2.msra.mxu0 0.0
    %2192 = vmatprep.subr.mxu0 0.0
    %2193 = vmatpush2.msra.mxu0 0.0
    %2194 = vmatprep.subr.mxu0 0.0
    %2195 = vmatpush2.msra.mxu0 0.0
    %2196 = vmatprep.subr.mxu0 0.0
    %2197 = vmatpush2.msra.mxu0 0.0
    %2198 = vmatprep.mubr.f32.mxu0 0.0
    %2199 = vmatmul.mubr.f32.gmra.mxu0 %v2004
    %v2200 = vpop.f32.mrf.mxu0
    %v2201 = vadd.f32 %v1995, %v2200
    %v2202 = vpop.f32.mrf.mxu0
    %2203 = vmatprep.mubr.f32.mxu0 0.0
    %2204 = vmatmul.mubr.f32.gmra.mxu0 %v2007
    %v2205 = vpop.f32.mrf.mxu0
    %v2206 = vadd.f32 %v2000, %v2205
    %v2207 = vpop.f32.mrf.mxu0
    %2208 = vdwg.mxu0
    %v2209 = vmax.f32 %v2201, 0.0
    %v2210 = vmax.f32 %v2206, 0.0
    %v2211 = vsel %vm1961, %v2209, 0.0
    %2212 = vadd.xlane.f32.xlu0 %v2211
    %v2213 = vpop.xlane.xlu0 %2212
    %v2214 = vsel %vm1961, %v2210, 0.0
    %2215 = vadd.xlane.f32.xlu0 %v2214
    %v2216 = vpop.xlane.xlu0 %2215
    %v2217 = vmul.f32 %v2209, %v2209
    %v2218 = vmul.f32 %v2210, %v2210
    %v2219 = vsel %vm1961, %v2217, 0.0
    %2220 = vadd.xlane.f32.xlu0 %v2219
    %v2221 = vpop.xlane.xlu0 %2220
    %v2222 = vsel %vm1961, %v2218, 0.0
    %2223 = vadd.xlane.f32.xlu0 %v2222
    %v2224 = vpop.xlane.xlu0 %2223
    %v2225 = vadd.f32 %v2091, %v2213
    %v2226 = vadd.f32 %v2094, %v2216
    %v2227 = vadd.f32 %v2099, %v2221
    %v2228 = vadd.f32 %v2102, %v2224
    %v2229 = vmul.f32 %v2225, 0.0058139535
    %v2230 = vmul.f32 %v2226, 0.0058139535
    %v2231 = vmul.f32 %v2227, 0.0058139535
    %v2232 = vmul.f32 %v2228, 0.0058139535
    %v2233 = vmul.f32 %v2229, %v2229
    %v2234 = vmul.f32 %v2230, %v2230
    %v2235 = vsub.f32 %v2231, %v2233
    %v2236 = vsub.f32 %v2232, %v2234
    %v2237 = vadd.f32 %v2235, 1e-05
    %v2238 = vadd.f32 %v2236, 1e-05
    %v2239 = vrsqrt.pop %v2237
    %v2240 = vrsqrt.pop %v2238
    %v2241 = vsub.f32 %v2087, %v2229
    %v2242 = vsub.f32 %v2088, %v2230
    %v2243 = vmul.f32 %v2241, %v2239
    %v2244 = vmul.f32 %v2242, %v2240
    %v2245 = vld [vmem:[%s49] sm:$0xff]
    %v2246 = vld [vmem:[%s49 + $0x8] sm:$0xff]
    %v2247 = vld [vmem:[%s49 + $0x10] sm:$0xff]
    %v2248 = vld [vmem:[%s49 + $0x18] sm:$0xff]
    %v2249 = vld [vmem:[%s49 + $0x20] sm:$0xff]
    %v2250 = vld [vmem:[%s49 + $0x28] sm:$0xff]
    %v2251 = vld [vmem:[%s49 + $0x30] sm:$0xff]
    %v2252 = vld [vmem:[%s49 + $0x38] sm:$0xff]
    %v2253 = vld [vmem:[%s49 + $0x40] sm:$0xff]
    %v2254 = vld [vmem:[%s49 + $0x48] sm:$0xff]
    %v2255 = vld [vmem:[%s49 + $0x50] sm:$0x3f]
    %v2257 = vsel %vm1961, %v2243, 0
    %v2260 = vsel %vm1961, %v2244, 0
    %v2263 = vsel %vm553, %v2255, 0
    %2265 = vmatprep.subr.mxu0 0.0
    %2266 = vmatpush1.msra.mxu0 0.0
    %2267 = vmatprep.subr.mxu0 0.0
    %2268 = vmatpush1.msra.mxu0 0.0
    %2269 = vmatprep.subr.mxu0 0.0
    %2270 = vmatpush1.msra.mxu0 0.0
    %2271 = vmatprep.subr.mxu0 0.0
    %2272 = vmatpush1.msra.mxu0 0.0
    %2273 = vmatprep.subr.mxu0 0.0
    %2274 = vmatpush1.msra.mxu0 0.0
    %2275 = vmatprep.subr.mxu0 0.0
    %2276 = vmatpush1.msra.mxu0 %v2263
    %2277 = vmatprep.subr.mxu0 0.0
    %2278 = vmatpush1.msra.mxu0 %v2254
    %2279 = vmatprep.subr.mxu0 0.0
    %2280 = vmatpush1.msra.mxu0 %v2253
    %2281 = vmatprep.subr.mxu0 0.0
    %2282 = vmatpush1.msra.mxu0 %v2252
    %2283 = vmatprep.subr.mxu0 0.0
    %2284 = vmatpush1.msra.mxu0 %v2251
    %2285 = vmatprep.subr.mxu0 0.0
    %2286 = vmatpush1.msra.mxu0 %v2250
    %2287 = vmatprep.subr.mxu0 0.0
    %2288 = vmatpush1.msra.mxu0 %v2249
    %2289 = vmatprep.subr.mxu0 0.0
    %2290 = vmatpush1.msra.mxu0 %v2248
    %2291 = vmatprep.subr.mxu0 0.0
    %2292 = vmatpush1.msra.mxu0 %v2247
    %2293 = vmatprep.subr.mxu0 0.0
    %2294 = vmatpush1.msra.mxu0 %v2246
    %2295 = vmatprep.subr.mxu0 0.0
    %2296 = vmatpush1.msra.mxu0 %v2245
    %2297 = vmatprep.subr.mxu0 0.0
    %2298 = vmatpush2.msra.mxu0 0.0
    %2299 = vmatprep.subr.mxu0 0.0
    %2300 = vmatpush2.msra.mxu0 0.0
    %2301 = vmatprep.subr.mxu0 0.0
    %2302 = vmatpush2.msra.mxu0 0.0
    %2303 = vmatprep.subr.mxu0 0.0
    %2304 = vmatpush2.msra.mxu0 0.0
    %2305 = vmatprep.subr.mxu0 0.0
    %2306 = vmatpush2.msra.mxu0 0.0
    %2307 = vmatprep.subr.mxu0 0.0
    %2308 = vmatpush2.msra.mxu0 0.0
    %2309 = vmatprep.subr.mxu0 0.0
    %2310 = vmatpush2.msra.mxu0 0.0
    %2311 = vmatprep.subr.mxu0 0.0
    %2312 = vmatpush2.msra.mxu0 0.0
    %2313 = vmatprep.subr.mxu0 0.0
    %2314 = vmatpush2.msra.mxu0 0.0
    %2315 = vmatprep.subr.mxu0 0.0
    %2316 = vmatpush2.msra.mxu0 0.0
    %2317 = vmatprep.subr.mxu0 0.0
    %2318 = vmatpush2.msra.mxu0 0.0
    %2319 = vmatprep.subr.mxu0 0.0
    %2320 = vmatpush2.msra.mxu0 0.0
    %2321 = vmatprep.subr.mxu0 0.0
    %2322 = vmatpush2.msra.mxu0 0.0
    %2323 = vmatprep.subr.mxu0 0.0
    %2324 = vmatpush2.msra.mxu0 0.0
    %2325 = vmatprep.subr.mxu0 0.0
    %2326 = vmatpush2.msra.mxu0 0.0
    %2327 = vmatprep.subr.mxu0 0.0
    %2328 = vmatpush2.msra.mxu0 0.0
    %2329 = vmatprep.mubr.f32.mxu0 0.0
    %2330 = vmatmul.mubr.f32.gmra.mxu0 %v2257
    %v2331 = vpop.f32.mrf.mxu0
    %v2332 = vadd.f32 0.0, %v2331
    %v2333 = vpop.f32.mrf.mxu0
    %2334 = vmatprep.mubr.f32.mxu0 0.0
    %2335 = vmatmul.mubr.f32.gmra.mxu0 %v2260
    %v2336 = vpop.f32.mrf.mxu0
    %v2337 = vadd.f32 0.0, %v2336
    %v2338 = vpop.f32.mrf.mxu0
    %2339 = vdwg.mxu0
    %v2340 = vsub.f32 %v2209, %v2229
    %v2341 = vsub.f32 %v2210, %v2230
    %v2342 = vmul.f32 %v2340, %v2239
    %v2343 = vmul.f32 %v2341, %v2240
    %v2345 = vsel %vm1961, %v2342, 0
    %v2348 = vsel %vm1961, %v2343, 0
    %2350 = vmatprep.subr.mxu0 0.0
    %2351 = vmatpush1.msra.mxu0 0.0
    %2352 = vmatprep.subr.mxu0 0.0
    %2353 = vmatpush1.msra.mxu0 0.0
    %2354 = vmatprep.subr.mxu0 0.0
    %2355 = vmatpush1.msra.mxu0 0.0
    %2356 = vmatprep.subr.mxu0 0.0
    %2357 = vmatpush1.msra.mxu0 0.0
    %2358 = vmatprep.subr.mxu0 0.0
    %2359 = vmatpush1.msra.mxu0 0.0
    %2360 = vmatprep.subr.mxu0 0.0
    %2361 = vmatpush1.msra.mxu0 %v2263
    %2362 = vmatprep.subr.mxu0 0.0
    %2363 = vmatpush1.msra.mxu0 %v2254
    %2364 = vmatprep.subr.mxu0 0.0
    %2365 = vmatpush1.msra.mxu0 %v2253
    %2366 = vmatprep.subr.mxu0 0.0
    %2367 = vmatpush1.msra.mxu0 %v2252
    %2368 = vmatprep.subr.mxu0 0.0
    %2369 = vmatpush1.msra.mxu0 %v2251
    %2370 = vmatprep.subr.mxu0 0.0
    %2371 = vmatpush1.msra.mxu0 %v2250
    %2372 = vmatprep.subr.mxu0 0.0
    %2373 = vmatpush1.msra.mxu0 %v2249
    %2374 = vmatprep.subr.mxu0 0.0
    %2375 = vmatpush1.msra.mxu0 %v2248
    %2376 = vmatprep.subr.mxu0 0.0
    %2377 = vmatpush1.msra.mxu0 %v2247
    %2378 = vmatprep.subr.mxu0 0.0
    %2379 = vmatpush1.msra.mxu0 %v2246
    %2380 = vmatprep.subr.mxu0 0.0
    %2381 = vmatpush1.msra.mxu0 %v2245
    %2382 = vmatprep.subr.mxu0 0.0
    %2383 = vmatpush2.msra.mxu0 0.0
    %2384 = vmatprep.subr.mxu0 0.0
    %2385 = vmatpush2.msra.mxu0 0.0
    %2386 = vmatprep.subr.mxu0 0.0
    %2387 = vmatpush2.msra.mxu0 0.0
    %2388 = vmatprep.subr.mxu0 0.0
    %2389 = vmatpush2.msra.mxu0 0.0
    %2390 = vmatprep.subr.mxu0 0.0
    %2391 = vmatpush2.msra.mxu0 0.0
    %2392 = vmatprep.subr.mxu0 0.0
    %2393 = vmatpush2.msra.mxu0 0.0
    %2394 = vmatprep.subr.mxu0 0.0
    %2395 = vmatpush2.msra.mxu0 0.0
    %2396 = vmatprep.subr.mxu0 0.0
    %2397 = vmatpush2.msra.mxu0 0.0
    %2398 = vmatprep.subr.mxu0 0.0
    %2399 = vmatpush2.msra.mxu0 0.0
    %2400 = vmatprep.subr.mxu0 0.0
    %2401 = vmatpush2.msra.mxu0 0.0
    %2402 = vmatprep.subr.mxu0 0.0
    %2403 = vmatpush2.msra.mxu0 0.0
    %2404 = vmatprep.subr.mxu0 0.0
    %2405 = vmatpush2.msra.mxu0 0.0
    %2406 = vmatprep.subr.mxu0 0.0
    %2407 = vmatpush2.msra.mxu0 0.0
    %2408 = vmatprep.subr.mxu0 0.0
    %2409 = vmatpush2.msra.mxu0 0.0
    %2410 = vmatprep.subr.mxu0 0.0
    %2411 = vmatpush2.msra.mxu0 0.0
    %2412 = vmatprep.subr.mxu0 0.0
    %2413 = vmatpush2.msra.mxu0 0.0
    %2414 = vmatprep.mubr.f32.mxu0 0.0
    %2415 = vmatmul.mubr.f32.gmra.mxu0 %v2345
    %v2416 = vpop.f32.mrf.mxu0
    %v2417 = vadd.f32 0.0, %v2416
    %v2418 = vpop.f32.mrf.mxu0
    %2419 = vmatprep.mubr.f32.mxu0 0.0
    %2420 = vmatmul.mubr.f32.gmra.mxu0 %v2348
    %v2421 = vpop.f32.mrf.mxu0
    %v2422 = vadd.f32 0.0, %v2421
    %v2423 = vpop.f32.mrf.mxu0
    %2424 = vdwg.mxu0
    %v2425 = vld [vmem:[#allocation12] sm:$0xff]
    %v2426 = vld [vmem:[#allocation12 + $0x8] sm:$0xff]
    %v2427 = vld [vmem:[#allocation12 + $0x10] sm:$0xf]
    %v2428 = vld [vmem:[%s23] sm:$0xff]
    %v2429 = vld [vmem:[%s23 + $0x8] sm:$0xff]
    %v2430 = vld [vmem:[%s23 + $0x10] sm:$0xf]
    %vm2431 = vcmask 334848
    %2432 = vst.msk [vmem:[#allocation2] sm:$0xff] %vm2431, %v2332
    %2433 = vst.msk [vmem:[#allocation2 + $0x18] sm:$0xff] %vm2431, %v2337
    %2436 = vrot.lane.b32.xlu0 %v2332, 127
    %v2437 = vpop.permute.xlu0 %2436
    %2438 = vrot.lane.b32.xlu0 %v2337, 127
    %v2439 = vpop.permute.xlu0 %2438
    %2442 = vst.msk [vmem:[#allocation2 + $0x30] sm:$0xff] %vm2431, %v2437
    %2443 = vst.msk [vmem:[#allocation2 + $0x48] sm:$0xff] %vm2431, %v2439
    %2444 = vrot.lane.b32.xlu0 %v2332, 126
    %v2445 = vpop.permute.xlu0 %2444
    %2446 = vrot.lane.b32.xlu0 %v2337, 126
    %v2447 = vpop.permute.xlu0 %2446
    %2450 = vst.msk [vmem:[#allocation2 + $0x60] sm:$0xff] %vm2431, %v2445
    %2451 = vst.msk [vmem:[#allocation2 + $0x78] sm:$0xff] %vm2431, %v2447
    %v2452 = vld [vmem:[#allocation2] sm:$0xff]
    %v2453 = vld [vmem:[#allocation2 + $0x18] sm:$0xff]
    %v2454 = vld [vmem:[#allocation2 + $0x30] sm:$0xff]
    %v2455 = vld [vmem:[#allocation2 + $0x48] sm:$0xff]
    %v2456 = vld [vmem:[#allocation2 + $0x60] sm:$0xff]
    %v2457 = vld [vmem:[#allocation2 + $0x78] sm:$0xff]
    %2459 = vset.pattern.permute.xlu0 0
    %2460 = vperm.xlu0 %2459, %v2428
    %v2461 = vpop.permute.xlu0 %2460
    %2464 = vset.pattern.permute.xlu0 0
    %2465 = vperm.xlu0 %2464, %v2429
    %v2466 = vpop.permute.xlu0 %2465
    %2469 = vset.pattern.permute.xlu0 0
    %2470 = vperm.xlu0 %2469, %v2430
    %v2471 = vpop.permute.xlu0 %2470
    %v2474 = vsel %vm1460, %v2425, 0
    %v2477 = vsel %vm1460, %v2426, 0
    %v2480 = vsel %vm1460, %v2427, 0
    %2482 = vmatprep.subr.mxu0 0.0
    %2483 = vmatpush1.msra.mxu0 0.0
    %2484 = vmatprep.subr.mxu0 0.0
    %2485 = vmatpush1.msra.mxu0 0.0
    %2486 = vmatprep.subr.mxu0 0.0
    %2487 = vmatpush1.msra.mxu0 0.0
    %2488 = vmatprep.subr.mxu0 0.0
    %2489 = vmatpush1.msra.mxu0 0.0
    %2490 = vmatprep.subr.mxu0 0.0
    %2491 = vmatpush1.msra.mxu0 0.0
    %2492 = vmatprep.subr.mxu0 0.0
    %2493 = vmatpush1.msra.mxu0 0.0
    %2494 = vmatprep.subr.mxu0 0.0
    %2495 = vmatpush1.msra.mxu0 0.0
    %2496 = vmatprep.subr.mxu0 0.0
    %2497 = vmatpush1.msra.mxu0 0.0
    %2498 = vmatprep.subr.mxu0 0.0
    %2499 = vmatpush1.msra.mxu0 0.0
    %2500 = vmatprep.subr.mxu0 0.0
    %2501 = vmatpush1.msra.mxu0 0.0
    %2502 = vmatprep.subr.mxu0 0.0
    %2503 = vmatpush1.msra.mxu0 %v2457
    %2504 = vmatprep.subr.mxu0 0.0
    %2505 = vmatpush1.msra.mxu0 %v2456
    %2506 = vmatprep.subr.mxu0 0.0
    %2507 = vmatpush1.msra.mxu0 %v2455
    %2508 = vmatprep.subr.mxu0 0.0
    %2509 = vmatpush1.msra.mxu0 %v2454
    %2510 = vmatprep.subr.mxu0 0.0
    %2511 = vmatpush1.msra.mxu0 %v2453
    %2512 = vmatprep.subr.mxu0 0.0
    %2513 = vmatpush1.msra.mxu0 %v2452
    %2514 = vmatprep.subr.mxu0 0.0
    %2515 = vmatpush2.msra.mxu0 0.0
    %2516 = vmatprep.subr.mxu0 0.0
    %2517 = vmatpush2.msra.mxu0 0.0
    %2518 = vmatprep.subr.mxu0 0.0
    %2519 = vmatpush2.msra.mxu0 0.0
    %2520 = vmatprep.subr.mxu0 0.0
    %2521 = vmatpush2.msra.mxu0 0.0
    %2522 = vmatprep.subr.mxu0 0.0
    %2523 = vmatpush2.msra.mxu0 0.0
    %2524 = vmatprep.subr.mxu0 0.0
    %2525 = vmatpush2.msra.mxu0 0.0
    %2526 = vmatprep.subr.mxu0 0.0
    %2527 = vmatpush2.msra.mxu0 0.0
    %2528 = vmatprep.subr.mxu0 0.0
    %2529 = vmatpush2.msra.mxu0 0.0
    %2530 = vmatprep.subr.mxu0 0.0
    %2531 = vmatpush2.msra.mxu0 0.0
    %2532 = vmatprep.subr.mxu0 0.0
    %2533 = vmatpush2.msra.mxu0 0.0
    %2534 = vmatprep.subr.mxu0 0.0
    %2535 = vmatpush2.msra.mxu0 0.0
    %2536 = vmatprep.subr.mxu0 0.0
    %2537 = vmatpush2.msra.mxu0 0.0
    %2538 = vmatprep.subr.mxu0 0.0
    %2539 = vmatpush2.msra.mxu0 0.0
    %2540 = vmatprep.subr.mxu0 0.0
    %2541 = vmatpush2.msra.mxu0 0.0
    %2542 = vmatprep.subr.mxu0 0.0
    %2543 = vmatpush2.msra.mxu0 0.0
    %2544 = vmatprep.subr.mxu0 0.0
    %2545 = vmatpush2.msra.mxu0 0.0
    %2546 = vmatprep.mubr.f32.mxu0 0.0
    %2547 = vmatmul.mubr.f32.gmra.mxu0 %v2474
    %v2548 = vpop.f32.mrf.mxu0
    %v2549 = vadd.f32 %v2461, %v2548
    %v2550 = vpop.f32.mrf.mxu0
    %2551 = vmatprep.mubr.f32.mxu0 0.0
    %2552 = vmatmul.mubr.f32.gmra.mxu0 %v2477
    %v2553 = vpop.f32.mrf.mxu0
    %v2554 = vadd.f32 %v2466, %v2553
    %v2555 = vpop.f32.mrf.mxu0
    %2556 = vmatprep.mubr.f32.mxu0 0.0
    %2557 = vmatmul.mubr.f32.gmra.mxu0 %v2480
    %v2558 = vpop.f32.mrf.mxu0
    %v2559 = vadd.f32 %v2471, %v2558
    %v2560 = vpop.f32.mrf.mxu0
    %2561 = vdwg.mxu0
    %v2562 = vmax.f32 %v2549, 0.0
    %v2563 = vmax.f32 %v2554, 0.0
    %v2564 = vmax.f32 %v2559, 0.0
    %v2565 = vsel %vm2431, %v2562, 0.0
    %2566 = vadd.xlane.f32.xlu0 %v2565
    %v2567 = vpop.xlane.xlu0 %2566
    %v2568 = vsel %vm2431, %v2563, 0.0
    %2569 = vadd.xlane.f32.xlu0 %v2568
    %v2570 = vpop.xlane.xlu0 %2569
    %vm2571 = vcmask 330752
    %v2572 = vsel %vm2571, %v2564, 0.0
    %2573 = vadd.xlane.f32.xlu0 %v2572
    %v2574 = vpop.xlane.xlu0 %2573
    %v2575 = vmul.f32 %v2562, %v2562
    %v2576 = vmul.f32 %v2563, %v2563
    %v2577 = vmul.f32 %v2564, %v2564
    %v2578 = vsel %vm2431, %v2575, 0.0
    %2579 = vadd.xlane.f32.xlu0 %v2578
    %v2580 = vpop.xlane.xlu0 %2579
    %v2581 = vsel %vm2431, %v2576, 0.0
    %2582 = vadd.xlane.f32.xlu0 %v2581
    %v2583 = vpop.xlane.xlu0 %2582
    %v2584 = vsel %vm2571, %v2577, 0.0
    %2585 = vadd.xlane.f32.xlu0 %v2584
    %v2586 = vpop.xlane.xlu0 %2585
    %2587 = vst.msk [vmem:[%s721] sm:$0xff] %vm2431, %v2417
    %2588 = vst.msk [vmem:[%s721 + $0x18] sm:$0xff] %vm2431, %v2422
    %2591 = vrot.lane.b32.xlu0 %v2417, 127
    %v2592 = vpop.permute.xlu0 %2591
    %2593 = vrot.lane.b32.xlu0 %v2422, 127
    %v2594 = vpop.permute.xlu0 %2593
    %2597 = vst.msk [vmem:[%s721 + $0x30] sm:$0xff] %vm2431, %v2592
    %2598 = vst.msk [vmem:[%s721 + $0x48] sm:$0xff] %vm2431, %v2594
    %2599 = vrot.lane.b32.xlu0 %v2417, 126
    %v2600 = vpop.permute.xlu0 %2599
    %2601 = vrot.lane.b32.xlu0 %v2422, 126
    %v2602 = vpop.permute.xlu0 %2601
    %2605 = vst.msk [vmem:[%s721 + $0x60] sm:$0xff] %vm2431, %v2600
    %2606 = vst.msk [vmem:[%s721 + $0x78] sm:$0xff] %vm2431, %v2602
    %v2607 = vld [vmem:[%s721] sm:$0xff]
    %v2608 = vld [vmem:[%s721 + $0x18] sm:$0xff]
    %v2609 = vld [vmem:[%s721 + $0x30] sm:$0xff]
    %v2610 = vld [vmem:[%s721 + $0x48] sm:$0xff]
    %v2611 = vld [vmem:[%s721 + $0x60] sm:$0xff]
    %v2612 = vld [vmem:[%s721 + $0x78] sm:$0xff]
    %2613 = vmatprep.subr.mxu0 0.0
    %2614 = vmatpush1.msra.mxu0 0.0
    %2615 = vmatprep.subr.mxu0 0.0
    %2616 = vmatpush1.msra.mxu0 0.0
    %2617 = vmatprep.subr.mxu0 0.0
    %2618 = vmatpush1.msra.mxu0 0.0
    %2619 = vmatprep.subr.mxu0 0.0
    %2620 = vmatpush1.msra.mxu0 0.0
    %2621 = vmatprep.subr.mxu0 0.0
    %2622 = vmatpush1.msra.mxu0 0.0
    %2623 = vmatprep.subr.mxu0 0.0
    %2624 = vmatpush1.msra.mxu0 0.0
    %2625 = vmatprep.subr.mxu0 0.0
    %2626 = vmatpush1.msra.mxu0 0.0
    %2627 = vmatprep.subr.mxu0 0.0
    %2628 = vmatpush1.msra.mxu0 0.0
    %2629 = vmatprep.subr.mxu0 0.0
    %2630 = vmatpush1.msra.mxu0 0.0
    %2631 = vmatprep.subr.mxu0 0.0
    %2632 = vmatpush1.msra.mxu0 0.0
    %2633 = vmatprep.subr.mxu0 0.0
    %2634 = vmatpush1.msra.mxu0 %v2612
    %2635 = vmatprep.subr.mxu0 0.0
    %2636 = vmatpush1.msra.mxu0 %v2611
    %2637 = vmatprep.subr.mxu0 0.0
    %2638 = vmatpush1.msra.mxu0 %v2610
    %2639 = vmatprep.subr.mxu0 0.0
    %2640 = vmatpush1.msra.mxu0 %v2609
    %2641 = vmatprep.subr.mxu0 0.0
    %2642 = vmatpush1.msra.mxu0 %v2608
    %2643 = vmatprep.subr.mxu0 0.0
    %2644 = vmatpush1.msra.mxu0 %v2607
    %2645 = vmatprep.subr.mxu0 0.0
    %2646 = vmatpush2.msra.mxu0 0.0
    %2647 = vmatprep.subr.mxu0 0.0
    %2648 = vmatpush2.msra.mxu0 0.0
    %2649 = vmatprep.subr.mxu0 0.0
    %2650 = vmatpush2.msra.mxu0 0.0
    %2651 = vmatprep.subr.mxu0 0.0
    %2652 = vmatpush2.msra.mxu0 0.0
    %2653 = vmatprep.subr.mxu0 0.0
    %2654 = vmatpush2.msra.mxu0 0.0
    %2655 = vmatprep.subr.mxu0 0.0
    %2656 = vmatpush2.msra.mxu0 0.0
    %2657 = vmatprep.subr.mxu0 0.0
    %2658 = vmatpush2.msra.mxu0 0.0
    %2659 = vmatprep.subr.mxu0 0.0
    %2660 = vmatpush2.msra.mxu0 0.0
    %2661 = vmatprep.subr.mxu0 0.0
    %2662 = vmatpush2.msra.mxu0 0.0
    %2663 = vmatprep.subr.mxu0 0.0
    %2664 = vmatpush2.msra.mxu0 0.0
    %2665 = vmatprep.subr.mxu0 0.0
    %2666 = vmatpush2.msra.mxu0 0.0
    %2667 = vmatprep.subr.mxu0 0.0
    %2668 = vmatpush2.msra.mxu0 0.0
    %2669 = vmatprep.subr.mxu0 0.0
    %2670 = vmatpush2.msra.mxu0 0.0
    %2671 = vmatprep.subr.mxu0 0.0
    %2672 = vmatpush2.msra.mxu0 0.0
    %2673 = vmatprep.subr.mxu0 0.0
    %2674 = vmatpush2.msra.mxu0 0.0
    %2675 = vmatprep.subr.mxu0 0.0
    %2676 = vmatpush2.msra.mxu0 0.0
    %2677 = vmatprep.mubr.f32.mxu0 0.0
    %2678 = vmatmul.mubr.f32.gmra.mxu0 %v2474
    %v2679 = vpop.f32.mrf.mxu0
    %v2680 = vadd.f32 %v2461, %v2679
    %v2681 = vpop.f32.mrf.mxu0
    %2682 = vmatprep.mubr.f32.mxu0 0.0
    %2683 = vmatmul.mubr.f32.gmra.mxu0 %v2477
    %v2684 = vpop.f32.mrf.mxu0
    %v2685 = vadd.f32 %v2466, %v2684
    %v2686 = vpop.f32.mrf.mxu0
    %2687 = vmatprep.mubr.f32.mxu0 0.0
    %2688 = vmatmul.mubr.f32.gmra.mxu0 %v2480
    %v2689 = vpop.f32.mrf.mxu0
    %v2690 = vadd.f32 %v2471, %v2689
    %v2691 = vpop.f32.mrf.mxu0
    %2692 = vdwg.mxu0
    %v2693 = vmax.f32 %v2680, 0.0
    %v2694 = vmax.f32 %v2685, 0.0
    %v2695 = vmax.f32 %v2690, 0.0
    %v2696 = vsel %vm2431, %v2693, 0.0
    %2697 = vadd.xlane.f32.xlu0 %v2696
    %v2698 = vpop.xlane.xlu0 %2697
    %v2699 = vsel %vm2431, %v2694, 0.0
    %2700 = vadd.xlane.f32.xlu0 %v2699
    %v2701 = vpop.xlane.xlu0 %2700
    %v2702 = vsel %vm2571, %v2695, 0.0
    %2703 = vadd.xlane.f32.xlu0 %v2702
    %v2704 = vpop.xlane.xlu0 %2703
    %v2705 = vmul.f32 %v2693, %v2693
    %v2706 = vmul.f32 %v2694, %v2694
    %v2707 = vmul.f32 %v2695, %v2695
    %v2708 = vsel %vm2431, %v2705, 0.0
    %2709 = vadd.xlane.f32.xlu0 %v2708
    %v2710 = vpop.xlane.xlu0 %2709
    %v2711 = vsel %vm2431, %v2706, 0.0
    %2712 = vadd.xlane.f32.xlu0 %v2711
    %v2713 = vpop.xlane.xlu0 %2712
    %v2714 = vsel %vm2571, %v2707, 0.0
    %2715 = vadd.xlane.f32.xlu0 %v2714
    %v2716 = vpop.xlane.xlu0 %2715
    %v2717 = vadd.f32 %v2567, %v2698
    %v2718 = vadd.f32 %v2570, %v2701
    %v2719 = vadd.f32 %v2574, %v2704
    %v2720 = vadd.f32 %v2580, %v2710
    %v2721 = vadd.f32 %v2583, %v2713
    %v2722 = vadd.f32 %v2586, %v2716
    %v2723 = vmul.f32 %v2717, 0.0121951215
    %v2724 = vmul.f32 %v2718, 0.0121951215
    %v2725 = vmul.f32 %v2719, 0.0121951215
    %v2726 = vmul.f32 %v2720, 0.0121951215
    %v2727 = vmul.f32 %v2721, 0.0121951215
    %v2728 = vmul.f32 %v2722, 0.0121951215
    %v2729 = vmul.f32 %v2723, %v2723
    %v2730 = vmul.f32 %v2724, %v2724
    %v2731 = vmul.f32 %v2725, %v2725
    %v2732 = vsub.f32 %v2726, %v2729
    %v2733 = vsub.f32 %v2727, %v2730
    %v2734 = vsub.f32 %v2728, %v2731
    %v2735 = vadd.f32 %v2732, 1e-05
    %v2736 = vadd.f32 %v2733, 1e-05
    %v2737 = vadd.f32 %v2734, 1e-05
    %v2738 = vrsqrt.pop %v2735
    %v2739 = vrsqrt.pop %v2736
    %v2740 = vrsqrt.pop %v2737
    %v2741 = vsub.f32 %v2562, %v2723
    %v2742 = vsub.f32 %v2563, %v2724
    %v2743 = vsub.f32 %v2564, %v2725
    %v2744 = vmul.f32 %v2741, %v2738
    %v2745 = vmul.f32 %v2742, %v2739
    %v2746 = vmul.f32 %v2743, %v2740
    %v2747 = vld [vmem:[%s51] sm:$0xff]
    %v2748 = vld [vmem:[%s51 + $0x8] sm:$0xff]
    %v2749 = vld [vmem:[%s51 + $0x10] sm:$0xff]
    %v2750 = vld [vmem:[%s51 + $0x18] sm:$0xff]
    %v2751 = vld [vmem:[%s51 + $0x20] sm:$0xff]
    %v2752 = vld [vmem:[%s51 + $0x28] sm:$0x1]
    %v2754 = vsel %vm2431, %v2744, 0
    %v2757 = vsel %vm2431, %v2745, 0
    %v2760 = vsel %vm2431, %v2746, 0
    %vm2762 = vcmask 1040384
    %v2764 = vsel %vm2762, %v2752, 0
    %2766 = vmatprep.subr.mxu0 0.0
    %2767 = vmatpush1.msra.mxu0 0.0
    %2768 = vmatprep.subr.mxu0 0.0
    %2769 = vmatpush1.msra.mxu0 0.0
    %2770 = vmatprep.subr.mxu0 0.0
    %2771 = vmatpush1.msra.mxu0 0.0
    %2772 = vmatprep.subr.mxu0 0.0
    %2773 = vmatpush1.msra.mxu0 0.0
    %2774 = vmatprep.subr.mxu0 0.0
    %2775 = vmatpush1.msra.mxu0 0.0
    %2776 = vmatprep.subr.mxu0 0.0
    %2777 = vmatpush1.msra.mxu0 0.0
    %2778 = vmatprep.subr.mxu0 0.0
    %2779 = vmatpush1.msra.mxu0 0.0
    %2780 = vmatprep.subr.mxu0 0.0
    %2781 = vmatpush1.msra.mxu0 0.0
    %2782 = vmatprep.subr.mxu0 0.0
    %2783 = vmatpush1.msra.mxu0 0.0
    %2784 = vmatprep.subr.mxu0 0.0
    %2785 = vmatpush1.msra.mxu0 0.0
    %2786 = vmatprep.subr.mxu0 0.0
    %2787 = vmatpush1.msra.mxu0 %v2764
    %2788 = vmatprep.subr.mxu0 0.0
    %2789 = vmatpush1.msra.mxu0 %v2751
    %2790 = vmatprep.subr.mxu0 0.0
    %2791 = vmatpush1.msra.mxu0 %v2750
    %2792 = vmatprep.subr.mxu0 0.0
    %2793 = vmatpush1.msra.mxu0 %v2749
    %2794 = vmatprep.subr.mxu0 0.0
    %2795 = vmatpush1.msra.mxu0 %v2748
    %2796 = vmatprep.subr.mxu0 0.0
    %2797 = vmatpush1.msra.mxu0 %v2747
    %2798 = vmatprep.subr.mxu0 0.0
    %2799 = vmatpush2.msra.mxu0 0.0
    %2800 = vmatprep.subr.mxu0 0.0
    %2801 = vmatpush2.msra.mxu0 0.0
    %2802 = vmatprep.subr.mxu0 0.0
    %2803 = vmatpush2.msra.mxu0 0.0
    %2804 = vmatprep.subr.mxu0 0.0
    %2805 = vmatpush2.msra.mxu0 0.0
    %2806 = vmatprep.subr.mxu0 0.0
    %2807 = vmatpush2.msra.mxu0 0.0
    %2808 = vmatprep.subr.mxu0 0.0
    %2809 = vmatpush2.msra.mxu0 0.0
    %2810 = vmatprep.subr.mxu0 0.0
    %2811 = vmatpush2.msra.mxu0 0.0
    %2812 = vmatprep.subr.mxu0 0.0
    %2813 = vmatpush2.msra.mxu0 0.0
    %2814 = vmatprep.subr.mxu0 0.0
    %2815 = vmatpush2.msra.mxu0 0.0
    %2816 = vmatprep.subr.mxu0 0.0
    %2817 = vmatpush2.msra.mxu0 0.0
    %2818 = vmatprep.subr.mxu0 0.0
    %2819 = vmatpush2.msra.mxu0 0.0
    %2820 = vmatprep.subr.mxu0 0.0
    %2821 = vmatpush2.msra.mxu0 0.0
    %2822 = vmatprep.subr.mxu0 0.0
    %2823 = vmatpush2.msra.mxu0 0.0
    %2824 = vmatprep.subr.mxu0 0.0
    %2825 = vmatpush2.msra.mxu0 0.0
    %2826 = vmatprep.subr.mxu0 0.0
    %2827 = vmatpush2.msra.mxu0 0.0
    %2828 = vmatprep.subr.mxu0 0.0
    %2829 = vmatpush2.msra.mxu0 0.0
    %2830 = vmatprep.mubr.f32.mxu0 0.0
    %2831 = vmatmul.mubr.f32.gmra.mxu0 %v2754
    %v2832 = vpop.f32.mrf.mxu0
    %v2833 = vadd.f32 0.0, %v2832
    %v2834 = vpop.f32.mrf.mxu0
    %2835 = vmatprep.mubr.f32.mxu0 0.0
    %2836 = vmatmul.mubr.f32.gmra.mxu0 %v2757
    %v2837 = vpop.f32.mrf.mxu0
    %v2838 = vadd.f32 0.0, %v2837
    %v2839 = vpop.f32.mrf.mxu0
    %2840 = vmatprep.mubr.f32.mxu0 0.0
    %2841 = vmatmul.mubr.f32.gmra.mxu0 %v2760
    %v2842 = vpop.f32.mrf.mxu0
    %v2843 = vadd.f32 0.0, %v2842
    %v2844 = vpop.f32.mrf.mxu0
    %2845 = vdwg.mxu0
    %v2846 = vld [vmem:[%s53] sm:$0xff]
    %v2847 = vld [vmem:[%s53 + $0x8] sm:$0xff]
    %v2848 = vld [vmem:[%s53 + $0x10] sm:$0xff]
    %v2849 = vld [vmem:[%s53 + $0x18] sm:$0xff]
    %v2850 = vld [vmem:[%s53 + $0x20] sm:$0xff]
    %v2851 = vld [vmem:[%s53 + $0x28] sm:$0x1]
    %v2853 = vsel %vm2762, %v2851, 0
    %2855 = vmatprep.subr.mxu0 0.0
    %2856 = vmatpush1.msra.mxu0 0.0
    %2857 = vmatprep.subr.mxu0 0.0
    %2858 = vmatpush1.msra.mxu0 0.0
    %2859 = vmatprep.subr.mxu0 0.0
    %2860 = vmatpush1.msra.mxu0 0.0
    %2861 = vmatprep.subr.mxu0 0.0
    %2862 = vmatpush1.msra.mxu0 0.0
    %2863 = vmatprep.subr.mxu0 0.0
    %2864 = vmatpush1.msra.mxu0 0.0
    %2865 = vmatprep.subr.mxu0 0.0
    %2866 = vmatpush1.msra.mxu0 0.0
    %2867 = vmatprep.subr.mxu0 0.0
    %2868 = vmatpush1.msra.mxu0 0.0
    %2869 = vmatprep.subr.mxu0 0.0
    %2870 = vmatpush1.msra.mxu0 0.0
    %2871 = vmatprep.subr.mxu0 0.0
    %2872 = vmatpush1.msra.mxu0 0.0
    %2873 = vmatprep.subr.mxu0 0.0
    %2874 = vmatpush1.msra.mxu0 0.0
    %2875 = vmatprep.subr.mxu0 0.0
    %2876 = vmatpush1.msra.mxu0 %v2853
    %2877 = vmatprep.subr.mxu0 0.0
    %2878 = vmatpush1.msra.mxu0 %v2850
    %2879 = vmatprep.subr.mxu0 0.0
    %2880 = vmatpush1.msra.mxu0 %v2849
    %2881 = vmatprep.subr.mxu0 0.0
    %2882 = vmatpush1.msra.mxu0 %v2848
    %2883 = vmatprep.subr.mxu0 0.0
    %2884 = vmatpush1.msra.mxu0 %v2847
    %2885 = vmatprep.subr.mxu0 0.0
    %2886 = vmatpush1.msra.mxu0 %v2846
    %2887 = vmatprep.subr.mxu0 0.0
    %2888 = vmatpush2.msra.mxu0 0.0
    %2889 = vmatprep.subr.mxu0 0.0
    %2890 = vmatpush2.msra.mxu0 0.0
    %2891 = vmatprep.subr.mxu0 0.0
    %2892 = vmatpush2.msra.mxu0 0.0
    %2893 = vmatprep.subr.mxu0 0.0
    %2894 = vmatpush2.msra.mxu0 0.0
    %2895 = vmatprep.subr.mxu0 0.0
    %2896 = vmatpush2.msra.mxu0 0.0
    %2897 = vmatprep.subr.mxu0 0.0
    %2898 = vmatpush2.msra.mxu0 0.0
    %2899 = vmatprep.subr.mxu0 0.0
    %2900 = vmatpush2.msra.mxu0 0.0
    %2901 = vmatprep.subr.mxu0 0.0
    %2902 = vmatpush2.msra.mxu0 0.0
    %2903 = vmatprep.subr.mxu0 0.0
    %2904 = vmatpush2.msra.mxu0 0.0
    %2905 = vmatprep.subr.mxu0 0.0
    %2906 = vmatpush2.msra.mxu0 0.0
    %2907 = vmatprep.subr.mxu0 0.0
    %2908 = vmatpush2.msra.mxu0 0.0
    %2909 = vmatprep.subr.mxu0 0.0
    %2910 = vmatpush2.msra.mxu0 0.0
    %2911 = vmatprep.subr.mxu0 0.0
    %2912 = vmatpush2.msra.mxu0 0.0
    %2913 = vmatprep.subr.mxu0 0.0
    %2914 = vmatpush2.msra.mxu0 0.0
    %2915 = vmatprep.subr.mxu0 0.0
    %2916 = vmatpush2.msra.mxu0 0.0
    %2917 = vmatprep.subr.mxu0 0.0
    %2918 = vmatpush2.msra.mxu0 0.0
    %2919 = vmatprep.mubr.f32.mxu0 0.0
    %2920 = vmatmul.mubr.f32.gmra.mxu0 %v2754
    %v2921 = vpop.f32.mrf.mxu0
    %v2922 = vadd.f32 0.0, %v2921
    %v2923 = vpop.f32.mrf.mxu0
    %2924 = vmatprep.mubr.f32.mxu0 0.0
    %2925 = vmatmul.mubr.f32.gmra.mxu0 %v2757
    %v2926 = vpop.f32.mrf.mxu0
    %v2927 = vadd.f32 0.0, %v2926
    %v2928 = vpop.f32.mrf.mxu0
    %2929 = vmatprep.mubr.f32.mxu0 0.0
    %2930 = vmatmul.mubr.f32.gmra.mxu0 %v2760
    %v2931 = vpop.f32.mrf.mxu0
    %v2932 = vadd.f32 0.0, %v2931
    %v2933 = vpop.f32.mrf.mxu0
    %2934 = vdwg.mxu0
    %v2935 = vmax.f32 %v2833, %v2922
    %v2936 = vmax.f32 %v2838, %v2927
    %v2937 = vmax.f32 %v2843, %v2932
    %v2938 = vsub.f32 %v2693, %v2723
    %v2939 = vsub.f32 %v2694, %v2724
    %v2940 = vsub.f32 %v2695, %v2725
    %v2941 = vmul.f32 %v2938, %v2738
    %v2942 = vmul.f32 %v2939, %v2739
    %v2943 = vmul.f32 %v2940, %v2740
    %v2945 = vsel %vm2431, %v2941, 0
    %v2948 = vsel %vm2431, %v2942, 0
    %v2951 = vsel %vm2431, %v2943, 0
    %2953 = vmatprep.subr.mxu0 0.0
    %2954 = vmatpush1.msra.mxu0 0.0
    %2955 = vmatprep.subr.mxu0 0.0
    %2956 = vmatpush1.msra.mxu0 0.0
    %2957 = vmatprep.subr.mxu0 0.0
    %2958 = vmatpush1.msra.mxu0 0.0
    %2959 = vmatprep.subr.mxu0 0.0
    %2960 = vmatpush1.msra.mxu0 0.0
    %2961 = vmatprep.subr.mxu0 0.0
    %2962 = vmatpush1.msra.mxu0 0.0
    %2963 = vmatprep.subr.mxu0 0.0
    %2964 = vmatpush1.msra.mxu0 0.0
    %2965 = vmatprep.subr.mxu0 0.0
    %2966 = vmatpush1.msra.mxu0 0.0
    %2967 = vmatprep.subr.mxu0 0.0
    %2968 = vmatpush1.msra.mxu0 0.0
    %2969 = vmatprep.subr.mxu0 0.0
    %2970 = vmatpush1.msra.mxu0 0.0
    %2971 = vmatprep.subr.mxu0 0.0
    %2972 = vmatpush1.msra.mxu0 0.0
    %2973 = vmatprep.subr.mxu0 0.0
    %2974 = vmatpush1.msra.mxu0 %v2764
    %2975 = vmatprep.subr.mxu0 0.0
    %2976 = vmatpush1.msra.mxu0 %v2751
    %2977 = vmatprep.subr.mxu0 0.0
    %2978 = vmatpush1.msra.mxu0 %v2750
    %2979 = vmatprep.subr.mxu0 0.0
    %2980 = vmatpush1.msra.mxu0 %v2749
    %2981 = vmatprep.subr.mxu0 0.0
    %2982 = vmatpush1.msra.mxu0 %v2748
    %2983 = vmatprep.subr.mxu0 0.0
    %2984 = vmatpush1.msra.mxu0 %v2747
    %2985 = vmatprep.subr.mxu0 0.0
    %2986 = vmatpush2.msra.mxu0 0.0
    %2987 = vmatprep.subr.mxu0 0.0
    %2988 = vmatpush2.msra.mxu0 0.0
    %2989 = vmatprep.subr.mxu0 0.0
    %2990 = vmatpush2.msra.mxu0 0.0
    %2991 = vmatprep.subr.mxu0 0.0
    %2992 = vmatpush2.msra.mxu0 0.0
    %2993 = vmatprep.subr.mxu0 0.0
    %2994 = vmatpush2.msra.mxu0 0.0
    %2995 = vmatprep.subr.mxu0 0.0
    %2996 = vmatpush2.msra.mxu0 0.0
    %2997 = vmatprep.subr.mxu0 0.0
    %2998 = vmatpush2.msra.mxu0 0.0
    %2999 = vmatprep.subr.mxu0 0.0
    %3000 = vmatpush2.msra.mxu0 0.0
    %3001 = vmatprep.subr.mxu0 0.0
    %3002 = vmatpush2.msra.mxu0 0.0
    %3003 = vmatprep.subr.mxu0 0.0
    %3004 = vmatpush2.msra.mxu0 0.0
    %3005 = vmatprep.subr.mxu0 0.0
    %3006 = vmatpush2.msra.mxu0 0.0
    %3007 = vmatprep.subr.mxu0 0.0
    %3008 = vmatpush2.msra.mxu0 0.0
    %3009 = vmatprep.subr.mxu0 0.0
    %3010 = vmatpush2.msra.mxu0 0.0
    %3011 = vmatprep.subr.mxu0 0.0
    %3012 = vmatpush2.msra.mxu0 0.0
    %3013 = vmatprep.subr.mxu0 0.0
    %3014 = vmatpush2.msra.mxu0 0.0
    %3015 = vmatprep.subr.mxu0 0.0
    %3016 = vmatpush2.msra.mxu0 0.0
    %3017 = vmatprep.mubr.f32.mxu0 0.0
    %3018 = vmatmul.mubr.f32.gmra.mxu0 %v2945
    %v3019 = vpop.f32.mrf.mxu0
    %v3020 = vadd.f32 0.0, %v3019
    %v3021 = vpop.f32.mrf.mxu0
    %3022 = vmatprep.mubr.f32.mxu0 0.0
    %3023 = vmatmul.mubr.f32.gmra.mxu0 %v2948
    %v3024 = vpop.f32.mrf.mxu0
    %v3025 = vadd.f32 0.0, %v3024
    %v3026 = vpop.f32.mrf.mxu0
    %3027 = vmatprep.mubr.f32.mxu0 0.0
    %3028 = vmatmul.mubr.f32.gmra.mxu0 %v2951
    %v3029 = vpop.f32.mrf.mxu0
    %v3030 = vadd.f32 0.0, %v3029
    %v3031 = vpop.f32.mrf.mxu0
    %3032 = vdwg.mxu0
    %3033 = vmatprep.subr.mxu0 0.0
    %3034 = vmatpush1.msra.mxu0 0.0
    %3035 = vmatprep.subr.mxu0 0.0
    %3036 = vmatpush1.msra.mxu0 0.0
    %3037 = vmatprep.subr.mxu0 0.0
    %3038 = vmatpush1.msra.mxu0 0.0
    %3039 = vmatprep.subr.mxu0 0.0
    %3040 = vmatpush1.msra.mxu0 0.0
    %3041 = vmatprep.subr.mxu0 0.0
    %3042 = vmatpush1.msra.mxu0 0.0
    %3043 = vmatprep.subr.mxu0 0.0
    %3044 = vmatpush1.msra.mxu0 0.0
    %3045 = vmatprep.subr.mxu0 0.0
    %3046 = vmatpush1.msra.mxu0 0.0
    %3047 = vmatprep.subr.mxu0 0.0
    %3048 = vmatpush1.msra.mxu0 0.0
    %3049 = vmatprep.subr.mxu0 0.0
    %3050 = vmatpush1.msra.mxu0 0.0
    %3051 = vmatprep.subr.mxu0 0.0
    %3052 = vmatpush1.msra.mxu0 0.0
    %3053 = vmatprep.subr.mxu0 0.0
    %3054 = vmatpush1.msra.mxu0 %v2853
    %3055 = vmatprep.subr.mxu0 0.0
    %3056 = vmatpush1.msra.mxu0 %v2850
    %3057 = vmatprep.subr.mxu0 0.0
    %3058 = vmatpush1.msra.mxu0 %v2849
    %3059 = vmatprep.subr.mxu0 0.0
    %3060 = vmatpush1.msra.mxu0 %v2848
    %3061 = vmatprep.subr.mxu0 0.0
    %3062 = vmatpush1.msra.mxu0 %v2847
    %3063 = vmatprep.subr.mxu0 0.0
    %3064 = vmatpush1.msra.mxu0 %v2846
    %3065 = vmatprep.subr.mxu0 0.0
    %3066 = vmatpush2.msra.mxu0 0.0
    %3067 = vmatprep.subr.mxu0 0.0
    %3068 = vmatpush2.msra.mxu0 0.0
    %3069 = vmatprep.subr.mxu0 0.0
    %3070 = vmatpush2.msra.mxu0 0.0
    %3071 = vmatprep.subr.mxu0 0.0
    %3072 = vmatpush2.msra.mxu0 0.0
    %3073 = vmatprep.subr.mxu0 0.0
    %3074 = vmatpush2.msra.mxu0 0.0
    %3075 = vmatprep.subr.mxu0 0.0
    %3076 = vmatpush2.msra.mxu0 0.0
    %3077 = vmatprep.subr.mxu0 0.0
    %3078 = vmatpush2.msra.mxu0 0.0
    %3079 = vmatprep.subr.mxu0 0.0
    %3080 = vmatpush2.msra.mxu0 0.0
    %3081 = vmatprep.subr.mxu0 0.0
    %3082 = vmatpush2.msra.mxu0 0.0
    %3083 = vmatprep.subr.mxu0 0.0
    %3084 = vmatpush2.msra.mxu0 0.0
    %3085 = vmatprep.subr.mxu0 0.0
    %3086 = vmatpush2.msra.mxu0 0.0
    %3087 = vmatprep.subr.mxu0 0.0
    %3088 = vmatpush2.msra.mxu0 0.0
    %3089 = vmatprep.subr.mxu0 0.0
    %3090 = vmatpush2.msra.mxu0 0.0
    %3091 = vmatprep.subr.mxu0 0.0
    %3092 = vmatpush2.msra.mxu0 0.0
    %3093 = vmatprep.subr.mxu0 0.0
    %3094 = vmatpush2.msra.mxu0 0.0
    %3095 = vmatprep.subr.mxu0 0.0
    %3096 = vmatpush2.msra.mxu0 0.0
    %3097 = vmatprep.mubr.f32.mxu0 0.0
    %3098 = vmatmul.mubr.f32.gmra.mxu0 %v2945
    %v3099 = vpop.f32.mrf.mxu0
    %v3100 = vadd.f32 0.0, %v3099
    %v3101 = vpop.f32.mrf.mxu0
    %3102 = vmatprep.mubr.f32.mxu0 0.0
    %3103 = vmatmul.mubr.f32.gmra.mxu0 %v2948
    %v3104 = vpop.f32.mrf.mxu0
    %v3105 = vadd.f32 0.0, %v3104
    %v3106 = vpop.f32.mrf.mxu0
    %3107 = vmatprep.mubr.f32.mxu0 0.0
    %3108 = vmatmul.mubr.f32.gmra.mxu0 %v2951
    %v3109 = vpop.f32.mrf.mxu0
    %v3110 = vadd.f32 0.0, %v3109
    %v3111 = vpop.f32.mrf.mxu0
    %3112 = vdwg.mxu0
    %v3113 = vmax.f32 %v3020, %v3100
    %v3114 = vmax.f32 %v3025, %v3105
    %v3115 = vmax.f32 %v3030, %v3110
    %v3116 = vld [vmem:[%s3] sm:$0x1]
    %s3117 = scalar_lea.vmem %s3, 1
    %v3118 = vld [vmem:[%s3117] sm:$0x1]
    %v3119 = vld [vmem:[#allocation13] sm:$0xf]
    %v3120 = vld [vmem:[%s27] sm:$0xf]
    %vm3121 = vcmask 712704
    %3122 = vst.msk [vmem:[#allocation2] sm:$0x1] %vm3121, %v3116
    %v3124 = vlaneseq
    %v3125 = vshrl.u32 %v3124, 7
    %v3126 = vsub.s32 0, %v3125
    %v3127 = vrot.slane %v3116, %v3126
    %3128 = vrot.lane.b32.xlu0 %v3127, 127
    %v3129 = vpop.permute.xlu0 %3128
    %3131 = vst.msk [vmem:[#allocation2 + $0x1] sm:$0x1] %vm3121, %v3129
    %3132 = vrot.lane.b32.xlu0 %v3127, 126
    %v3133 = vpop.permute.xlu0 %3132
    %3135 = vst.msk [vmem:[#allocation2 + $0x2] sm:$0x1] %vm3121, %v3133
    %v3136 = vld [vmem:[#allocation2] sm:$0x7]
    %3138 = vset.pattern.permute.xlu0 0
    %3139 = vperm.xlu0 %3138, %v3120
    %v3140 = vpop.permute.xlu0 %3139
    %vm3142 = vcmask 23552
    %v3144 = vsel %vm3142, %v3119, 0
    %vm3146 = vcmask 1042432
    %v3148 = vsel %vm3146, %v3136, 0
    %3150 = vmatprep.subr.mxu0 0.0
    %3151 = vmatpush1.msra.mxu0 0.0
    %3152 = vmatprep.subr.mxu0 0.0
    %3153 = vmatpush1.msra.mxu0 0.0
    %3154 = vmatprep.subr.mxu0 0.0
    %3155 = vmatpush1.msra.mxu0 0.0
    %3156 = vmatprep.subr.mxu0 0.0
    %3157 = vmatpush1.msra.mxu0 0.0
    %3158 = vmatprep.subr.mxu0 0.0
    %3159 = vmatpush1.msra.mxu0 0.0
    %3160 = vmatprep.subr.mxu0 0.0
    %3161 = vmatpush1.msra.mxu0 0.0
    %3162 = vmatprep.subr.mxu0 0.0
    %3163 = vmatpush1.msra.mxu0 0.0
    %3164 = vmatprep.subr.mxu0 0.0
    %3165 = vmatpush1.msra.mxu0 0.0
    %3166 = vmatprep.subr.mxu0 0.0
    %3167 = vmatpush1.msra.mxu0 0.0
    %3168 = vmatprep.subr.mxu0 0.0
    %3169 = vmatpush1.msra.mxu0 0.0
    %3170 = vmatprep.subr.mxu0 0.0
    %3171 = vmatpush1.msra.mxu0 0.0
    %3172 = vmatprep.subr.mxu0 0.0
    %3173 = vmatpush1.msra.mxu0 0.0
    %3174 = vmatprep.subr.mxu0 0.0
    %3175 = vmatpush1.msra.mxu0 0.0
    %3176 = vmatprep.subr.mxu0 0.0
    %3177 = vmatpush1.msra.mxu0 0.0
    %3178 = vmatprep.subr.mxu0 0.0
    %3179 = vmatpush1.msra.mxu0 0.0
    %3180 = vmatprep.subr.mxu0 0.0
    %3181 = vmatpush1.msra.mxu0 %v3148
    %3182 = vmatprep.subr.mxu0 0.0
    %3183 = vmatpush2.msra.mxu0 0.0
    %3184 = vmatprep.subr.mxu0 0.0
    %3185 = vmatpush2.msra.mxu0 0.0
    %3186 = vmatprep.subr.mxu0 0.0
    %3187 = vmatpush2.msra.mxu0 0.0
    %3188 = vmatprep.subr.mxu0 0.0
    %3189 = vmatpush2.msra.mxu0 0.0
    %3190 = vmatprep.subr.mxu0 0.0
    %3191 = vmatpush2.msra.mxu0 0.0
    %3192 = vmatprep.subr.mxu0 0.0
    %3193 = vmatpush2.msra.mxu0 0.0
    %3194 = vmatprep.subr.mxu0 0.0
    %3195 = vmatpush2.msra.mxu0 0.0
    %3196 = vmatprep.subr.mxu0 0.0
    %3197 = vmatpush2.msra.mxu0 0.0
    %3198 = vmatprep.subr.mxu0 0.0
    %3199 = vmatpush2.msra.mxu0 0.0
    %3200 = vmatprep.subr.mxu0 0.0
    %3201 = vmatpush2.msra.mxu0 0.0
    %3202 = vmatprep.subr.mxu0 0.0
    %3203 = vmatpush2.msra.mxu0 0.0
    %3204 = vmatprep.subr.mxu0 0.0
    %3205 = vmatpush2.msra.mxu0 0.0
    %3206 = vmatprep.subr.mxu0 0.0
    %3207 = vmatpush2.msra.mxu0 0.0
    %3208 = vmatprep.subr.mxu0 0.0
    %3209 = vmatpush2.msra.mxu0 0.0
    %3210 = vmatprep.subr.mxu0 0.0
    %3211 = vmatpush2.msra.mxu0 0.0
    %3212 = vmatprep.subr.mxu0 0.0
    %3213 = vmatpush2.msra.mxu0 0.0
    %3214 = vmatprep.mubr.f32.mxu0 0.0
    %3215 = vmatmul.mubr.f32.gmra.mxu0 %v3144
    %v3216 = vpop.f32.mrf.mxu0
    %v3217 = vadd.f32 %v3140, %v3216
    %v3218 = vpop.f32.mrf.mxu0
    %3219 = vdwg.mxu0
    %v3220 = vmax.f32 %v3217, 0.0
    %vm3221 = vcmask 715776
    %v3222 = vsel %vm3221, %v3220, 0.0
    %3223 = vadd.xlane.f32.xlu0 %v3222
    %v3224 = vpop.xlane.xlu0 %3223
    %v3225 = vmul.f32 %v3220, %v3220
    %v3226 = vsel %vm3221, %v3225, 0.0
    %3227 = vadd.xlane.f32.xlu0 %v3226
    %v3228 = vpop.xlane.xlu0 %3227
    %3229 = vst.msk [vmem:[%s721] sm:$0x1] %vm3121, %v3118
    %v3231 = vlaneseq
    %v3232 = vshrl.u32 %v3231, 7
    %v3233 = vsub.s32 0, %v3232
    %v3234 = vrot.slane %v3118, %v3233
    %3235 = vrot.lane.b32.xlu0 %v3234, 127
    %v3236 = vpop.permute.xlu0 %3235
    %3238 = vst.msk [vmem:[%s721 + $0x1] sm:$0x1] %vm3121, %v3236
    %3239 = vrot.lane.b32.xlu0 %v3234, 126
    %v3240 = vpop.permute.xlu0 %3239
    %3242 = vst.msk [vmem:[%s721 + $0x2] sm:$0x1] %vm3121, %v3240
    %v3243 = vld [vmem:[%s721] sm:$0x7]
    %v3245 = vsel %vm3146, %v3243, 0
    %3247 = vmatprep.subr.mxu0 0.0
    %3248 = vmatpush1.msra.mxu0 0.0
    %3249 = vmatprep.subr.mxu0 0.0
    %3250 = vmatpush1.msra.mxu0 0.0
    %3251 = vmatprep.subr.mxu0 0.0
    %3252 = vmatpush1.msra.mxu0 0.0
    %3253 = vmatprep.subr.mxu0 0.0
    %3254 = vmatpush1.msra.mxu0 0.0
    %3255 = vmatprep.subr.mxu0 0.0
    %3256 = vmatpush1.msra.mxu0 0.0
    %3257 = vmatprep.subr.mxu0 0.0
    %3258 = vmatpush1.msra.mxu0 0.0
    %3259 = vmatprep.subr.mxu0 0.0
    %3260 = vmatpush1.msra.mxu0 0.0
    %3261 = vmatprep.subr.mxu0 0.0
    %3262 = vmatpush1.msra.mxu0 0.0
    %3263 = vmatprep.subr.mxu0 0.0
    %3264 = vmatpush1.msra.mxu0 0.0
    %3265 = vmatprep.subr.mxu0 0.0
    %3266 = vmatpush1.msra.mxu0 0.0
    %3267 = vmatprep.subr.mxu0 0.0
    %3268 = vmatpush1.msra.mxu0 0.0
    %3269 = vmatprep.subr.mxu0 0.0
    %3270 = vmatpush1.msra.mxu0 0.0
    %3271 = vmatprep.subr.mxu0 0.0
    %3272 = vmatpush1.msra.mxu0 0.0
    %3273 = vmatprep.subr.mxu0 0.0
    %3274 = vmatpush1.msra.mxu0 0.0
    %3275 = vmatprep.subr.mxu0 0.0
    %3276 = vmatpush1.msra.mxu0 0.0
    %3277 = vmatprep.subr.mxu0 0.0
    %3278 = vmatpush1.msra.mxu0 %v3245
    %3279 = vmatprep.subr.mxu0 0.0
    %3280 = vmatpush2.msra.mxu0 0.0
    %3281 = vmatprep.subr.mxu0 0.0
    %3282 = vmatpush2.msra.mxu0 0.0
    %3283 = vmatprep.subr.mxu0 0.0
    %3284 = vmatpush2.msra.mxu0 0.0
    %3285 = vmatprep.subr.mxu0 0.0
    %3286 = vmatpush2.msra.mxu0 0.0
    %3287 = vmatprep.subr.mxu0 0.0
    %3288 = vmatpush2.msra.mxu0 0.0
    %3289 = vmatprep.subr.mxu0 0.0
    %3290 = vmatpush2.msra.mxu0 0.0
    %3291 = vmatprep.subr.mxu0 0.0
    %3292 = vmatpush2.msra.mxu0 0.0
    %3293 = vmatprep.subr.mxu0 0.0
    %3294 = vmatpush2.msra.mxu0 0.0
    %3295 = vmatprep.subr.mxu0 0.0
    %3296 = vmatpush2.msra.mxu0 0.0
    %3297 = vmatprep.subr.mxu0 0.0
    %3298 = vmatpush2.msra.mxu0 0.0
    %3299 = vmatprep.subr.mxu0 0.0
    %3300 = vmatpush2.msra.mxu0 0.0
    %3301 = vmatprep.subr.mxu0 0.0
    %3302 = vmatpush2.msra.mxu0 0.0
    %3303 = vmatprep.subr.mxu0 0.0
    %3304 = vmatpush2.msra.mxu0 0.0
    %3305 = vmatprep.subr.mxu0 0.0
    %3306 = vmatpush2.msra.mxu0 0.0
    %3307 = vmatprep.subr.mxu0 0.0
    %3308 = vmatpush2.msra.mxu0 0.0
    %3309 = vmatprep.subr.mxu0 0.0
    %3310 = vmatpush2.msra.mxu0 0.0
    %3311 = vmatprep.mubr.f32.mxu0 0.0
    %3312 = vmatmul.mubr.f32.gmra.mxu0 %v3144
    %v3313 = vpop.f32.mrf.mxu0
    %v3314 = vadd.f32 %v3140, %v3313
    %v3315 = vpop.f32.mrf.mxu0
    %3316 = vdwg.mxu0
    %v3317 = vmax.f32 %v3314, 0.0
    %v3318 = vsel %vm3221, %v3317, 0.0
    %3319 = vadd.xlane.f32.xlu0 %v3318
    %v3320 = vpop.xlane.xlu0 %3319
    %v3321 = vmul.f32 %v3317, %v3317
    %v3322 = vsel %vm3221, %v3321, 0.0
    %3323 = vadd.xlane.f32.xlu0 %v3322
    %v3324 = vpop.xlane.xlu0 %3323
    %v3325 = vadd.f32 %v3224, %v3320
    %v3326 = vadd.f32 %v3228, %v3324
    %v3327 = vmul.f32 %v3325, 0.0056818184
    %v3328 = vmul.f32 %v3326, 0.0056818184
    %v3329 = vmul.f32 %v3327, %v3327
    %v3330 = vsub.f32 %v3328, %v3329
    %v3331 = vadd.f32 %v3330, 1e-05
    %v3332 = vrsqrt.pop %v3331
    %v3333 = vsub.f32 %v3220, %v3327
    %v3334 = vmul.f32 %v3333, %v3332
    %v3335 = vld [vmem:[%s55] sm:$0xff]
    %v3336 = vld [vmem:[%s55 + $0x8] sm:$0xff]
    %v3337 = vld [vmem:[%s55 + $0x10] sm:$0xff]
    %v3338 = vld [vmem:[%s55 + $0x18] sm:$0xff]
    %v3339 = vld [vmem:[%s55 + $0x20] sm:$0xff]
    %v3340 = vld [vmem:[%s55 + $0x28] sm:$0xff]
    %v3341 = vld [vmem:[%s55 + $0x30] sm:$0xff]
    %v3342 = vld [vmem:[%s55 + $0x38] sm:$0xff]
    %v3343 = vld [vmem:[%s55 + $0x40] sm:$0xff]
    %v3344 = vld [vmem:[%s55 + $0x48] sm:$0xff]
    %v3345 = vld [vmem:[%s55 + $0x50] sm:$0xff]
    %vm3346 = vcmask 719872
    %v3348 = vsel %vm3346, %v3334, 0
    %3350 = vmatprep.subr.mxu0 0.0
    %3351 = vmatpush1.msra.mxu0 0.0
    %3352 = vmatprep.subr.mxu0 0.0
    %3353 = vmatpush1.msra.mxu0 0.0
    %3354 = vmatprep.subr.mxu0 0.0
    %3355 = vmatpush1.msra.mxu0 0.0
    %3356 = vmatprep.subr.mxu0 0.0
    %3357 = vmatpush1.msra.mxu0 0.0
    %3358 = vmatprep.subr.mxu0 0.0
    %3359 = vmatpush1.msra.mxu0 0.0
    %3360 = vmatprep.subr.mxu0 0.0
    %3361 = vmatpush1.msra.mxu0 %v3345
    %3362 = vmatprep.subr.mxu0 0.0
    %3363 = vmatpush1.msra.mxu0 %v3344
    %3364 = vmatprep.subr.mxu0 0.0
    %3365 = vmatpush1.msra.mxu0 %v3343
    %3366 = vmatprep.subr.mxu0 0.0
    %3367 = vmatpush1.msra.mxu0 %v3342
    %3368 = vmatprep.subr.mxu0 0.0
    %3369 = vmatpush1.msra.mxu0 %v3341
    %3370 = vmatprep.subr.mxu0 0.0
    %3371 = vmatpush1.msra.mxu0 %v3340
    %3372 = vmatprep.subr.mxu0 0.0
    %3373 = vmatpush1.msra.mxu0 %v3339
    %3374 = vmatprep.subr.mxu0 0.0
    %3375 = vmatpush1.msra.mxu0 %v3338
    %3376 = vmatprep.subr.mxu0 0.0
    %3377 = vmatpush1.msra.mxu0 %v3337
    %3378 = vmatprep.subr.mxu0 0.0
    %3379 = vmatpush1.msra.mxu0 %v3336
    %3380 = vmatprep.subr.mxu0 0.0
    %3381 = vmatpush1.msra.mxu0 %v3335
    %3382 = vmatprep.subr.mxu0 0.0
    %3383 = vmatpush2.msra.mxu0 0.0
    %3384 = vmatprep.subr.mxu0 0.0
    %3385 = vmatpush2.msra.mxu0 0.0
    %3386 = vmatprep.subr.mxu0 0.0
    %3387 = vmatpush2.msra.mxu0 0.0
    %3388 = vmatprep.subr.mxu0 0.0
    %3389 = vmatpush2.msra.mxu0 0.0
    %3390 = vmatprep.subr.mxu0 0.0
    %3391 = vmatpush2.msra.mxu0 0.0
    %3392 = vmatprep.subr.mxu0 0.0
    %3393 = vmatpush2.msra.mxu0 0.0
    %3394 = vmatprep.subr.mxu0 0.0
    %3395 = vmatpush2.msra.mxu0 0.0
    %3396 = vmatprep.subr.mxu0 0.0
    %3397 = vmatpush2.msra.mxu0 0.0
    %3398 = vmatprep.subr.mxu0 0.0
    %3399 = vmatpush2.msra.mxu0 0.0
    %3400 = vmatprep.subr.mxu0 0.0
    %3401 = vmatpush2.msra.mxu0 0.0
    %3402 = vmatprep.subr.mxu0 0.0
    %3403 = vmatpush2.msra.mxu0 0.0
    %3404 = vmatprep.subr.mxu0 0.0
    %3405 = vmatpush2.msra.mxu0 0.0
    %3406 = vmatprep.subr.mxu0 0.0
    %3407 = vmatpush2.msra.mxu0 0.0
    %3408 = vmatprep.subr.mxu0 0.0
    %3409 = vmatpush2.msra.mxu0 0.0
    %3410 = vmatprep.subr.mxu0 0.0
    %3411 = vmatpush2.msra.mxu0 0.0
    %3412 = vmatprep.subr.mxu0 0.0
    %3413 = vmatpush2.msra.mxu0 0.0
    %3414 = vmatprep.mubr.f32.mxu0 0.0
    %3415 = vmatmul.mubr.f32.gmra.mxu0 %v3348
    %v3416 = vpop.f32.mrf.mxu0
    %v3417 = vadd.f32 0.0, %v3416
    %v3418 = vpop.f32.mrf.mxu0
    %3419 = vdwg.mxu0
    %v3420 = vsub.f32 %v3317, %v3327
    %v3421 = vmul.f32 %v3420, %v3332
    %v3423 = vsel %vm3346, %v3421, 0
    %3425 = vmatprep.subr.mxu0 0.0
    %3426 = vmatpush1.msra.mxu0 0.0
    %3427 = vmatprep.subr.mxu0 0.0
    %3428 = vmatpush1.msra.mxu0 0.0
    %3429 = vmatprep.subr.mxu0 0.0
    %3430 = vmatpush1.msra.mxu0 0.0
    %3431 = vmatprep.subr.mxu0 0.0
    %3432 = vmatpush1.msra.mxu0 0.0
    %3433 = vmatprep.subr.mxu0 0.0
    %3434 = vmatpush1.msra.mxu0 0.0
    %3435 = vmatprep.subr.mxu0 0.0
    %3436 = vmatpush1.msra.mxu0 %v3345
    %3437 = vmatprep.subr.mxu0 0.0
    %3438 = vmatpush1.msra.mxu0 %v3344
    %3439 = vmatprep.subr.mxu0 0.0
    %3440 = vmatpush1.msra.mxu0 %v3343
    %3441 = vmatprep.subr.mxu0 0.0
    %3442 = vmatpush1.msra.mxu0 %v3342
    %3443 = vmatprep.subr.mxu0 0.0
    %3444 = vmatpush1.msra.mxu0 %v3341
    %3445 = vmatprep.subr.mxu0 0.0
    %3446 = vmatpush1.msra.mxu0 %v3340
    %3447 = vmatprep.subr.mxu0 0.0
    %3448 = vmatpush1.msra.mxu0 %v3339
    %3449 = vmatprep.subr.mxu0 0.0
    %3450 = vmatpush1.msra.mxu0 %v3338
    %3451 = vmatprep.subr.mxu0 0.0
    %3452 = vmatpush1.msra.mxu0 %v3337
    %3453 = vmatprep.subr.mxu0 0.0
    %3454 = vmatpush1.msra.mxu0 %v3336
    %3455 = vmatprep.subr.mxu0 0.0
    %3456 = vmatpush1.msra.mxu0 %v3335
    %3457 = vmatprep.subr.mxu0 0.0
    %3458 = vmatpush2.msra.mxu0 0.0
    %3459 = vmatprep.subr.mxu0 0.0
    %3460 = vmatpush2.msra.mxu0 0.0
    %3461 = vmatprep.subr.mxu0 0.0
    %3462 = vmatpush2.msra.mxu0 0.0
    %3463 = vmatprep.subr.mxu0 0.0
    %3464 = vmatpush2.msra.mxu0 0.0
    %3465 = vmatprep.subr.mxu0 0.0
    %3466 = vmatpush2.msra.mxu0 0.0
    %3467 = vmatprep.subr.mxu0 0.0
    %3468 = vmatpush2.msra.mxu0 0.0
    %3469 = vmatprep.subr.mxu0 0.0
    %3470 = vmatpush2.msra.mxu0 0.0
    %3471 = vmatprep.subr.mxu0 0.0
    %3472 = vmatpush2.msra.mxu0 0.0
    %3473 = vmatprep.subr.mxu0 0.0
    %3474 = vmatpush2.msra.mxu0 0.0
    %3475 = vmatprep.subr.mxu0 0.0
    %3476 = vmatpush2.msra.mxu0 0.0
    %3477 = vmatprep.subr.mxu0 0.0
    %3478 = vmatpush2.msra.mxu0 0.0
    %3479 = vmatprep.subr.mxu0 0.0
    %3480 = vmatpush2.msra.mxu0 0.0
    %3481 = vmatprep.subr.mxu0 0.0
    %3482 = vmatpush2.msra.mxu0 0.0
    %3483 = vmatprep.subr.mxu0 0.0
    %3484 = vmatpush2.msra.mxu0 0.0
    %3485 = vmatprep.subr.mxu0 0.0
    %3486 = vmatpush2.msra.mxu0 0.0
    %3487 = vmatprep.subr.mxu0 0.0
    %3488 = vmatpush2.msra.mxu0 0.0
    %3489 = vmatprep.mubr.f32.mxu0 0.0
    %3490 = vmatmul.mubr.f32.gmra.mxu0 %v3423
    %v3491 = vpop.f32.mrf.mxu0
    %v3492 = vadd.f32 0.0, %v3491
    %v3493 = vpop.f32.mrf.mxu0
    %3494 = vdwg.mxu0
    %v3495 = vld [vmem:[#allocation15] sm:$0xff]
    %v3496 = vld [vmem:[%s31] sm:$0xff]
    %vm3497 = vcmask 338944
    %3498 = vst.msk [vmem:[#allocation2] sm:$0xf] %vm3497, %v3417
    %v3500 = vrot.slane %v3417, 4
    %3501 = vrot.lane.b32.xlu0 %v3500, 127
    %v3502 = vpop.permute.xlu0 %3501
    %vm3504 = vcmask 343044
    %3505 = vst.msk [vmem:[#allocation2] sm:$0xf0] %vm3504, %v3502
    %3506 = vrot.lane.b32.xlu0 %v3417, 126
    %v3507 = vpop.permute.xlu0 %3506
    %3509 = vst.msk [vmem:[#allocation2 + $0x18] sm:$0xf] %vm3497, %v3507
    %v3510 = vld [vmem:[#allocation2] sm:$0xff]
    %v3511 = vld [vmem:[#allocation2 + $0x18] sm:$0xf]
    %3513 = vset.pattern.permute.xlu0 0
    %3514 = vperm.xlu0 %3513, %v3496
    %v3515 = vpop.permute.xlu0 %3514
    %vm3517 = vcmask 97280
    %v3519 = vsel %vm3517, %v3495, 0
    %v3522 = vsel %vm1590, %v3511, 0
    %3524 = vmatprep.subr.mxu0 0.0
    %3525 = vmatpush1.msra.mxu0 0.0
    %3526 = vmatprep.subr.mxu0 0.0
    %3527 = vmatpush1.msra.mxu0 0.0
    %3528 = vmatprep.subr.mxu0 0.0
    %3529 = vmatpush1.msra.mxu0 0.0
    %3530 = vmatprep.subr.mxu0 0.0
    %3531 = vmatpush1.msra.mxu0 0.0
    %3532 = vmatprep.subr.mxu0 0.0
    %3533 = vmatpush1.msra.mxu0 0.0
    %3534 = vmatprep.subr.mxu0 0.0
    %3535 = vmatpush1.msra.mxu0 0.0
    %3536 = vmatprep.subr.mxu0 0.0
    %3537 = vmatpush1.msra.mxu0 0.0
    %3538 = vmatprep.subr.mxu0 0.0
    %3539 = vmatpush1.msra.mxu0 0.0
    %3540 = vmatprep.subr.mxu0 0.0
    %3541 = vmatpush1.msra.mxu0 0.0
    %3542 = vmatprep.subr.mxu0 0.0
    %3543 = vmatpush1.msra.mxu0 0.0
    %3544 = vmatprep.subr.mxu0 0.0
    %3545 = vmatpush1.msra.mxu0 0.0
    %3546 = vmatprep.subr.mxu0 0.0
    %3547 = vmatpush1.msra.mxu0 0.0
    %3548 = vmatprep.subr.mxu0 0.0
    %3549 = vmatpush1.msra.mxu0 0.0
    %3550 = vmatprep.subr.mxu0 0.0
    %3551 = vmatpush1.msra.mxu0 0.0
    %3552 = vmatprep.subr.mxu0 0.0
    %3553 = vmatpush1.msra.mxu0 %v3522
    %3554 = vmatprep.subr.mxu0 0.0
    %3555 = vmatpush1.msra.mxu0 %v3510
    %3556 = vmatprep.subr.mxu0 0.0
    %3557 = vmatpush2.msra.mxu0 0.0
    %3558 = vmatprep.subr.mxu0 0.0
    %3559 = vmatpush2.msra.mxu0 0.0
    %3560 = vmatprep.subr.mxu0 0.0
    %3561 = vmatpush2.msra.mxu0 0.0
    %3562 = vmatprep.subr.mxu0 0.0
    %3563 = vmatpush2.msra.mxu0 0.0
    %3564 = vmatprep.subr.mxu0 0.0
    %3565 = vmatpush2.msra.mxu0 0.0
    %3566 = vmatprep.subr.mxu0 0.0
    %3567 = vmatpush2.msra.mxu0 0.0
    %3568 = vmatprep.subr.mxu0 0.0
    %3569 = vmatpush2.msra.mxu0 0.0
    %3570 = vmatprep.subr.mxu0 0.0
    %3571 = vmatpush2.msra.mxu0 0.0
    %3572 = vmatprep.subr.mxu0 0.0
    %3573 = vmatpush2.msra.mxu0 0.0
    %3574 = vmatprep.subr.mxu0 0.0
    %3575 = vmatpush2.msra.mxu0 0.0
    %3576 = vmatprep.subr.mxu0 0.0
    %3577 = vmatpush2.msra.mxu0 0.0
    %3578 = vmatprep.subr.mxu0 0.0
    %3579 = vmatpush2.msra.mxu0 0.0
    %3580 = vmatprep.subr.mxu0 0.0
    %3581 = vmatpush2.msra.mxu0 0.0
    %3582 = vmatprep.subr.mxu0 0.0
    %3583 = vmatpush2.msra.mxu0 0.0
    %3584 = vmatprep.subr.mxu0 0.0
    %3585 = vmatpush2.msra.mxu0 0.0
    %3586 = vmatprep.subr.mxu0 0.0
    %3587 = vmatpush2.msra.mxu0 0.0
    %3588 = vmatprep.mubr.f32.mxu0 0.0
    %3589 = vmatmul.mubr.f32.gmra.mxu0 %v3519
    %v3590 = vpop.f32.mrf.mxu0
    %v3591 = vadd.f32 %v3515, %v3590
    %v3592 = vpop.f32.mrf.mxu0
    %3593 = vdwg.mxu0
    %v3594 = vmax.f32 %v3591, 0.0
    %vm3595 = vcmask 343040
    %v3596 = vsel %vm3595, %v3594, 0.0
    %3597 = vadd.xlane.f32.xlu0 %v3596
    %v3598 = vpop.xlane.xlu0 %3597
    %v3599 = vmul.f32 %v3594, %v3594
    %v3600 = vsel %vm3595, %v3599, 0.0
    %3601 = vadd.xlane.f32.xlu0 %v3600
    %v3602 = vpop.xlane.xlu0 %3601
    %3603 = vst.msk [vmem:[%s721] sm:$0xf] %vm3497, %v3492
    %v3605 = vrot.slane %v3492, 4
    %3606 = vrot.lane.b32.xlu0 %v3605, 127
    %v3607 = vpop.permute.xlu0 %3606
    %3609 = vst.msk [vmem:[%s721] sm:$0xf0] %vm3504, %v3607
    %3610 = vrot.lane.b32.xlu0 %v3492, 126
    %v3611 = vpop.permute.xlu0 %3610
    %3613 = vst.msk [vmem:[%s721 + $0x18] sm:$0xf] %vm3497, %v3611
    %v3614 = vld [vmem:[%s721] sm:$0xff]
    %v3615 = vld [vmem:[%s721 + $0x18] sm:$0xf]
    %v3617 = vsel %vm1590, %v3615, 0
    %3619 = vmatprep.subr.mxu0 0.0
    %3620 = vmatpush1.msra.mxu0 0.0
    %3621 = vmatprep.subr.mxu0 0.0
    %3622 = vmatpush1.msra.mxu0 0.0
    %3623 = vmatprep.subr.mxu0 0.0
    %3624 = vmatpush1.msra.mxu0 0.0
    %3625 = vmatprep.subr.mxu0 0.0
    %3626 = vmatpush1.msra.mxu0 0.0
    %3627 = vmatprep.subr.mxu0 0.0
    %3628 = vmatpush1.msra.mxu0 0.0
    %3629 = vmatprep.subr.mxu0 0.0
    %3630 = vmatpush1.msra.mxu0 0.0
    %3631 = vmatprep.subr.mxu0 0.0
    %3632 = vmatpush1.msra.mxu0 0.0
    %3633 = vmatprep.subr.mxu0 0.0
    %3634 = vmatpush1.msra.mxu0 0.0
    %3635 = vmatprep.subr.mxu0 0.0
    %3636 = vmatpush1.msra.mxu0 0.0
    %3637 = vmatprep.subr.mxu0 0.0
    %3638 = vmatpush1.msra.mxu0 0.0
    %3639 = vmatprep.subr.mxu0 0.0
    %3640 = vmatpush1.msra.mxu0 0.0
    %3641 = vmatprep.subr.mxu0 0.0
    %3642 = vmatpush1.msra.mxu0 0.0
    %3643 = vmatprep.subr.mxu0 0.0
    %3644 = vmatpush1.msra.mxu0 0.0
    %3645 = vmatprep.subr.mxu0 0.0
    %3646 = vmatpush1.msra.mxu0 0.0
    %3647 = vmatprep.subr.mxu0 0.0
    %3648 = vmatpush1.msra.mxu0 %v3617
    %3649 = vmatprep.subr.mxu0 0.0
    %3650 = vmatpush1.msra.mxu0 %v3614
    %3651 = vmatprep.subr.mxu0 0.0
    %3652 = vmatpush2.msra.mxu0 0.0
    %3653 = vmatprep.subr.mxu0 0.0
    %3654 = vmatpush2.msra.mxu0 0.0
    %3655 = vmatprep.subr.mxu0 0.0
    %3656 = vmatpush2.msra.mxu0 0.0
    %3657 = vmatprep.subr.mxu0 0.0
    %3658 = vmatpush2.msra.mxu0 0.0
    %3659 = vmatprep.subr.mxu0 0.0
    %3660 = vmatpush2.msra.mxu0 0.0
    %3661 = vmatprep.subr.mxu0 0.0
    %3662 = vmatpush2.msra.mxu0 0.0
    %3663 = vmatprep.subr.mxu0 0.0
    %3664 = vmatpush2.msra.mxu0 0.0
    %3665 = vmatprep.subr.mxu0 0.0
    %3666 = vmatpush2.msra.mxu0 0.0
    %3667 = vmatprep.subr.mxu0 0.0
    %3668 = vmatpush2.msra.mxu0 0.0
    %3669 = vmatprep.subr.mxu0 0.0
    %3670 = vmatpush2.msra.mxu0 0.0
    %3671 = vmatprep.subr.mxu0 0.0
    %3672 = vmatpush2.msra.mxu0 0.0
    %3673 = vmatprep.subr.mxu0 0.0
    %3674 = vmatpush2.msra.mxu0 0.0
    %3675 = vmatprep.subr.mxu0 0.0
    %3676 = vmatpush2.msra.mxu0 0.0
    %3677 = vmatprep.subr.mxu0 0.0
    %3678 = vmatpush2.msra.mxu0 0.0
    %3679 = vmatprep.subr.mxu0 0.0
    %3680 = vmatpush2.msra.mxu0 0.0
    %3681 = vmatprep.subr.mxu0 0.0
    %3682 = vmatpush2.msra.mxu0 0.0
    %3683 = vmatprep.mubr.f32.mxu0 0.0
    %3684 = vmatmul.mubr.f32.gmra.mxu0 %v3519
    %v3685 = vpop.f32.mrf.mxu0
    %v3686 = vadd.f32 %v3515, %v3685
    %v3687 = vpop.f32.mrf.mxu0
    %3688 = vdwg.mxu0
    %v3689 = vmax.f32 %v3686, 0.0
    %v3690 = vsel %vm3595, %v3689, 0.0
    %3691 = vadd.xlane.f32.xlu0 %v3690
    %v3692 = vpop.xlane.xlu0 %3691
    %v3693 = vmul.f32 %v3689, %v3689
    %v3694 = vsel %vm3595, %v3693, 0.0
    %3695 = vadd.xlane.f32.xlu0 %v3694
    %v3696 = vpop.xlane.xlu0 %3695
    %v3697 = vadd.f32 %v3598, %v3692
    %v3698 = vadd.f32 %v3602, %v3696
    %v3699 = vmul.f32 %v3697, 0.011904762
    %v3700 = vmul.f32 %v3698, 0.011904762
    %v3701 = vmul.f32 %v3699, %v3699
    %v3702 = vsub.f32 %v3700, %v3701
    %v3703 = vadd.f32 %v3702, 1e-05
    %v3704 = vrsqrt.pop %v3703
    %v3705 = vsub.f32 %v3594, %v3699
    %v3706 = vmul.f32 %v3705, %v3704
    %v3707 = vld [vmem:[%s57] sm:$0xff]
    %v3708 = vld [vmem:[%s57 + $0x8] sm:$0xff]
    %v3709 = vld [vmem:[%s57 + $0x10] sm:$0xff]
    %v3710 = vld [vmem:[%s57 + $0x18] sm:$0xff]
    %v3711 = vld [vmem:[%s57 + $0x20] sm:$0xff]
    %v3712 = vld [vmem:[%s57 + $0x28] sm:$0x3]
    %v3714 = vsel %vm3595, %v3706, 0
    %vm3716 = vcmask 1041408
    %v3718 = vsel %vm3716, %v3712, 0
    %3720 = vmatprep.subr.mxu0 0.0
    %3721 = vmatpush1.msra.mxu0 0.0
    %3722 = vmatprep.subr.mxu0 0.0
    %3723 = vmatpush1.msra.mxu0 0.0
    %3724 = vmatprep.subr.mxu0 0.0
    %3725 = vmatpush1.msra.mxu0 0.0
    %3726 = vmatprep.subr.mxu0 0.0
    %3727 = vmatpush1.msra.mxu0 0.0
    %3728 = vmatprep.subr.mxu0 0.0
    %3729 = vmatpush1.msra.mxu0 0.0
    %3730 = vmatprep.subr.mxu0 0.0
    %3731 = vmatpush1.msra.mxu0 0.0
    %3732 = vmatprep.subr.mxu0 0.0
    %3733 = vmatpush1.msra.mxu0 0.0
    %3734 = vmatprep.subr.mxu0 0.0
    %3735 = vmatpush1.msra.mxu0 0.0
    %3736 = vmatprep.subr.mxu0 0.0
    %3737 = vmatpush1.msra.mxu0 0.0
    %3738 = vmatprep.subr.mxu0 0.0
    %3739 = vmatpush1.msra.mxu0 0.0
    %3740 = vmatprep.subr.mxu0 0.0
    %3741 = vmatpush1.msra.mxu0 %v3718
    %3742 = vmatprep.subr.mxu0 0.0
    %3743 = vmatpush1.msra.mxu0 %v3711
    %3744 = vmatprep.subr.mxu0 0.0
    %3745 = vmatpush1.msra.mxu0 %v3710
    %3746 = vmatprep.subr.mxu0 0.0
    %3747 = vmatpush1.msra.mxu0 %v3709
    %3748 = vmatprep.subr.mxu0 0.0
    %3749 = vmatpush1.msra.mxu0 %v3708
    %3750 = vmatprep.subr.mxu0 0.0
    %3751 = vmatpush1.msra.mxu0 %v3707
    %3752 = vmatprep.subr.mxu0 0.0
    %3753 = vmatpush2.msra.mxu0 0.0
    %3754 = vmatprep.subr.mxu0 0.0
    %3755 = vmatpush2.msra.mxu0 0.0
    %3756 = vmatprep.subr.mxu0 0.0
    %3757 = vmatpush2.msra.mxu0 0.0
    %3758 = vmatprep.subr.mxu0 0.0
    %3759 = vmatpush2.msra.mxu0 0.0
    %3760 = vmatprep.subr.mxu0 0.0
    %3761 = vmatpush2.msra.mxu0 0.0
    %3762 = vmatprep.subr.mxu0 0.0
    %3763 = vmatpush2.msra.mxu0 0.0
    %3764 = vmatprep.subr.mxu0 0.0
    %3765 = vmatpush2.msra.mxu0 0.0
    %3766 = vmatprep.subr.mxu0 0.0
    %3767 = vmatpush2.msra.mxu0 0.0
    %3768 = vmatprep.subr.mxu0 0.0
    %3769 = vmatpush2.msra.mxu0 0.0
    %3770 = vmatprep.subr.mxu0 0.0
    %3771 = vmatpush2.msra.mxu0 0.0
    %3772 = vmatprep.subr.mxu0 0.0
    %3773 = vmatpush2.msra.mxu0 0.0
    %3774 = vmatprep.subr.mxu0 0.0
    %3775 = vmatpush2.msra.mxu0 0.0
    %3776 = vmatprep.subr.mxu0 0.0
    %3777 = vmatpush2.msra.mxu0 0.0
    %3778 = vmatprep.subr.mxu0 0.0
    %3779 = vmatpush2.msra.mxu0 0.0
    %3780 = vmatprep.subr.mxu0 0.0
    %3781 = vmatpush2.msra.mxu0 0.0
    %3782 = vmatprep.subr.mxu0 0.0
    %3783 = vmatpush2.msra.mxu0 0.0
    %3784 = vmatprep.mubr.f32.mxu0 0.0
    %3785 = vmatmul.mubr.f32.gmra.mxu0 %v3714
    %v3786 = vpop.f32.mrf.mxu0
    %v3787 = vadd.f32 0.0, %v3786
    %v3788 = vpop.f32.mrf.mxu0
    %3789 = vdwg.mxu0
    %v3790 = vsub.f32 %v3689, %v3699
    %v3791 = vmul.f32 %v3790, %v3704
    %v3793 = vsel %vm3595, %v3791, 0
    %3795 = vmatprep.subr.mxu0 0.0
    %3796 = vmatpush1.msra.mxu0 0.0
    %3797 = vmatprep.subr.mxu0 0.0
    %3798 = vmatpush1.msra.mxu0 0.0
    %3799 = vmatprep.subr.mxu0 0.0
    %3800 = vmatpush1.msra.mxu0 0.0
    %3801 = vmatprep.subr.mxu0 0.0
    %3802 = vmatpush1.msra.mxu0 0.0
    %3803 = vmatprep.subr.mxu0 0.0
    %3804 = vmatpush1.msra.mxu0 0.0
    %3805 = vmatprep.subr.mxu0 0.0
    %3806 = vmatpush1.msra.mxu0 0.0
    %3807 = vmatprep.subr.mxu0 0.0
    %3808 = vmatpush1.msra.mxu0 0.0
    %3809 = vmatprep.subr.mxu0 0.0
    %3810 = vmatpush1.msra.mxu0 0.0
    %3811 = vmatprep.subr.mxu0 0.0
    %3812 = vmatpush1.msra.mxu0 0.0
    %3813 = vmatprep.subr.mxu0 0.0
    %3814 = vmatpush1.msra.mxu0 0.0
    %3815 = vmatprep.subr.mxu0 0.0
    %3816 = vmatpush1.msra.mxu0 %v3718
    %3817 = vmatprep.subr.mxu0 0.0
    %3818 = vmatpush1.msra.mxu0 %v3711
    %3819 = vmatprep.subr.mxu0 0.0
    %3820 = vmatpush1.msra.mxu0 %v3710
    %3821 = vmatprep.subr.mxu0 0.0
    %3822 = vmatpush1.msra.mxu0 %v3709
    %3823 = vmatprep.subr.mxu0 0.0
    %3824 = vmatpush1.msra.mxu0 %v3708
    %3825 = vmatprep.subr.mxu0 0.0
    %3826 = vmatpush1.msra.mxu0 %v3707
    %3827 = vmatprep.subr.mxu0 0.0
    %3828 = vmatpush2.msra.mxu0 0.0
    %3829 = vmatprep.subr.mxu0 0.0
    %3830 = vmatpush2.msra.mxu0 0.0
    %3831 = vmatprep.subr.mxu0 0.0
    %3832 = vmatpush2.msra.mxu0 0.0
    %3833 = vmatprep.subr.mxu0 0.0
    %3834 = vmatpush2.msra.mxu0 0.0
    %3835 = vmatprep.subr.mxu0 0.0
    %3836 = vmatpush2.msra.mxu0 0.0
    %3837 = vmatprep.subr.mxu0 0.0
    %3838 = vmatpush2.msra.mxu0 0.0
    %3839 = vmatprep.subr.mxu0 0.0
    %3840 = vmatpush2.msra.mxu0 0.0
    %3841 = vmatprep.subr.mxu0 0.0
    %3842 = vmatpush2.msra.mxu0 0.0
    %3843 = vmatprep.subr.mxu0 0.0
    %3844 = vmatpush2.msra.mxu0 0.0
    %3845 = vmatprep.subr.mxu0 0.0
    %3846 = vmatpush2.msra.mxu0 0.0
    %3847 = vmatprep.subr.mxu0 0.0
    %3848 = vmatpush2.msra.mxu0 0.0
    %3849 = vmatprep.subr.mxu0 0.0
    %3850 = vmatpush2.msra.mxu0 0.0
    %3851 = vmatprep.subr.mxu0 0.0
    %3852 = vmatpush2.msra.mxu0 0.0
    %3853 = vmatprep.subr.mxu0 0.0
    %3854 = vmatpush2.msra.mxu0 0.0
    %3855 = vmatprep.subr.mxu0 0.0
    %3856 = vmatpush2.msra.mxu0 0.0
    %3857 = vmatprep.subr.mxu0 0.0
    %3858 = vmatpush2.msra.mxu0 0.0
    %3859 = vmatprep.mubr.f32.mxu0 0.0
    %3860 = vmatmul.mubr.f32.gmra.mxu0 %v3793
    %v3861 = vpop.f32.mrf.mxu0
    %v3862 = vadd.f32 0.0, %v3861
    %v3863 = vpop.f32.mrf.mxu0
    %3864 = vdwg.mxu0
    %v3865 = vld [vmem:[#allocation16] sm:$0xff]
    %v3866 = vld [vmem:[#allocation16 + $0x8] sm:$0xf]
    %v3867 = vld [vmem:[%s35] sm:$0xff]
    %v3868 = vld [vmem:[%s35 + $0x8] sm:$0xf]
    %vm3869 = vcmask 162816
    %3870 = vst.msk [vmem:[#allocation2] sm:$0xff] %vm3869, %v3787
    %3872 = vrot.lane.b32.xlu0 %v3787, 127
    %v3873 = vpop.permute.xlu0 %3872
    %3875 = vst.msk [vmem:[#allocation2 + $0x18] sm:$0xff] %vm3869, %v3873
    %v3876 = vld [vmem:[#allocation2] sm:$0xff]
    %v3877 = vld [vmem:[#allocation2 + $0x18] sm:$0xff]
    %3879 = vset.pattern.permute.xlu0 0
    %3880 = vperm.xlu0 %3879, %v3867
    %v3881 = vpop.permute.xlu0 %3880
    %3884 = vset.pattern.permute.xlu0 0
    %3885 = vperm.xlu0 %3884, %v3868
    %v3886 = vpop.permute.xlu0 %3885
    %vm3888 = vcmask 130048
    %v3890 = vsel %vm3888, %v3865, 0
    %v3893 = vsel %vm3888, %v3866, 0
    %3895 = vmatprep.subr.mxu0 0.0
    %3896 = vmatpush1.msra.mxu0 0.0
    %3897 = vmatprep.subr.mxu0 0.0
    %3898 = vmatpush1.msra.mxu0 0.0
    %3899 = vmatprep.subr.mxu0 0.0
    %3900 = vmatpush1.msra.mxu0 0.0
    %3901 = vmatprep.subr.mxu0 0.0
    %3902 = vmatpush1.msra.mxu0 0.0
    %3903 = vmatprep.subr.mxu0 0.0
    %3904 = vmatpush1.msra.mxu0 0.0
    %3905 = vmatprep.subr.mxu0 0.0
    %3906 = vmatpush1.msra.mxu0 0.0
    %3907 = vmatprep.subr.mxu0 0.0
    %3908 = vmatpush1.msra.mxu0 0.0
    %3909 = vmatprep.subr.mxu0 0.0
    %3910 = vmatpush1.msra.mxu0 0.0
    %3911 = vmatprep.subr.mxu0 0.0
    %3912 = vmatpush1.msra.mxu0 0.0
    %3913 = vmatprep.subr.mxu0 0.0
    %3914 = vmatpush1.msra.mxu0 0.0
    %3915 = vmatprep.subr.mxu0 0.0
    %3916 = vmatpush1.msra.mxu0 0.0
    %3917 = vmatprep.subr.mxu0 0.0
    %3918 = vmatpush1.msra.mxu0 0.0
    %3919 = vmatprep.subr.mxu0 0.0
    %3920 = vmatpush1.msra.mxu0 0.0
    %3921 = vmatprep.subr.mxu0 0.0
    %3922 = vmatpush1.msra.mxu0 0.0
    %3923 = vmatprep.subr.mxu0 0.0
    %3924 = vmatpush1.msra.mxu0 %v3877
    %3925 = vmatprep.subr.mxu0 0.0
    %3926 = vmatpush1.msra.mxu0 %v3876
    %3927 = vmatprep.subr.mxu0 0.0
    %3928 = vmatpush2.msra.mxu0 0.0
    %3929 = vmatprep.subr.mxu0 0.0
    %3930 = vmatpush2.msra.mxu0 0.0
    %3931 = vmatprep.subr.mxu0 0.0
    %3932 = vmatpush2.msra.mxu0 0.0
    %3933 = vmatprep.subr.mxu0 0.0
    %3934 = vmatpush2.msra.mxu0 0.0
    %3935 = vmatprep.subr.mxu0 0.0
    %3936 = vmatpush2.msra.mxu0 0.0
    %3937 = vmatprep.subr.mxu0 0.0
    %3938 = vmatpush2.msra.mxu0 0.0
    %3939 = vmatprep.subr.mxu0 0.0
    %3940 = vmatpush2.msra.mxu0 0.0
    %3941 = vmatprep.subr.mxu0 0.0
    %3942 = vmatpush2.msra.mxu0 0.0
    %3943 = vmatprep.subr.mxu0 0.0
    %3944 = vmatpush2.msra.mxu0 0.0
    %3945 = vmatprep.subr.mxu0 0.0
    %3946 = vmatpush2.msra.mxu0 0.0
    %3947 = vmatprep.subr.mxu0 0.0
    %3948 = vmatpush2.msra.mxu0 0.0
    %3949 = vmatprep.subr.mxu0 0.0
    %3950 = vmatpush2.msra.mxu0 0.0
    %3951 = vmatprep.subr.mxu0 0.0
    %3952 = vmatpush2.msra.mxu0 0.0
    %3953 = vmatprep.subr.mxu0 0.0
    %3954 = vmatpush2.msra.mxu0 0.0
    %3955 = vmatprep.subr.mxu0 0.0
    %3956 = vmatpush2.msra.mxu0 0.0
    %3957 = vmatprep.subr.mxu0 0.0
    %3958 = vmatpush2.msra.mxu0 0.0
    %3959 = vmatprep.mubr.f32.mxu0 0.0
    %3960 = vmatmul.mubr.f32.gmra.mxu0 %v3890
    %v3961 = vpop.f32.mrf.mxu0
    %v3962 = vadd.f32 %v3881, %v3961
    %v3963 = vpop.f32.mrf.mxu0
    %3964 = vmatprep.mubr.f32.mxu0 0.0
    %3965 = vmatmul.mubr.f32.gmra.mxu0 %v3893
    %v3966 = vpop.f32.mrf.mxu0
    %v3967 = vadd.f32 %v3886, %v3966
    %v3968 = vpop.f32.mrf.mxu0
    %3969 = vdwg.mxu0
    %v3970 = vmax.f32 %v3962, 0.0
    %v3971 = vmax.f32 %v3967, 0.0
    %v3972 = vsel %vm3869, %v3970, 0.0
    %3973 = vadd.xlane.f32.xlu0 %v3972
    %v3974 = vpop.xlane.xlu0 %3973
    %vm3975 = vcmask 158720
    %v3976 = vsel %vm3975, %v3971, 0.0
    %3977 = vadd.xlane.f32.xlu0 %v3976
    %v3978 = vpop.xlane.xlu0 %3977
    %v3979 = vmul.f32 %v3970, %v3970
    %v3980 = vmul.f32 %v3971, %v3971
    %v3981 = vsel %vm3869, %v3979, 0.0
    %3982 = vadd.xlane.f32.xlu0 %v3981
    %v3983 = vpop.xlane.xlu0 %3982
    %v3984 = vsel %vm3975, %v3980, 0.0
    %3985 = vadd.xlane.f32.xlu0 %v3984
    %v3986 = vpop.xlane.xlu0 %3985
    %3987 = vst.msk [vmem:[%s721] sm:$0xff] %vm3869, %v3862
    %3989 = vrot.lane.b32.xlu0 %v3862, 127
    %v3990 = vpop.permute.xlu0 %3989
    %3992 = vst.msk [vmem:[%s721 + $0x18] sm:$0xff] %vm3869, %v3990
    %v3993 = vld [vmem:[%s721] sm:$0xff]
    %v3994 = vld [vmem:[%s721 + $0x18] sm:$0xff]
    %3995 = vmatprep.subr.mxu0 0.0
    %3996 = vmatpush1.msra.mxu0 0.0
    %3997 = vmatprep.subr.mxu0 0.0
    %3998 = vmatpush1.msra.mxu0 0.0
    %3999 = vmatprep.subr.mxu0 0.0
    %4000 = vmatpush1.msra.mxu0 0.0
    %4001 = vmatprep.subr.mxu0 0.0
    %4002 = vmatpush1.msra.mxu0 0.0
    %4003 = vmatprep.subr.mxu0 0.0
    %4004 = vmatpush1.msra.mxu0 0.0
    %4005 = vmatprep.subr.mxu0 0.0
    %4006 = vmatpush1.msra.mxu0 0.0
    %4007 = vmatprep.subr.mxu0 0.0
    %4008 = vmatpush1.msra.mxu0 0.0
    %4009 = vmatprep.subr.mxu0 0.0
    %4010 = vmatpush1.msra.mxu0 0.0
    %4011 = vmatprep.subr.mxu0 0.0
    %4012 = vmatpush1.msra.mxu0 0.0
    %4013 = vmatprep.subr.mxu0 0.0
    %4014 = vmatpush1.msra.mxu0 0.0
    %4015 = vmatprep.subr.mxu0 0.0
    %4016 = vmatpush1.msra.mxu0 0.0
    %4017 = vmatprep.subr.mxu0 0.0
    %4018 = vmatpush1.msra.mxu0 0.0
    %4019 = vmatprep.subr.mxu0 0.0
    %4020 = vmatpush1.msra.mxu0 0.0
    %4021 = vmatprep.subr.mxu0 0.0
    %4022 = vmatpush1.msra.mxu0 0.0
    %4023 = vmatprep.subr.mxu0 0.0
    %4024 = vmatpush1.msra.mxu0 %v3994
    %4025 = vmatprep.subr.mxu0 0.0
    %4026 = vmatpush1.msra.mxu0 %v3993
    %4027 = vmatprep.subr.mxu0 0.0
    %4028 = vmatpush2.msra.mxu0 0.0
    %4029 = vmatprep.subr.mxu0 0.0
    %4030 = vmatpush2.msra.mxu0 0.0
    %4031 = vmatprep.subr.mxu0 0.0
    %4032 = vmatpush2.msra.mxu0 0.0
    %4033 = vmatprep.subr.mxu0 0.0
    %4034 = vmatpush2.msra.mxu0 0.0
    %4035 = vmatprep.subr.mxu0 0.0
    %4036 = vmatpush2.msra.mxu0 0.0
    %4037 = vmatprep.subr.mxu0 0.0
    %4038 = vmatpush2.msra.mxu0 0.0
    %4039 = vmatprep.subr.mxu0 0.0
    %4040 = vmatpush2.msra.mxu0 0.0
    %4041 = vmatprep.subr.mxu0 0.0
    %4042 = vmatpush2.msra.mxu0 0.0
    %4043 = vmatprep.subr.mxu0 0.0
    %4044 = vmatpush2.msra.mxu0 0.0
    %4045 = vmatprep.subr.mxu0 0.0
    %4046 = vmatpush2.msra.mxu0 0.0
    %4047 = vmatprep.subr.mxu0 0.0
    %4048 = vmatpush2.msra.mxu0 0.0
    %4049 = vmatprep.subr.mxu0 0.0
    %4050 = vmatpush2.msra.mxu0 0.0
    %4051 = vmatprep.subr.mxu0 0.0
    %4052 = vmatpush2.msra.mxu0 0.0
    %4053 = vmatprep.subr.mxu0 0.0
    %4054 = vmatpush2.msra.mxu0 0.0
    %4055 = vmatprep.subr.mxu0 0.0
    %4056 = vmatpush2.msra.mxu0 0.0
    %4057 = vmatprep.subr.mxu0 0.0
    %4058 = vmatpush2.msra.mxu0 0.0
    %4059 = vmatprep.mubr.f32.mxu0 0.0
    %4060 = vmatmul.mubr.f32.gmra.mxu0 %v3890
    %v4061 = vpop.f32.mrf.mxu0
    %v4062 = vadd.f32 %v3881, %v4061
    %v4063 = vpop.f32.mrf.mxu0
    %4064 = vmatprep.mubr.f32.mxu0 0.0
    %4065 = vmatmul.mubr.f32.gmra.mxu0 %v3893
    %v4066 = vpop.f32.mrf.mxu0
    %v4067 = vadd.f32 %v3886, %v4066
    %v4068 = vpop.f32.mrf.mxu0
    %4069 = vdwg.mxu0
    %v4070 = vmax.f32 %v4062, 0.0
    %v4071 = vmax.f32 %v4067, 0.0
    %v4072 = vsel %vm3869, %v4070, 0.0
    %4073 = vadd.xlane.f32.xlu0 %v4072
    %v4074 = vpop.xlane.xlu0 %4073
    %v4075 = vsel %vm3975, %v4071, 0.0
    %4076 = vadd.xlane.f32.xlu0 %v4075
    %v4077 = vpop.xlane.xlu0 %4076
    %v4078 = vmul.f32 %v4070, %v4070
    %v4079 = vmul.f32 %v4071, %v4071
    %v4080 = vsel %vm3869, %v4078, 0.0
    %4081 = vadd.xlane.f32.xlu0 %v4080
    %v4082 = vpop.xlane.xlu0 %4081
    %v4083 = vsel %vm3975, %v4079, 0.0
    %4084 = vadd.xlane.f32.xlu0 %v4083
    %v4085 = vpop.xlane.xlu0 %4084
    %v4086 = vadd.f32 %v3974, %v4074
    %v4087 = vadd.f32 %v3978, %v4077
    %v4088 = vadd.f32 %v3983, %v4082
    %v4089 = vadd.f32 %v3986, %v4085
    %v4090 = vmul.f32 %v4086, 0.025
    %v4091 = vmul.f32 %v4087, 0.025
    %v4092 = vmul.f32 %v4088, 0.025
    %v4093 = vmul.f32 %v4089, 0.025
    %v4094 = vmul.f32 %v4090, %v4090
    %v4095 = vmul.f32 %v4091, %v4091
    %v4096 = vsub.f32 %v4092, %v4094
    %v4097 = vsub.f32 %v4093, %v4095
    %v4098 = vadd.f32 %v4096, 1e-05
    %v4099 = vadd.f32 %v4097, 1e-05
    %v4100 = vrsqrt.pop %v4098
    %v4101 = vrsqrt.pop %v4099
    %v4102 = vsub.f32 %v3970, %v4090
    %v4103 = vsub.f32 %v3971, %v4091
    %v4104 = vmul.f32 %v4102, %v4100
    %v4105 = vmul.f32 %v4103, %v4101
    %v4106 = vld [vmem:[#allocation22] sm:$0xff]
    %v4107 = vld [vmem:[#allocation22 + $0x8] sm:$0xff]
    %v4108 = vld [vmem:[#allocation22 + $0x10] sm:$0xf]
    %v4110 = vsel %vm3869, %v4104, 0
    %v4113 = vsel %vm3869, %v4105, 0
    %v4116 = vsel %vm1590, %v4108, 0
    %4118 = vmatprep.subr.mxu0 0.0
    %4119 = vmatpush1.msra.mxu0 0.0
    %4120 = vmatprep.subr.mxu0 0.0
    %4121 = vmatpush1.msra.mxu0 0.0
    %4122 = vmatprep.subr.mxu0 0.0
    %4123 = vmatpush1.msra.mxu0 0.0
    %4124 = vmatprep.subr.mxu0 0.0
    %4125 = vmatpush1.msra.mxu0 0.0
    %4126 = vmatprep.subr.mxu0 0.0
    %4127 = vmatpush1.msra.mxu0 0.0
    %4128 = vmatprep.subr.mxu0 0.0
    %4129 = vmatpush1.msra.mxu0 0.0
    %4130 = vmatprep.subr.mxu0 0.0
    %4131 = vmatpush1.msra.mxu0 0.0
    %4132 = vmatprep.subr.mxu0 0.0
    %4133 = vmatpush1.msra.mxu0 0.0
    %4134 = vmatprep.subr.mxu0 0.0
    %4135 = vmatpush1.msra.mxu0 0.0
    %4136 = vmatprep.subr.mxu0 0.0
    %4137 = vmatpush1.msra.mxu0 0.0
    %4138 = vmatprep.subr.mxu0 0.0
    %4139 = vmatpush1.msra.mxu0 0.0
    %4140 = vmatprep.subr.mxu0 0.0
    %4141 = vmatpush1.msra.mxu0 0.0
    %4142 = vmatprep.subr.mxu0 0.0
    %4143 = vmatpush1.msra.mxu0 0.0
    %4144 = vmatprep.subr.mxu0 0.0
    %4145 = vmatpush1.msra.mxu0 %v4116
    %4146 = vmatprep.subr.mxu0 0.0
    %4147 = vmatpush1.msra.mxu0 %v4107
    %4148 = vmatprep.subr.mxu0 0.0
    %4149 = vmatpush1.msra.mxu0 %v4106
    %4150 = vmatprep.subr.mxu0 0.0
    %4151 = vmatpush2.msra.mxu0 0.0
    %4152 = vmatprep.subr.mxu0 0.0
    %4153 = vmatpush2.msra.mxu0 0.0
    %4154 = vmatprep.subr.mxu0 0.0
    %4155 = vmatpush2.msra.mxu0 0.0
    %4156 = vmatprep.subr.mxu0 0.0
    %4157 = vmatpush2.msra.mxu0 0.0
    %4158 = vmatprep.subr.mxu0 0.0
    %4159 = vmatpush2.msra.mxu0 0.0
    %4160 = vmatprep.subr.mxu0 0.0
    %4161 = vmatpush2.msra.mxu0 0.0
    %4162 = vmatprep.subr.mxu0 0.0
    %4163 = vmatpush2.msra.mxu0 0.0
    %4164 = vmatprep.subr.mxu0 0.0
    %4165 = vmatpush2.msra.mxu0 0.0
    %4166 = vmatprep.subr.mxu0 0.0
    %4167 = vmatpush2.msra.mxu0 0.0
    %4168 = vmatprep.subr.mxu0 0.0
    %4169 = vmatpush2.msra.mxu0 0.0
    %4170 = vmatprep.subr.mxu0 0.0
    %4171 = vmatpush2.msra.mxu0 0.0
    %4172 = vmatprep.subr.mxu0 0.0
    %4173 = vmatpush2.msra.mxu0 0.0
    %4174 = vmatprep.subr.mxu0 0.0
    %4175 = vmatpush2.msra.mxu0 0.0
    %4176 = vmatprep.subr.mxu0 0.0
    %4177 = vmatpush2.msra.mxu0 0.0
    %4178 = vmatprep.subr.mxu0 0.0
    %4179 = vmatpush2.msra.mxu0 0.0
    %4180 = vmatprep.subr.mxu0 0.0
    %4181 = vmatpush2.msra.mxu0 0.0
    %4182 = vmatprep.mubr.f32.mxu0 0.0
    %4183 = vmatmul.mubr.f32.gmra.mxu0 %v4110
    %v4184 = vpop.f32.mrf.mxu0
    %v4185 = vadd.f32 0.0, %v4184
    %v4186 = vpop.f32.mrf.mxu0
    %4187 = vmatprep.mubr.f32.mxu0 0.0
    %4188 = vmatmul.mubr.f32.gmra.mxu0 %v4113
    %v4189 = vpop.f32.mrf.mxu0
    %v4190 = vadd.f32 0.0, %v4189
    %v4191 = vpop.f32.mrf.mxu0
    %4192 = vdwg.mxu0
    %v4193 = vsub.f32 %v4070, %v4090
    %v4194 = vsub.f32 %v4071, %v4091
    %v4195 = vmul.f32 %v4193, %v4100
    %v4196 = vmul.f32 %v4194, %v4101
    %v4198 = vsel %vm3869, %v4195, 0
    %v4201 = vsel %vm3869, %v4196, 0
    %4203 = vmatprep.subr.mxu0 0.0
    %4204 = vmatpush1.msra.mxu0 0.0
    %4205 = vmatprep.subr.mxu0 0.0
    %4206 = vmatpush1.msra.mxu0 0.0
    %4207 = vmatprep.subr.mxu0 0.0
    %4208 = vmatpush1.msra.mxu0 0.0
    %4209 = vmatprep.subr.mxu0 0.0
    %4210 = vmatpush1.msra.mxu0 0.0
    %4211 = vmatprep.subr.mxu0 0.0
    %4212 = vmatpush1.msra.mxu0 0.0
    %4213 = vmatprep.subr.mxu0 0.0
    %4214 = vmatpush1.msra.mxu0 0.0
    %4215 = vmatprep.subr.mxu0 0.0
    %4216 = vmatpush1.msra.mxu0 0.0
    %4217 = vmatprep.subr.mxu0 0.0
    %4218 = vmatpush1.msra.mxu0 0.0
    %4219 = vmatprep.subr.mxu0 0.0
    %4220 = vmatpush1.msra.mxu0 0.0
    %4221 = vmatprep.subr.mxu0 0.0
    %4222 = vmatpush1.msra.mxu0 0.0
    %4223 = vmatprep.subr.mxu0 0.0
    %4224 = vmatpush1.msra.mxu0 0.0
    %4225 = vmatprep.subr.mxu0 0.0
    %4226 = vmatpush1.msra.mxu0 0.0
    %4227 = vmatprep.subr.mxu0 0.0
    %4228 = vmatpush1.msra.mxu0 0.0
    %4229 = vmatprep.subr.mxu0 0.0
    %4230 = vmatpush1.msra.mxu0 %v4116
    %4231 = vmatprep.subr.mxu0 0.0
    %4232 = vmatpush1.msra.mxu0 %v4107
    %4233 = vmatprep.subr.mxu0 0.0
    %4234 = vmatpush1.msra.mxu0 %v4106
    %4235 = vmatprep.subr.mxu0 0.0
    %4236 = vmatpush2.msra.mxu0 0.0
    %4237 = vmatprep.subr.mxu0 0.0
    %4238 = vmatpush2.msra.mxu0 0.0
    %4239 = vmatprep.subr.mxu0 0.0
    %4240 = vmatpush2.msra.mxu0 0.0
    %4241 = vmatprep.subr.mxu0 0.0
    %4242 = vmatpush2.msra.mxu0 0.0
    %4243 = vmatprep.subr.mxu0 0.0
    %4244 = vmatpush2.msra.mxu0 0.0
    %4245 = vmatprep.subr.mxu0 0.0
    %4246 = vmatpush2.msra.mxu0 0.0
    %4247 = vmatprep.subr.mxu0 0.0
    %4248 = vmatpush2.msra.mxu0 0.0
    %4249 = vmatprep.subr.mxu0 0.0
    %4250 = vmatpush2.msra.mxu0 0.0
    %4251 = vmatprep.subr.mxu0 0.0
    %4252 = vmatpush2.msra.mxu0 0.0
    %4253 = vmatprep.subr.mxu0 0.0
    %4254 = vmatpush2.msra.mxu0 0.0
    %4255 = vmatprep.subr.mxu0 0.0
    %4256 = vmatpush2.msra.mxu0 0.0
    %4257 = vmatprep.subr.mxu0 0.0
    %4258 = vmatpush2.msra.mxu0 0.0
    %4259 = vmatprep.subr.mxu0 0.0
    %4260 = vmatpush2.msra.mxu0 0.0
    %4261 = vmatprep.subr.mxu0 0.0
    %4262 = vmatpush2.msra.mxu0 0.0
    %4263 = vmatprep.subr.mxu0 0.0
    %4264 = vmatpush2.msra.mxu0 0.0
    %4265 = vmatprep.subr.mxu0 0.0
    %4266 = vmatpush2.msra.mxu0 0.0
    %4267 = vmatprep.mubr.f32.mxu0 0.0
    %4268 = vmatmul.mubr.f32.gmra.mxu0 %v4198
    %v4269 = vpop.f32.mrf.mxu0
    %v4270 = vadd.f32 0.0, %v4269
    %v4271 = vpop.f32.mrf.mxu0
    %4272 = vmatprep.mubr.f32.mxu0 0.0
    %4273 = vmatmul.mubr.f32.gmra.mxu0 %v4201
    %v4274 = vpop.f32.mrf.mxu0
    %v4275 = vadd.f32 0.0, %v4274
    %v4276 = vpop.f32.mrf.mxu0
    %4277 = vdwg.mxu0
    %v4278 = vld [vmem:[%s5] sm:$0x1]
    %s4279 = scalar_lea.vmem %s5, 1
    %v4280 = vld [vmem:[%s4279] sm:$0x1]
    %v4281 = vld [vmem:[#allocation18] sm:$0xf]
    %v4282 = vld [vmem:[%s39] sm:$0xf]
    %vm4283 = vcmask 188416
    %4284 = vst.msk [vmem:[#allocation2] sm:$0x1] %vm4283, %v4278
    %v4286 = vlaneseq
    %v4287 = vshrl.u32 %v4286, 7
    %v4288 = vsub.s32 0, %v4287
    %v4289 = vrot.slane %v4278, %v4288
    %4290 = vrot.lane.b32.xlu0 %v4289, 127
    %v4291 = vpop.permute.xlu0 %4290
    %4293 = vst.msk [vmem:[#allocation2 + $0x1] sm:$0x1] %vm4283, %v4291
    %4294 = vrot.lane.b32.xlu0 %v4289, 126
    %v4295 = vpop.permute.xlu0 %4294
    %4297 = vst.msk [vmem:[#allocation2 + $0x2] sm:$0x1] %vm4283, %v4295
    %v4298 = vld [vmem:[#allocation2] sm:$0x7]
    %4300 = vset.pattern.permute.xlu0 0
    %4301 = vperm.xlu0 %4300, %v4282
    %v4302 = vpop.permute.xlu0 %4301
    %v4305 = vsel %vm3142, %v4281, 0
    %v4308 = vsel %vm3146, %v4298, 0
    %4310 = vmatprep.subr.mxu0 0.0
    %4311 = vmatpush1.msra.mxu0 0.0
    %4312 = vmatprep.subr.mxu0 0.0
    %4313 = vmatpush1.msra.mxu0 0.0
    %4314 = vmatprep.subr.mxu0 0.0
    %4315 = vmatpush1.msra.mxu0 0.0
    %4316 = vmatprep.subr.mxu0 0.0
    %4317 = vmatpush1.msra.mxu0 0.0
    %4318 = vmatprep.subr.mxu0 0.0
    %4319 = vmatpush1.msra.mxu0 0.0
    %4320 = vmatprep.subr.mxu0 0.0
    %4321 = vmatpush1.msra.mxu0 0.0
    %4322 = vmatprep.subr.mxu0 0.0
    %4323 = vmatpush1.msra.mxu0 0.0
    %4324 = vmatprep.subr.mxu0 0.0
    %4325 = vmatpush1.msra.mxu0 0.0
    %4326 = vmatprep.subr.mxu0 0.0
    %4327 = vmatpush1.msra.mxu0 0.0
    %4328 = vmatprep.subr.mxu0 0.0
    %4329 = vmatpush1.msra.mxu0 0.0
    %4330 = vmatprep.subr.mxu0 0.0
    %4331 = vmatpush1.msra.mxu0 0.0
    %4332 = vmatprep.subr.mxu0 0.0
    %4333 = vmatpush1.msra.mxu0 0.0
    %4334 = vmatprep.subr.mxu0 0.0
    %4335 = vmatpush1.msra.mxu0 0.0
    %4336 = vmatprep.subr.mxu0 0.0
    %4337 = vmatpush1.msra.mxu0 0.0
    %4338 = vmatprep.subr.mxu0 0.0
    %4339 = vmatpush1.msra.mxu0 0.0
    %4340 = vmatprep.subr.mxu0 0.0
    %4341 = vmatpush1.msra.mxu0 %v4308
    %4342 = vmatprep.subr.mxu0 0.0
    %4343 = vmatpush2.msra.mxu0 0.0
    %4344 = vmatprep.subr.mxu0 0.0
    %4345 = vmatpush2.msra.mxu0 0.0
    %4346 = vmatprep.subr.mxu0 0.0
    %4347 = vmatpush2.msra.mxu0 0.0
    %4348 = vmatprep.subr.mxu0 0.0
    %4349 = vmatpush2.msra.mxu0 0.0
    %4350 = vmatprep.subr.mxu0 0.0
    %4351 = vmatpush2.msra.mxu0 0.0
    %4352 = vmatprep.subr.mxu0 0.0
    %4353 = vmatpush2.msra.mxu0 0.0
    %4354 = vmatprep.subr.mxu0 0.0
    %4355 = vmatpush2.msra.mxu0 0.0
    %4356 = vmatprep.subr.mxu0 0.0
    %4357 = vmatpush2.msra.mxu0 0.0
    %4358 = vmatprep.subr.mxu0 0.0
    %4359 = vmatpush2.msra.mxu0 0.0
    %4360 = vmatprep.subr.mxu0 0.0
    %4361 = vmatpush2.msra.mxu0 0.0
    %4362 = vmatprep.subr.mxu0 0.0
    %4363 = vmatpush2.msra.mxu0 0.0
    %4364 = vmatprep.subr.mxu0 0.0
    %4365 = vmatpush2.msra.mxu0 0.0
    %4366 = vmatprep.subr.mxu0 0.0
    %4367 = vmatpush2.msra.mxu0 0.0
    %4368 = vmatprep.subr.mxu0 0.0
    %4369 = vmatpush2.msra.mxu0 0.0
    %4370 = vmatprep.subr.mxu0 0.0
    %4371 = vmatpush2.msra.mxu0 0.0
    %4372 = vmatprep.subr.mxu0 0.0
    %4373 = vmatpush2.msra.mxu0 0.0
    %4374 = vmatprep.mubr.f32.mxu0 0.0
    %4375 = vmatmul.mubr.f32.gmra.mxu0 %v4305
    %v4376 = vpop.f32.mrf.mxu0
    %v4377 = vadd.f32 %v4302, %v4376
    %v4378 = vpop.f32.mrf.mxu0
    %4379 = vdwg.mxu0
    %v4380 = vmax.f32 %v4377, 0.0
    %vm4381 = vcmask 191488
    %v4382 = vsel %vm4381, %v4380, 0.0
    %4383 = vadd.xlane.f32.xlu0 %v4382
    %v4384 = vpop.xlane.xlu0 %4383
    %v4385 = vmul.f32 %v4380, %v4380
    %v4386 = vsel %vm4381, %v4385, 0.0
    %4387 = vadd.xlane.f32.xlu0 %v4386
    %v4388 = vpop.xlane.xlu0 %4387
    %4389 = vst.msk [vmem:[%s721] sm:$0x1] %vm4283, %v4280
    %v4391 = vlaneseq
    %v4392 = vshrl.u32 %v4391, 7
    %v4393 = vsub.s32 0, %v4392
    %v4394 = vrot.slane %v4280, %v4393
    %4395 = vrot.lane.b32.xlu0 %v4394, 127
    %v4396 = vpop.permute.xlu0 %4395
    %4398 = vst.msk [vmem:[%s721 + $0x1] sm:$0x1] %vm4283, %v4396
    %4399 = vrot.lane.b32.xlu0 %v4394, 126
    %v4400 = vpop.permute.xlu0 %4399
    %4402 = vst.msk [vmem:[%s721 + $0x2] sm:$0x1] %vm4283, %v4400
    %v4403 = vld [vmem:[%s721] sm:$0x7]
    %v4405 = vsel %vm3146, %v4403, 0
    %4407 = vmatprep.subr.mxu0 0.0
    %4408 = vmatpush1.msra.mxu0 0.0
    %4409 = vmatprep.subr.mxu0 0.0
    %4410 = vmatpush1.msra.mxu0 0.0
    %4411 = vmatprep.subr.mxu0 0.0
    %4412 = vmatpush1.msra.mxu0 0.0
    %4413 = vmatprep.subr.mxu0 0.0
    %4414 = vmatpush1.msra.mxu0 0.0
    %4415 = vmatprep.subr.mxu0 0.0
    %4416 = vmatpush1.msra.mxu0 0.0
    %4417 = vmatprep.subr.mxu0 0.0
    %4418 = vmatpush1.msra.mxu0 0.0
    %4419 = vmatprep.subr.mxu0 0.0
    %4420 = vmatpush1.msra.mxu0 0.0
    %4421 = vmatprep.subr.mxu0 0.0
    %4422 = vmatpush1.msra.mxu0 0.0
    %4423 = vmatprep.subr.mxu0 0.0
    %4424 = vmatpush1.msra.mxu0 0.0
    %4425 = vmatprep.subr.mxu0 0.0
    %4426 = vmatpush1.msra.mxu0 0.0
    %4427 = vmatprep.subr.mxu0 0.0
    %4428 = vmatpush1.msra.mxu0 0.0
    %4429 = vmatprep.subr.mxu0 0.0
    %4430 = vmatpush1.msra.mxu0 0.0
    %4431 = vmatprep.subr.mxu0 0.0
    %4432 = vmatpush1.msra.mxu0 0.0
    %4433 = vmatprep.subr.mxu0 0.0
    %4434 = vmatpush1.msra.mxu0 0.0
    %4435 = vmatprep.subr.mxu0 0.0
    %4436 = vmatpush1.msra.mxu0 0.0
    %4437 = vmatprep.subr.mxu0 0.0
    %4438 = vmatpush1.msra.mxu0 %v4405
    %4439 = vmatprep.subr.mxu0 0.0
    %4440 = vmatpush2.msra.mxu0 0.0
    %4441 = vmatprep.subr.mxu0 0.0
    %4442 = vmatpush2.msra.mxu0 0.0
    %4443 = vmatprep.subr.mxu0 0.0
    %4444 = vmatpush2.msra.mxu0 0.0
    %4445 = vmatprep.subr.mxu0 0.0
    %4446 = vmatpush2.msra.mxu0 0.0
    %4447 = vmatprep.subr.mxu0 0.0
    %4448 = vmatpush2.msra.mxu0 0.0
    %4449 = vmatprep.subr.mxu0 0.0
    %4450 = vmatpush2.msra.mxu0 0.0
    %4451 = vmatprep.subr.mxu0 0.0
    %4452 = vmatpush2.msra.mxu0 0.0
    %4453 = vmatprep.subr.mxu0 0.0
    %4454 = vmatpush2.msra.mxu0 0.0
    %4455 = vmatprep.subr.mxu0 0.0
    %4456 = vmatpush2.msra.mxu0 0.0
    %4457 = vmatprep.subr.mxu0 0.0
    %4458 = vmatpush2.msra.mxu0 0.0
    %4459 = vmatprep.subr.mxu0 0.0
    %4460 = vmatpush2.msra.mxu0 0.0
    %4461 = vmatprep.subr.mxu0 0.0
    %4462 = vmatpush2.msra.mxu0 0.0
    %4463 = vmatprep.subr.mxu0 0.0
    %4464 = vmatpush2.msra.mxu0 0.0
    %4465 = vmatprep.subr.mxu0 0.0
    %4466 = vmatpush2.msra.mxu0 0.0
    %4467 = vmatprep.subr.mxu0 0.0
    %4468 = vmatpush2.msra.mxu0 0.0
    %4469 = vmatprep.subr.mxu0 0.0
    %4470 = vmatpush2.msra.mxu0 0.0
    %4471 = vmatprep.mubr.f32.mxu0 0.0
    %4472 = vmatmul.mubr.f32.gmra.mxu0 %v4305
    %v4473 = vpop.f32.mrf.mxu0
    %v4474 = vadd.f32 %v4302, %v4473
    %v4475 = vpop.f32.mrf.mxu0
    %4476 = vdwg.mxu0
    %v4477 = vmax.f32 %v4474, 0.0
    %v4478 = vsel %vm4381, %v4477, 0.0
    %4479 = vadd.xlane.f32.xlu0 %v4478
    %v4480 = vpop.xlane.xlu0 %4479
    %v4481 = vmul.f32 %v4477, %v4477
    %v4482 = vsel %vm4381, %v4481, 0.0
    %4483 = vadd.xlane.f32.xlu0 %v4482
    %v4484 = vpop.xlane.xlu0 %4483
    %v4485 = vadd.f32 %v4384, %v4480
    %v4486 = vadd.f32 %v4388, %v4484
    %v4487 = vmul.f32 %v4485, 0.020833334
    %v4488 = vmul.f32 %v4486, 0.020833334
    %v4489 = vmul.f32 %v4487, %v4487
    %v4490 = vsub.f32 %v4488, %v4489
    %v4491 = vadd.f32 %v4490, 1e-05
    %v4492 = vrsqrt.pop %v4491
    %v4493 = vsub.f32 %v4380, %v4487
    %v4494 = vmul.f32 %v4493, %v4492
    %v4495 = vld [vmem:[%s61] sm:$0xff]
    %v4496 = vld [vmem:[%s61 + $0x8] sm:$0xff]
    %v4497 = vld [vmem:[%s61 + $0x10] sm:$0xff]
    %v4499 = vsel %vm1498, %v4494, 0
    %4501 = vmatprep.subr.mxu0 0.0
    %4502 = vmatpush1.msra.mxu0 0.0
    %4503 = vmatprep.subr.mxu0 0.0
    %4504 = vmatpush1.msra.mxu0 0.0
    %4505 = vmatprep.subr.mxu0 0.0
    %4506 = vmatpush1.msra.mxu0 0.0
    %4507 = vmatprep.subr.mxu0 0.0
    %4508 = vmatpush1.msra.mxu0 0.0
    %4509 = vmatprep.subr.mxu0 0.0
    %4510 = vmatpush1.msra.mxu0 0.0
    %4511 = vmatprep.subr.mxu0 0.0
    %4512 = vmatpush1.msra.mxu0 0.0
    %4513 = vmatprep.subr.mxu0 0.0
    %4514 = vmatpush1.msra.mxu0 0.0
    %4515 = vmatprep.subr.mxu0 0.0
    %4516 = vmatpush1.msra.mxu0 0.0
    %4517 = vmatprep.subr.mxu0 0.0
    %4518 = vmatpush1.msra.mxu0 0.0
    %4519 = vmatprep.subr.mxu0 0.0
    %4520 = vmatpush1.msra.mxu0 0.0
    %4521 = vmatprep.subr.mxu0 0.0
    %4522 = vmatpush1.msra.mxu0 0.0
    %4523 = vmatprep.subr.mxu0 0.0
    %4524 = vmatpush1.msra.mxu0 0.0
    %4525 = vmatprep.subr.mxu0 0.0
    %4526 = vmatpush1.msra.mxu0 0.0
    %4527 = vmatprep.subr.mxu0 0.0
    %4528 = vmatpush1.msra.mxu0 %v4497
    %4529 = vmatprep.subr.mxu0 0.0
    %4530 = vmatpush1.msra.mxu0 %v4496
    %4531 = vmatprep.subr.mxu0 0.0
    %4532 = vmatpush1.msra.mxu0 %v4495
    %4533 = vmatprep.subr.mxu0 0.0
    %4534 = vmatpush2.msra.mxu0 0.0
    %4535 = vmatprep.subr.mxu0 0.0
    %4536 = vmatpush2.msra.mxu0 0.0
    %4537 = vmatprep.subr.mxu0 0.0
    %4538 = vmatpush2.msra.mxu0 0.0
    %4539 = vmatprep.subr.mxu0 0.0
    %4540 = vmatpush2.msra.mxu0 0.0
    %4541 = vmatprep.subr.mxu0 0.0
    %4542 = vmatpush2.msra.mxu0 0.0
    %4543 = vmatprep.subr.mxu0 0.0
    %4544 = vmatpush2.msra.mxu0 0.0
    %4545 = vmatprep.subr.mxu0 0.0
    %4546 = vmatpush2.msra.mxu0 0.0
    %4547 = vmatprep.subr.mxu0 0.0
    %4548 = vmatpush2.msra.mxu0 0.0
    %4549 = vmatprep.subr.mxu0 0.0
    %4550 = vmatpush2.msra.mxu0 0.0
    %4551 = vmatprep.subr.mxu0 0.0
    %4552 = vmatpush2.msra.mxu0 0.0
    %4553 = vmatprep.subr.mxu0 0.0
    %4554 = vmatpush2.msra.mxu0 0.0
    %4555 = vmatprep.subr.mxu0 0.0
    %4556 = vmatpush2.msra.mxu0 0.0
    %4557 = vmatprep.subr.mxu0 0.0
    %4558 = vmatpush2.msra.mxu0 0.0
    %4559 = vmatprep.subr.mxu0 0.0
    %4560 = vmatpush2.msra.mxu0 0.0
    %4561 = vmatprep.subr.mxu0 0.0
    %4562 = vmatpush2.msra.mxu0 0.0
    %4563 = vmatprep.subr.mxu0 0.0
    %4564 = vmatpush2.msra.mxu0 0.0
    %4565 = vmatprep.mubr.f32.mxu0 0.0
    %4566 = vmatmul.mubr.f32.gmra.mxu0 %v4499
    %v4567 = vpop.f32.mrf.mxu0
    %v4568 = vadd.f32 0.0, %v4567
    %v4569 = vpop.f32.mrf.mxu0
    %4570 = vdwg.mxu0
    %v4571 = vsub.f32 %v4477, %v4487
    %v4572 = vmul.f32 %v4571, %v4492
    %v4574 = vsel %vm1498, %v4572, 0
    %4576 = vmatprep.subr.mxu0 0.0
    %4577 = vmatpush1.msra.mxu0 0.0
    %4578 = vmatprep.subr.mxu0 0.0
    %4579 = vmatpush1.msra.mxu0 0.0
    %4580 = vmatprep.subr.mxu0 0.0
    %4581 = vmatpush1.msra.mxu0 0.0
    %4582 = vmatprep.subr.mxu0 0.0
    %4583 = vmatpush1.msra.mxu0 0.0
    %4584 = vmatprep.subr.mxu0 0.0
    %4585 = vmatpush1.msra.mxu0 0.0
    %4586 = vmatprep.subr.mxu0 0.0
    %4587 = vmatpush1.msra.mxu0 0.0
    %4588 = vmatprep.subr.mxu0 0.0
    %4589 = vmatpush1.msra.mxu0 0.0
    %4590 = vmatprep.subr.mxu0 0.0
    %4591 = vmatpush1.msra.mxu0 0.0
    %4592 = vmatprep.subr.mxu0 0.0
    %4593 = vmatpush1.msra.mxu0 0.0
    %4594 = vmatprep.subr.mxu0 0.0
    %4595 = vmatpush1.msra.mxu0 0.0
    %4596 = vmatprep.subr.mxu0 0.0
    %4597 = vmatpush1.msra.mxu0 0.0
    %4598 = vmatprep.subr.mxu0 0.0
    %4599 = vmatpush1.msra.mxu0 0.0
    %4600 = vmatprep.subr.mxu0 0.0
    %4601 = vmatpush1.msra.mxu0 0.0
    %4602 = vmatprep.subr.mxu0 0.0
    %4603 = vmatpush1.msra.mxu0 %v4497
    %4604 = vmatprep.subr.mxu0 0.0
    %4605 = vmatpush1.msra.mxu0 %v4496
    %4606 = vmatprep.subr.mxu0 0.0
    %4607 = vmatpush1.msra.mxu0 %v4495
    %4608 = vmatprep.subr.mxu0 0.0
    %4609 = vmatpush2.msra.mxu0 0.0
    %4610 = vmatprep.subr.mxu0 0.0
    %4611 = vmatpush2.msra.mxu0 0.0
    %4612 = vmatprep.subr.mxu0 0.0
    %4613 = vmatpush2.msra.mxu0 0.0
    %4614 = vmatprep.subr.mxu0 0.0
    %4615 = vmatpush2.msra.mxu0 0.0
    %4616 = vmatprep.subr.mxu0 0.0
    %4617 = vmatpush2.msra.mxu0 0.0
    %4618 = vmatprep.subr.mxu0 0.0
    %4619 = vmatpush2.msra.mxu0 0.0
    %4620 = vmatprep.subr.mxu0 0.0
    %4621 = vmatpush2.msra.mxu0 0.0
    %4622 = vmatprep.subr.mxu0 0.0
    %4623 = vmatpush2.msra.mxu0 0.0
    %4624 = vmatprep.subr.mxu0 0.0
    %4625 = vmatpush2.msra.mxu0 0.0
    %4626 = vmatprep.subr.mxu0 0.0
    %4627 = vmatpush2.msra.mxu0 0.0
    %4628 = vmatprep.subr.mxu0 0.0
    %4629 = vmatpush2.msra.mxu0 0.0
    %4630 = vmatprep.subr.mxu0 0.0
    %4631 = vmatpush2.msra.mxu0 0.0
    %4632 = vmatprep.subr.mxu0 0.0
    %4633 = vmatpush2.msra.mxu0 0.0
    %4634 = vmatprep.subr.mxu0 0.0
    %4635 = vmatpush2.msra.mxu0 0.0
    %4636 = vmatprep.subr.mxu0 0.0
    %4637 = vmatpush2.msra.mxu0 0.0
    %4638 = vmatprep.subr.mxu0 0.0
    %4639 = vmatpush2.msra.mxu0 0.0
    %4640 = vmatprep.mubr.f32.mxu0 0.0
    %4641 = vmatmul.mubr.f32.gmra.mxu0 %v4574
    %v4642 = vpop.f32.mrf.mxu0
    %v4643 = vadd.f32 0.0, %v4642
    %v4644 = vpop.f32.mrf.mxu0
    %4645 = vdwg.mxu0
    %v4646 = vld [vmem:[#allocation19] sm:$0xff]
    %v4647 = vld [vmem:[%s43] sm:$0xff]
    %vm4648 = vcmask 76800
    %4649 = vst.msk [vmem:[#allocation2] sm:$0xf] %vm4648, %v4568
    %v4651 = vrot.slane %v4568, 4
    %4652 = vrot.lane.b32.xlu0 %v4651, 127
    %v4653 = vpop.permute.xlu0 %4652
    %vm4655 = vcmask 80900
    %4656 = vst.msk [vmem:[#allocation2] sm:$0xf0] %vm4655, %v4653
    %4657 = vrot.lane.b32.xlu0 %v4568, 126
    %v4658 = vpop.permute.xlu0 %4657
    %4660 = vst.msk [vmem:[#allocation2 + $0x18] sm:$0xf] %vm4648, %v4658
    %v4661 = vld [vmem:[#allocation2] sm:$0xff]
    %v4662 = vld [vmem:[#allocation2 + $0x18] sm:$0xf]
    %4664 = vset.pattern.permute.xlu0 0
    %4665 = vperm.xlu0 %4664, %v4647
    %v4666 = vpop.permute.xlu0 %4665
    %v4669 = vsel %vm3517, %v4646, 0
    %v4672 = vsel %vm1590, %v4662, 0
    %4674 = vmatprep.subr.mxu0 0.0
    %4675 = vmatpush1.msra.mxu0 0.0
    %4676 = vmatprep.subr.mxu0 0.0
    %4677 = vmatpush1.msra.mxu0 0.0
    %4678 = vmatprep.subr.mxu0 0.0
    %4679 = vmatpush1.msra.mxu0 0.0
    %4680 = vmatprep.subr.mxu0 0.0
    %4681 = vmatpush1.msra.mxu0 0.0
    %4682 = vmatprep.subr.mxu0 0.0
    %4683 = vmatpush1.msra.mxu0 0.0
    %4684 = vmatprep.subr.mxu0 0.0
    %4685 = vmatpush1.msra.mxu0 0.0
    %4686 = vmatprep.subr.mxu0 0.0
    %4687 = vmatpush1.msra.mxu0 0.0
    %4688 = vmatprep.subr.mxu0 0.0
    %4689 = vmatpush1.msra.mxu0 0.0
    %4690 = vmatprep.subr.mxu0 0.0
    %4691 = vmatpush1.msra.mxu0 0.0
    %4692 = vmatprep.subr.mxu0 0.0
    %4693 = vmatpush1.msra.mxu0 0.0
    %4694 = vmatprep.subr.mxu0 0.0
    %4695 = vmatpush1.msra.mxu0 0.0
    %4696 = vmatprep.subr.mxu0 0.0
    %4697 = vmatpush1.msra.mxu0 0.0
    %4698 = vmatprep.subr.mxu0 0.0
    %4699 = vmatpush1.msra.mxu0 0.0
    %4700 = vmatprep.subr.mxu0 0.0
    %4701 = vmatpush1.msra.mxu0 0.0
    %4702 = vmatprep.subr.mxu0 0.0
    %4703 = vmatpush1.msra.mxu0 %v4672
    %4704 = vmatprep.subr.mxu0 0.0
    %4705 = vmatpush1.msra.mxu0 %v4661
    %4706 = vmatprep.subr.mxu0 0.0
    %4707 = vmatpush2.msra.mxu0 0.0
    %4708 = vmatprep.subr.mxu0 0.0
    %4709 = vmatpush2.msra.mxu0 0.0
    %4710 = vmatprep.subr.mxu0 0.0
    %4711 = vmatpush2.msra.mxu0 0.0
    %4712 = vmatprep.subr.mxu0 0.0
    %4713 = vmatpush2.msra.mxu0 0.0
    %4714 = vmatprep.subr.mxu0 0.0
    %4715 = vmatpush2.msra.mxu0 0.0
    %4716 = vmatprep.subr.mxu0 0.0
    %4717 = vmatpush2.msra.mxu0 0.0
    %4718 = vmatprep.subr.mxu0 0.0
    %4719 = vmatpush2.msra.mxu0 0.0
    %4720 = vmatprep.subr.mxu0 0.0
    %4721 = vmatpush2.msra.mxu0 0.0
    %4722 = vmatprep.subr.mxu0 0.0
    %4723 = vmatpush2.msra.mxu0 0.0
    %4724 = vmatprep.subr.mxu0 0.0
    %4725 = vmatpush2.msra.mxu0 0.0
    %4726 = vmatprep.subr.mxu0 0.0
    %4727 = vmatpush2.msra.mxu0 0.0
    %4728 = vmatprep.subr.mxu0 0.0
    %4729 = vmatpush2.msra.mxu0 0.0
    %4730 = vmatprep.subr.mxu0 0.0
    %4731 = vmatpush2.msra.mxu0 0.0
    %4732 = vmatprep.subr.mxu0 0.0
    %4733 = vmatpush2.msra.mxu0 0.0
    %4734 = vmatprep.subr.mxu0 0.0
    %4735 = vmatpush2.msra.mxu0 0.0
    %4736 = vmatprep.subr.mxu0 0.0
    %4737 = vmatpush2.msra.mxu0 0.0
    %4738 = vmatprep.mubr.f32.mxu0 0.0
    %4739 = vmatmul.mubr.f32.gmra.mxu0 %v4669
    %v4740 = vpop.f32.mrf.mxu0
    %v4741 = vadd.f32 %v4666, %v4740
    %v4742 = vpop.f32.mrf.mxu0
    %4743 = vdwg.mxu0
    %v4744 = vmax.f32 %v4741, 0.0
    %vm4745 = vcmask 80896
    %v4746 = vsel %vm4745, %v4744, 0.0
    %4747 = vadd.xlane.f32.xlu0 %v4746
    %v4748 = vpop.xlane.xlu0 %4747
    %v4749 = vmul.f32 %v4744, %v4744
    %v4750 = vsel %vm4745, %v4749, 0.0
    %4751 = vadd.xlane.f32.xlu0 %v4750
    %v4752 = vpop.xlane.xlu0 %4751
    %4753 = vst.msk [vmem:[%s721] sm:$0xf] %vm4648, %v4643
    %v4755 = vrot.slane %v4643, 4
    %4756 = vrot.lane.b32.xlu0 %v4755, 127
    %v4757 = vpop.permute.xlu0 %4756
    %4759 = vst.msk [vmem:[%s721] sm:$0xf0] %vm4655, %v4757
    %4760 = vrot.lane.b32.xlu0 %v4643, 126
    %v4761 = vpop.permute.xlu0 %4760
    %4763 = vst.msk [vmem:[%s721 + $0x18] sm:$0xf] %vm4648, %v4761
    %v4764 = vld [vmem:[%s721] sm:$0xff]
    %v4765 = vld [vmem:[%s721 + $0x18] sm:$0xf]
    %v4767 = vsel %vm1590, %v4765, 0
    %4769 = vmatprep.subr.mxu0 0.0
    %4770 = vmatpush1.msra.mxu0 0.0
    %4771 = vmatprep.subr.mxu0 0.0
    %4772 = vmatpush1.msra.mxu0 0.0
    %4773 = vmatprep.subr.mxu0 0.0
    %4774 = vmatpush1.msra.mxu0 0.0
    %4775 = vmatprep.subr.mxu0 0.0
    %4776 = vmatpush1.msra.mxu0 0.0
    %4777 = vmatprep.subr.mxu0 0.0
    %4778 = vmatpush1.msra.mxu0 0.0
    %4779 = vmatprep.subr.mxu0 0.0
    %4780 = vmatpush1.msra.mxu0 0.0
    %4781 = vmatprep.subr.mxu0 0.0
    %4782 = vmatpush1.msra.mxu0 0.0
    %4783 = vmatprep.subr.mxu0 0.0
    %4784 = vmatpush1.msra.mxu0 0.0
    %4785 = vmatprep.subr.mxu0 0.0
    %4786 = vmatpush1.msra.mxu0 0.0
    %4787 = vmatprep.subr.mxu0 0.0
    %4788 = vmatpush1.msra.mxu0 0.0
    %4789 = vmatprep.subr.mxu0 0.0
    %4790 = vmatpush1.msra.mxu0 0.0
    %4791 = vmatprep.subr.mxu0 0.0
    %4792 = vmatpush1.msra.mxu0 0.0
    %4793 = vmatprep.subr.mxu0 0.0
    %4794 = vmatpush1.msra.mxu0 0.0
    %4795 = vmatprep.subr.mxu0 0.0
    %4796 = vmatpush1.msra.mxu0 0.0
    %4797 = vmatprep.subr.mxu0 0.0
    %4798 = vmatpush1.msra.mxu0 %v4767
    %4799 = vmatprep.subr.mxu0 0.0
    %4800 = vmatpush1.msra.mxu0 %v4764
    %4801 = vmatprep.subr.mxu0 0.0
    %4802 = vmatpush2.msra.mxu0 0.0
    %4803 = vmatprep.subr.mxu0 0.0
    %4804 = vmatpush2.msra.mxu0 0.0
    %4805 = vmatprep.subr.mxu0 0.0
    %4806 = vmatpush2.msra.mxu0 0.0
    %4807 = vmatprep.subr.mxu0 0.0
    %4808 = vmatpush2.msra.mxu0 0.0
    %4809 = vmatprep.subr.mxu0 0.0
    %4810 = vmatpush2.msra.mxu0 0.0
    %4811 = vmatprep.subr.mxu0 0.0
    %4812 = vmatpush2.msra.mxu0 0.0
    %4813 = vmatprep.subr.mxu0 0.0
    %4814 = vmatpush2.msra.mxu0 0.0
    %4815 = vmatprep.subr.mxu0 0.0
    %4816 = vmatpush2.msra.mxu0 0.0
    %4817 = vmatprep.subr.mxu0 0.0
    %4818 = vmatpush2.msra.mxu0 0.0
    %4819 = vmatprep.subr.mxu0 0.0
    %4820 = vmatpush2.msra.mxu0 0.0
    %4821 = vmatprep.subr.mxu0 0.0
    %4822 = vmatpush2.msra.mxu0 0.0
    %4823 = vmatprep.subr.mxu0 0.0
    %4824 = vmatpush2.msra.mxu0 0.0
    %4825 = vmatprep.subr.mxu0 0.0
    %4826 = vmatpush2.msra.mxu0 0.0
    %4827 = vmatprep.subr.mxu0 0.0
    %4828 = vmatpush2.msra.mxu0 0.0
    %4829 = vmatprep.subr.mxu0 0.0
    %4830 = vmatpush2.msra.mxu0 0.0
    %4831 = vmatprep.subr.mxu0 0.0
    %4832 = vmatpush2.msra.mxu0 0.0
    %4833 = vmatprep.mubr.f32.mxu0 0.0
    %4834 = vmatmul.mubr.f32.gmra.mxu0 %v4669
    %v4835 = vpop.f32.mrf.mxu0
    %v4836 = vadd.f32 %v4666, %v4835
    %v4837 = vpop.f32.mrf.mxu0
    %4838 = vdwg.mxu0
    %v4839 = vmax.f32 %v4836, 0.0
    %v4840 = vsel %vm4745, %v4839, 0.0
    %4841 = vadd.xlane.f32.xlu0 %v4840
    %v4842 = vpop.xlane.xlu0 %4841
    %v4843 = vmul.f32 %v4839, %v4839
    %v4844 = vsel %vm4745, %v4843, 0.0
    %4845 = vadd.xlane.f32.xlu0 %v4844
    %v4846 = vpop.xlane.xlu0 %4845
    %v4847 = vadd.f32 %v4748, %v4842
    %v4848 = vadd.f32 %v4752, %v4846
    %v4849 = vmul.f32 %v4847, 0.05
    %v4850 = vmul.f32 %v4848, 0.05
    %v4851 = vmul.f32 %v4849, %v4849
    %v4852 = vsub.f32 %v4850, %v4851
    %v4853 = vadd.f32 %v4852, 1e-05
    %v4854 = vrsqrt.pop %v4853
    %v4855 = vsub.f32 %v4744, %v4849
    %v4856 = vmul.f32 %v4855, %v4854
    %v4857 = vld [vmem:[#allocation24] sm:$0xff]
    %v4858 = vld [vmem:[#allocation24 + $0x8] sm:$0x3]
    %v4860 = vsel %vm4745, %v4856, 0
    %v4863 = vsel %vm3716, %v4858, 0
    %4865 = vmatprep.subr.mxu0 0.0
    %4866 = vmatpush1.msra.mxu0 0.0
    %4867 = vmatprep.subr.mxu0 0.0
    %4868 = vmatpush1.msra.mxu0 0.0
    %4869 = vmatprep.subr.mxu0 0.0
    %4870 = vmatpush1.msra.mxu0 0.0
    %4871 = vmatprep.subr.mxu0 0.0
    %4872 = vmatpush1.msra.mxu0 0.0
    %4873 = vmatprep.subr.mxu0 0.0
    %4874 = vmatpush1.msra.mxu0 0.0
    %4875 = vmatprep.subr.mxu0 0.0
    %4876 = vmatpush1.msra.mxu0 0.0
    %4877 = vmatprep.subr.mxu0 0.0
    %4878 = vmatpush1.msra.mxu0 0.0
    %4879 = vmatprep.subr.mxu0 0.0
    %4880 = vmatpush1.msra.mxu0 0.0
    %4881 = vmatprep.subr.mxu0 0.0
    %4882 = vmatpush1.msra.mxu0 0.0
    %4883 = vmatprep.subr.mxu0 0.0
    %4884 = vmatpush1.msra.mxu0 0.0
    %4885 = vmatprep.subr.mxu0 0.0
    %4886 = vmatpush1.msra.mxu0 0.0
    %4887 = vmatprep.subr.mxu0 0.0
    %4888 = vmatpush1.msra.mxu0 0.0
    %4889 = vmatprep.subr.mxu0 0.0
    %4890 = vmatpush1.msra.mxu0 0.0
    %4891 = vmatprep.subr.mxu0 0.0
    %4892 = vmatpush1.msra.mxu0 0.0
    %4893 = vmatprep.subr.mxu0 0.0
    %4894 = vmatpush1.msra.mxu0 %v4863
    %4895 = vmatprep.subr.mxu0 0.0
    %4896 = vmatpush1.msra.mxu0 %v4857
    %4897 = vmatprep.subr.mxu0 0.0
    %4898 = vmatpush2.msra.mxu0 0.0
    %4899 = vmatprep.subr.mxu0 0.0
    %4900 = vmatpush2.msra.mxu0 0.0
    %4901 = vmatprep.subr.mxu0 0.0
    %4902 = vmatpush2.msra.mxu0 0.0
    %4903 = vmatprep.subr.mxu0 0.0
    %4904 = vmatpush2.msra.mxu0 0.0
    %4905 = vmatprep.subr.mxu0 0.0
    %4906 = vmatpush2.msra.mxu0 0.0
    %4907 = vmatprep.subr.mxu0 0.0
    %4908 = vmatpush2.msra.mxu0 0.0
    %4909 = vmatprep.subr.mxu0 0.0
    %4910 = vmatpush2.msra.mxu0 0.0
    %4911 = vmatprep.subr.mxu0 0.0
    %4912 = vmatpush2.msra.mxu0 0.0
    %4913 = vmatprep.subr.mxu0 0.0
    %4914 = vmatpush2.msra.mxu0 0.0
    %4915 = vmatprep.subr.mxu0 0.0
    %4916 = vmatpush2.msra.mxu0 0.0
    %4917 = vmatprep.subr.mxu0 0.0
    %4918 = vmatpush2.msra.mxu0 0.0
    %4919 = vmatprep.subr.mxu0 0.0
    %4920 = vmatpush2.msra.mxu0 0.0
    %4921 = vmatprep.subr.mxu0 0.0
    %4922 = vmatpush2.msra.mxu0 0.0
    %4923 = vmatprep.subr.mxu0 0.0
    %4924 = vmatpush2.msra.mxu0 0.0
    %4925 = vmatprep.subr.mxu0 0.0
    %4926 = vmatpush2.msra.mxu0 0.0
    %4927 = vmatprep.subr.mxu0 0.0
    %4928 = vmatpush2.msra.mxu0 0.0
    %4929 = vmatprep.mubr.f32.mxu0 0.0
    %4930 = vmatmul.mubr.f32.gmra.mxu0 %v4860
    %v4931 = vpop.f32.mrf.mxu0
    %v4932 = vadd.f32 0.0, %v4931
    %v4933 = vpop.f32.mrf.mxu0
    %4934 = vdwg.mxu0
    %v4935 = vsub.f32 %v4839, %v4849
    %v4936 = vmul.f32 %v4935, %v4854
    %v4938 = vsel %vm4745, %v4936, 0
    %4940 = vmatprep.subr.mxu0 0.0
    %4941 = vmatpush1.msra.mxu0 0.0
    %4942 = vmatprep.subr.mxu0 0.0
    %4943 = vmatpush1.msra.mxu0 0.0
    %4944 = vmatprep.subr.mxu0 0.0
    %4945 = vmatpush1.msra.mxu0 0.0
    %4946 = vmatprep.subr.mxu0 0.0
    %4947 = vmatpush1.msra.mxu0 0.0
    %4948 = vmatprep.subr.mxu0 0.0
    %4949 = vmatpush1.msra.mxu0 0.0
    %4950 = vmatprep.subr.mxu0 0.0
    %4951 = vmatpush1.msra.mxu0 0.0
    %4952 = vmatprep.subr.mxu0 0.0
    %4953 = vmatpush1.msra.mxu0 0.0
    %4954 = vmatprep.subr.mxu0 0.0
    %4955 = vmatpush1.msra.mxu0 0.0
    %4956 = vmatprep.subr.mxu0 0.0
    %4957 = vmatpush1.msra.mxu0 0.0
    %4958 = vmatprep.subr.mxu0 0.0
    %4959 = vmatpush1.msra.mxu0 0.0
    %4960 = vmatprep.subr.mxu0 0.0
    %4961 = vmatpush1.msra.mxu0 0.0
    %4962 = vmatprep.subr.mxu0 0.0
    %4963 = vmatpush1.msra.mxu0 0.0
    %4964 = vmatprep.subr.mxu0 0.0
    %4965 = vmatpush1.msra.mxu0 0.0
    %4966 = vmatprep.subr.mxu0 0.0
    %4967 = vmatpush1.msra.mxu0 0.0
    %4968 = vmatprep.subr.mxu0 0.0
    %4969 = vmatpush1.msra.mxu0 %v4863
    %4970 = vmatprep.subr.mxu0 0.0
    %4971 = vmatpush1.msra.mxu0 %v4857
    %4972 = vmatprep.subr.mxu0 0.0
    %4973 = vmatpush2.msra.mxu0 0.0
    %4974 = vmatprep.subr.mxu0 0.0
    %4975 = vmatpush2.msra.mxu0 0.0
    %4976 = vmatprep.subr.mxu0 0.0
    %4977 = vmatpush2.msra.mxu0 0.0
    %4978 = vmatprep.subr.mxu0 0.0
    %4979 = vmatpush2.msra.mxu0 0.0
    %4980 = vmatprep.subr.mxu0 0.0
    %4981 = vmatpush2.msra.mxu0 0.0
    %4982 = vmatprep.subr.mxu0 0.0
    %4983 = vmatpush2.msra.mxu0 0.0
    %4984 = vmatprep.subr.mxu0 0.0
    %4985 = vmatpush2.msra.mxu0 0.0
    %4986 = vmatprep.subr.mxu0 0.0
    %4987 = vmatpush2.msra.mxu0 0.0
    %4988 = vmatprep.subr.mxu0 0.0
    %4989 = vmatpush2.msra.mxu0 0.0
    %4990 = vmatprep.subr.mxu0 0.0
    %4991 = vmatpush2.msra.mxu0 0.0
    %4992 = vmatprep.subr.mxu0 0.0
    %4993 = vmatpush2.msra.mxu0 0.0
    %4994 = vmatprep.subr.mxu0 0.0
    %4995 = vmatpush2.msra.mxu0 0.0
    %4996 = vmatprep.subr.mxu0 0.0
    %4997 = vmatpush2.msra.mxu0 0.0
    %4998 = vmatprep.subr.mxu0 0.0
    %4999 = vmatpush2.msra.mxu0 0.0
    %5000 = vmatprep.subr.mxu0 0.0
    %5001 = vmatpush2.msra.mxu0 0.0
    %5002 = vmatprep.subr.mxu0 0.0
    %5003 = vmatpush2.msra.mxu0 0.0
    %5004 = vmatprep.mubr.f32.mxu0 0.0
    %5005 = vmatmul.mubr.f32.gmra.mxu0 %v4938
    %v5006 = vpop.f32.mrf.mxu0
    %v5007 = vadd.f32 0.0, %v5006
    %v5008 = vpop.f32.mrf.mxu0
    %5009 = vdwg.mxu0
    %5010 = vst [vmem:[#allocation3] sm:$0xff] 0.0
    %vm5011 = vcmask 549888
    %5012 = vst.msk [vmem:[#allocation3 + $0x8] sm:$0x3] %vm5011, 0.0
    %vm5013 = vcmask 155648
    %5014 = vst.msk [vmem:[#allocation3] sm:$0x1] %vm5013, %v2935
    %v5017 = vunpack.c.l.s4 1983009808
    %v5018 = vunpack.c.0.s8 %v5017
    %v5019 = vlaneseq
    %v5020 = vshrl.u32 %v5019, 7
    %v5021 = vsub.s32 %v5018, %v5020
    %v5022 = vrot.slane %v2935, %v5021
    %v5023 = vrot.slane %v5022, 7
    %v5024 = vrot.slane %v5023, 2
    %5025 = vrot.lane.b32.xlu0 %v5024, 20
    %v5026 = vpop.permute.xlu0 %5025
    %vm5028 = vcmask 319648
    %5029 = vst.msk [vmem:[#allocation3] sm:$0x1] %vm5028, %v5026
    %v5030 = vcombine.high %v5022, %v5022
    %5031 = vrot.lane.b32.xlu0 %v5030, 40
    %v5032 = vpop.permute.xlu0 %5031
    %vm5034 = vcmask 483648
    %5035 = vst.msk [vmem:[#allocation3] sm:$0x1] %vm5034, %v5032
    %v5036 = vrot.slane %v5030, 7
    %v5037 = vrot.slane %v5036, 2
    %5038 = vrot.lane.b32.xlu0 %v5037, 60
    %v5039 = vpop.permute.xlu0 %5038
    %vm5041 = vcmask 647648
    %5042 = vst.msk [vmem:[#allocation3] sm:$0x1] %vm5041, %v5039
    %v5043 = vcombine.high %v2935, %v2935
    %v5045 = vunpack.c.l.s4 1983009808
    %v5046 = vunpack.c.0.s8 %v5045
    %v5047 = vlaneseq
    %v5048 = vshrl.u32 %v5047, 7
    %v5049 = vsub.s32 %v5046, %v5048
    %v5050 = vrot.slane %v5043, %v5049
    %5051 = vrot.lane.b32.xlu0 %v5050, 80
    %v5052 = vpop.permute.xlu0 %5051
    %vm5054 = vcmask 811648
    %5055 = vst.msk [vmem:[#allocation3] sm:$0x1] %vm5054, %v5052
    %v5056 = vrot.slane %v5050, 7
    %v5057 = vrot.slane %v5056, 2
    %5058 = vrot.lane.b32.xlu0 %v5057, 100
    %v5059 = vpop.permute.xlu0 %5058
    %vm5061 = vcmask 975648
    %5062 = vst.msk [vmem:[#allocation3] sm:$0x1] %vm5061, %v5059
    %v5063 = vcombine.high %v5050, %v5050
    %5064 = vrot.lane.b32.xlu0 %v5063, 120
    %v5065 = vpop.permute.xlu0 %5064
    %v5066 = vrot.slane %v5065, 6
    %v5067 = vsel %vm514, %v5066, %v5065
    %vm5069 = vcmask 1041344
    %vm5070 = vcmask 92162
    %vm5071 = vmor %vm5070, %vm5069
    %5072 = vst.msk [vmem:[#allocation3] sm:$0x5] %vm5071, %v5067
    %v5073 = vrot.slane %v5063, 7
    %v5074 = vrot.slane %v5073, 2
    %5075 = vrot.lane.b32.xlu0 %v5074, 12
    %v5076 = vpop.permute.xlu0 %5075
    %vm5078 = vcmask 254048
    %5079 = vst.msk [vmem:[#allocation3 + $0x2] sm:$0x1] %vm5078, %v5076
    %v5082 = vunpack.c.l.s4 1983009808
    %v5083 = vunpack.c.0.s8 %v5082
    %v5084 = vlaneseq
    %v5085 = vshrl.u32 %v5084, 7
    %v5086 = vsub.s32 %v5083, %v5085
    %v5087 = vrot.slane %v2936, %v5086
    %5088 = vrot.lane.b32.xlu0 %v5087, 32
    %v5089 = vpop.permute.xlu0 %5088
    %vm5091 = vcmask 418048
    %5092 = vst.msk [vmem:[#allocation3 + $0x2] sm:$0x1] %vm5091, %v5089
    %v5093 = vrot.slane %v5087, 7
    %v5094 = vrot.slane %v5093, 2
    %5095 = vrot.lane.b32.xlu0 %v5094, 52
    %v5096 = vpop.permute.xlu0 %5095
    %vm5098 = vcmask 582048
    %5099 = vst.msk [vmem:[#allocation3 + $0x2] sm:$0x1] %vm5098, %v5096
    %v5100 = vcombine.high %v5087, %v5087
    %5101 = vrot.lane.b32.xlu0 %v5100, 72
    %v5102 = vpop.permute.xlu0 %5101
    %vm5104 = vcmask 746048
    %5105 = vst.msk [vmem:[#allocation3 + $0x2] sm:$0x1] %vm5104, %v5102
    %v5106 = vrot.slane %v5100, 7
    %v5107 = vrot.slane %v5106, 2
    %5108 = vrot.lane.b32.xlu0 %v5107, 92
    %v5109 = vpop.permute.xlu0 %5108
    %vm5111 = vcmask 910048
    %5112 = vst.msk [vmem:[#allocation3 + $0x2] sm:$0x1] %vm5111, %v5109
    %v5113 = vcombine.high %v2936, %v2936
    %v5115 = vunpack.c.l.s4 1983009808
    %v5116 = vunpack.c.0.s8 %v5115
    %v5117 = vlaneseq
    %v5118 = vshrl.u32 %v5117, 7
    %v5119 = vsub.s32 %v5116, %v5118
    %v5120 = vrot.slane %v5113, %v5119
    %5121 = vrot.lane.b32.xlu0 %v5120, 112
    %v5122 = vpop.permute.xlu0 %5121
    %v5123 = vrot.slane %v5122, 6
    %vm5124 = vcmask 916480
    %v5125 = vsel %vm5124, %v5123, %v5122
    %vm5127 = vcmask 1041280
    %vm5128 = vcmask 26626
    %vm5129 = vmor %vm5128, %vm5127
    %5130 = vst.msk [vmem:[#allocation3 + $0x2] sm:$0x5] %vm5129, %v5125
    %v5131 = vrot.slane %v5120, 7
    %v5132 = vrot.slane %v5131, 2
    %5133 = vrot.lane.b32.xlu0 %v5132, 4
    %v5134 = vpop.permute.xlu0 %5133
    %vm5136 = vcmask 188448
    %5137 = vst.msk [vmem:[#allocation3 + $0x4] sm:$0x1] %vm5136, %v5134
    %v5138 = vcombine.high %v5120, %v5120
    %5139 = vrot.lane.b32.xlu0 %v5138, 24
    %v5140 = vpop.permute.xlu0 %5139
    %vm5142 = vcmask 352448
    %5143 = vst.msk [vmem:[#allocation3 + $0x4] sm:$0x1] %vm5142, %v5140
    %v5144 = vrot.slane %v5138, 7
    %v5145 = vrot.slane %v5144, 2
    %5146 = vrot.lane.b32.xlu0 %v5145, 44
    %v5147 = vpop.permute.xlu0 %5146
    %vm5149 = vcmask 516448
    %5150 = vst.msk [vmem:[#allocation3 + $0x4] sm:$0x1] %vm5149, %v5147
    %v5153 = vunpack.c.l.s4 1983009808
    %v5154 = vunpack.c.0.s8 %v5153
    %v5155 = vlaneseq
    %v5156 = vshrl.u32 %v5155, 7
    %v5157 = vsub.s32 %v5154, %v5156
    %v5158 = vrot.slane %v2937, %v5157
    %5159 = vrot.lane.b32.xlu0 %v5158, 64
    %v5160 = vpop.permute.xlu0 %5159
    %vm5162 = vcmask 680448
    %5163 = vst.msk [vmem:[#allocation3 + $0x4] sm:$0x1] %vm5162, %v5160
    %v5164 = vrot.slane %v5158, 7
    %v5165 = vrot.slane %v5164, 2
    %5166 = vrot.lane.b32.xlu0 %v5165, 84
    %v5167 = vpop.permute.xlu0 %5166
    %vm5169 = vcmask 844448
    %5170 = vst.msk [vmem:[#allocation3 + $0x4] sm:$0x1] %vm5169, %v5167
    %v5171 = vcombine.high %v5158, %v5158
    %5172 = vrot.lane.b32.xlu0 %v5171, 104
    %v5173 = vpop.permute.xlu0 %5172
    %vm5175 = vcmask 1008448
    %5176 = vst.msk [vmem:[#allocation3 + $0x4] sm:$0x1] %vm5175, %v5173
    %v5177 = vrot.slane %v5171, 7
    %v5178 = vrot.slane %v5177, 2
    %5179 = vrot.lane.b32.xlu0 %v5178, 124
    %v5180 = vpop.permute.xlu0 %5179
    %v5181 = vrot.slane %v5180, 6
    %v5182 = vsel %vm448, %v5181, %v5180
    %vm5184 = vcmask 1041376
    %vm5185 = vcmask 124930
    %vm5186 = vmor %vm5185, %vm5184
    %5187 = vst.msk [vmem:[#allocation3 + $0x4] sm:$0x5] %vm5186, %v5182
    %v5190 = vunpack.c.l.s4 1983009808
    %v5191 = vunpack.c.0.s8 %v5190
    %v5192 = vlaneseq
    %v5193 = vshrl.u32 %v5192, 7
    %v5194 = vsub.s32 %v5191, %v5193
    %v5195 = vrot.slane %v4185, %v5194
    %5196 = vrot.lane.b32.xlu0 %v5195, 16
    %v5197 = vpop.permute.xlu0 %5196
    %vm5199 = vcmask 204928
    %5200 = vst.msk [vmem:[#allocation3 + $0x6] sm:$0x1] %vm5199, %v5197
    %v5201 = vrot.slane %v5195, 7
    %v5202 = vrot.slane %v5201, 2
    %5203 = vrot.lane.b32.xlu0 %v5202, 26
    %v5204 = vpop.permute.xlu0 %5203
    %vm5206 = vcmask 286928
    %5207 = vst.msk [vmem:[#allocation3 + $0x6] sm:$0x1] %vm5206, %v5204
    %v5208 = vcombine.high %v5195, %v5195
    %5209 = vrot.lane.b32.xlu0 %v5208, 36
    %v5210 = vpop.permute.xlu0 %5209
    %vm5212 = vcmask 368928
    %5213 = vst.msk [vmem:[#allocation3 + $0x6] sm:$0x1] %vm5212, %v5210
    %v5214 = vrot.slane %v5208, 7
    %v5215 = vrot.slane %v5214, 2
    %5216 = vrot.lane.b32.xlu0 %v5215, 46
    %v5217 = vpop.permute.xlu0 %5216
    %vm5219 = vcmask 450928
    %5220 = vst.msk [vmem:[#allocation3 + $0x6] sm:$0x1] %vm5219, %v5217
    %v5221 = vcombine.high %v4185, %v4185
    %v5223 = vunpack.c.l.s4 1983009808
    %v5224 = vunpack.c.0.s8 %v5223
    %v5225 = vlaneseq
    %v5226 = vshrl.u32 %v5225, 7
    %v5227 = vsub.s32 %v5224, %v5226
    %v5228 = vrot.slane %v5221, %v5227
    %5229 = vrot.lane.b32.xlu0 %v5228, 56
    %v5230 = vpop.permute.xlu0 %5229
    %vm5232 = vcmask 532928
    %5233 = vst.msk [vmem:[#allocation3 + $0x6] sm:$0x1] %vm5232, %v5230
    %v5234 = vrot.slane %v5228, 7
    %v5235 = vrot.slane %v5234, 2
    %5236 = vrot.lane.b32.xlu0 %v5235, 66
    %v5237 = vpop.permute.xlu0 %5236
    %vm5239 = vcmask 614928
    %5240 = vst.msk [vmem:[#allocation3 + $0x6] sm:$0x1] %vm5239, %v5237
    %v5241 = vcombine.high %v5228, %v5228
    %5242 = vrot.lane.b32.xlu0 %v5241, 76
    %v5243 = vpop.permute.xlu0 %5242
    %vm5245 = vcmask 696928
    %5246 = vst.msk [vmem:[#allocation3 + $0x6] sm:$0x1] %vm5245, %v5243
    %v5247 = vrot.slane %v5241, 7
    %v5248 = vrot.slane %v5247, 2
    %5249 = vrot.lane.b32.xlu0 %v5248, 86
    %v5250 = vpop.permute.xlu0 %5249
    %vm5252 = vcmask 778928
    %5253 = vst.msk [vmem:[#allocation3 + $0x6] sm:$0x1] %vm5252, %v5250
    %v5256 = vunpack.c.l.s4 1983009808
    %v5257 = vunpack.c.0.s8 %v5256
    %v5258 = vlaneseq
    %v5259 = vshrl.u32 %v5258, 7
    %v5260 = vsub.s32 %v5257, %v5259
    %v5261 = vrot.slane %v4190, %v5260
    %5262 = vrot.lane.b32.xlu0 %v5261, 96
    %v5263 = vpop.permute.xlu0 %5262
    %vm5265 = vcmask 860928
    %5266 = vst.msk [vmem:[#allocation3 + $0x6] sm:$0x1] %vm5265, %v5263
    %v5267 = vrot.slane %v5261, 7
    %v5268 = vrot.slane %v5267, 2
    %5269 = vrot.lane.b32.xlu0 %v5268, 106
    %v5270 = vpop.permute.xlu0 %5269
    %vm5272 = vcmask 942928
    %5273 = vst.msk [vmem:[#allocation3 + $0x6] sm:$0x1] %vm5272, %v5270
    %v5274 = vcombine.high %v5261, %v5261
    %5275 = vrot.lane.b32.xlu0 %v5274, 116
    %v5276 = vpop.permute.xlu0 %5275
    %vm5278 = vcmask 1024928
    %5279 = vst.msk [vmem:[#allocation3 + $0x6] sm:$0x1] %vm5278, %v5276
    %v5280 = vrot.slane %v5274, 7
    %v5281 = vrot.slane %v5280, 2
    %5282 = vrot.lane.b32.xlu0 %v5281, 126
    %v5283 = vpop.permute.xlu0 %5282
    %v5284 = vrot.slane %v5283, 6
    %v5285 = vsel %vm409, %v5284, %v5283
    %vm5287 = vcmask 1041392
    %vm5288 = vcmask 59394
    %vm5289 = vmor %vm5288, %vm5287
    %5290 = vst.msk [vmem:[#allocation3 + $0x6] sm:$0x5] %vm5289, %v5285
    %v5293 = vunpack.c.l.s4 1983009808
    %v5294 = vunpack.c.0.s8 %v5293
    %v5295 = vlaneseq
    %v5296 = vshrl.u32 %v5295, 7
    %v5297 = vsub.s32 %v5294, %v5296
    %v5298 = vrot.slane %v4932, %v5297
    %5299 = vrot.lane.b32.xlu0 %v5298, 8
    %v5300 = vpop.permute.xlu0 %5299
    %vm5302 = vcmask 98368
    %5303 = vst.msk [vmem:[#allocation3 + $0x8] sm:$0x1] %vm5302, %v5300
    %v5304 = vrot.slane %v5298, 7
    %v5305 = vrot.slane %v5304, 2
    %5306 = vrot.lane.b32.xlu0 %v5305, 13
    %v5307 = vpop.permute.xlu0 %5306
    %vm5309 = vcmask 139368
    %5310 = vst.msk [vmem:[#allocation3 + $0x8] sm:$0x1] %vm5309, %v5307
    %v5311 = vcombine.high %v5298, %v5298
    %5312 = vrot.lane.b32.xlu0 %v5311, 18
    %v5313 = vpop.permute.xlu0 %5312
    %vm5315 = vcmask 180368
    %5316 = vst.msk [vmem:[#allocation3 + $0x8] sm:$0x1] %vm5315, %v5313
    %v5317 = vrot.slane %v5311, 7
    %v5318 = vrot.slane %v5317, 2
    %5319 = vrot.lane.b32.xlu0 %v5318, 23
    %v5320 = vpop.permute.xlu0 %5319
    %vm5322 = vcmask 221368
    %5323 = vst.msk [vmem:[#allocation3 + $0x8] sm:$0x1] %vm5322, %v5320
    %v5324 = vcombine.high %v4932, %v4932
    %v5326 = vunpack.c.l.s4 1983009808
    %v5327 = vunpack.c.0.s8 %v5326
    %v5328 = vlaneseq
    %v5329 = vshrl.u32 %v5328, 7
    %v5330 = vsub.s32 %v5327, %v5329
    %v5331 = vrot.slane %v5324, %v5330
    %5332 = vrot.lane.b32.xlu0 %v5331, 28
    %v5333 = vpop.permute.xlu0 %5332
    %vm5335 = vcmask 262368
    %5336 = vst.msk [vmem:[#allocation3 + $0x8] sm:$0x1] %vm5335, %v5333
    %v5337 = vrot.slane %v5331, 7
    %v5338 = vrot.slane %v5337, 2
    %5339 = vrot.lane.b32.xlu0 %v5338, 33
    %v5340 = vpop.permute.xlu0 %5339
    %vm5342 = vcmask 303368
    %5343 = vst.msk [vmem:[#allocation3 + $0x8] sm:$0x1] %vm5342, %v5340
    %v5344 = vcombine.high %v5331, %v5331
    %5345 = vrot.lane.b32.xlu0 %v5344, 38
    %v5346 = vpop.permute.xlu0 %5345
    %vm5348 = vcmask 344368
    %5349 = vst.msk [vmem:[#allocation3 + $0x8] sm:$0x1] %vm5348, %v5346
    %v5350 = vrot.slane %v5344, 7
    %v5351 = vrot.slane %v5350, 2
    %5352 = vrot.lane.b32.xlu0 %v5351, 43
    %v5353 = vpop.permute.xlu0 %5352
    %vm5355 = vcmask 385368
    %5356 = vst.msk [vmem:[#allocation3 + $0x8] sm:$0x1] %vm5355, %v5353
    %v5357 = vld [vmem:[#allocation5] sm:$0x1]
    %v5360 = vunpack.c.l.s4 1983009808
    %v5361 = vunpack.c.0.s8 %v5360
    %v5362 = vlaneseq
    %v5363 = vshrl.u32 %v5362, 7
    %v5364 = vsub.s32 %v5361, %v5363
    %v5365 = vrot.slane %v5357, %v5364
    %5366 = vrot.lane.b32.xlu0 %v5365, 48
    %v5367 = vpop.permute.xlu0 %5366
    %vm5369 = vcmask 549248
    %5370 = vst.msk [vmem:[#allocation3 + $0x8] sm:$0x1] %vm5369, %v5367
    %5371 = vst.msk [vmem:[#allocation3 + $0x1] sm:$0x1] %vm5013, %v3113
    %v5374 = vunpack.c.l.s4 1983009808
    %v5375 = vunpack.c.0.s8 %v5374
    %v5376 = vlaneseq
    %v5377 = vshrl.u32 %v5376, 7
    %v5378 = vsub.s32 %v5375, %v5377
    %v5379 = vrot.slane %v3113, %v5378
    %v5380 = vrot.slane %v5379, 7
    %v5381 = vrot.slane %v5380, 2
    %5382 = vrot.lane.b32.xlu0 %v5381, 20
    %v5383 = vpop.permute.xlu0 %5382
    %5385 = vst.msk [vmem:[#allocation3 + $0x1] sm:$0x1] %vm5028, %v5383
    %v5386 = vcombine.high %v5379, %v5379
    %5387 = vrot.lane.b32.xlu0 %v5386, 40
    %v5388 = vpop.permute.xlu0 %5387
    %5390 = vst.msk [vmem:[#allocation3 + $0x1] sm:$0x1] %vm5034, %v5388
    %v5391 = vrot.slane %v5386, 7
    %v5392 = vrot.slane %v5391, 2
    %5393 = vrot.lane.b32.xlu0 %v5392, 60
    %v5394 = vpop.permute.xlu0 %5393
    %5396 = vst.msk [vmem:[#allocation3 + $0x1] sm:$0x1] %vm5041, %v5394
    %v5397 = vcombine.high %v3113, %v3113
    %v5399 = vunpack.c.l.s4 1983009808
    %v5400 = vunpack.c.0.s8 %v5399
    %v5401 = vlaneseq
    %v5402 = vshrl.u32 %v5401, 7
    %v5403 = vsub.s32 %v5400, %v5402
    %v5404 = vrot.slane %v5397, %v5403
    %5405 = vrot.lane.b32.xlu0 %v5404, 80
    %v5406 = vpop.permute.xlu0 %5405
    %5408 = vst.msk [vmem:[#allocation3 + $0x1] sm:$0x1] %vm5054, %v5406
    %v5409 = vrot.slane %v5404, 7
    %v5410 = vrot.slane %v5409, 2
    %5411 = vrot.lane.b32.xlu0 %v5410, 100
    %v5412 = vpop.permute.xlu0 %5411
    %5414 = vst.msk [vmem:[#allocation3 + $0x1] sm:$0x1] %vm5061, %v5412
    %v5415 = vcombine.high %v5404, %v5404
    %5416 = vrot.lane.b32.xlu0 %v5415, 120
    %v5417 = vpop.permute.xlu0 %5416
    %v5418 = vrot.slane %v5417, 6
    %v5419 = vsel %vm514, %v5418, %v5417
    %5421 = vst.msk [vmem:[#allocation3 + $0x1] sm:$0x5] %vm5071, %v5419
    %v5422 = vrot.slane %v5415, 7
    %v5423 = vrot.slane %v5422, 2
    %5424 = vrot.lane.b32.xlu0 %v5423, 12
    %v5425 = vpop.permute.xlu0 %5424
    %5427 = vst.msk [vmem:[#allocation3 + $0x3] sm:$0x1] %vm5078, %v5425
    %v5430 = vunpack.c.l.s4 1983009808
    %v5431 = vunpack.c.0.s8 %v5430
    %v5432 = vlaneseq
    %v5433 = vshrl.u32 %v5432, 7
    %v5434 = vsub.s32 %v5431, %v5433
    %v5435 = vrot.slane %v3114, %v5434
    %5436 = vrot.lane.b32.xlu0 %v5435, 32
    %v5437 = vpop.permute.xlu0 %5436
    %5439 = vst.msk [vmem:[#allocation3 + $0x3] sm:$0x1] %vm5091, %v5437
    %v5440 = vrot.slane %v5435, 7
    %v5441 = vrot.slane %v5440, 2
    %5442 = vrot.lane.b32.xlu0 %v5441, 52
    %v5443 = vpop.permute.xlu0 %5442
    %5445 = vst.msk [vmem:[#allocation3 + $0x3] sm:$0x1] %vm5098, %v5443
    %v5446 = vcombine.high %v5435, %v5435
    %5447 = vrot.lane.b32.xlu0 %v5446, 72
    %v5448 = vpop.permute.xlu0 %5447
    %5450 = vst.msk [vmem:[#allocation3 + $0x3] sm:$0x1] %vm5104, %v5448
    %v5451 = vrot.slane %v5446, 7
    %v5452 = vrot.slane %v5451, 2
    %5453 = vrot.lane.b32.xlu0 %v5452, 92
    %v5454 = vpop.permute.xlu0 %5453
    %5456 = vst.msk [vmem:[#allocation3 + $0x3] sm:$0x1] %vm5111, %v5454
    %v5457 = vcombine.high %v3114, %v3114
    %v5459 = vunpack.c.l.s4 1983009808
    %v5460 = vunpack.c.0.s8 %v5459
    %v5461 = vlaneseq
    %v5462 = vshrl.u32 %v5461, 7
    %v5463 = vsub.s32 %v5460, %v5462
    %v5464 = vrot.slane %v5457, %v5463
    %5465 = vrot.lane.b32.xlu0 %v5464, 112
    %v5466 = vpop.permute.xlu0 %5465
    %v5467 = vrot.slane %v5466, 6
    %v5468 = vsel %vm5124, %v5467, %v5466
    %5470 = vst.msk [vmem:[#allocation3 + $0x3] sm:$0x5] %vm5129, %v5468
    %v5471 = vrot.slane %v5464, 7
    %v5472 = vrot.slane %v5471, 2
    %5473 = vrot.lane.b32.xlu0 %v5472, 4
    %v5474 = vpop.permute.xlu0 %5473
    %5476 = vst.msk [vmem:[#allocation3 + $0x5] sm:$0x1] %vm5136, %v5474
    %v5477 = vcombine.high %v5464, %v5464
    %5478 = vrot.lane.b32.xlu0 %v5477, 24
    %v5479 = vpop.permute.xlu0 %5478
    %5481 = vst.msk [vmem:[#allocation3 + $0x5] sm:$0x1] %vm5142, %v5479
    %v5482 = vrot.slane %v5477, 7
    %v5483 = vrot.slane %v5482, 2
    %5484 = vrot.lane.b32.xlu0 %v5483, 44
    %v5485 = vpop.permute.xlu0 %5484
    %5487 = vst.msk [vmem:[#allocation3 + $0x5] sm:$0x1] %vm5149, %v5485
    %v5490 = vunpack.c.l.s4 1983009808
    %v5491 = vunpack.c.0.s8 %v5490
    %v5492 = vlaneseq
    %v5493 = vshrl.u32 %v5492, 7
    %v5494 = vsub.s32 %v5491, %v5493
    %v5495 = vrot.slane %v3115, %v5494
    %5496 = vrot.lane.b32.xlu0 %v5495, 64
    %v5497 = vpop.permute.xlu0 %5496
    %5499 = vst.msk [vmem:[#allocation3 + $0x5] sm:$0x1] %vm5162, %v5497
    %v5500 = vrot.slane %v5495, 7
    %v5501 = vrot.slane %v5500, 2
    %5502 = vrot.lane.b32.xlu0 %v5501, 84
    %v5503 = vpop.permute.xlu0 %5502
    %5505 = vst.msk [vmem:[#allocation3 + $0x5] sm:$0x1] %vm5169, %v5503
    %v5506 = vcombine.high %v5495, %v5495
    %5507 = vrot.lane.b32.xlu0 %v5506, 104
    %v5508 = vpop.permute.xlu0 %5507
    %5510 = vst.msk [vmem:[#allocation3 + $0x5] sm:$0x1] %vm5175, %v5508
    %v5511 = vrot.slane %v5506, 7
    %v5512 = vrot.slane %v5511, 2
    %5513 = vrot.lane.b32.xlu0 %v5512, 124
    %v5514 = vpop.permute.xlu0 %5513
    %v5515 = vrot.slane %v5514, 6
    %v5516 = vsel %vm448, %v5515, %v5514
    %5518 = vst.msk [vmem:[#allocation3 + $0x5] sm:$0x5] %vm5186, %v5516
    %v5521 = vunpack.c.l.s4 1983009808
    %v5522 = vunpack.c.0.s8 %v5521
    %v5523 = vlaneseq
    %v5524 = vshrl.u32 %v5523, 7
    %v5525 = vsub.s32 %v5522, %v5524
    %v5526 = vrot.slane %v4270, %v5525
    %5527 = vrot.lane.b32.xlu0 %v5526, 16
    %v5528 = vpop.permute.xlu0 %5527
    %5530 = vst.msk [vmem:[#allocation3 + $0x7] sm:$0x1] %vm5199, %v5528
    %v5531 = vrot.slane %v5526, 7
    %v5532 = vrot.slane %v5531, 2
    %5533 = vrot.lane.b32.xlu0 %v5532, 26
    %v5534 = vpop.permute.xlu0 %5533
    %5536 = vst.msk [vmem:[#allocation3 + $0x7] sm:$0x1] %vm5206, %v5534
    %v5537 = vcombine.high %v5526, %v5526
    %5538 = vrot.lane.b32.xlu0 %v5537, 36
    %v5539 = vpop.permute.xlu0 %5538
    %5541 = vst.msk [vmem:[#allocation3 + $0x7] sm:$0x1] %vm5212, %v5539
    %v5542 = vrot.slane %v5537, 7
    %v5543 = vrot.slane %v5542, 2
    %5544 = vrot.lane.b32.xlu0 %v5543, 46
    %v5545 = vpop.permute.xlu0 %5544
    %5547 = vst.msk [vmem:[#allocation3 + $0x7] sm:$0x1] %vm5219, %v5545
    %v5548 = vcombine.high %v4270, %v4270
    %v5550 = vunpack.c.l.s4 1983009808
    %v5551 = vunpack.c.0.s8 %v5550
    %v5552 = vlaneseq
    %v5553 = vshrl.u32 %v5552, 7
    %v5554 = vsub.s32 %v5551, %v5553
    %v5555 = vrot.slane %v5548, %v5554
    %5556 = vrot.lane.b32.xlu0 %v5555, 56
    %v5557 = vpop.permute.xlu0 %5556
    %5559 = vst.msk [vmem:[#allocation3 + $0x7] sm:$0x1] %vm5232, %v5557
    %v5560 = vrot.slane %v5555, 7
    %v5561 = vrot.slane %v5560, 2
    %5562 = vrot.lane.b32.xlu0 %v5561, 66
    %v5563 = vpop.permute.xlu0 %5562
    %5565 = vst.msk [vmem:[#allocation3 + $0x7] sm:$0x1] %vm5239, %v5563
    %v5566 = vcombine.high %v5555, %v5555
    %5567 = vrot.lane.b32.xlu0 %v5566, 76
    %v5568 = vpop.permute.xlu0 %5567
    %5570 = vst.msk [vmem:[#allocation3 + $0x7] sm:$0x1] %vm5245, %v5568
    %v5571 = vrot.slane %v5566, 7
    %v5572 = vrot.slane %v5571, 2
    %5573 = vrot.lane.b32.xlu0 %v5572, 86
    %v5574 = vpop.permute.xlu0 %5573
    %5576 = vst.msk [vmem:[#allocation3 + $0x7] sm:$0x1] %vm5252, %v5574
    %v5579 = vunpack.c.l.s4 1983009808
    %v5580 = vunpack.c.0.s8 %v5579
    %v5581 = vlaneseq
    %v5582 = vshrl.u32 %v5581, 7
    %v5583 = vsub.s32 %v5580, %v5582
    %v5584 = vrot.slane %v4275, %v5583
    %5585 = vrot.lane.b32.xlu0 %v5584, 96
    %v5586 = vpop.permute.xlu0 %5585
    %5588 = vst.msk [vmem:[#allocation3 + $0x7] sm:$0x1] %vm5265, %v5586
    %v5589 = vrot.slane %v5584, 7
    %v5590 = vrot.slane %v5589, 2
    %5591 = vrot.lane.b32.xlu0 %v5590, 106
    %v5592 = vpop.permute.xlu0 %5591
    %5594 = vst.msk [vmem:[#allocation3 + $0x7] sm:$0x1] %vm5272, %v5592
    %v5595 = vcombine.high %v5584, %v5584
    %5596 = vrot.lane.b32.xlu0 %v5595, 116
    %v5597 = vpop.permute.xlu0 %5596
    %5599 = vst.msk [vmem:[#allocation3 + $0x7] sm:$0x1] %vm5278, %v5597
    %v5600 = vrot.slane %v5595, 7
    %v5601 = vrot.slane %v5600, 2
    %5602 = vrot.lane.b32.xlu0 %v5601, 126
    %v5603 = vpop.permute.xlu0 %5602
    %v5604 = vrot.slane %v5603, 6
    %v5605 = vsel %vm409, %v5604, %v5603
    %5607 = vst.msk [vmem:[#allocation3 + $0x7] sm:$0x5] %vm5289, %v5605
    %v5610 = vunpack.c.l.s4 1983009808
    %v5611 = vunpack.c.0.s8 %v5610
    %v5612 = vlaneseq
    %v5613 = vshrl.u32 %v5612, 7
    %v5614 = vsub.s32 %v5611, %v5613
    %v5615 = vrot.slane %v5007, %v5614
    %5616 = vrot.lane.b32.xlu0 %v5615, 8
    %v5617 = vpop.permute.xlu0 %5616
    %5619 = vst.msk [vmem:[#allocation3 + $0x9] sm:$0x1] %vm5302, %v5617
    %v5620 = vrot.slane %v5615, 7
    %v5621 = vrot.slane %v5620, 2
    %5622 = vrot.lane.b32.xlu0 %v5621, 13
    %v5623 = vpop.permute.xlu0 %5622
    %5625 = vst.msk [vmem:[#allocation3 + $0x9] sm:$0x1] %vm5309, %v5623
    %v5626 = vcombine.high %v5615, %v5615
    %5627 = vrot.lane.b32.xlu0 %v5626, 18
    %v5628 = vpop.permute.xlu0 %5627
    %5630 = vst.msk [vmem:[#allocation3 + $0x9] sm:$0x1] %vm5315, %v5628
    %v5631 = vrot.slane %v5626, 7
    %v5632 = vrot.slane %v5631, 2
    %5633 = vrot.lane.b32.xlu0 %v5632, 23
    %v5634 = vpop.permute.xlu0 %5633
    %5636 = vst.msk [vmem:[#allocation3 + $0x9] sm:$0x1] %vm5322, %v5634
    %v5637 = vcombine.high %v5007, %v5007
    %v5639 = vunpack.c.l.s4 1983009808
    %v5640 = vunpack.c.0.s8 %v5639
    %v5641 = vlaneseq
    %v5642 = vshrl.u32 %v5641, 7
    %v5643 = vsub.s32 %v5640, %v5642
    %v5644 = vrot.slane %v5637, %v5643
    %5645 = vrot.lane.b32.xlu0 %v5644, 28
    %v5646 = vpop.permute.xlu0 %5645
    %5648 = vst.msk [vmem:[#allocation3 + $0x9] sm:$0x1] %vm5335, %v5646
    %v5649 = vrot.slane %v5644, 7
    %v5650 = vrot.slane %v5649, 2
    %5651 = vrot.lane.b32.xlu0 %v5650, 33
    %v5652 = vpop.permute.xlu0 %5651
    %5654 = vst.msk [vmem:[#allocation3 + $0x9] sm:$0x1] %vm5342, %v5652
    %v5655 = vcombine.high %v5644, %v5644
    %5656 = vrot.lane.b32.xlu0 %v5655, 38
    %v5657 = vpop.permute.xlu0 %5656
    %5659 = vst.msk [vmem:[#allocation3 + $0x9] sm:$0x1] %vm5348, %v5657
    %v5660 = vrot.slane %v5655, 7
    %v5661 = vrot.slane %v5660, 2
    %5662 = vrot.lane.b32.xlu0 %v5661, 43
    %v5663 = vpop.permute.xlu0 %5662
    %5665 = vst.msk [vmem:[#allocation3 + $0x9] sm:$0x1] %vm5355, %v5663
    %v5666 = vld [vmem:[#allocation5 + $0x1] sm:$0x1]
    %v5669 = vunpack.c.l.s4 1983009808
    %v5670 = vunpack.c.0.s8 %v5669
    %v5671 = vlaneseq
    %v5672 = vshrl.u32 %v5671, 7
    %v5673 = vsub.s32 %v5670, %v5672
    %v5674 = vrot.slane %v5666, %v5673
    %5675 = vrot.lane.b32.xlu0 %v5674, 48
    %v5676 = vpop.permute.xlu0 %5675
    %5678 = vst.msk [vmem:[#allocation3 + $0x9] sm:$0x1] %vm5369, %v5676
    %v5679 = vld [vmem:[#allocation3] sm:$0xff]
    %v5680 = vld [vmem:[#allocation3 + $0x8] sm:$0x3]
    %v5681 = vmax.f32 %v5679, 0.0
    %v5682 = vmax.f32 %v5680, 0.0
    %v5685 = vcombine.high %v5681, %v5681
    %v5687 = vunpack.c.l.s4 1983009808
    %v5688 = vunpack.c.0.s8 %v5687
    %v5689 = vlaneseq
    %v5690 = vshrl.u32 %v5689, 7
    %v5691 = vsub.s32 %v5688, %v5690
    %v5692 = vrot.slane %v5681, %v5691
    %v5694 = vunpack.c.l.s4 1983009808
    %v5695 = vunpack.c.0.s8 %v5694
    %v5696 = vlaneseq
    %v5697 = vshrl.u32 %v5696, 7
    %v5698 = vsub.s32 %v5695, %v5697
    %v5699 = vrot.slane %v5685, %v5698
    %v5700 = vcombine.high %v5692, %v5692
    %v5701 = vcombine.high %v5699, %v5699
    %v5703 = vunpack.c.l.s4 1983009808
    %v5704 = vunpack.c.0.s8 %v5703
    %v5705 = vlaneseq
    %v5706 = vshrl.u32 %v5705, 7
    %v5707 = vsub.s32 %v5704, %v5706
    %v5708 = vrot.slane %v5682, %v5707
    %v5714 = vsel %vm3716, %v5692, 0.0
    %v5715 = vrot.slane %v5714, 4
    %v5716 = vadd.f32 %v5714, %v5715
    %v5717 = vrot.slane %v5716, 2
    %v5718 = vadd.f32 %v5716, %v5717
    %v5719 = vrot.slane %v5718, 1
    %v5720 = vadd.f32 %v5718, %v5719
    %v5721 = vsel %vm3716, %v5700, 0.0
    %v5722 = vrot.slane %v5721, 4
    %v5723 = vadd.f32 %v5721, %v5722
    %v5724 = vrot.slane %v5723, 2
    %v5725 = vadd.f32 %v5723, %v5724
    %v5726 = vrot.slane %v5725, 1
    %v5727 = vadd.f32 %v5725, %v5726
    %v5728 = vsel %vm3716, %v5699, 0.0
    %v5729 = vrot.slane %v5728, 4
    %v5730 = vadd.f32 %v5728, %v5729
    %v5731 = vrot.slane %v5730, 2
    %v5732 = vadd.f32 %v5730, %v5731
    %v5733 = vrot.slane %v5732, 1
    %v5734 = vadd.f32 %v5732, %v5733
    %v5735 = vsel %vm3716, %v5701, 0.0
    %v5736 = vrot.slane %v5735, 4
    %v5737 = vadd.f32 %v5735, %v5736
    %v5738 = vrot.slane %v5737, 2
    %v5739 = vadd.f32 %v5737, %v5738
    %v5740 = vrot.slane %v5739, 1
    %v5741 = vadd.f32 %v5739, %v5740
    %v5742 = vsel %vm5011, %v5708, 0.0
    %v5743 = vrot.slane %v5742, 4
    %v5744 = vadd.f32 %v5742, %v5743
    %v5745 = vrot.slane %v5744, 2
    %v5746 = vadd.f32 %v5744, %v5745
    %v5747 = vrot.slane %v5746, 1
    %v5748 = vadd.f32 %v5746, %v5747
    %v5749 = vmul.f32 %v5720, 0.5
    %v5750 = vmul.f32 %v5727, 0.5
    %v5751 = vmul.f32 %v5734, 0.5
    %v5752 = vmul.f32 %v5741, 0.5
    %v5753 = vmul.f32 %v5748, 0.5
    %v5754 = vmul.f32 %v5681, %v5681
    %v5755 = vmul.f32 %v5682, %v5682
    %v5758 = vcombine.high %v5754, %v5754
    %v5760 = vunpack.c.l.s4 1983009808
    %v5761 = vunpack.c.0.s8 %v5760
    %v5762 = vlaneseq
    %v5763 = vshrl.u32 %v5762, 7
    %v5764 = vsub.s32 %v5761, %v5763
    %v5765 = vrot.slane %v5754, %v5764
    %v5767 = vunpack.c.l.s4 1983009808
    %v5768 = vunpack.c.0.s8 %v5767
    %v5769 = vlaneseq
    %v5770 = vshrl.u32 %v5769, 7
    %v5771 = vsub.s32 %v5768, %v5770
    %v5772 = vrot.slane %v5758, %v5771
    %v5773 = vcombine.high %v5765, %v5765
    %v5774 = vcombine.high %v5772, %v5772
    %v5776 = vunpack.c.l.s4 1983009808
    %v5777 = vunpack.c.0.s8 %v5776
    %v5778 = vlaneseq
    %v5779 = vshrl.u32 %v5778, 7
    %v5780 = vsub.s32 %v5777, %v5779
    %v5781 = vrot.slane %v5755, %v5780
    %v5787 = vsel %vm3716, %v5765, 0.0
    %v5788 = vrot.slane %v5787, 4
    %v5789 = vadd.f32 %v5787, %v5788
    %v5790 = vrot.slane %v5789, 2
    %v5791 = vadd.f32 %v5789, %v5790
    %v5792 = vrot.slane %v5791, 1
    %v5793 = vadd.f32 %v5791, %v5792
    %v5794 = vsel %vm3716, %v5773, 0.0
    %v5795 = vrot.slane %v5794, 4
    %v5796 = vadd.f32 %v5794, %v5795
    %v5797 = vrot.slane %v5796, 2
    %v5798 = vadd.f32 %v5796, %v5797
    %v5799 = vrot.slane %v5798, 1
    %v5800 = vadd.f32 %v5798, %v5799
    %v5801 = vsel %vm3716, %v5772, 0.0
    %v5802 = vrot.slane %v5801, 4
    %v5803 = vadd.f32 %v5801, %v5802
    %v5804 = vrot.slane %v5803, 2
    %v5805 = vadd.f32 %v5803, %v5804
    %v5806 = vrot.slane %v5805, 1
    %v5807 = vadd.f32 %v5805, %v5806
    %v5808 = vsel %vm3716, %v5774, 0.0
    %v5809 = vrot.slane %v5808, 4
    %v5810 = vadd.f32 %v5808, %v5809
    %v5811 = vrot.slane %v5810, 2
    %v5812 = vadd.f32 %v5810, %v5811
    %v5813 = vrot.slane %v5812, 1
    %v5814 = vadd.f32 %v5812, %v5813
    %v5815 = vsel %vm5011, %v5781, 0.0
    %v5816 = vrot.slane %v5815, 4
    %v5817 = vadd.f32 %v5815, %v5816
    %v5818 = vrot.slane %v5817, 2
    %v5819 = vadd.f32 %v5817, %v5818
    %v5820 = vrot.slane %v5819, 1
    %v5821 = vadd.f32 %v5819, %v5820
    %v5822 = vmul.f32 %v5793, 0.5
    %v5823 = vmul.f32 %v5800, 0.5
    %v5824 = vmul.f32 %v5807, 0.5
    %v5825 = vmul.f32 %v5814, 0.5
    %v5826 = vmul.f32 %v5821, 0.5
    %v5832 = vcombine.low %v5749, %v5750
    %v5833 = vcombine.low %v5751, %v5752
    %v5835 = vunpack.c.l.s4 1983009808
    %v5836 = vunpack.c.0.s8 %v5835
    %v5837 = vlaneseq
    %v5838 = vshrl.u32 %v5837, 7
    %v5839 = vsub.s32 %v5836, %v5838
    %v5840 = vrot.slane %v5832, %v5839
    %v5842 = vunpack.c.l.s4 1983009808
    %v5843 = vunpack.c.0.s8 %v5842
    %v5844 = vlaneseq
    %v5845 = vshrl.u32 %v5844, 7
    %v5846 = vsub.s32 %v5843, %v5845
    %v5847 = vrot.slane %v5833, %v5846
    %v5848 = vcombine.low %v5840, %v5847
    %v5850 = vunpack.c.l.s4 1983009808
    %v5851 = vunpack.c.0.s8 %v5850
    %v5852 = vlaneseq
    %v5853 = vshrl.u32 %v5852, 7
    %v5854 = vsub.s32 %v5851, %v5853
    %v5855 = vrot.slane %v5753, %v5854
    %v5858 = vsub.f32 %v5681, %v5848
    %v5859 = vsub.f32 %v5682, %v5855
    %v5860 = vmul.f32 %v5749, %v5749
    %v5861 = vmul.f32 %v5750, %v5750
    %v5862 = vmul.f32 %v5751, %v5751
    %v5863 = vmul.f32 %v5752, %v5752
    %v5864 = vmul.f32 %v5753, %v5753
    %v5865 = vsub.f32 %v5822, %v5860
    %v5866 = vsub.f32 %v5823, %v5861
    %v5867 = vsub.f32 %v5824, %v5862
    %v5868 = vsub.f32 %v5825, %v5863
    %v5869 = vsub.f32 %v5826, %v5864
    %v5870 = vadd.f32 %v5865, 1e-05
    %v5871 = vadd.f32 %v5866, 1e-05
    %v5872 = vadd.f32 %v5867, 1e-05
    %v5873 = vadd.f32 %v5868, 1e-05
    %v5874 = vadd.f32 %v5869, 1e-05
    %v5875 = vrsqrt.pop %v5870
    %v5876 = vrsqrt.pop %v5871
    %v5877 = vrsqrt.pop %v5872
    %v5878 = vrsqrt.pop %v5873
    %v5879 = vrsqrt.pop %v5874
    %v5885 = vcombine.low %v5875, %v5876
    %v5886 = vcombine.low %v5877, %v5878
    %v5888 = vunpack.c.l.s4 1983009808
    %v5889 = vunpack.c.0.s8 %v5888
    %v5890 = vlaneseq
    %v5891 = vshrl.u32 %v5890, 7
    %v5892 = vsub.s32 %v5889, %v5891
    %v5893 = vrot.slane %v5885, %v5892
    %v5895 = vunpack.c.l.s4 1983009808
    %v5896 = vunpack.c.0.s8 %v5895
    %v5897 = vlaneseq
    %v5898 = vshrl.u32 %v5897, 7
    %v5899 = vsub.s32 %v5896, %v5898
    %v5900 = vrot.slane %v5886, %v5899
    %v5901 = vcombine.low %v5893, %v5900
    %v5903 = vunpack.c.l.s4 1983009808
    %v5904 = vunpack.c.0.s8 %v5903
    %v5905 = vlaneseq
    %v5906 = vshrl.u32 %v5905, 7
    %v5907 = vsub.s32 %v5904, %v5906
    %v5908 = vrot.slane %v5879, %v5907
    %v5911 = vmul.f32 %v5858, %v5901
    %v5912 = vmul.f32 %v5859, %v5908
    %v5913 = vld [vmem:[#allocation25] sm:$0xff]
    %v5914 = vld [vmem:[#allocation25 + $0x8] sm:$0xff]
    %v5915 = vld [vmem:[#allocation25 + $0x10] sm:$0xff]
    %v5916 = vld [vmem:[#allocation25 + $0x18] sm:$0xff]
    %v5917 = vld [vmem:[#allocation25 + $0x20] sm:$0xff]
    %v5918 = vld [vmem:[#allocation25 + $0x28] sm:$0xff]
    %v5919 = vld [vmem:[#allocation25 + $0x30] sm:$0xff]
    %v5920 = vld [vmem:[#allocation25 + $0x38] sm:$0xff]
    %v5921 = vld [vmem:[#allocation25 + $0x40] sm:$0xff]
    %v5922 = vld [vmem:[#allocation25 + $0x48] sm:$0xff]
    %v5923 = vld [vmem:[#allocation25 + $0x50] sm:$0xff]
    %v5924 = vld [vmem:[#allocation25 + $0x58] sm:$0xff]
    %v5925 = vld [vmem:[#allocation25 + $0x60] sm:$0xff]
    %v5926 = vld [vmem:[#allocation25 + $0x68] sm:$0xff]
    %v5927 = vld [vmem:[#allocation25 + $0x70] sm:$0xff]
    %v5928 = vld [vmem:[#allocation25 + $0x78] sm:$0xff]
    %v5929 = vld [vmem:[#allocation25 + $0x80] sm:$0xff]
    %v5930 = vld [vmem:[#allocation25 + $0x88] sm:$0xff]
    %v5931 = vld [vmem:[#allocation25 + $0x90] sm:$0xff]
    %v5932 = vld [vmem:[#allocation25 + $0x98] sm:$0xff]
    %v5933 = vld [vmem:[#allocation25 + $0xa0] sm:$0xff]
    %v5934 = vld [vmem:[#allocation25 + $0xa8] sm:$0xff]
    %v5935 = vld [vmem:[#allocation25 + $0xb0] sm:$0xff]
    %v5936 = vld [vmem:[#allocation25 + $0xb8] sm:$0xff]
    %v5937 = vld [vmem:[#allocation25 + $0xc0] sm:$0xff]
    %v5938 = vld [vmem:[#allocation25 + $0xc8] sm:$0xff]
    %v5939 = vld [vmem:[#allocation25 + $0xd0] sm:$0xff]
    %v5940 = vld [vmem:[#allocation25 + $0xd8] sm:$0xff]
    %v5941 = vld [vmem:[#allocation25 + $0xe0] sm:$0xff]
    %v5942 = vld [vmem:[#allocation25 + $0xe8] sm:$0xff]
    %v5943 = vld [vmem:[#allocation25 + $0xf0] sm:$0xff]
    %v5944 = vld [vmem:[#allocation25 + $0xf8] sm:$0xff]
    %v5945 = vld [vmem:[#allocation25 + $0x100] sm:$0xff]
    %v5946 = vld [vmem:[#allocation25 + $0x108] sm:$0xff]
    %v5947 = vld [vmem:[#allocation25 + $0x110] sm:$0xff]
    %v5948 = vld [vmem:[#allocation25 + $0x118] sm:$0xff]
    %v5949 = vld [vmem:[#allocation25 + $0x120] sm:$0xff]
    %v5950 = vld [vmem:[#allocation25 + $0x128] sm:$0xff]
    %v5951 = vld [vmem:[#allocation25 + $0x130] sm:$0xff]
    %v5952 = vld [vmem:[#allocation25 + $0x138] sm:$0xff]
    %v5953 = vld [vmem:[#allocation25 + $0x140] sm:$0xff]
    %v5954 = vld [vmem:[#allocation25 + $0x148] sm:$0xff]
    %v5955 = vld [vmem:[#allocation25 + $0x150] sm:$0xff]
    %v5956 = vld [vmem:[#allocation25 + $0x158] sm:$0xff]
    %v5957 = vld [vmem:[#allocation25 + $0x160] sm:$0xff]
    %v5958 = vld [vmem:[#allocation25 + $0x168] sm:$0xff]
    %v5959 = vld [vmem:[#allocation25 + $0x170] sm:$0xff]
    %v5960 = vld [vmem:[#allocation25 + $0x178] sm:$0xff]
    %v5961 = vld [vmem:[#allocation25 + $0x180] sm:$0xff]
    %v5962 = vld [vmem:[#allocation25 + $0x188] sm:$0xff]
    %v5963 = vld [vmem:[#allocation25 + $0x190] sm:$0xff]
    %v5964 = vld [vmem:[#allocation25 + $0x198] sm:$0xff]
    %v5965 = vld [vmem:[#allocation25 + $0x1a0] sm:$0xff]
    %v5966 = vld [vmem:[#allocation25 + $0x1a8] sm:$0xff]
    %v5967 = vld [vmem:[#allocation25 + $0x1b0] sm:$0xff]
    %v5968 = vld [vmem:[#allocation25 + $0x1b8] sm:$0xff]
    %v5969 = vld [vmem:[#allocation25 + $0x1c0] sm:$0xff]
    %v5970 = vld [vmem:[#allocation25 + $0x1c8] sm:$0xff]
    %v5971 = vld [vmem:[#allocation25 + $0x1d0] sm:$0xff]
    %v5972 = vld [vmem:[#allocation25 + $0x1d8] sm:$0xff]
    %v5973 = vld [vmem:[#allocation25 + $0x1e0] sm:$0xff]
    %v5974 = vld [vmem:[#allocation25 + $0x1e8] sm:$0xff]
    %v5975 = vld [vmem:[#allocation25 + $0x1f0] sm:$0xff]
    %v5976 = vld [vmem:[#allocation25 + $0x1f8] sm:$0xff]
    %v5977 = vld [vmem:[#allocation25 + $0x200] sm:$0xff]
    %v5978 = vld [vmem:[#allocation25 + $0x208] sm:$0xff]
    %v5979 = vld [vmem:[#allocation25 + $0x210] sm:$0xff]
    %v5980 = vld [vmem:[#allocation25 + $0x218] sm:$0xff]
    %v5981 = vld [vmem:[#allocation25 + $0x220] sm:$0xff]
    %v5982 = vld [vmem:[#allocation25 + $0x228] sm:$0xff]
    %v5983 = vld [vmem:[#allocation25 + $0x230] sm:$0xff]
    %v5984 = vld [vmem:[#allocation25 + $0x238] sm:$0xff]
    %v5985 = vld [vmem:[#allocation25 + $0x240] sm:$0xff]
    %v5986 = vld [vmem:[#allocation25 + $0x248] sm:$0xff]
    %v5987 = vld [vmem:[#allocation25 + $0x250] sm:$0xff]
    %v5988 = vld [vmem:[#allocation25 + $0x258] sm:$0xff]
    %v5989 = vld [vmem:[#allocation25 + $0x260] sm:$0xff]
    %v5990 = vld [vmem:[#allocation25 + $0x268] sm:$0xff]
    %v5991 = vld [vmem:[#allocation25 + $0x270] sm:$0xff]
    %v5992 = vld [vmem:[#allocation25 + $0x278] sm:$0xff]
    %v5993 = vld [vmem:[#allocation25 + $0x280] sm:$0xff]
    %v5994 = vld [vmem:[#allocation25 + $0x288] sm:$0xff]
    %v5995 = vld [vmem:[#allocation25 + $0x290] sm:$0xff]
    %v5996 = vld [vmem:[#allocation25 + $0x298] sm:$0xff]
    %v5997 = vld [vmem:[#allocation25 + $0x2a0] sm:$0xff]
    %v5998 = vld [vmem:[#allocation25 + $0x2a8] sm:$0xff]
    %v5999 = vld [vmem:[#allocation25 + $0x2b0] sm:$0xff]
    %v6000 = vld [vmem:[#allocation25 + $0x2b8] sm:$0xff]
    %v6001 = vld [vmem:[#allocation25 + $0x2c0] sm:$0xff]
    %v6002 = vld [vmem:[#allocation25 + $0x2c8] sm:$0xff]
    %v6003 = vld [vmem:[#allocation25 + $0x2d0] sm:$0xff]
    %v6004 = vld [vmem:[#allocation25 + $0x2d8] sm:$0xff]
    %v6005 = vld [vmem:[#allocation25 + $0x2e0] sm:$0xff]
    %v6006 = vld [vmem:[#allocation25 + $0x2e8] sm:$0xff]
    %v6007 = vld [vmem:[#allocation25 + $0x2f0] sm:$0xff]
    %v6008 = vld [vmem:[#allocation25 + $0x2f8] sm:$0xff]
    %v6009 = vld [vmem:[#allocation25 + $0x300] sm:$0xff]
    %v6010 = vld [vmem:[#allocation25 + $0x308] sm:$0xff]
    %v6011 = vld [vmem:[#allocation25 + $0x310] sm:$0xff]
    %v6012 = vld [vmem:[#allocation25 + $0x318] sm:$0xff]
    %v6013 = vld [vmem:[#allocation25 + $0x320] sm:$0xff]
    %v6014 = vld [vmem:[#allocation25 + $0x328] sm:$0xff]
    %v6015 = vld [vmem:[#allocation25 + $0x330] sm:$0xff]
    %v6016 = vld [vmem:[#allocation25 + $0x338] sm:$0xff]
    %v6017 = vld [vmem:[#allocation25 + $0x340] sm:$0xff]
    %v6018 = vld [vmem:[#allocation25 + $0x348] sm:$0xff]
    %v6019 = vld [vmem:[#allocation25 + $0x350] sm:$0xff]
    %v6020 = vld [vmem:[#allocation25 + $0x358] sm:$0xff]
    %v6021 = vld [vmem:[#allocation25 + $0x360] sm:$0xff]
    %v6022 = vld [vmem:[#allocation25 + $0x368] sm:$0xff]
    %v6023 = vld [vmem:[#allocation25 + $0x370] sm:$0xff]
    %v6024 = vld [vmem:[#allocation25 + $0x378] sm:$0xff]
    %v6025 = vld [vmem:[#allocation25 + $0x380] sm:$0xff]
    %v6026 = vld [vmem:[#allocation25 + $0x388] sm:$0xff]
    %v6027 = vld [vmem:[#allocation25 + $0x390] sm:$0xff]
    %v6028 = vld [vmem:[#allocation25 + $0x398] sm:$0xff]
    %v6029 = vld [vmem:[#allocation25 + $0x3a0] sm:$0xff]
    %v6030 = vld [vmem:[#allocation25 + $0x3a8] sm:$0xff]
    %v6031 = vld [vmem:[#allocation25 + $0x3b0] sm:$0xff]
    %v6032 = vld [vmem:[#allocation25 + $0x3b8] sm:$0xff]
    %v6033 = vld [vmem:[#allocation25 + $0x3c0] sm:$0xff]
    %v6034 = vld [vmem:[#allocation25 + $0x3c8] sm:$0xff]
    %v6035 = vld [vmem:[#allocation25 + $0x3d0] sm:$0xff]
    %v6036 = vld [vmem:[#allocation25 + $0x3d8] sm:$0xff]
    %v6037 = vld [vmem:[#allocation25 + $0x3e0] sm:$0xff]
    %v6038 = vld [vmem:[#allocation25 + $0x3e8] sm:$0xff]
    %v6039 = vld [vmem:[#allocation25 + $0x3f0] sm:$0xff]
    %v6040 = vld [vmem:[#allocation25 + $0x3f8] sm:$0xff]
    %v6041 = vld [vmem:[#allocation25 + $0x400] sm:$0xff]
    %v6042 = vld [vmem:[#allocation25 + $0x408] sm:$0xff]
    %v6043 = vld [vmem:[#allocation25 + $0x410] sm:$0xff]
    %v6044 = vld [vmem:[#allocation25 + $0x418] sm:$0xff]
    %v6045 = vld [vmem:[#allocation25 + $0x420] sm:$0xff]
    %v6046 = vld [vmem:[#allocation25 + $0x428] sm:$0xff]
    %v6047 = vld [vmem:[#allocation25 + $0x430] sm:$0xff]
    %v6048 = vld [vmem:[#allocation25 + $0x438] sm:$0xff]
    %v6049 = vld [vmem:[#allocation25 + $0x440] sm:$0xff]
    %v6050 = vld [vmem:[#allocation25 + $0x448] sm:$0xff]
    %v6051 = vld [vmem:[#allocation25 + $0x450] sm:$0xff]
    %v6052 = vld [vmem:[#allocation25 + $0x458] sm:$0xff]
    %v6053 = vld [vmem:[#allocation25 + $0x460] sm:$0xff]
    %v6054 = vld [vmem:[#allocation25 + $0x468] sm:$0xff]
    %v6055 = vld [vmem:[#allocation25 + $0x470] sm:$0xff]
    %v6056 = vld [vmem:[#allocation25 + $0x478] sm:$0xff]
    %v6057 = vld [vmem:[#allocation25 + $0x480] sm:$0xf]
    %v6058 = vld [vmem:[#allocation25 + $0x488] sm:$0xf]
    %v6059 = vld [vmem:[#allocation27] sm:$0x3]
    %v6061 = vlaneseq
    %v6062 = vshrl.u32 %v6061, 7
    %v6063 = vsub.s32 0, %v6062
    %v6064 = vrot.slane %v6059, %v6063
    %v6065 = vlaneseq
    %v6066 = vshrl.u32 %v6065, 7
    %v6067 = vsub.s32 1, %v6066
    %v6068 = vrot.slane %v6059, %v6067
    %v6073 = vcombine.high %v5911, %v5911
    %v6075 = vunpack.c.l.s4 1983009808
    %v6076 = vunpack.c.0.s8 %v6075
    %v6077 = vlaneseq
    %v6078 = vshrl.u32 %v6077, 7
    %v6079 = vsub.s32 %v6076, %v6078
    %v6080 = vrot.slane %v5911, %v6079
    %v6082 = vunpack.c.l.s4 1983009808
    %v6083 = vunpack.c.0.s8 %v6082
    %v6084 = vlaneseq
    %v6085 = vshrl.u32 %v6084, 7
    %v6086 = vsub.s32 %v6083, %v6085
    %v6087 = vrot.slane %v6073, %v6086
    %v6088 = vcombine.high %v6080, %v6080
    %v6089 = vcombine.high %v6087, %v6087
    %v6091 = vunpack.c.l.s4 1983009808
    %v6092 = vunpack.c.0.s8 %v6091
    %v6093 = vlaneseq
    %v6094 = vshrl.u32 %v6093, 7
    %v6095 = vsub.s32 %v6092, %v6094
    %v6096 = vrot.slane %v5912, %v6095
    %vm6101 = vcmask 556032
    %v6102 = vsel %vm6101, %v6096, 0
    %v6105 = vsel %vm1590, %v6057, 0
    %v6108 = vsel %vm1590, %v6058, 0
    %6110 = vmatprep.subr.mxu0 %v5944
    %6111 = vmatpush1.msra.mxu0 %v5943
    %6112 = vmatprep.subr.mxu0 %v5942
    %6113 = vmatpush1.msra.mxu0 %v5941
    %6114 = vmatprep.subr.mxu0 %v5940
    %6115 = vmatpush1.msra.mxu0 %v5939
    %6116 = vmatprep.subr.mxu0 %v5938
    %6117 = vmatpush1.msra.mxu0 %v5937
    %6118 = vmatprep.subr.mxu0 %v5936
    %6119 = vmatpush1.msra.mxu0 %v5935
    %6120 = vmatprep.subr.mxu0 %v5934
    %6121 = vmatpush1.msra.mxu0 %v5933
    %6122 = vmatprep.subr.mxu0 %v5932
    %6123 = vmatpush1.msra.mxu0 %v5931
    %6124 = vmatprep.subr.mxu0 %v5930
    %6125 = vmatpush1.msra.mxu0 %v5929
    %6126 = vmatprep.subr.mxu0 %v5928
    %6127 = vmatpush1.msra.mxu0 %v5927
    %6128 = vmatprep.subr.mxu0 %v5926
    %6129 = vmatpush1.msra.mxu0 %v5925
    %6130 = vmatprep.subr.mxu0 %v5924
    %6131 = vmatpush1.msra.mxu0 %v5923
    %6132 = vmatprep.subr.mxu0 %v5922
    %6133 = vmatpush1.msra.mxu0 %v5921
    %6134 = vmatprep.subr.mxu0 %v5920
    %6135 = vmatpush1.msra.mxu0 %v5919
    %6136 = vmatprep.subr.mxu0 %v5918
    %6137 = vmatpush1.msra.mxu0 %v5917
    %6138 = vmatprep.subr.mxu0 %v5916
    %6139 = vmatpush1.msra.mxu0 %v5915
    %6140 = vmatprep.subr.mxu0 %v5914
    %6141 = vmatpush1.msra.mxu0 %v5913
    %6142 = vmatprep.subr.mxu0 %v5976
    %6143 = vmatpush2.msra.mxu0 %v5975
    %6144 = vmatprep.subr.mxu0 %v5974
    %6145 = vmatpush2.msra.mxu0 %v5973
    %6146 = vmatprep.subr.mxu0 %v5972
    %6147 = vmatpush2.msra.mxu0 %v5971
    %6148 = vmatprep.subr.mxu0 %v5970
    %6149 = vmatpush2.msra.mxu0 %v5969
    %6150 = vmatprep.subr.mxu0 %v5968
    %6151 = vmatpush2.msra.mxu0 %v5967
    %6152 = vmatprep.subr.mxu0 %v5966
    %6153 = vmatpush2.msra.mxu0 %v5965
    %6154 = vmatprep.subr.mxu0 %v5964
    %6155 = vmatpush2.msra.mxu0 %v5963
    %6156 = vmatprep.subr.mxu0 %v5962
    %6157 = vmatpush2.msra.mxu0 %v5961
    %6158 = vmatprep.subr.mxu0 %v5960
    %6159 = vmatpush2.msra.mxu0 %v5959
    %6160 = vmatprep.subr.mxu0 %v5958
    %6161 = vmatpush2.msra.mxu0 %v5957
    %6162 = vmatprep.subr.mxu0 %v5956
    %6163 = vmatpush2.msra.mxu0 %v5955
    %6164 = vmatprep.subr.mxu0 %v5954
    %6165 = vmatpush2.msra.mxu0 %v5953
    %6166 = vmatprep.subr.mxu0 %v5952
    %6167 = vmatpush2.msra.mxu0 %v5951
    %6168 = vmatprep.subr.mxu0 %v5950
    %6169 = vmatpush2.msra.mxu0 %v5949
    %6170 = vmatprep.subr.mxu0 %v5948
    %6171 = vmatpush2.msra.mxu0 %v5947
    %6172 = vmatprep.subr.mxu0 %v5946
    %6173 = vmatpush2.msra.mxu0 %v5945
    %6174 = vmatprep.mubr.f32.mxu0 %v6088
    %6175 = vmatmul.mubr.f32.gmra.mxu0 %v6080
    %v6176 = vpop.f32.mrf.mxu0
    %v6177 = vadd.f32 %v6064, %v6176
    %v6178 = vpop.f32.mrf.mxu0
    %v6179 = vadd.f32 %v6068, %v6178
    %6180 = vdwg.mxu0
    %6181 = vmatprep.subr.mxu0 %v6008
    %6182 = vmatpush1.msra.mxu0 %v6007
    %6183 = vmatprep.subr.mxu0 %v6006
    %6184 = vmatpush1.msra.mxu0 %v6005
    %6185 = vmatprep.subr.mxu0 %v6004
    %6186 = vmatpush1.msra.mxu0 %v6003
    %6187 = vmatprep.subr.mxu0 %v6002
    %6188 = vmatpush1.msra.mxu0 %v6001
    %6189 = vmatprep.subr.mxu0 %v6000
    %6190 = vmatpush1.msra.mxu0 %v5999
    %6191 = vmatprep.subr.mxu0 %v5998
    %6192 = vmatpush1.msra.mxu0 %v5997
    %6193 = vmatprep.subr.mxu0 %v5996
    %6194 = vmatpush1.msra.mxu0 %v5995
    %6195 = vmatprep.subr.mxu0 %v5994
    %6196 = vmatpush1.msra.mxu0 %v5993
    %6197 = vmatprep.subr.mxu0 %v5992
    %6198 = vmatpush1.msra.mxu0 %v5991
    %6199 = vmatprep.subr.mxu0 %v5990
    %6200 = vmatpush1.msra.mxu0 %v5989
    %6201 = vmatprep.subr.mxu0 %v5988
    %6202 = vmatpush1.msra.mxu0 %v5987
    %6203 = vmatprep.subr.mxu0 %v5986
    %6204 = vmatpush1.msra.mxu0 %v5985
    %6205 = vmatprep.subr.mxu0 %v5984
    %6206 = vmatpush1.msra.mxu0 %v5983
    %6207 = vmatprep.subr.mxu0 %v5982
    %6208 = vmatpush1.msra.mxu0 %v5981
    %6209 = vmatprep.subr.mxu0 %v5980
    %6210 = vmatpush1.msra.mxu0 %v5979
    %6211 = vmatprep.subr.mxu0 %v5978
    %6212 = vmatpush1.msra.mxu0 %v5977
    %6213 = vmatprep.subr.mxu0 %v6040
    %6214 = vmatpush2.msra.mxu0 %v6039
    %6215 = vmatprep.subr.mxu0 %v6038
    %6216 = vmatpush2.msra.mxu0 %v6037
    %6217 = vmatprep.subr.mxu0 %v6036
    %6218 = vmatpush2.msra.mxu0 %v6035
    %6219 = vmatprep.subr.mxu0 %v6034
    %6220 = vmatpush2.msra.mxu0 %v6033
    %6221 = vmatprep.subr.mxu0 %v6032
    %6222 = vmatpush2.msra.mxu0 %v6031
    %6223 = vmatprep.subr.mxu0 %v6030
    %6224 = vmatpush2.msra.mxu0 %v6029
    %6225 = vmatprep.subr.mxu0 %v6028
    %6226 = vmatpush2.msra.mxu0 %v6027
    %6227 = vmatprep.subr.mxu0 %v6026
    %6228 = vmatpush2.msra.mxu0 %v6025
    %6229 = vmatprep.subr.mxu0 %v6024
    %6230 = vmatpush2.msra.mxu0 %v6023
    %6231 = vmatprep.subr.mxu0 %v6022
    %6232 = vmatpush2.msra.mxu0 %v6021
    %6233 = vmatprep.subr.mxu0 %v6020
    %6234 = vmatpush2.msra.mxu0 %v6019
    %6235 = vmatprep.subr.mxu0 %v6018
    %6236 = vmatpush2.msra.mxu0 %v6017
    %6237 = vmatprep.subr.mxu0 %v6016
    %6238 = vmatpush2.msra.mxu0 %v6015
    %6239 = vmatprep.subr.mxu0 %v6014
    %6240 = vmatpush2.msra.mxu0 %v6013
    %6241 = vmatprep.subr.mxu0 %v6012
    %6242 = vmatpush2.msra.mxu0 %v6011
    %6243 = vmatprep.subr.mxu0 %v6010
    %6244 = vmatpush2.msra.mxu0 %v6009
    %6245 = vmatprep.mubr.f32.mxu0 %v6089
    %6246 = vmatmul.mubr.f32.gmra.mxu0 %v6087
    %v6247 = vpop.f32.mrf.mxu0
    %v6248 = vadd.f32 %v6177, %v6247
    %v6249 = vpop.f32.mrf.mxu0
    %v6250 = vadd.f32 %v6179, %v6249
    %6251 = vdwg.mxu0
    %6252 = vmatprep.subr.mxu0 0.0
    %6253 = vmatpush1.msra.mxu0 0.0
    %6254 = vmatprep.subr.mxu0 0.0
    %6255 = vmatpush1.msra.mxu0 0.0
    %6256 = vmatprep.subr.mxu0 0.0
    %6257 = vmatpush1.msra.mxu0 0.0
    %6258 = vmatprep.subr.mxu0 0.0
    %6259 = vmatpush1.msra.mxu0 0.0
    %6260 = vmatprep.subr.mxu0 0.0
    %6261 = vmatpush1.msra.mxu0 0.0
    %6262 = vmatprep.subr.mxu0 0.0
    %6263 = vmatpush1.msra.mxu0 0.0
    %6264 = vmatprep.subr.mxu0 0.0
    %6265 = vmatpush1.msra.mxu0 0.0
    %6266 = vmatprep.subr.mxu0 %v6108
    %6267 = vmatpush1.msra.mxu0 %v6105
    %6268 = vmatprep.subr.mxu0 %v6056
    %6269 = vmatpush1.msra.mxu0 %v6055
    %6270 = vmatprep.subr.mxu0 %v6054
    %6271 = vmatpush1.msra.mxu0 %v6053
    %6272 = vmatprep.subr.mxu0 %v6052
    %6273 = vmatpush1.msra.mxu0 %v6051
    %6274 = vmatprep.subr.mxu0 %v6050
    %6275 = vmatpush1.msra.mxu0 %v6049
    %6276 = vmatprep.subr.mxu0 %v6048
    %6277 = vmatpush1.msra.mxu0 %v6047
    %6278 = vmatprep.subr.mxu0 %v6046
    %6279 = vmatpush1.msra.mxu0 %v6045
    %6280 = vmatprep.subr.mxu0 %v6044
    %6281 = vmatpush1.msra.mxu0 %v6043
    %6282 = vmatprep.subr.mxu0 %v6042
    %6283 = vmatpush1.msra.mxu0 %v6041
    %6284 = vmatprep.subr.mxu0 0.0
    %6285 = vmatpush2.msra.mxu0 0.0
    %6286 = vmatprep.subr.mxu0 0.0
    %6287 = vmatpush2.msra.mxu0 0.0
    %6288 = vmatprep.subr.mxu0 0.0
    %6289 = vmatpush2.msra.mxu0 0.0
    %6290 = vmatprep.subr.mxu0 0.0
    %6291 = vmatpush2.msra.mxu0 0.0
    %6292 = vmatprep.subr.mxu0 0.0
    %6293 = vmatpush2.msra.mxu0 0.0
    %6294 = vmatprep.subr.mxu0 0.0
    %6295 = vmatpush2.msra.mxu0 0.0
    %6296 = vmatprep.subr.mxu0 0.0
    %6297 = vmatpush2.msra.mxu0 0.0
    %6298 = vmatprep.subr.mxu0 0.0
    %6299 = vmatpush2.msra.mxu0 0.0
    %6300 = vmatprep.subr.mxu0 0.0
    %6301 = vmatpush2.msra.mxu0 0.0
    %6302 = vmatprep.subr.mxu0 0.0
    %6303 = vmatpush2.msra.mxu0 0.0
    %6304 = vmatprep.subr.mxu0 0.0
    %6305 = vmatpush2.msra.mxu0 0.0
    %6306 = vmatprep.subr.mxu0 0.0
    %6307 = vmatpush2.msra.mxu0 0.0
    %6308 = vmatprep.subr.mxu0 0.0
    %6309 = vmatpush2.msra.mxu0 0.0
    %6310 = vmatprep.subr.mxu0 0.0
    %6311 = vmatpush2.msra.mxu0 0.0
    %6312 = vmatprep.subr.mxu0 0.0
    %6313 = vmatpush2.msra.mxu0 0.0
    %6314 = vmatprep.subr.mxu0 0.0
    %6315 = vmatpush2.msra.mxu0 0.0
    %6316 = vmatprep.mubr.f32.mxu0 0.0
    %6317 = vmatmul.mubr.f32.gmra.mxu0 %v6102
    %v6318 = vpop.f32.mrf.mxu0
    %v6319 = vadd.f32 %v6248, %v6318
    %v6320 = vpop.f32.mrf.mxu0
    %v6321 = vadd.f32 %v6250, %v6320
    %6322 = vdwg.mxu0
    %v6323 = vmax.f32 %v6319, 0.0
    %v6324 = vmax.f32 %v6321, 0.0
    %v6325 = vsel %vm3716, %v6323, 0.0
    %v6326 = vrot.slane %v6325, 4
    %v6327 = vadd.f32 %v6325, %v6326
    %v6328 = vrot.slane %v6327, 2
    %v6329 = vadd.f32 %v6327, %v6328
    %v6330 = vrot.slane %v6329, 1
    %v6331 = vadd.f32 %v6329, %v6330
    %vm6332 = vcmask 910336
    %v6333 = vsel %vm6332, %v6324, 0.0
    %v6334 = vrot.slane %v6333, 4
    %v6335 = vadd.f32 %v6333, %v6334
    %v6336 = vrot.slane %v6335, 2
    %v6337 = vadd.f32 %v6335, %v6336
    %v6338 = vrot.slane %v6337, 1
    %v6339 = vadd.f32 %v6337, %v6338
    %v6340 = vmul.f32 %v6331, 0.5
    %v6341 = vmul.f32 %v6339, 0.5
    %v6342 = vmul.f32 %v6323, %v6323
    %v6343 = vmul.f32 %v6324, %v6324
    %v6344 = vsel %vm3716, %v6342, 0.0
    %v6345 = vrot.slane %v6344, 4
    %v6346 = vadd.f32 %v6344, %v6345
    %v6347 = vrot.slane %v6346, 2
    %v6348 = vadd.f32 %v6346, %v6347
    %v6349 = vrot.slane %v6348, 1
    %v6350 = vadd.f32 %v6348, %v6349
    %v6351 = vsel %vm6332, %v6343, 0.0
    %v6352 = vrot.slane %v6351, 4
    %v6353 = vadd.f32 %v6351, %v6352
    %v6354 = vrot.slane %v6353, 2
    %v6355 = vadd.f32 %v6353, %v6354
    %v6356 = vrot.slane %v6355, 1
    %v6357 = vadd.f32 %v6355, %v6356
    %v6358 = vmul.f32 %v6350, 0.5
    %v6359 = vmul.f32 %v6357, 0.5
    %v6360 = vsub.f32 %v6323, %v6340
    %v6361 = vsub.f32 %v6324, %v6341
    %v6362 = vmul.f32 %v6340, %v6340
    %v6363 = vmul.f32 %v6341, %v6341
    %v6364 = vsub.f32 %v6358, %v6362
    %v6365 = vsub.f32 %v6359, %v6363
    %v6366 = vadd.f32 %v6364, 1e-05
    %v6367 = vadd.f32 %v6365, 1e-05
    %v6368 = vrsqrt.pop %v6366
    %v6369 = vrsqrt.pop %v6367
    %v6370 = vmul.f32 %v6360, %v6368
    %v6371 = vmul.f32 %v6361, %v6369
    %v6372 = vld [vmem:[%s69] sm:$0xff]
    %v6373 = vld [vmem:[%s69 + $0x8] sm:$0xff]
    %v6374 = vld [vmem:[%s69 + $0x10] sm:$0xff]
    %v6375 = vld [vmem:[%s69 + $0x18] sm:$0xff]
    %v6376 = vld [vmem:[%s69 + $0x20] sm:$0xff]
    %v6377 = vld [vmem:[%s69 + $0x28] sm:$0xff]
    %v6378 = vld [vmem:[%s69 + $0x30] sm:$0xff]
    %v6379 = vld [vmem:[%s69 + $0x38] sm:$0xff]
    %v6380 = vld [vmem:[%s69 + $0x40] sm:$0xff]
    %v6381 = vld [vmem:[%s69 + $0x48] sm:$0xff]
    %v6382 = vld [vmem:[%s69 + $0x50] sm:$0xff]
    %v6383 = vld [vmem:[%s69 + $0x58] sm:$0xff]
    %v6384 = vld [vmem:[%s69 + $0x60] sm:$0xff]
    %v6385 = vld [vmem:[%s69 + $0x68] sm:$0xff]
    %v6386 = vld [vmem:[%s69 + $0x70] sm:$0xff]
    %v6387 = vld [vmem:[%s69 + $0x78] sm:$0xff]
    %v6388 = vld [vmem:[%s69 + $0x80] sm:$0xff]
    %v6389 = vld [vmem:[%s69 + $0x88] sm:$0xff]
    %v6390 = vld [vmem:[%s69 + $0x90] sm:$0xff]
    %v6391 = vld [vmem:[%s69 + $0x98] sm:$0xff]
    %v6392 = vld [vmem:[%s69 + $0xa0] sm:$0xff]
    %v6393 = vld [vmem:[%s69 + $0xa8] sm:$0xff]
    %v6394 = vld [vmem:[%s69 + $0xb0] sm:$0xff]
    %v6395 = vld [vmem:[%s69 + $0xb8] sm:$0xff]
    %v6396 = vld [vmem:[%s69 + $0xc0] sm:$0xff]
    %v6397 = vld [vmem:[%s69 + $0xc8] sm:$0xff]
    %v6398 = vld [vmem:[%s69 + $0xd0] sm:$0xff]
    %v6399 = vld [vmem:[%s69 + $0xd8] sm:$0xff]
    %v6400 = vld [vmem:[%s69 + $0xe0] sm:$0xff]
    %v6401 = vld [vmem:[%s69 + $0xe8] sm:$0xff]
    %v6402 = vld [vmem:[#allocation28] sm:$0x1]
    %v6404 = vlaneseq
    %v6405 = vshrl.u32 %v6404, 7
    %v6406 = vsub.s32 0, %v6405
    %v6407 = vrot.slane %v6402, %v6406
    %v6410 = vsel %vm5124, %v6371, 0
    %6412 = vmatprep.subr.mxu0 0.0
    %6413 = vmatpush1.msra.mxu0 %v6387
    %6414 = vmatprep.subr.mxu0 0.0
    %6415 = vmatpush1.msra.mxu0 %v6386
    %6416 = vmatprep.subr.mxu0 0.0
    %6417 = vmatpush1.msra.mxu0 %v6385
    %6418 = vmatprep.subr.mxu0 0.0
    %6419 = vmatpush1.msra.mxu0 %v6384
    %6420 = vmatprep.subr.mxu0 0.0
    %6421 = vmatpush1.msra.mxu0 %v6383
    %6422 = vmatprep.subr.mxu0 0.0
    %6423 = vmatpush1.msra.mxu0 %v6382
    %6424 = vmatprep.subr.mxu0 0.0
    %6425 = vmatpush1.msra.mxu0 %v6381
    %6426 = vmatprep.subr.mxu0 0.0
    %6427 = vmatpush1.msra.mxu0 %v6380
    %6428 = vmatprep.subr.mxu0 0.0
    %6429 = vmatpush1.msra.mxu0 %v6379
    %6430 = vmatprep.subr.mxu0 0.0
    %6431 = vmatpush1.msra.mxu0 %v6378
    %6432 = vmatprep.subr.mxu0 0.0
    %6433 = vmatpush1.msra.mxu0 %v6377
    %6434 = vmatprep.subr.mxu0 0.0
    %6435 = vmatpush1.msra.mxu0 %v6376
    %6436 = vmatprep.subr.mxu0 0.0
    %6437 = vmatpush1.msra.mxu0 %v6375
    %6438 = vmatprep.subr.mxu0 0.0
    %6439 = vmatpush1.msra.mxu0 %v6374
    %6440 = vmatprep.subr.mxu0 0.0
    %6441 = vmatpush1.msra.mxu0 %v6373
    %6442 = vmatprep.subr.mxu0 0.0
    %6443 = vmatpush1.msra.mxu0 %v6372
    %6444 = vmatprep.subr.mxu0 0.0
    %6445 = vmatpush2.msra.mxu0 0.0
    %6446 = vmatprep.subr.mxu0 0.0
    %6447 = vmatpush2.msra.mxu0 0.0
    %6448 = vmatprep.subr.mxu0 0.0
    %6449 = vmatpush2.msra.mxu0 %v6401
    %6450 = vmatprep.subr.mxu0 0.0
    %6451 = vmatpush2.msra.mxu0 %v6400
    %6452 = vmatprep.subr.mxu0 0.0
    %6453 = vmatpush2.msra.mxu0 %v6399
    %6454 = vmatprep.subr.mxu0 0.0
    %6455 = vmatpush2.msra.mxu0 %v6398
    %6456 = vmatprep.subr.mxu0 0.0
    %6457 = vmatpush2.msra.mxu0 %v6397
    %6458 = vmatprep.subr.mxu0 0.0
    %6459 = vmatpush2.msra.mxu0 %v6396
    %6460 = vmatprep.subr.mxu0 0.0
    %6461 = vmatpush2.msra.mxu0 %v6395
    %6462 = vmatprep.subr.mxu0 0.0
    %6463 = vmatpush2.msra.mxu0 %v6394
    %6464 = vmatprep.subr.mxu0 0.0
    %6465 = vmatpush2.msra.mxu0 %v6393
    %6466 = vmatprep.subr.mxu0 0.0
    %6467 = vmatpush2.msra.mxu0 %v6392
    %6468 = vmatprep.subr.mxu0 0.0
    %6469 = vmatpush2.msra.mxu0 %v6391
    %6470 = vmatprep.subr.mxu0 0.0
    %6471 = vmatpush2.msra.mxu0 %v6390
    %6472 = vmatprep.subr.mxu0 0.0
    %6473 = vmatpush2.msra.mxu0 %v6389
    %6474 = vmatprep.subr.mxu0 0.0
    %6475 = vmatpush2.msra.mxu0 %v6388
    %6476 = vmatprep.mubr.f32.mxu0 %v6410
    %6477 = vmatmul.mubr.f32.gmra.mxu0 %v6370
    %v6478 = vpop.f32.mrf.mxu0
    %v6479 = vadd.f32 %v6407, %v6478
    %v6480 = vpop.f32.mrf.mxu0
    %6481 = vdwg.mxu0
    %v6482 = vmax.f32 %v6479, 0.0
    %vm6483 = vcmask 484352
    %v6484 = vsel %vm6483, %v6482, 0.0
    %v6485 = vrot.slane %v6484, 4
    %v6486 = vadd.f32 %v6484, %v6485
    %v6487 = vrot.slane %v6486, 2
    %v6488 = vadd.f32 %v6486, %v6487
    %v6489 = vrot.slane %v6488, 1
    %v6490 = vadd.f32 %v6488, %v6489
    %v6491 = vmul.f32 %v6490, 0.5
    %v6492 = vmul.f32 %v6482, %v6482
    %v6493 = vsel %vm6483, %v6492, 0.0
    %v6494 = vrot.slane %v6493, 4
    %v6495 = vadd.f32 %v6493, %v6494
    %v6496 = vrot.slane %v6495, 2
    %v6497 = vadd.f32 %v6495, %v6496
    %v6498 = vrot.slane %v6497, 1
    %v6499 = vadd.f32 %v6497, %v6498
    %v6500 = vmul.f32 %v6499, 0.5
    %v6501 = vsub.f32 %v6482, %v6491
    %v6502 = vmul.f32 %v6491, %v6491
    %v6503 = vsub.f32 %v6500, %v6502
    %v6504 = vadd.f32 %v6503, 1e-05
    %v6505 = vrsqrt.pop %v6504
    %v6506 = vmul.f32 %v6501, %v6505
    %v6507 = vld [vmem:[%s73] sm:$0xff]
    %v6508 = vld [vmem:[%s73 + $0x8] sm:$0xff]
    %v6509 = vld [vmem:[%s73 + $0x10] sm:$0xff]
    %v6510 = vld [vmem:[%s73 + $0x18] sm:$0xff]
    %v6511 = vld [vmem:[%s73 + $0x20] sm:$0xff]
    %v6512 = vld [vmem:[%s73 + $0x28] sm:$0xff]
    %v6513 = vld [vmem:[%s73 + $0x30] sm:$0xff]
    %v6514 = vld [vmem:[%s73 + $0x38] sm:$0xf]
    %v6515 = vld [vmem:[#allocation4] sm:$0x1]
    %v6517 = vlaneseq
    %v6518 = vshrl.u32 %v6517, 7
    %v6519 = vsub.s32 0, %v6518
    %v6520 = vrot.slane %v6515, %v6519
    %vm6522 = vcmask 490496
    %v6524 = vsel %vm6522, %v6506, 0
    %v6527 = vsel %vm1590, %v6514, 0
    %6529 = vmatprep.subr.mxu0 0.0
    %6530 = vmatpush1.msra.mxu0 0.0
    %6531 = vmatprep.subr.mxu0 0.0
    %6532 = vmatpush1.msra.mxu0 0.0
    %6533 = vmatprep.subr.mxu0 0.0
    %6534 = vmatpush1.msra.mxu0 0.0
    %6535 = vmatprep.subr.mxu0 0.0
    %6536 = vmatpush1.msra.mxu0 0.0
    %6537 = vmatprep.subr.mxu0 0.0
    %6538 = vmatpush1.msra.mxu0 0.0
    %6539 = vmatprep.subr.mxu0 0.0
    %6540 = vmatpush1.msra.mxu0 0.0
    %6541 = vmatprep.subr.mxu0 0.0
    %6542 = vmatpush1.msra.mxu0 0.0
    %6543 = vmatprep.subr.mxu0 0.0
    %6544 = vmatpush1.msra.mxu0 0.0
    %6545 = vmatprep.subr.mxu0 0.0
    %6546 = vmatpush1.msra.mxu0 %v6527
    %6547 = vmatprep.subr.mxu0 0.0
    %6548 = vmatpush1.msra.mxu0 %v6513
    %6549 = vmatprep.subr.mxu0 0.0
    %6550 = vmatpush1.msra.mxu0 %v6512
    %6551 = vmatprep.subr.mxu0 0.0
    %6552 = vmatpush1.msra.mxu0 %v6511
    %6553 = vmatprep.subr.mxu0 0.0
    %6554 = vmatpush1.msra.mxu0 %v6510
    %6555 = vmatprep.subr.mxu0 0.0
    %6556 = vmatpush1.msra.mxu0 %v6509
    %6557 = vmatprep.subr.mxu0 0.0
    %6558 = vmatpush1.msra.mxu0 %v6508
    %6559 = vmatprep.subr.mxu0 0.0
    %6560 = vmatpush1.msra.mxu0 %v6507
    %6561 = vmatprep.subr.mxu0 0.0
    %6562 = vmatpush2.msra.mxu0 0.0
    %6563 = vmatprep.subr.mxu0 0.0
    %6564 = vmatpush2.msra.mxu0 0.0
    %6565 = vmatprep.subr.mxu0 0.0
    %6566 = vmatpush2.msra.mxu0 0.0
    %6567 = vmatprep.subr.mxu0 0.0
    %6568 = vmatpush2.msra.mxu0 0.0
    %6569 = vmatprep.subr.mxu0 0.0
    %6570 = vmatpush2.msra.mxu0 0.0
    %6571 = vmatprep.subr.mxu0 0.0
    %6572 = vmatpush2.msra.mxu0 0.0
    %6573 = vmatprep.subr.mxu0 0.0
    %6574 = vmatpush2.msra.mxu0 0.0
    %6575 = vmatprep.subr.mxu0 0.0
    %6576 = vmatpush2.msra.mxu0 0.0
    %6577 = vmatprep.subr.mxu0 0.0
    %6578 = vmatpush2.msra.mxu0 0.0
    %6579 = vmatprep.subr.mxu0 0.0
    %6580 = vmatpush2.msra.mxu0 0.0
    %6581 = vmatprep.subr.mxu0 0.0
    %6582 = vmatpush2.msra.mxu0 0.0
    %6583 = vmatprep.subr.mxu0 0.0
    %6584 = vmatpush2.msra.mxu0 0.0
    %6585 = vmatprep.subr.mxu0 0.0
    %6586 = vmatpush2.msra.mxu0 0.0
    %6587 = vmatprep.subr.mxu0 0.0
    %6588 = vmatpush2.msra.mxu0 0.0
    %6589 = vmatprep.subr.mxu0 0.0
    %6590 = vmatpush2.msra.mxu0 0.0
    %6591 = vmatprep.subr.mxu0 0.0
    %6592 = vmatpush2.msra.mxu0 0.0
    %6593 = vmatprep.mubr.f32.mxu0 0.0
    %6594 = vmatmul.mubr.f32.gmra.mxu0 %v6524
    %v6595 = vpop.f32.mrf.mxu0
    %v6596 = vadd.f32 %v6520, %v6595
    %v6597 = vpop.f32.mrf.mxu0
    %6598 = vdwg.mxu0
    %vm6599 = vcmask 1024
    %6600 = vst.msk [vmem:[%s77] sm:$0x3] %vm6599, %v6596
    // Predicated region
    $region218: #{soybean_forward.1} parent=1 // pred_check
      _
    $region219: #{soybean_forward.1} parent=1 // pred_check_branch
      %6602 = sbr.rel (0) target = $region221
    $region220: #{soybean_forward.1} parent=1 // pred_region
      _
    $region221: #{soybean_forward.1} parent=1 // pred_fallthru
      _
    // Predicated region
    $region222: #{soybean_forward.1} parent=1 // pred_check
      _
    $region223: #{soybean_forward.1} parent=1 // pred_check_branch
      %6604 = sbr.rel (0) target = $region225
    $region224: #{soybean_forward.1} parent=1 // pred_region
      _
    $region225: #{soybean_forward.1} parent=1 // pred_fallthru
      _
    %6605 = vsyncpa [#allocation6], 1
    %6606 = vsyncpa [#allocation8], 1
    %6607 = vsyncpa [#allocation11], 1
    %6608 = vsyncpa [#allocation14], 1
    %6609 = vsyncpa [#allocation17], 1
    %6610 = vsyncpa [#allocation20], 1
    %6611 = vsyncpa [#allocation23], 1
    %6612 = vsyncpa [#allocation26], 1
    %6613 = vsyncpa [#allocation29], 1

</llo_original>
